<compile_context>
chip_gen: v7x
topology: tpu7x:2x2x1
jax: 0.10.0
libtpu: 0.0.40
codegen_flags: <defaults>
</compile_context>

<pallas_src>
import functools

import jax
import jax.numpy as jnp
from jax.experimental import pallas as pl
from jax.experimental.pallas import tpu as pltpu

K = 5        # conv kernel size
PAD = 2      # "same" padding for k=5, stride=1
BN_EPS = 1e-5


# ---------------------------------------------------------------------------
# Kernel 1: fused Conv2d(k=5,s=1,p=2) + BatchNorm(+conv bias) + ReLU + MaxPool.
# One grid step per batch element.
# ---------------------------------------------------------------------------
def _conv_bn_relu_pool_kernel(x_ref, w_ref, scale_ref, shift_ref, o_ref,
                              xp_ref, col_ref, y_ref, *, H, W, Cin, Cout):
    # x_ref     : (1, H, W, Cin)        bf16 input tile (one batch element)
    # w_ref     : (K*K*Cin, Cout)       bf16 conv weights, rows in (kh, kw, ci) order
    # scale_ref : (1, Cout)             f32  gamma / sqrt(var + eps)
    # shift_ref : (1, Cout)             f32  beta + (conv_bias - mean) * scale
    # o_ref     : (1, H//2, W//2, Cout) bf16 output tile
    # xp_ref    : (H+4, W+4, Cin)       f32  VMEM scratch, zero-padded input
    # col_ref   : (H, W, K*K*Cin)       bf16 VMEM scratch, im2col matrix
    # y_ref     : (H, W, Cout)          f32  VMEM scratch, pre-pool activations

    # In-kernel halo: zero the padded scratch, copy the image into the interior.
    xp_ref[...] = jnp.zeros_like(xp_ref)
    xp_ref[pl.ds(PAD, H), pl.ds(PAD, W), :] = x_ref[0].astype(jnp.float32)

    # im2col: 25 shifted copies -> one (K*K*Cin)-deep contraction axis.
    for kh in range(K):
        for kw in range(K):
            j = (kh * K + kw) * Cin
            col_ref[:, :, pl.ds(j, Cin)] = (
                xp_ref[pl.ds(kh, H), pl.ds(kw, W), :].astype(jnp.bfloat16))

    # Single MXU matmul: (H, W, K*K*Cin) x (K*K*Cin, Cout) -> (H, W, Cout) f32.
    y = jax.lax.dot_general(
        col_ref[...], w_ref[...],
        dimension_numbers=(((2,), (0,)), ((), ())),
        preferred_element_type=jnp.float32)

    # BatchNorm (conv bias folded into shift) + ReLU, f32 epilogue.
    y_ref[...] = jnp.maximum(y * scale_ref[...] + shift_ref[...], 0.0)

    # 2x2 max-pool, stride 2 (strided reads of the f32 scratch).
    H2, W2 = H // 2, W // 2
    p00 = y_ref[pl.ds(0, H2, 2), pl.ds(0, W2, 2), :]
    p01 = y_ref[pl.ds(0, H2, 2), pl.ds(1, W2, 2), :]
    p10 = y_ref[pl.ds(1, H2, 2), pl.ds(0, W2, 2), :]
    p11 = y_ref[pl.ds(1, H2, 2), pl.ds(1, W2, 2), :]
    o_ref[0] = jnp.maximum(jnp.maximum(p00, p01),
                           jnp.maximum(p10, p11)).astype(o_ref.dtype)


def conv_bn_relu_pool(x_nhwc, w_mat, scale, shift):
    N, H, W, Cin = x_nhwc.shape
    KKCin, Cout = w_mat.shape
    assert KKCin == K * K * Cin
    assert H % 2 == 0 and W % 2 == 0, "H and W must be even for MaxPool(2,2)"
    H2, W2 = H // 2, W // 2

    kernel = functools.partial(_conv_bn_relu_pool_kernel,
                               H=H, W=W, Cin=Cin, Cout=Cout)
    return pl.pallas_call(
        kernel,
        out_shape=jax.ShapeDtypeStruct((N, H2, W2, Cout), jnp.bfloat16),
        grid_spec=pltpu.PrefetchScalarGridSpec(
            num_scalar_prefetch=0,
            grid=(N,),
            in_specs=[
                pl.BlockSpec((1, H, W, Cin), lambda b: (b, 0, 0, 0)),
                pl.BlockSpec((KKCin, Cout), lambda b: (0, 0)),
                pl.BlockSpec((1, Cout), lambda b: (0, 0)),
                pl.BlockSpec((1, Cout), lambda b: (0, 0)),
            ],
            out_specs=pl.BlockSpec((1, H2, W2, Cout), lambda b: (b, 0, 0, 0)),
            scratch_shapes=[
                pltpu.VMEM((H + 2 * PAD, W + 2 * PAD, Cin), jnp.float32),
                pltpu.VMEM((H, W, K * K * Cin), jnp.bfloat16),
                pltpu.VMEM((H, W, Cout), jnp.float32),
            ],
        ),
        compiler_params=pltpu.CompilerParams(dimension_semantics=("parallel",)),
    )(x_nhwc, w_mat,
      scale.reshape(1, Cout).astype(jnp.float32),
      shift.reshape(1, Cout).astype(jnp.float32))


# ---------------------------------------------------------------------------
# Kernel 2: Linear (fc1), feature axis tiled on the grid, f32 accumulator,
# output lanes padded to a multiple of 128 (sliced back in the wrapper).
# ---------------------------------------------------------------------------
def _fc_kernel(x_ref, w_ref, b_ref, o_ref, acc_ref):
    k = pl.program_id(0)

    @pl.when(k == 0)
    def _():
        acc_ref[...] = jnp.zeros_like(acc_ref)

    acc_ref[...] += jnp.dot(x_ref[...], w_ref[...],
                            preferred_element_type=jnp.float32)

    @pl.when(k == pl.num_programs(0) - 1)
    def _():
        o_ref[...] = acc_ref[...] + b_ref[...]


def linear(x, w, b):
    N, F = x.shape
    F2, CP = w.shape
    assert F == F2 and CP % 128 == 0
    tf = min(F, 2048)
    if F % tf != 0:          # fall back to a single feature block
        tf = F
    return pl.pallas_call(
        _fc_kernel,
        out_shape=jax.ShapeDtypeStruct((N, CP), jnp.float32),
        grid_spec=pltpu.PrefetchScalarGridSpec(
            num_scalar_prefetch=0,
            grid=(F // tf,),
            in_specs=[
                pl.BlockSpec((N, tf), lambda k: (0, k)),
                pl.BlockSpec((tf, CP), lambda k: (k, 0)),
                pl.BlockSpec((1, CP), lambda k: (0, 0)),
            ],
            out_specs=pl.BlockSpec((N, CP), lambda k: (0, 0)),
            scratch_shapes=[pltpu.VMEM((N, CP), jnp.float32)],
        ),
        compiler_params=pltpu.CompilerParams(dimension_semantics=("arbitrary",)),
    )(x, w, b.reshape(1, CP).astype(jnp.float32))


# ---------------------------------------------------------------------------
# Parameters (deterministic, synthetic) + forward pass
# ---------------------------------------------------------------------------
def _fold_bn(gamma, beta, mean, var, conv_bias):
    scale = gamma / jnp.sqrt(var + BN_EPS)
    shift = beta + (conv_bias - mean) * scale
    return scale, shift


def init_params(key, H, W, num_classes=2):
    c1_in, c1_out, c2_out = 1, 16, 32
    H4, W4 = H // 4, W // 4
    feat = c2_out * H4 * W4
    ks = jax.random.split(key, 14)

    w1 = 0.1 * jax.random.normal(ks[0], (K, K, c1_in, c1_out), jnp.float32)
    b1 = 0.1 * jax.random.normal(ks[1], (c1_out,), jnp.float32)
    g1 = 1.0 + 0.1 * jax.random.normal(ks[2], (c1_out,), jnp.float32)
    be1 = 0.1 * jax.random.normal(ks[3], (c1_out,), jnp.float32)
    m1 = 0.1 * jax.random.normal(ks[4], (c1_out,), jnp.float32)
    v1 = 1.0 + jnp.abs(0.1 * jax.random.normal(ks[5], (c1_out,), jnp.float32))

    w2 = 0.1 * jax.random.normal(ks[6], (K, K, c1_out, c2_out), jnp.float32)
    b2 = 0.1 * jax.random.normal(ks[7], (c2_out,), jnp.float32)
    g2 = 1.0 + 0.1 * jax.random.normal(ks[8], (c2_out,), jnp.float32)
    be2 = 0.1 * jax.random.normal(ks[9], (c2_out,), jnp.float32)
    m2 = 0.1 * jax.random.normal(ks[10], (c2_out,), jnp.float32)
    v2 = 1.0 + jnp.abs(0.1 * jax.random.normal(ks[11], (c2_out,), jnp.float32))

    s1, sh1 = _fold_bn(g1, be1, m1, v1, b1)
    s2, sh2 = _fold_bn(g2, be2, m2, v2, b2)

    # fc1 in torch layout: rows in (c, h, w) flatten order.
    fc_w_torch = 0.05 * jax.random.normal(ks[12], (feat, num_classes), jnp.float32)
    fc_b = 0.05 * jax.random.normal(ks[13], (num_classes,), jnp.float32)

    # Permute fc rows once so the kernel can flatten in NHWC order
    # (bit-identical to torch's NCHW reshape semantics).
    i = jnp.arange(feat)
    h = i // (W4 * c2_out)
    w = (i // c2_out) % W4
    c = i % c2_out
    perm = c * (H4 * W4) + h * W4 + w
    fc_w_nhwc = fc_w_torch[perm]

    # Pad the class dim to a multiple of 128 for lane-dense stores.
    CP = ((num_classes + 127) // 128) * 128
    fc_w_pad = jnp.zeros((feat, CP), jnp.float32).at[:, :num_classes].set(fc_w_nhwc)
    fc_b_pad = jnp.zeros((CP,), jnp.float32).at[:num_classes].set(fc_b)

    params = dict(
        w1=w1.reshape(K * K * c1_in, c1_out).astype(jnp.bfloat16),
        scale1=s1, shift1=sh1,
        w2=w2.reshape(K * K * c1_out, c2_out).astype(jnp.bfloat16),
        scale2=s2, shift2=sh2,
        fc_w=fc_w_pad.astype(jnp.bfloat16), fc_b=fc_b_pad)
    ref = dict(w1=w1, scale1=s1, shift1=sh1,
               w2=w2, scale2=s2, shift2=sh2,
               fc_w=fc_w_torch, fc_b=fc_b)
    return params, ref


@functools.partial(jax.jit, static_argnames=("num_classes",))
def net_forward(x_nchw, params, *, num_classes):
    N, _, H, W = x_nchw.shape
    assert H % 4 == 0 and W % 4 == 0, "H and W must be divisible by 4"
    x = jnp.transpose(x_nchw, (0, 2, 3, 1)).astype(jnp.bfloat16)   # NCHW -> NHWC
    h1 = conv_bn_relu_pool(x, params['w1'], params['scale1'], params['shift1'])
    h2 = conv_bn_relu_pool(h1, params['w2'], params['scale2'], params['shift2'])
    flat = h2.reshape(N, -1)                 # NHWC flatten; fc rows pre-permuted
    out = linear(flat, params['fc_w'], params['fc_b'])
    return out[:, :num_classes]


def reference_forward(x_nchw, ref):
    """Pure-JAX f32 reference with torch-order flatten (validates semantics)."""
    x = jnp.transpose(x_nchw, (0, 2, 3, 1))

    def layer(h, w_hwio, scale, shift):
        y = jax.lax.conv_general_dilated(
            h, w_hwio, window_strides=(1, 1),
            padding=((PAD, PAD), (PAD, PAD)),
            dimension_numbers=('NHWC', 'HWIO', 'NHWC'))
        y = jnp.maximum(y * scale + shift, 0.0)
        return jax.lax.reduce_window(y, -jnp.inf, jax.lax.max,
                                     (1, 2, 2, 1), (1, 2, 2, 1), 'VALID')

    h1 = layer(x, ref['w1'], ref['scale1'], ref['shift1'])
    h2 = layer(h1, ref['w2'], ref['scale2'], ref['shift2'])
    flat = jnp.transpose(h2, (0, 3, 1, 2)).reshape(x_nchw.shape[0], -1)  # torch order
    return flat @ ref['fc_w'] + ref['fc_b']


if __name__ == "__main__":
    N, C, H, W = 2, 1, 16, 16          # Conv2d expects 1 input channel
    num_classes = 2

    x = jax.random.normal(jax.random.PRNGKey(0), (N, C, H, W), jnp.float32)
    params, ref = init_params(jax.random.PRNGKey(42), H, W, num_classes)

    out = net_forward(x, params, num_classes=num_classes)
    out = jax.block_until_ready(out)
    assert out.shape == (N, num_classes), out.shape
    assert out.dtype == jnp.float32

    # bf16 matmuls with f32 accumulation -> loose tolerance vs f32 reference.
    expected = reference_forward(x, ref)
    assert jnp.allclose(out, expected, atol=0.25, rtol=0.1), (out, expected)

    print("KERNEL_OK")
</pallas_src>

<mosaic_0001>
module attributes {stable_mosaic.version = 11 : i64} {
  func.func @_conv_bn_relu_pool_kernel(%arg0: i32, %arg1: memref<1x16x16x1xbf16, #tpu.memory_space<vmem>>, %arg2: memref<25x16xbf16, #tpu.memory_space<vmem>>, %arg3: memref<1x16xf32, #tpu.memory_space<vmem>>, %arg4: memref<1x16xf32, #tpu.memory_space<vmem>>, %arg5: memref<1x8x8x16xbf16, #tpu.memory_space<vmem>>, %arg6: memref<20x20x1xf32, #tpu.memory_space<vmem>>, %arg7: memref<16x16x25xbf16, #tpu.memory_space<vmem>>, %arg8: memref<16x16x16xf32, #tpu.memory_space<vmem>>) attributes {dimension_semantics = [#tpu.dimension_semantics<parallel>], iteration_bounds = array<i64: 2>, scalar_prefetch = 0 : i64, scratch_operands = 3 : i64, tpu.core_type = #tpu.core_type<tc>, window_params = [{transform_indices = @transform_0, window_bounds = array<i64: 1, 16, 16, 1>}, {pipeline_mode = #tpu.pipeline_mode<synchronous>, transform_indices = @transform_1, window_bounds = array<i64: 25, 16>}, {pipeline_mode = #tpu.pipeline_mode<synchronous>, transform_indices = @transform_2, window_bounds = array<i64: 1, 16>}, {pipeline_mode = #tpu.pipeline_mode<synchronous>, transform_indices = @transform_3, window_bounds = array<i64: 1, 16>}, {transform_indices = @transform_4, window_bounds = array<i64: 1, 8, 8, 16>}]} {
    %cst = arith.constant 0.000000e+00 : f32
    %0 = vector.broadcast %cst : f32 to vector<20x20x1xf32>
    %c0 = arith.constant 0 : index
    %c0_0 = arith.constant 0 : index
    %c0_1 = arith.constant 0 : index
    %1 = vector.load %arg6[%c0, %c0_0, %c0_1] : memref<20x20x1xf32, #tpu.memory_space<vmem>>, vector<20x20x1xf32>
    tpu.vector_store %arg6[%c0, %c0_0, %c0_1], %0 {strides = array<i32>} : memref<20x20x1xf32, #tpu.memory_space<vmem>>, vector<20x20x1xf32>,
    %c0_2 = arith.constant 0 : index
    %c0_3 = arith.constant 0 : index
    %c0_4 = arith.constant 0 : index
    %c0_5 = arith.constant 0 : index
    %2 = vector.load %arg1[%c0_2, %c0_3, %c0_4, %c0_5] : memref<1x16x16x1xbf16, #tpu.memory_space<vmem>>, vector<1x16x16x1xbf16>
    %3 = vector.shape_cast %2 : vector<1x16x16x1xbf16> to vector<16x16x1xbf16>
    %4 = arith.extf %3 : vector<16x16x1xbf16> to vector<16x16x1xf32>
    %c2 = arith.constant 2 : index
    %c2_6 = arith.constant 2 : index
    %c0_7 = arith.constant 0 : index
    %5 = vector.load %arg6[%c2, %c2_6, %c0_7] : memref<20x20x1xf32, #tpu.memory_space<vmem>>, vector<16x16x1xf32>
    tpu.vector_store %arg6[%c2, %c2_6, %c0_7], %4 {strides = array<i32>} : memref<20x20x1xf32, #tpu.memory_space<vmem>>, vector<16x16x1xf32>,
    %c0_8 = arith.constant 0 : index
    %c0_9 = arith.constant 0 : index
    %c0_10 = arith.constant 0 : index
    %6 = vector.load %arg6[%c0_8, %c0_9, %c0_10] : memref<20x20x1xf32, #tpu.memory_space<vmem>>, vector<16x16x1xf32>
    %7 = arith.truncf %6 : vector<16x16x1xf32> to vector<16x16x1xbf16>
    %c0_11 = arith.constant 0 : index
    %c0_12 = arith.constant 0 : index
    %c0_13 = arith.constant 0 : index
    %8 = vector.load %arg7[%c0_11, %c0_12, %c0_13] : memref<16x16x25xbf16, #tpu.memory_space<vmem>>, vector<16x16x1xbf16>
    tpu.vector_store %arg7[%c0_11, %c0_12, %c0_13], %7 {strides = array<i32>} : memref<16x16x25xbf16, #tpu.memory_space<vmem>>, vector<16x16x1xbf16>,
    %c0_14 = arith.constant 0 : index
    %c1 = arith.constant 1 : index
    %c0_15 = arith.constant 0 : index
    %9 = vector.load %arg6[%c0_14, %c1, %c0_15] : memref<20x20x1xf32, #tpu.memory_space<vmem>>, vector<16x16x1xf32>
    %10 = arith.truncf %9 : vector<16x16x1xf32> to vector<16x16x1xbf16>
    %c0_16 = arith.constant 0 : index
    %c0_17 = arith.constant 0 : index
    %c1_18 = arith.constant 1 : index
    %11 = vector.load %arg7[%c0_16, %c0_17, %c1_18] : memref<16x16x25xbf16, #tpu.memory_space<vmem>>, vector<16x16x1xbf16>
    tpu.vector_store %arg7[%c0_16, %c0_17, %c1_18], %10 {strides = array<i32>} : memref<16x16x25xbf16, #tpu.memory_space<vmem>>, vector<16x16x1xbf16>,
    %c0_19 = arith.constant 0 : index
    %c2_20 = arith.constant 2 : index
    %c0_21 = arith.constant 0 : index
    %12 = vector.load %arg6[%c0_19, %c2_20, %c0_21] : memref<20x20x1xf32, #tpu.memory_space<vmem>>, vector<16x16x1xf32>
    %13 = arith.truncf %12 : vector<16x16x1xf32> to vector<16x16x1xbf16>
    %c0_22 = arith.constant 0 : index
    %c0_23 = arith.constant 0 : index
    %c2_24 = arith.constant 2 : index
    %14 = vector.load %arg7[%c0_22, %c0_23, %c2_24] : memref<16x16x25xbf16, #tpu.memory_space<vmem>>, vector<16x16x1xbf16>
    tpu.vector_store %arg7[%c0_22, %c0_23, %c2_24], %13 {strides = array<i32>} : memref<16x16x25xbf16, #tpu.memory_space<vmem>>, vector<16x16x1xbf16>,
    %c0_25 = arith.constant 0 : index
    %c3 = arith.constant 3 : index
    %c0_26 = arith.constant 0 : index
    %15 = vector.load %arg6[%c0_25, %c3, %c0_26] : memref<20x20x1xf32, #tpu.memory_space<vmem>>, vector<16x16x1xf32>
    %16 = arith.truncf %15 : vector<16x16x1xf32> to vector<16x16x1xbf16>
    %c0_27 = arith.constant 0 : index
    %c0_28 = arith.constant 0 : index
    %c3_29 = arith.constant 3 : index
    %17 = vector.load %arg7[%c0_27, %c0_28, %c3_29] : memref<16x16x25xbf16, #tpu.memory_space<vmem>>, vector<16x16x1xbf16>
    tpu.vector_store %arg7[%c0_27, %c0_28, %c3_29], %16 {strides = array<i32>} : memref<16x16x25xbf16, #tpu.memory_space<vmem>>, vector<16x16x1xbf16>,
    %c0_30 = arith.constant 0 : index
    %c4 = arith.constant 4 : index
    %c0_31 = arith.constant 0 : index
    %18 = vector.load %arg6[%c0_30, %c4, %c0_31] : memref<20x20x1xf32, #tpu.memory_space<vmem>>, vector<16x16x1xf32>
    %19 = arith.truncf %18 : vector<16x16x1xf32> to vector<16x16x1xbf16>
    %c0_32 = arith.constant 0 : index
    %c0_33 = arith.constant 0 : index
    %c4_34 = arith.constant 4 : index
    %20 = vector.load %arg7[%c0_32, %c0_33, %c4_34] : memref<16x16x25xbf16, #tpu.memory_space<vmem>>, vector<16x16x1xbf16>
    tpu.vector_store %arg7[%c0_32, %c0_33, %c4_34], %19 {strides = array<i32>} : memref<16x16x25xbf16, #tpu.memory_space<vmem>>, vector<16x16x1xbf16>,
    %c1_35 = arith.constant 1 : index
    %c0_36 = arith.constant 0 : index
    %c0_37 = arith.constant 0 : index
    %21 = vector.load %arg6[%c1_35, %c0_36, %c0_37] : memref<20x20x1xf32, #tpu.memory_space<vmem>>, vector<16x16x1xf32>
    %22 = arith.truncf %21 : vector<16x16x1xf32> to vector<16x16x1xbf16>
    %c0_38 = arith.constant 0 : index
    %c0_39 = arith.constant 0 : index
    %c5 = arith.constant 5 : index
    %23 = vector.load %arg7[%c0_38, %c0_39, %c5] : memref<16x16x25xbf16, #tpu.memory_space<vmem>>, vector<16x16x1xbf16>
    tpu.vector_store %arg7[%c0_38, %c0_39, %c5], %22 {strides = array<i32>} : memref<16x16x25xbf16, #tpu.memory_space<vmem>>, vector<16x16x1xbf16>,
    %c1_40 = arith.constant 1 : index
    %c1_41 = arith.constant 1 : index
    %c0_42 = arith.constant 0 : index
    %24 = vector.load %arg6[%c1_40, %c1_41, %c0_42] : memref<20x20x1xf32, #tpu.memory_space<vmem>>, vector<16x16x1xf32>
    %25 = arith.truncf %24 : vector<16x16x1xf32> to vector<16x16x1xbf16>
    %c0_43 = arith.constant 0 : index
    %c0_44 = arith.constant 0 : index
    %c6 = arith.constant 6 : index
    %26 = vector.load %arg7[%c0_43, %c0_44, %c6] : memref<16x16x25xbf16, #tpu.memory_space<vmem>>, vector<16x16x1xbf16>
    tpu.vector_store %arg7[%c0_43, %c0_44, %c6], %25 {strides = array<i32>} : memref<16x16x25xbf16, #tpu.memory_space<vmem>>, vector<16x16x1xbf16>,
    %c1_45 = arith.constant 1 : index
    %c2_46 = arith.constant 2 : index
    %c0_47 = arith.constant 0 : index
    %27 = vector.load %arg6[%c1_45, %c2_46, %c0_47] : memref<20x20x1xf32, #tpu.memory_space<vmem>>, vector<16x16x1xf32>
    %28 = arith.truncf %27 : vector<16x16x1xf32> to vector<16x16x1xbf16>
    %c0_48 = arith.constant 0 : index
    %c0_49 = arith.constant 0 : index
    %c7 = arith.constant 7 : index
    %29 = vector.load %arg7[%c0_48, %c0_49, %c7] : memref<16x16x25xbf16, #tpu.memory_space<vmem>>, vector<16x16x1xbf16>
    tpu.vector_store %arg7[%c0_48, %c0_49, %c7], %28 {strides = array<i32>} : memref<16x16x25xbf16, #tpu.memory_space<vmem>>, vector<16x16x1xbf16>,
    %c1_50 = arith.constant 1 : index
    %c3_51 = arith.constant 3 : index
    %c0_52 = arith.constant 0 : index
    %30 = vector.load %arg6[%c1_50, %c3_51, %c0_52] : memref<20x20x1xf32, #tpu.memory_space<vmem>>, vector<16x16x1xf32>
    %31 = arith.truncf %30 : vector<16x16x1xf32> to vector<16x16x1xbf16>
    %c0_53 = arith.constant 0 : index
    %c0_54 = arith.constant 0 : index
    %c8 = arith.constant 8 : index
    %32 = vector.load %arg7[%c0_53, %c0_54, %c8] : memref<16x16x25xbf16, #tpu.memory_space<vmem>>, vector<16x16x1xbf16>
    tpu.vector_store %arg7[%c0_53, %c0_54, %c8], %31 {strides = array<i32>} : memref<16x16x25xbf16, #tpu.memory_space<vmem>>, vector<16x16x1xbf16>,
    %c1_55 = arith.constant 1 : index
    %c4_56 = arith.constant 4 : index
    %c0_57 = arith.constant 0 : index
    %33 = vector.load %arg6[%c1_55, %c4_56, %c0_57] : memref<20x20x1xf32, #tpu.memory_space<vmem>>, vector<16x16x1xf32>
    %34 = arith.truncf %33 : vector<16x16x1xf32> to vector<16x16x1xbf16>
    %c0_58 = arith.constant 0 : index
    %c0_59 = arith.constant 0 : index
    %c9 = arith.constant 9 : index
    %35 = vector.load %arg7[%c0_58, %c0_59, %c9] : memref<16x16x25xbf16, #tpu.memory_space<vmem>>, vector<16x16x1xbf16>
    tpu.vector_store %arg7[%c0_58, %c0_59, %c9], %34 {strides = array<i32>} : memref<16x16x25xbf16, #tpu.memory_space<vmem>>, vector<16x16x1xbf16>,
    %c2_60 = arith.constant 2 : index
    %c0_61 = arith.constant 0 : index
    %c0_62 = arith.constant 0 : index
    %36 = vector.load %arg6[%c2_60, %c0_61, %c0_62] : memref<20x20x1xf32, #tpu.memory_space<vmem>>, vector<16x16x1xf32>
    %37 = arith.truncf %36 : vector<16x16x1xf32> to vector<16x16x1xbf16>
    %c0_63 = arith.constant 0 : index
    %c0_64 = arith.constant 0 : index
    %c10 = arith.constant 10 : index
    %38 = vector.load %arg7[%c0_63, %c0_64, %c10] : memref<16x16x25xbf16, #tpu.memory_space<vmem>>, vector<16x16x1xbf16>
    tpu.vector_store %arg7[%c0_63, %c0_64, %c10], %37 {strides = array<i32>} : memref<16x16x25xbf16, #tpu.memory_space<vmem>>, vector<16x16x1xbf16>,
    %c2_65 = arith.constant 2 : index
    %c1_66 = arith.constant 1 : index
    %c0_67 = arith.constant 0 : index
    %39 = vector.load %arg6[%c2_65, %c1_66, %c0_67] : memref<20x20x1xf32, #tpu.memory_space<vmem>>, vector<16x16x1xf32>
    %40 = arith.truncf %39 : vector<16x16x1xf32> to vector<16x16x1xbf16>
    %c0_68 = arith.constant 0 : index
    %c0_69 = arith.constant 0 : index
    %c11 = arith.constant 11 : index
    %41 = vector.load %arg7[%c0_68, %c0_69, %c11] : memref<16x16x25xbf16, #tpu.memory_space<vmem>>, vector<16x16x1xbf16>
    tpu.vector_store %arg7[%c0_68, %c0_69, %c11], %40 {strides = array<i32>} : memref<16x16x25xbf16, #tpu.memory_space<vmem>>, vector<16x16x1xbf16>,
    %c2_70 = arith.constant 2 : index
    %c2_71 = arith.constant 2 : index
    %c0_72 = arith.constant 0 : index
    %42 = vector.load %arg6[%c2_70, %c2_71, %c0_72] : memref<20x20x1xf32, #tpu.memory_space<vmem>>, vector<16x16x1xf32>
    %43 = arith.truncf %42 : vector<16x16x1xf32> to vector<16x16x1xbf16>
    %c0_73 = arith.constant 0 : index
    %c0_74 = arith.constant 0 : index
    %c12 = arith.constant 12 : index
    %44 = vector.load %arg7[%c0_73, %c0_74, %c12] : memref<16x16x25xbf16, #tpu.memory_space<vmem>>, vector<16x16x1xbf16>
    tpu.vector_store %arg7[%c0_73, %c0_74, %c12], %43 {strides = array<i32>} : memref<16x16x25xbf16, #tpu.memory_space<vmem>>, vector<16x16x1xbf16>,
    %c2_75 = arith.constant 2 : index
    %c3_76 = arith.constant 3 : index
    %c0_77 = arith.constant 0 : index
    %45 = vector.load %arg6[%c2_75, %c3_76, %c0_77] : memref<20x20x1xf32, #tpu.memory_space<vmem>>, vector<16x16x1xf32>
    %46 = arith.truncf %45 : vector<16x16x1xf32> to vector<16x16x1xbf16>
    %c0_78 = arith.constant 0 : index
    %c0_79 = arith.constant 0 : index
    %c13 = arith.constant 13 : index
    %47 = vector.load %arg7[%c0_78, %c0_79, %c13] : memref<16x16x25xbf16, #tpu.memory_space<vmem>>, vector<16x16x1xbf16>
    tpu.vector_store %arg7[%c0_78, %c0_79, %c13], %46 {strides = array<i32>} : memref<16x16x25xbf16, #tpu.memory_space<vmem>>, vector<16x16x1xbf16>,
    %c2_80 = arith.constant 2 : index
    %c4_81 = arith.constant 4 : index
    %c0_82 = arith.constant 0 : index
    %48 = vector.load %arg6[%c2_80, %c4_81, %c0_82] : memref<20x20x1xf32, #tpu.memory_space<vmem>>, vector<16x16x1xf32>
    %49 = arith.truncf %48 : vector<16x16x1xf32> to vector<16x16x1xbf16>
    %c0_83 = arith.constant 0 : index
    %c0_84 = arith.constant 0 : index
    %c14 = arith.constant 14 : index
    %50 = vector.load %arg7[%c0_83, %c0_84, %c14] : memref<16x16x25xbf16, #tpu.memory_space<vmem>>, vector<16x16x1xbf16>
    tpu.vector_store %arg7[%c0_83, %c0_84, %c14], %49 {strides = array<i32>} : memref<16x16x25xbf16, #tpu.memory_space<vmem>>, vector<16x16x1xbf16>,
    %c3_85 = arith.constant 3 : index
    %c0_86 = arith.constant 0 : index
    %c0_87 = arith.constant 0 : index
    %51 = vector.load %arg6[%c3_85, %c0_86, %c0_87] : memref<20x20x1xf32, #tpu.memory_space<vmem>>, vector<16x16x1xf32>
    %52 = arith.truncf %51 : vector<16x16x1xf32> to vector<16x16x1xbf16>
    %c0_88 = arith.constant 0 : index
    %c0_89 = arith.constant 0 : index
    %c15 = arith.constant 15 : index
    %53 = vector.load %arg7[%c0_88, %c0_89, %c15] : memref<16x16x25xbf16, #tpu.memory_space<vmem>>, vector<16x16x1xbf16>
    tpu.vector_store %arg7[%c0_88, %c0_89, %c15], %52 {strides = array<i32>} : memref<16x16x25xbf16, #tpu.memory_space<vmem>>, vector<16x16x1xbf16>,
    %c3_90 = arith.constant 3 : index
    %c1_91 = arith.constant 1 : index
    %c0_92 = arith.constant 0 : index
    %54 = vector.load %arg6[%c3_90, %c1_91, %c0_92] : memref<20x20x1xf32, #tpu.memory_space<vmem>>, vector<16x16x1xf32>
    %55 = arith.truncf %54 : vector<16x16x1xf32> to vector<16x16x1xbf16>
    %c0_93 = arith.constant 0 : index
    %c0_94 = arith.constant 0 : index
    %c16 = arith.constant 16 : index
    %56 = vector.load %arg7[%c0_93, %c0_94, %c16] : memref<16x16x25xbf16, #tpu.memory_space<vmem>>, vector<16x16x1xbf16>
    tpu.vector_store %arg7[%c0_93, %c0_94, %c16], %55 {strides = array<i32>} : memref<16x16x25xbf16, #tpu.memory_space<vmem>>, vector<16x16x1xbf16>,
    %c3_95 = arith.constant 3 : index
    %c2_96 = arith.constant 2 : index
    %c0_97 = arith.constant 0 : index
    %57 = vector.load %arg6[%c3_95, %c2_96, %c0_97] : memref<20x20x1xf32, #tpu.memory_space<vmem>>, vector<16x16x1xf32>
    %58 = arith.truncf %57 : vector<16x16x1xf32> to vector<16x16x1xbf16>
    %c0_98 = arith.constant 0 : index
    %c0_99 = arith.constant 0 : index
    %c17 = arith.constant 17 : index
    %59 = vector.load %arg7[%c0_98, %c0_99, %c17] : memref<16x16x25xbf16, #tpu.memory_space<vmem>>, vector<16x16x1xbf16>
    tpu.vector_store %arg7[%c0_98, %c0_99, %c17], %58 {strides = array<i32>} : memref<16x16x25xbf16, #tpu.memory_space<vmem>>, vector<16x16x1xbf16>,
    %c3_100 = arith.constant 3 : index
    %c3_101 = arith.constant 3 : index
    %c0_102 = arith.constant 0 : index
    %60 = vector.load %arg6[%c3_100, %c3_101, %c0_102] : memref<20x20x1xf32, #tpu.memory_space<vmem>>, vector<16x16x1xf32>
    %61 = arith.truncf %60 : vector<16x16x1xf32> to vector<16x16x1xbf16>
    %c0_103 = arith.constant 0 : index
    %c0_104 = arith.constant 0 : index
    %c18 = arith.constant 18 : index
    %62 = vector.load %arg7[%c0_103, %c0_104, %c18] : memref<16x16x25xbf16, #tpu.memory_space<vmem>>, vector<16x16x1xbf16>
    tpu.vector_store %arg7[%c0_103, %c0_104, %c18], %61 {strides = array<i32>} : memref<16x16x25xbf16, #tpu.memory_space<vmem>>, vector<16x16x1xbf16>,
    %c3_105 = arith.constant 3 : index
    %c4_106 = arith.constant 4 : index
    %c0_107 = arith.constant 0 : index
    %63 = vector.load %arg6[%c3_105, %c4_106, %c0_107] : memref<20x20x1xf32, #tpu.memory_space<vmem>>, vector<16x16x1xf32>
    %64 = arith.truncf %63 : vector<16x16x1xf32> to vector<16x16x1xbf16>
    %c0_108 = arith.constant 0 : index
    %c0_109 = arith.constant 0 : index
    %c19 = arith.constant 19 : index
    %65 = vector.load %arg7[%c0_108, %c0_109, %c19] : memref<16x16x25xbf16, #tpu.memory_space<vmem>>, vector<16x16x1xbf16>
    tpu.vector_store %arg7[%c0_108, %c0_109, %c19], %64 {strides = array<i32>} : memref<16x16x25xbf16, #tpu.memory_space<vmem>>, vector<16x16x1xbf16>,
    %c4_110 = arith.constant 4 : index
    %c0_111 = arith.constant 0 : index
    %c0_112 = arith.constant 0 : index
    %66 = vector.load %arg6[%c4_110, %c0_111, %c0_112] : memref<20x20x1xf32, #tpu.memory_space<vmem>>, vector<16x16x1xf32>
    %67 = arith.truncf %66 : vector<16x16x1xf32> to vector<16x16x1xbf16>
    %c0_113 = arith.constant 0 : index
    %c0_114 = arith.constant 0 : index
    %c20 = arith.constant 20 : index
    %68 = vector.load %arg7[%c0_113, %c0_114, %c20] : memref<16x16x25xbf16, #tpu.memory_space<vmem>>, vector<16x16x1xbf16>
    tpu.vector_store %arg7[%c0_113, %c0_114, %c20], %67 {strides = array<i32>} : memref<16x16x25xbf16, #tpu.memory_space<vmem>>, vector<16x16x1xbf16>,
    %c4_115 = arith.constant 4 : index
    %c1_116 = arith.constant 1 : index
    %c0_117 = arith.constant 0 : index
    %69 = vector.load %arg6[%c4_115, %c1_116, %c0_117] : memref<20x20x1xf32, #tpu.memory_space<vmem>>, vector<16x16x1xf32>
    %70 = arith.truncf %69 : vector<16x16x1xf32> to vector<16x16x1xbf16>
    %c0_118 = arith.constant 0 : index
    %c0_119 = arith.constant 0 : index
    %c21 = arith.constant 21 : index
    %71 = vector.load %arg7[%c0_118, %c0_119, %c21] : memref<16x16x25xbf16, #tpu.memory_space<vmem>>, vector<16x16x1xbf16>
    tpu.vector_store %arg7[%c0_118, %c0_119, %c21], %70 {strides = array<i32>} : memref<16x16x25xbf16, #tpu.memory_space<vmem>>, vector<16x16x1xbf16>,
    %c4_120 = arith.constant 4 : index
    %c2_121 = arith.constant 2 : index
    %c0_122 = arith.constant 0 : index
    %72 = vector.load %arg6[%c4_120, %c2_121, %c0_122] : memref<20x20x1xf32, #tpu.memory_space<vmem>>, vector<16x16x1xf32>
    %73 = arith.truncf %72 : vector<16x16x1xf32> to vector<16x16x1xbf16>
    %c0_123 = arith.constant 0 : index
    %c0_124 = arith.constant 0 : index
    %c22 = arith.constant 22 : index
    %74 = vector.load %arg7[%c0_123, %c0_124, %c22] : memref<16x16x25xbf16, #tpu.memory_space<vmem>>, vector<16x16x1xbf16>
    tpu.vector_store %arg7[%c0_123, %c0_124, %c22], %73 {strides = array<i32>} : memref<16x16x25xbf16, #tpu.memory_space<vmem>>, vector<16x16x1xbf16>,
    %c4_125 = arith.constant 4 : index
    %c3_126 = arith.constant 3 : index
    %c0_127 = arith.constant 0 : index
    %75 = vector.load %arg6[%c4_125, %c3_126, %c0_127] : memref<20x20x1xf32, #tpu.memory_space<vmem>>, vector<16x16x1xf32>
    %76 = arith.truncf %75 : vector<16x16x1xf32> to vector<16x16x1xbf16>
    %c0_128 = arith.constant 0 : index
    %c0_129 = arith.constant 0 : index
    %c23 = arith.constant 23 : index
    %77 = vector.load %arg7[%c0_128, %c0_129, %c23] : memref<16x16x25xbf16, #tpu.memory_space<vmem>>, vector<16x16x1xbf16>
    tpu.vector_store %arg7[%c0_128, %c0_129, %c23], %76 {strides = array<i32>} : memref<16x16x25xbf16, #tpu.memory_space<vmem>>, vector<16x16x1xbf16>,
    %c4_130 = arith.constant 4 : index
    %c4_131 = arith.constant 4 : index
    %c0_132 = arith.constant 0 : index
    %78 = vector.load %arg6[%c4_130, %c4_131, %c0_132] : memref<20x20x1xf32, #tpu.memory_space<vmem>>, vector<16x16x1xf32>
    %79 = arith.truncf %78 : vector<16x16x1xf32> to vector<16x16x1xbf16>
    %c0_133 = arith.constant 0 : index
    %c0_134 = arith.constant 0 : index
    %c24 = arith.constant 24 : index
    %80 = vector.load %arg7[%c0_133, %c0_134, %c24] : memref<16x16x25xbf16, #tpu.memory_space<vmem>>, vector<16x16x1xbf16>
    tpu.vector_store %arg7[%c0_133, %c0_134, %c24], %79 {strides = array<i32>} : memref<16x16x25xbf16, #tpu.memory_space<vmem>>, vector<16x16x1xbf16>,
    %c0_135 = arith.constant 0 : index
    %c0_136 = arith.constant 0 : index
    %c0_137 = arith.constant 0 : index
    %81 = vector.load %arg7[%c0_135, %c0_136, %c0_137] : memref<16x16x25xbf16, #tpu.memory_space<vmem>>, vector<16x16x25xbf16>
    %c0_138 = arith.constant 0 : index
    %c0_139 = arith.constant 0 : index
    %82 = vector.load %arg2[%c0_138, %c0_139] : memref<25x16xbf16, #tpu.memory_space<vmem>>, vector<25x16xbf16>
    %cst_140 = arith.constant dense<0.000000e+00> : vector<16x16x16xf32>
    %83 = tpu.matmul %81, %82, %cst_140 {dimension_numbers = #tpu.dot_dimension_numbers<[2], [0], [0, 1], [1], [0, 0, 0, 1, 1, 1], [], []>} : vector<16x16x25xbf16>, vector<25x16xbf16>, vector<16x16x16xf32> -> vector<16x16x16xf32>
    %c0_141 = arith.constant 0 : index
    %c0_142 = arith.constant 0 : index
    %84 = vector.load %arg3[%c0_141, %c0_142] : memref<1x16xf32, #tpu.memory_space<vmem>>, vector<1x16xf32>
    %85 = vector.shape_cast %84 : vector<1x16xf32> to vector<1x1x16xf32>
    %86 = vector.broadcast %85 : vector<1x1x16xf32> to vector<16x16x16xf32>
    %87 = arith.mulf %83, %86 : vector<16x16x16xf32>
    %c0_143 = arith.constant 0 : index
    %c0_144 = arith.constant 0 : index
    %88 = vector.load %arg4[%c0_143, %c0_144] : memref<1x16xf32, #tpu.memory_space<vmem>>, vector<1x16xf32>
    %89 = vector.shape_cast %88 : vector<1x16xf32> to vector<1x1x16xf32>
    %90 = vector.broadcast %89 : vector<1x1x16xf32> to vector<16x16x16xf32>
    %91 = arith.addf %87, %90 : vector<16x16x16xf32>
    %cst_145 = arith.constant 0.000000e+00 : f32
    %92 = vector.broadcast %cst_145 : f32 to vector<16x16x16xf32>
    %93 = arith.maximumf %91, %92 : vector<16x16x16xf32>
    %c0_146 = arith.constant 0 : index
    %c0_147 = arith.constant 0 : index
    %c0_148 = arith.constant 0 : index
    %94 = vector.load %arg8[%c0_146, %c0_147, %c0_148] : memref<16x16x16xf32, #tpu.memory_space<vmem>>, vector<16x16x16xf32>
    tpu.vector_store %arg8[%c0_146, %c0_147, %c0_148], %93 {strides = array<i32>} : memref<16x16x16xf32, #tpu.memory_space<vmem>>, vector<16x16x16xf32>,
    %c0_149 = arith.constant 0 : index
    %c0_150 = arith.constant 0 : index
    %c0_151 = arith.constant 0 : index
    %95 = tpu.strided_load %arg8[%c0_149, %c0_150, %c0_151] {strides = array<i32: 2, 2, 1>} : memref<16x16x16xf32, #tpu.memory_space<vmem>>, vector<8x8x16xf32>
    %c0_152 = arith.constant 0 : index
    %c1_153 = arith.constant 1 : index
    %c0_154 = arith.constant 0 : index
    %96 = tpu.strided_load %arg8[%c0_152, %c1_153, %c0_154] {strides = array<i32: 2, 2, 1>} : memref<16x16x16xf32, #tpu.memory_space<vmem>>, vector<8x8x16xf32>
    %c1_155 = arith.constant 1 : index
    %c0_156 = arith.constant 0 : index
    %c0_157 = arith.constant 0 : index
    %97 = tpu.strided_load %arg8[%c1_155, %c0_156, %c0_157] {strides = array<i32: 2, 2, 1>} : memref<16x16x16xf32, #tpu.memory_space<vmem>>, vector<8x8x16xf32>
    %c1_158 = arith.constant 1 : index
    %c1_159 = arith.constant 1 : index
    %c0_160 = arith.constant 0 : index
    %98 = tpu.strided_load %arg8[%c1_158, %c1_159, %c0_160] {strides = array<i32: 2, 2, 1>} : memref<16x16x16xf32, #tpu.memory_space<vmem>>, vector<8x8x16xf32>
    %99 = arith.maximumf %95, %96 : vector<8x8x16xf32>
    %100 = arith.maximumf %97, %98 : vector<8x8x16xf32>
    %101 = arith.maximumf %99, %100 : vector<8x8x16xf32>
    %102 = arith.truncf %101 : vector<8x8x16xf32> to vector<8x8x16xbf16>
    %c0_161 = arith.constant 0 : index
    %c0_162 = arith.constant 0 : index
    %c0_163 = arith.constant 0 : index
    %c0_164 = arith.constant 0 : index
    %103 = vector.load %arg5[%c0_161, %c0_162, %c0_163, %c0_164] : memref<1x8x8x16xbf16, #tpu.memory_space<vmem>>, vector<1x8x8x16xbf16>
    %104 = vector.shape_cast %103 : vector<1x8x8x16xbf16> to vector<8x8x16xbf16>
    %105 = vector.shape_cast %102 : vector<8x8x16xbf16> to vector<1x8x8x16xbf16>
    tpu.vector_store %arg5[%c0_161, %c0_162, %c0_163, %c0_164], %105 {strides = array<i32>} : memref<1x8x8x16xbf16, #tpu.memory_space<vmem>>, vector<1x8x8x16xbf16>,
    return
  }
  func.func @transform_0(%arg0: i32) -> (i32, i32, i32, i32) {
    %c0_i32 = arith.constant 0 : i32
    %c0_i32_0 = arith.constant 0 : i32
    %c0_i32_1 = arith.constant 0 : i32
    %c0_i32_2 = arith.constant 0 : i32
    return %arg0, %c0_i32, %c0_i32_0, %c0_i32_1 : i32, i32, i32, i32
  }
  func.func @transform_1(%arg0: i32) -> (i32, i32) {
    %c0_i32 = arith.constant 0 : i32
    %c0_i32_0 = arith.constant 0 : i32
    %c0_i32_1 = arith.constant 0 : i32
    return %c0_i32, %c0_i32_0 : i32, i32
  }
  func.func @transform_2(%arg0: i32) -> (i32, i32) {
    %c0_i32 = arith.constant 0 : i32
    %c0_i32_0 = arith.constant 0 : i32
    %c0_i32_1 = arith.constant 0 : i32
    return %c0_i32, %c0_i32_0 : i32, i32
  }
  func.func @transform_3(%arg0: i32) -> (i32, i32) {
    %c0_i32 = arith.constant 0 : i32
    %c0_i32_0 = arith.constant 0 : i32
    %c0_i32_1 = arith.constant 0 : i32
    return %c0_i32, %c0_i32_0 : i32, i32
  }
  func.func @transform_4(%arg0: i32) -> (i32, i32, i32, i32) {
    %c0_i32 = arith.constant 0 : i32
    %c0_i32_0 = arith.constant 0 : i32
    %c0_i32_1 = arith.constant 0 : i32
    %c0_i32_2 = arith.constant 0 : i32
    return %arg0, %c0_i32, %c0_i32_0, %c0_i32_1 : i32, i32, i32, i32
  }
}

module attributes {stable_mosaic.version = 11 : i64} {
  func.func @_conv_bn_relu_pool_kernel(%arg0: i32, %arg1: memref<1x8x8x16xbf16, #tpu.memory_space<vmem>>, %arg2: memref<400x32xbf16, #tpu.memory_space<vmem>>, %arg3: memref<1x32xf32, #tpu.memory_space<vmem>>, %arg4: memref<1x32xf32, #tpu.memory_space<vmem>>, %arg5: memref<1x4x4x32xbf16, #tpu.memory_space<vmem>>, %arg6: memref<12x12x16xf32, #tpu.memory_space<vmem>>, %arg7: memref<8x8x400xbf16, #tpu.memory_space<vmem>>, %arg8: memref<8x8x32xf32, #tpu.memory_space<vmem>>) attributes {dimension_semantics = [#tpu.dimension_semantics<parallel>], iteration_bounds = array<i64: 2>, scalar_prefetch = 0 : i64, scratch_operands = 3 : i64, tpu.core_type = #tpu.core_type<tc>, window_params = [{transform_indices = @transform_0, window_bounds = array<i64: 1, 8, 8, 16>}, {pipeline_mode = #tpu.pipeline_mode<synchronous>, transform_indices = @transform_1, window_bounds = array<i64: 400, 32>}, {pipeline_mode = #tpu.pipeline_mode<synchronous>, transform_indices = @transform_2, window_bounds = array<i64: 1, 32>}, {pipeline_mode = #tpu.pipeline_mode<synchronous>, transform_indices = @transform_3, window_bounds = array<i64: 1, 32>}, {transform_indices = @transform_4, window_bounds = array<i64: 1, 4, 4, 32>}]} {
    %cst = arith.constant 0.000000e+00 : f32
    %0 = vector.broadcast %cst : f32 to vector<12x12x16xf32>
    %c0 = arith.constant 0 : index
    %c0_0 = arith.constant 0 : index
    %c0_1 = arith.constant 0 : index
    %1 = vector.load %arg6[%c0, %c0_0, %c0_1] : memref<12x12x16xf32, #tpu.memory_space<vmem>>, vector<12x12x16xf32>
    tpu.vector_store %arg6[%c0, %c0_0, %c0_1], %0 {strides = array<i32>} : memref<12x12x16xf32, #tpu.memory_space<vmem>>, vector<12x12x16xf32>,
    %c0_2 = arith.constant 0 : index
    %c0_3 = arith.constant 0 : index
    %c0_4 = arith.constant 0 : index
    %c0_5 = arith.constant 0 : index
    %2 = vector.load %arg1[%c0_2, %c0_3, %c0_4, %c0_5] : memref<1x8x8x16xbf16, #tpu.memory_space<vmem>>, vector<1x8x8x16xbf16>
    %3 = vector.shape_cast %2 : vector<1x8x8x16xbf16> to vector<8x8x16xbf16>
    %4 = arith.extf %3 : vector<8x8x16xbf16> to vector<8x8x16xf32>
    %c2 = arith.constant 2 : index
    %c2_6 = arith.constant 2 : index
    %c0_7 = arith.constant 0 : index
    %5 = vector.load %arg6[%c2, %c2_6, %c0_7] : memref<12x12x16xf32, #tpu.memory_space<vmem>>, vector<8x8x16xf32>
    tpu.vector_store %arg6[%c2, %c2_6, %c0_7], %4 {strides = array<i32>} : memref<12x12x16xf32, #tpu.memory_space<vmem>>, vector<8x8x16xf32>,
    %c0_8 = arith.constant 0 : index
    %c0_9 = arith.constant 0 : index
    %c0_10 = arith.constant 0 : index
    %6 = vector.load %arg6[%c0_8, %c0_9, %c0_10] : memref<12x12x16xf32, #tpu.memory_space<vmem>>, vector<8x8x16xf32>
    %7 = arith.truncf %6 : vector<8x8x16xf32> to vector<8x8x16xbf16>
    %c0_11 = arith.constant 0 : index
    %c0_12 = arith.constant 0 : index
    %c0_13 = arith.constant 0 : index
    %8 = vector.load %arg7[%c0_11, %c0_12, %c0_13] : memref<8x8x400xbf16, #tpu.memory_space<vmem>>, vector<8x8x16xbf16>
    tpu.vector_store %arg7[%c0_11, %c0_12, %c0_13], %7 {strides = array<i32>} : memref<8x8x400xbf16, #tpu.memory_space<vmem>>, vector<8x8x16xbf16>,
    %c0_14 = arith.constant 0 : index
    %c1 = arith.constant 1 : index
    %c0_15 = arith.constant 0 : index
    %9 = vector.load %arg6[%c0_14, %c1, %c0_15] : memref<12x12x16xf32, #tpu.memory_space<vmem>>, vector<8x8x16xf32>
    %10 = arith.truncf %9 : vector<8x8x16xf32> to vector<8x8x16xbf16>
    %c0_16 = arith.constant 0 : index
    %c0_17 = arith.constant 0 : index
    %c16 = arith.constant 16 : index
    %11 = vector.load %arg7[%c0_16, %c0_17, %c16] : memref<8x8x400xbf16, #tpu.memory_space<vmem>>, vector<8x8x16xbf16>
    tpu.vector_store %arg7[%c0_16, %c0_17, %c16], %10 {strides = array<i32>} : memref<8x8x400xbf16, #tpu.memory_space<vmem>>, vector<8x8x16xbf16>,
    %c0_18 = arith.constant 0 : index
    %c2_19 = arith.constant 2 : index
    %c0_20 = arith.constant 0 : index
    %12 = vector.load %arg6[%c0_18, %c2_19, %c0_20] : memref<12x12x16xf32, #tpu.memory_space<vmem>>, vector<8x8x16xf32>
    %13 = arith.truncf %12 : vector<8x8x16xf32> to vector<8x8x16xbf16>
    %c0_21 = arith.constant 0 : index
    %c0_22 = arith.constant 0 : index
    %c32 = arith.constant 32 : index
    %14 = vector.load %arg7[%c0_21, %c0_22, %c32] : memref<8x8x400xbf16, #tpu.memory_space<vmem>>, vector<8x8x16xbf16>
    tpu.vector_store %arg7[%c0_21, %c0_22, %c32], %13 {strides = array<i32>} : memref<8x8x400xbf16, #tpu.memory_space<vmem>>, vector<8x8x16xbf16>,
    %c0_23 = arith.constant 0 : index
    %c3 = arith.constant 3 : index
    %c0_24 = arith.constant 0 : index
    %15 = vector.load %arg6[%c0_23, %c3, %c0_24] : memref<12x12x16xf32, #tpu.memory_space<vmem>>, vector<8x8x16xf32>
    %16 = arith.truncf %15 : vector<8x8x16xf32> to vector<8x8x16xbf16>
    %c0_25 = arith.constant 0 : index
    %c0_26 = arith.constant 0 : index
    %c48 = arith.constant 48 : index
    %17 = vector.load %arg7[%c0_25, %c0_26, %c48] : memref<8x8x400xbf16, #tpu.memory_space<vmem>>, vector<8x8x16xbf16>
    tpu.vector_store %arg7[%c0_25, %c0_26, %c48], %16 {strides = array<i32>} : memref<8x8x400xbf16, #tpu.memory_space<vmem>>, vector<8x8x16xbf16>,
    %c0_27 = arith.constant 0 : index
    %c4 = arith.constant 4 : index
    %c0_28 = arith.constant 0 : index
    %18 = vector.load %arg6[%c0_27, %c4, %c0_28] : memref<12x12x16xf32, #tpu.memory_space<vmem>>, vector<8x8x16xf32>
    %19 = arith.truncf %18 : vector<8x8x16xf32> to vector<8x8x16xbf16>
    %c0_29 = arith.constant 0 : index
    %c0_30 = arith.constant 0 : index
    %c64 = arith.constant 64 : index
    %20 = vector.load %arg7[%c0_29, %c0_30, %c64] : memref<8x8x400xbf16, #tpu.memory_space<vmem>>, vector<8x8x16xbf16>
    tpu.vector_store %arg7[%c0_29, %c0_30, %c64], %19 {strides = array<i32>} : memref<8x8x400xbf16, #tpu.memory_space<vmem>>, vector<8x8x16xbf16>,
    %c1_31 = arith.constant 1 : index
    %c0_32 = arith.constant 0 : index
    %c0_33 = arith.constant 0 : index
    %21 = vector.load %arg6[%c1_31, %c0_32, %c0_33] : memref<12x12x16xf32, #tpu.memory_space<vmem>>, vector<8x8x16xf32>
    %22 = arith.truncf %21 : vector<8x8x16xf32> to vector<8x8x16xbf16>
    %c0_34 = arith.constant 0 : index
    %c0_35 = arith.constant 0 : index
    %c80 = arith.constant 80 : index
    %23 = vector.load %arg7[%c0_34, %c0_35, %c80] : memref<8x8x400xbf16, #tpu.memory_space<vmem>>, vector<8x8x16xbf16>
    tpu.vector_store %arg7[%c0_34, %c0_35, %c80], %22 {strides = array<i32>} : memref<8x8x400xbf16, #tpu.memory_space<vmem>>, vector<8x8x16xbf16>,
    %c1_36 = arith.constant 1 : index
    %c1_37 = arith.constant 1 : index
    %c0_38 = arith.constant 0 : index
    %24 = vector.load %arg6[%c1_36, %c1_37, %c0_38] : memref<12x12x16xf32, #tpu.memory_space<vmem>>, vector<8x8x16xf32>
    %25 = arith.truncf %24 : vector<8x8x16xf32> to vector<8x8x16xbf16>
    %c0_39 = arith.constant 0 : index
    %c0_40 = arith.constant 0 : index
    %c96 = arith.constant 96 : index
    %26 = vector.load %arg7[%c0_39, %c0_40, %c96] : memref<8x8x400xbf16, #tpu.memory_space<vmem>>, vector<8x8x16xbf16>
    tpu.vector_store %arg7[%c0_39, %c0_40, %c96], %25 {strides = array<i32>} : memref<8x8x400xbf16, #tpu.memory_space<vmem>>, vector<8x8x16xbf16>,
    %c1_41 = arith.constant 1 : index
    %c2_42 = arith.constant 2 : index
    %c0_43 = arith.constant 0 : index
    %27 = vector.load %arg6[%c1_41, %c2_42, %c0_43] : memref<12x12x16xf32, #tpu.memory_space<vmem>>, vector<8x8x16xf32>
    %28 = arith.truncf %27 : vector<8x8x16xf32> to vector<8x8x16xbf16>
    %c0_44 = arith.constant 0 : index
    %c0_45 = arith.constant 0 : index
    %c112 = arith.constant 112 : index
    %29 = vector.load %arg7[%c0_44, %c0_45, %c112] : memref<8x8x400xbf16, #tpu.memory_space<vmem>>, vector<8x8x16xbf16>
    tpu.vector_store %arg7[%c0_44, %c0_45, %c112], %28 {strides = array<i32>} : memref<8x8x400xbf16, #tpu.memory_space<vmem>>, vector<8x8x16xbf16>,
    %c1_46 = arith.constant 1 : index
    %c3_47 = arith.constant 3 : index
    %c0_48 = arith.constant 0 : index
    %30 = vector.load %arg6[%c1_46, %c3_47, %c0_48] : memref<12x12x16xf32, #tpu.memory_space<vmem>>, vector<8x8x16xf32>
    %31 = arith.truncf %30 : vector<8x8x16xf32> to vector<8x8x16xbf16>
    %c0_49 = arith.constant 0 : index
    %c0_50 = arith.constant 0 : index
    %c128 = arith.constant 128 : index
    %32 = vector.load %arg7[%c0_49, %c0_50, %c128] : memref<8x8x400xbf16, #tpu.memory_space<vmem>>, vector<8x8x16xbf16>
    tpu.vector_store %arg7[%c0_49, %c0_50, %c128], %31 {strides = array<i32>} : memref<8x8x400xbf16, #tpu.memory_space<vmem>>, vector<8x8x16xbf16>,
    %c1_51 = arith.constant 1 : index
    %c4_52 = arith.constant 4 : index
    %c0_53 = arith.constant 0 : index
    %33 = vector.load %arg6[%c1_51, %c4_52, %c0_53] : memref<12x12x16xf32, #tpu.memory_space<vmem>>, vector<8x8x16xf32>
    %34 = arith.truncf %33 : vector<8x8x16xf32> to vector<8x8x16xbf16>
    %c0_54 = arith.constant 0 : index
    %c0_55 = arith.constant 0 : index
    %c144 = arith.constant 144 : index
    %35 = vector.load %arg7[%c0_54, %c0_55, %c144] : memref<8x8x400xbf16, #tpu.memory_space<vmem>>, vector<8x8x16xbf16>
    tpu.vector_store %arg7[%c0_54, %c0_55, %c144], %34 {strides = array<i32>} : memref<8x8x400xbf16, #tpu.memory_space<vmem>>, vector<8x8x16xbf16>,
    %c2_56 = arith.constant 2 : index
    %c0_57 = arith.constant 0 : index
    %c0_58 = arith.constant 0 : index
    %36 = vector.load %arg6[%c2_56, %c0_57, %c0_58] : memref<12x12x16xf32, #tpu.memory_space<vmem>>, vector<8x8x16xf32>
    %37 = arith.truncf %36 : vector<8x8x16xf32> to vector<8x8x16xbf16>
    %c0_59 = arith.constant 0 : index
    %c0_60 = arith.constant 0 : index
    %c160 = arith.constant 160 : index
    %38 = vector.load %arg7[%c0_59, %c0_60, %c160] : memref<8x8x400xbf16, #tpu.memory_space<vmem>>, vector<8x8x16xbf16>
    tpu.vector_store %arg7[%c0_59, %c0_60, %c160], %37 {strides = array<i32>} : memref<8x8x400xbf16, #tpu.memory_space<vmem>>, vector<8x8x16xbf16>,
    %c2_61 = arith.constant 2 : index
    %c1_62 = arith.constant 1 : index
    %c0_63 = arith.constant 0 : index
    %39 = vector.load %arg6[%c2_61, %c1_62, %c0_63] : memref<12x12x16xf32, #tpu.memory_space<vmem>>, vector<8x8x16xf32>
    %40 = arith.truncf %39 : vector<8x8x16xf32> to vector<8x8x16xbf16>
    %c0_64 = arith.constant 0 : index
    %c0_65 = arith.constant 0 : index
    %c176 = arith.constant 176 : index
    %41 = vector.load %arg7[%c0_64, %c0_65, %c176] : memref<8x8x400xbf16, #tpu.memory_space<vmem>>, vector<8x8x16xbf16>
    tpu.vector_store %arg7[%c0_64, %c0_65, %c176], %40 {strides = array<i32>} : memref<8x8x400xbf16, #tpu.memory_space<vmem>>, vector<8x8x16xbf16>,
    %c2_66 = arith.constant 2 : index
    %c2_67 = arith.constant 2 : index
    %c0_68 = arith.constant 0 : index
    %42 = vector.load %arg6[%c2_66, %c2_67, %c0_68] : memref<12x12x16xf32, #tpu.memory_space<vmem>>, vector<8x8x16xf32>
    %43 = arith.truncf %42 : vector<8x8x16xf32> to vector<8x8x16xbf16>
    %c0_69 = arith.constant 0 : index
    %c0_70 = arith.constant 0 : index
    %c192 = arith.constant 192 : index
    %44 = vector.load %arg7[%c0_69, %c0_70, %c192] : memref<8x8x400xbf16, #tpu.memory_space<vmem>>, vector<8x8x16xbf16>
    tpu.vector_store %arg7[%c0_69, %c0_70, %c192], %43 {strides = array<i32>} : memref<8x8x400xbf16, #tpu.memory_space<vmem>>, vector<8x8x16xbf16>,
    %c2_71 = arith.constant 2 : index
    %c3_72 = arith.constant 3 : index
    %c0_73 = arith.constant 0 : index
    %45 = vector.load %arg6[%c2_71, %c3_72, %c0_73] : memref<12x12x16xf32, #tpu.memory_space<vmem>>, vector<8x8x16xf32>
    %46 = arith.truncf %45 : vector<8x8x16xf32> to vector<8x8x16xbf16>
    %c0_74 = arith.constant 0 : index
    %c0_75 = arith.constant 0 : index
    %c208 = arith.constant 208 : index
    %47 = vector.load %arg7[%c0_74, %c0_75, %c208] : memref<8x8x400xbf16, #tpu.memory_space<vmem>>, vector<8x8x16xbf16>
    tpu.vector_store %arg7[%c0_74, %c0_75, %c208], %46 {strides = array<i32>} : memref<8x8x400xbf16, #tpu.memory_space<vmem>>, vector<8x8x16xbf16>,
    %c2_76 = arith.constant 2 : index
    %c4_77 = arith.constant 4 : index
    %c0_78 = arith.constant 0 : index
    %48 = vector.load %arg6[%c2_76, %c4_77, %c0_78] : memref<12x12x16xf32, #tpu.memory_space<vmem>>, vector<8x8x16xf32>
    %49 = arith.truncf %48 : vector<8x8x16xf32> to vector<8x8x16xbf16>
    %c0_79 = arith.constant 0 : index
    %c0_80 = arith.constant 0 : index
    %c224 = arith.constant 224 : index
    %50 = vector.load %arg7[%c0_79, %c0_80, %c224] : memref<8x8x400xbf16, #tpu.memory_space<vmem>>, vector<8x8x16xbf16>
    tpu.vector_store %arg7[%c0_79, %c0_80, %c224], %49 {strides = array<i32>} : memref<8x8x400xbf16, #tpu.memory_space<vmem>>, vector<8x8x16xbf16>,
    %c3_81 = arith.constant 3 : index
    %c0_82 = arith.constant 0 : index
    %c0_83 = arith.constant 0 : index
    %51 = vector.load %arg6[%c3_81, %c0_82, %c0_83] : memref<12x12x16xf32, #tpu.memory_space<vmem>>, vector<8x8x16xf32>
    %52 = arith.truncf %51 : vector<8x8x16xf32> to vector<8x8x16xbf16>
    %c0_84 = arith.constant 0 : index
    %c0_85 = arith.constant 0 : index
    %c240 = arith.constant 240 : index
    %53 = vector.load %arg7[%c0_84, %c0_85, %c240] : memref<8x8x400xbf16, #tpu.memory_space<vmem>>, vector<8x8x16xbf16>
    tpu.vector_store %arg7[%c0_84, %c0_85, %c240], %52 {strides = array<i32>} : memref<8x8x400xbf16, #tpu.memory_space<vmem>>, vector<8x8x16xbf16>,
    %c3_86 = arith.constant 3 : index
    %c1_87 = arith.constant 1 : index
    %c0_88 = arith.constant 0 : index
    %54 = vector.load %arg6[%c3_86, %c1_87, %c0_88] : memref<12x12x16xf32, #tpu.memory_space<vmem>>, vector<8x8x16xf32>
    %55 = arith.truncf %54 : vector<8x8x16xf32> to vector<8x8x16xbf16>
    %c0_89 = arith.constant 0 : index
    %c0_90 = arith.constant 0 : index
    %c256 = arith.constant 256 : index
    %56 = vector.load %arg7[%c0_89, %c0_90, %c256] : memref<8x8x400xbf16, #tpu.memory_space<vmem>>, vector<8x8x16xbf16>
    tpu.vector_store %arg7[%c0_89, %c0_90, %c256], %55 {strides = array<i32>} : memref<8x8x400xbf16, #tpu.memory_space<vmem>>, vector<8x8x16xbf16>,
    %c3_91 = arith.constant 3 : index
    %c2_92 = arith.constant 2 : index
    %c0_93 = arith.constant 0 : index
    %57 = vector.load %arg6[%c3_91, %c2_92, %c0_93] : memref<12x12x16xf32, #tpu.memory_space<vmem>>, vector<8x8x16xf32>
    %58 = arith.truncf %57 : vector<8x8x16xf32> to vector<8x8x16xbf16>
    %c0_94 = arith.constant 0 : index
    %c0_95 = arith.constant 0 : index
    %c272 = arith.constant 272 : index
    %59 = vector.load %arg7[%c0_94, %c0_95, %c272] : memref<8x8x400xbf16, #tpu.memory_space<vmem>>, vector<8x8x16xbf16>
    tpu.vector_store %arg7[%c0_94, %c0_95, %c272], %58 {strides = array<i32>} : memref<8x8x400xbf16, #tpu.memory_space<vmem>>, vector<8x8x16xbf16>,
    %c3_96 = arith.constant 3 : index
    %c3_97 = arith.constant 3 : index
    %c0_98 = arith.constant 0 : index
    %60 = vector.load %arg6[%c3_96, %c3_97, %c0_98] : memref<12x12x16xf32, #tpu.memory_space<vmem>>, vector<8x8x16xf32>
    %61 = arith.truncf %60 : vector<8x8x16xf32> to vector<8x8x16xbf16>
    %c0_99 = arith.constant 0 : index
    %c0_100 = arith.constant 0 : index
    %c288 = arith.constant 288 : index
    %62 = vector.load %arg7[%c0_99, %c0_100, %c288] : memref<8x8x400xbf16, #tpu.memory_space<vmem>>, vector<8x8x16xbf16>
    tpu.vector_store %arg7[%c0_99, %c0_100, %c288], %61 {strides = array<i32>} : memref<8x8x400xbf16, #tpu.memory_space<vmem>>, vector<8x8x16xbf16>,
    %c3_101 = arith.constant 3 : index
    %c4_102 = arith.constant 4 : index
    %c0_103 = arith.constant 0 : index
    %63 = vector.load %arg6[%c3_101, %c4_102, %c0_103] : memref<12x12x16xf32, #tpu.memory_space<vmem>>, vector<8x8x16xf32>
    %64 = arith.truncf %63 : vector<8x8x16xf32> to vector<8x8x16xbf16>
    %c0_104 = arith.constant 0 : index
    %c0_105 = arith.constant 0 : index
    %c304 = arith.constant 304 : index
    %65 = vector.load %arg7[%c0_104, %c0_105, %c304] : memref<8x8x400xbf16, #tpu.memory_space<vmem>>, vector<8x8x16xbf16>
    tpu.vector_store %arg7[%c0_104, %c0_105, %c304], %64 {strides = array<i32>} : memref<8x8x400xbf16, #tpu.memory_space<vmem>>, vector<8x8x16xbf16>,
    %c4_106 = arith.constant 4 : index
    %c0_107 = arith.constant 0 : index
    %c0_108 = arith.constant 0 : index
    %66 = vector.load %arg6[%c4_106, %c0_107, %c0_108] : memref<12x12x16xf32, #tpu.memory_space<vmem>>, vector<8x8x16xf32>
    %67 = arith.truncf %66 : vector<8x8x16xf32> to vector<8x8x16xbf16>
    %c0_109 = arith.constant 0 : index
    %c0_110 = arith.constant 0 : index
    %c320 = arith.constant 320 : index
    %68 = vector.load %arg7[%c0_109, %c0_110, %c320] : memref<8x8x400xbf16, #tpu.memory_space<vmem>>, vector<8x8x16xbf16>
    tpu.vector_store %arg7[%c0_109, %c0_110, %c320], %67 {strides = array<i32>} : memref<8x8x400xbf16, #tpu.memory_space<vmem>>, vector<8x8x16xbf16>,
    %c4_111 = arith.constant 4 : index
    %c1_112 = arith.constant 1 : index
    %c0_113 = arith.constant 0 : index
    %69 = vector.load %arg6[%c4_111, %c1_112, %c0_113] : memref<12x12x16xf32, #tpu.memory_space<vmem>>, vector<8x8x16xf32>
    %70 = arith.truncf %69 : vector<8x8x16xf32> to vector<8x8x16xbf16>
    %c0_114 = arith.constant 0 : index
    %c0_115 = arith.constant 0 : index
    %c336 = arith.constant 336 : index
    %71 = vector.load %arg7[%c0_114, %c0_115, %c336] : memref<8x8x400xbf16, #tpu.memory_space<vmem>>, vector<8x8x16xbf16>
    tpu.vector_store %arg7[%c0_114, %c0_115, %c336], %70 {strides = array<i32>} : memref<8x8x400xbf16, #tpu.memory_space<vmem>>, vector<8x8x16xbf16>,
    %c4_116 = arith.constant 4 : index
    %c2_117 = arith.constant 2 : index
    %c0_118 = arith.constant 0 : index
    %72 = vector.load %arg6[%c4_116, %c2_117, %c0_118] : memref<12x12x16xf32, #tpu.memory_space<vmem>>, vector<8x8x16xf32>
    %73 = arith.truncf %72 : vector<8x8x16xf32> to vector<8x8x16xbf16>
    %c0_119 = arith.constant 0 : index
    %c0_120 = arith.constant 0 : index
    %c352 = arith.constant 352 : index
    %74 = vector.load %arg7[%c0_119, %c0_120, %c352] : memref<8x8x400xbf16, #tpu.memory_space<vmem>>, vector<8x8x16xbf16>
    tpu.vector_store %arg7[%c0_119, %c0_120, %c352], %73 {strides = array<i32>} : memref<8x8x400xbf16, #tpu.memory_space<vmem>>, vector<8x8x16xbf16>,
    %c4_121 = arith.constant 4 : index
    %c3_122 = arith.constant 3 : index
    %c0_123 = arith.constant 0 : index
    %75 = vector.load %arg6[%c4_121, %c3_122, %c0_123] : memref<12x12x16xf32, #tpu.memory_space<vmem>>, vector<8x8x16xf32>
    %76 = arith.truncf %75 : vector<8x8x16xf32> to vector<8x8x16xbf16>
    %c0_124 = arith.constant 0 : index
    %c0_125 = arith.constant 0 : index
    %c368 = arith.constant 368 : index
    %77 = vector.load %arg7[%c0_124, %c0_125, %c368] : memref<8x8x400xbf16, #tpu.memory_space<vmem>>, vector<8x8x16xbf16>
    tpu.vector_store %arg7[%c0_124, %c0_125, %c368], %76 {strides = array<i32>} : memref<8x8x400xbf16, #tpu.memory_space<vmem>>, vector<8x8x16xbf16>,
    %c4_126 = arith.constant 4 : index
    %c4_127 = arith.constant 4 : index
    %c0_128 = arith.constant 0 : index
    %78 = vector.load %arg6[%c4_126, %c4_127, %c0_128] : memref<12x12x16xf32, #tpu.memory_space<vmem>>, vector<8x8x16xf32>
    %79 = arith.truncf %78 : vector<8x8x16xf32> to vector<8x8x16xbf16>
    %c0_129 = arith.constant 0 : index
    %c0_130 = arith.constant 0 : index
    %c384 = arith.constant 384 : index
    %80 = vector.load %arg7[%c0_129, %c0_130, %c384] : memref<8x8x400xbf16, #tpu.memory_space<vmem>>, vector<8x8x16xbf16>
    tpu.vector_store %arg7[%c0_129, %c0_130, %c384], %79 {strides = array<i32>} : memref<8x8x400xbf16, #tpu.memory_space<vmem>>, vector<8x8x16xbf16>,
    %c0_131 = arith.constant 0 : index
    %c0_132 = arith.constant 0 : index
    %c0_133 = arith.constant 0 : index
    %81 = vector.load %arg7[%c0_131, %c0_132, %c0_133] : memref<8x8x400xbf16, #tpu.memory_space<vmem>>, vector<8x8x400xbf16>
    %c0_134 = arith.constant 0 : index
    %c0_135 = arith.constant 0 : index
    %82 = vector.load %arg2[%c0_134, %c0_135] : memref<400x32xbf16, #tpu.memory_space<vmem>>, vector<400x32xbf16>
    %cst_136 = arith.constant dense<0.000000e+00> : vector<8x8x32xf32>
    %83 = tpu.matmul %81, %82, %cst_136 {dimension_numbers = #tpu.dot_dimension_numbers<[2], [0], [0, 1], [1], [0, 0, 0, 1, 1, 1], [], []>} : vector<8x8x400xbf16>, vector<400x32xbf16>, vector<8x8x32xf32> -> vector<8x8x32xf32>
    %c0_137 = arith.constant 0 : index
    %c0_138 = arith.constant 0 : index
    %84 = vector.load %arg3[%c0_137, %c0_138] : memref<1x32xf32, #tpu.memory_space<vmem>>, vector<1x32xf32>
    %85 = vector.shape_cast %84 : vector<1x32xf32> to vector<1x1x32xf32>
    %86 = vector.broadcast %85 : vector<1x1x32xf32> to vector<8x8x32xf32>
    %87 = arith.mulf %83, %86 : vector<8x8x32xf32>
    %c0_139 = arith.constant 0 : index
    %c0_140 = arith.constant 0 : index
    %88 = vector.load %arg4[%c0_139, %c0_140] : memref<1x32xf32, #tpu.memory_space<vmem>>, vector<1x32xf32>
    %89 = vector.shape_cast %88 : vector<1x32xf32> to vector<1x1x32xf32>
    %90 = vector.broadcast %89 : vector<1x1x32xf32> to vector<8x8x32xf32>
    %91 = arith.addf %87, %90 : vector<8x8x32xf32>
    %cst_141 = arith.constant 0.000000e+00 : f32
    %92 = vector.broadcast %cst_141 : f32 to vector<8x8x32xf32>
    %93 = arith.maximumf %91, %92 : vector<8x8x32xf32>
    %c0_142 = arith.constant 0 : index
    %c0_143 = arith.constant 0 : index
    %c0_144 = arith.constant 0 : index
    %94 = vector.load %arg8[%c0_142, %c0_143, %c0_144] : memref<8x8x32xf32, #tpu.memory_space<vmem>>, vector<8x8x32xf32>
    tpu.vector_store %arg8[%c0_142, %c0_143, %c0_144], %93 {strides = array<i32>} : memref<8x8x32xf32, #tpu.memory_space<vmem>>, vector<8x8x32xf32>,
    %c0_145 = arith.constant 0 : index
    %c0_146 = arith.constant 0 : index
    %c0_147 = arith.constant 0 : index
    %95 = tpu.strided_load %arg8[%c0_145, %c0_146, %c0_147] {strides = array<i32: 2, 2, 1>} : memref<8x8x32xf32, #tpu.memory_space<vmem>>, vector<4x4x32xf32>
    %c0_148 = arith.constant 0 : index
    %c1_149 = arith.constant 1 : index
    %c0_150 = arith.constant 0 : index
    %96 = tpu.strided_load %arg8[%c0_148, %c1_149, %c0_150] {strides = array<i32: 2, 2, 1>} : memref<8x8x32xf32, #tpu.memory_space<vmem>>, vector<4x4x32xf32>
    %c1_151 = arith.constant 1 : index
    %c0_152 = arith.constant 0 : index
    %c0_153 = arith.constant 0 : index
    %97 = tpu.strided_load %arg8[%c1_151, %c0_152, %c0_153] {strides = array<i32: 2, 2, 1>} : memref<8x8x32xf32, #tpu.memory_space<vmem>>, vector<4x4x32xf32>
    %c1_154 = arith.constant 1 : index
    %c1_155 = arith.constant 1 : index
    %c0_156 = arith.constant 0 : index
    %98 = tpu.strided_load %arg8[%c1_154, %c1_155, %c0_156] {strides = array<i32: 2, 2, 1>} : memref<8x8x32xf32, #tpu.memory_space<vmem>>, vector<4x4x32xf32>
    %99 = arith.maximumf %95, %96 : vector<4x4x32xf32>
    %100 = arith.maximumf %97, %98 : vector<4x4x32xf32>
    %101 = arith.maximumf %99, %100 : vector<4x4x32xf32>
    %102 = arith.truncf %101 : vector<4x4x32xf32> to vector<4x4x32xbf16>
    %c0_157 = arith.constant 0 : index
    %c0_158 = arith.constant 0 : index
    %c0_159 = arith.constant 0 : index
    %c0_160 = arith.constant 0 : index
    %103 = vector.load %arg5[%c0_157, %c0_158, %c0_159, %c0_160] : memref<1x4x4x32xbf16, #tpu.memory_space<vmem>>, vector<1x4x4x32xbf16>
    %104 = vector.shape_cast %103 : vector<1x4x4x32xbf16> to vector<4x4x32xbf16>
    %105 = vector.shape_cast %102 : vector<4x4x32xbf16> to vector<1x4x4x32xbf16>
    tpu.vector_store %arg5[%c0_157, %c0_158, %c0_159, %c0_160], %105 {strides = array<i32>} : memref<1x4x4x32xbf16, #tpu.memory_space<vmem>>, vector<1x4x4x32xbf16>,
    return
  }
  func.func @transform_0(%arg0: i32) -> (i32, i32, i32, i32) {
    %c0_i32 = arith.constant 0 : i32
    %c0_i32_0 = arith.constant 0 : i32
    %c0_i32_1 = arith.constant 0 : i32
    %c0_i32_2 = arith.constant 0 : i32
    return %arg0, %c0_i32, %c0_i32_0, %c0_i32_1 : i32, i32, i32, i32
  }
  func.func @transform_1(%arg0: i32) -> (i32, i32) {
    %c0_i32 = arith.constant 0 : i32
    %c0_i32_0 = arith.constant 0 : i32
    %c0_i32_1 = arith.constant 0 : i32
    return %c0_i32, %c0_i32_0 : i32, i32
  }
  func.func @transform_2(%arg0: i32) -> (i32, i32) {
    %c0_i32 = arith.constant 0 : i32
    %c0_i32_0 = arith.constant 0 : i32
    %c0_i32_1 = arith.constant 0 : i32
    return %c0_i32, %c0_i32_0 : i32, i32
  }
  func.func @transform_3(%arg0: i32) -> (i32, i32) {
    %c0_i32 = arith.constant 0 : i32
    %c0_i32_0 = arith.constant 0 : i32
    %c0_i32_1 = arith.constant 0 : i32
    return %c0_i32, %c0_i32_0 : i32, i32
  }
  func.func @transform_4(%arg0: i32) -> (i32, i32, i32, i32) {
    %c0_i32 = arith.constant 0 : i32
    %c0_i32_0 = arith.constant 0 : i32
    %c0_i32_1 = arith.constant 0 : i32
    %c0_i32_2 = arith.constant 0 : i32
    return %arg0, %c0_i32, %c0_i32_0, %c0_i32_1 : i32, i32, i32, i32
  }
}

module attributes {stable_mosaic.version = 11 : i64} {
  func.func @_fc_kernel(%arg0: i32, %arg1: memref<2x512xbf16, #tpu.memory_space<vmem>>, %arg2: memref<512x128xbf16, #tpu.memory_space<vmem>>, %arg3: memref<1x128xf32, #tpu.memory_space<vmem>>, %arg4: memref<2x128xf32, #tpu.memory_space<vmem>>, %arg5: memref<2x128xf32, #tpu.memory_space<vmem>>) attributes {dimension_semantics = [#tpu.dimension_semantics<arbitrary>], iteration_bounds = array<i64: 1>, scalar_prefetch = 0 : i64, scratch_operands = 1 : i64, tpu.core_type = #tpu.core_type<tc>, window_params = [{transform_indices = @transform_0, window_bounds = array<i64: 2, 512>}, {transform_indices = @transform_1, window_bounds = array<i64: 512, 128>}, {pipeline_mode = #tpu.pipeline_mode<synchronous>, transform_indices = @transform_2, window_bounds = array<i64: 1, 128>}, {pipeline_mode = #tpu.pipeline_mode<synchronous>, transform_indices = @transform_3, window_bounds = array<i64: 2, 128>}]} {
    %c0_i32 = arith.constant 0 : i32
    %0 = arith.cmpi eq, %arg0, %c0_i32 : i32
    %1 = arith.extui %0 : i1 to i32
    %c0_i32_0 = arith.constant 0 : i32
    %2 = arith.cmpi ne, %1, %c0_i32_0 : i32
    scf.if %2 {
      %cst_10 = arith.constant 0.000000e+00 : f32
      %12 = vector.broadcast %cst_10 : f32 to vector<2x128xf32>
      %c0_11 = arith.constant 0 : index
      %c0_12 = arith.constant 0 : index
      %13 = vector.load %arg5[%c0_11, %c0_12] : memref<2x128xf32, #tpu.memory_space<vmem>>, vector<2x128xf32>
      tpu.vector_store %arg5[%c0_11, %c0_12], %12 {strides = array<i32>} : memref<2x128xf32, #tpu.memory_space<vmem>>, vector<2x128xf32>,
    } else {
    }
    %c0 = arith.constant 0 : index
    %c0_1 = arith.constant 0 : index
    %3 = vector.load %arg5[%c0, %c0_1] : memref<2x128xf32, #tpu.memory_space<vmem>>, vector<2x128xf32>
    %c0_2 = arith.constant 0 : index
    %c0_3 = arith.constant 0 : index
    %4 = vector.load %arg1[%c0_2, %c0_3] : memref<2x512xbf16, #tpu.memory_space<vmem>>, vector<2x512xbf16>
    %c0_4 = arith.constant 0 : index
    %c0_5 = arith.constant 0 : index
    %5 = vector.load %arg2[%c0_4, %c0_5] : memref<512x128xbf16, #tpu.memory_space<vmem>>, vector<512x128xbf16>
    %cst = arith.constant dense<0.000000e+00> : vector<2x128xf32>
    %6 = tpu.matmul %4, %5, %cst {dimension_numbers = #tpu.dot_dimension_numbers<[1], [0], [0], [1], [0, 0, 1, 1], [], []>} : vector<2x512xbf16>, vector<512x128xbf16>, vector<2x128xf32> -> vector<2x128xf32>
    %7 = arith.addf %3, %6 : vector<2x128xf32>
    %c0_6 = arith.constant 0 : index
    %c0_7 = arith.constant 0 : index
    %8 = vector.load %arg5[%c0_6, %c0_7] : memref<2x128xf32, #tpu.memory_space<vmem>>, vector<2x128xf32>
    tpu.vector_store %arg5[%c0_6, %c0_7], %7 {strides = array<i32>} : memref<2x128xf32, #tpu.memory_space<vmem>>, vector<2x128xf32>,
    %c0_i32_8 = arith.constant 0 : i32
    %9 = arith.cmpi eq, %arg0, %c0_i32_8 : i32
    %10 = arith.extui %9 : i1 to i32
    %c0_i32_9 = arith.constant 0 : i32
    %11 = arith.cmpi ne, %10, %c0_i32_9 : i32
    scf.if %11 {
      %c0_10 = arith.constant 0 : index
      %c0_11 = arith.constant 0 : index
      %12 = vector.load %arg5[%c0_10, %c0_11] : memref<2x128xf32, #tpu.memory_space<vmem>>, vector<2x128xf32>
      %c0_12 = arith.constant 0 : index
      %c0_13 = arith.constant 0 : index
      %13 = vector.load %arg3[%c0_12, %c0_13] : memref<1x128xf32, #tpu.memory_space<vmem>>, vector<1x128xf32>
      %14 = vector.broadcast %13 : vector<1x128xf32> to vector<2x128xf32>
      %15 = arith.addf %12, %14 : vector<2x128xf32>
      %c0_14 = arith.constant 0 : index
      %c0_15 = arith.constant 0 : index
      %16 = vector.load %arg4[%c0_14, %c0_15] : memref<2x128xf32, #tpu.memory_space<vmem>>, vector<2x128xf32>
      tpu.vector_store %arg4[%c0_14, %c0_15], %15 {strides = array<i32>} : memref<2x128xf32, #tpu.memory_space<vmem>>, vector<2x128xf32>,
    } else {
    }
    return
  }
  func.func @transform_0(%arg0: i32) -> (i32, i32) {
    %c0_i32 = arith.constant 0 : i32
    %c0_i32_0 = arith.constant 0 : i32
    return %c0_i32, %arg0 : i32, i32
  }
  func.func @transform_1(%arg0: i32) -> (i32, i32) {
    %c0_i32 = arith.constant 0 : i32
    %c0_i32_0 = arith.constant 0 : i32
    return %arg0, %c0_i32 : i32, i32
  }
  func.func @transform_2(%arg0: i32) -> (i32, i32) {
    %c0_i32 = arith.constant 0 : i32
    %c0_i32_0 = arith.constant 0 : i32
    %c0_i32_1 = arith.constant 0 : i32
    return %c0_i32, %c0_i32_0 : i32, i32
  }
  func.func @transform_3(%arg0: i32) -> (i32, i32) {
    %c0_i32 = arith.constant 0 : i32
    %c0_i32_0 = arith.constant 0 : i32
    %c0_i32_1 = arith.constant 0 : i32
    return %c0_i32, %c0_i32_0 : i32, i32
  }
}

</mosaic_0001>

<llo_original>
// kernel: net_forward.5
$region0: #{net_forward.5}
  #allocation0 [shape = 'u32[]', space=smem, size = 0x4, offset = 0x4, fixed_abs, tag = 'smem constant byte address 0x4 - core index']
  #allocation1 [shape = 'u32[144,128]{1,0:T(1,128)}', space=vmem, size = 0x12000, scoped, tag = 'internal scratch']
  #allocation2 [shape = 'f32[2,128]{1,0:T(2,128)}', space=vmem, size = 0x400, scoped, tag = 'scratch operand']
  %s0 = inlined_call_operand.vmem [shape: bf16[2,512], index: 0, kind: input, shape index: {}]
  %s1 = inlined_call_operand.vmem [shape: bf16[512,128], index: 1, kind: input, shape index: {}]
  %s2 = inlined_call_operand.vmem [shape: f32[1,128], index: 2, kind: input, shape index: {}]
  %s3 = inlined_call_operand.hbm [shape: f32[2,128], index: 3, kind: output, shape index: {}]
  %s4 = sld [smem:[#allocation0]]
  $region30: #{net_forward.5} parent=0
    _
  %s6 = ssub.s32 1, %s4
  %s7 = scalar_select 0, %s6, %s4
  $region1: #{net_forward.5} parent=0
    #allocation3 [shape = 'u8[1024]{0}', space=vmem, size = 0x400, scoped, tag = 'output window, operand 0, single buffered']
    #allocation4 [shape = 's32[1]{0}', space=sflag, size = 0x4, scoped, tag = 'scoped memory for net_forward.5']
    %8 = vsyncpa [#allocation4], 0
    // Predicated region
    $region2: #{net_forward.5} parent=1 // pred_check
      _
    $region3: #{net_forward.5} parent=1 // pred_check_branch
      %10 = sbr.rel (0) target = $region5
    $region4: #{net_forward.5} parent=1 // pred_region
      _
    $region5: #{net_forward.5} parent=1 // pred_fallthru
      _
    // Predicated region
    $region6: #{net_forward.5} parent=1 // pred_check
      _
    $region7: #{net_forward.5} parent=1 // pred_check_branch
      %12 = sbr.rel (0) target = $region9
    $region8: #{net_forward.5} parent=1 // pred_region
      _
    $region9: #{net_forward.5} parent=1 // pred_fallthru
      _
    // Predicated region
    $region10: #{net_forward.5} parent=1 // pred_check
      _
    $region11: #{net_forward.5} parent=1 // pred_check_branch
      %14 = sbr.rel (0) target = $region13
    $region12: #{net_forward.5} parent=1 // pred_region
      _
    $region13: #{net_forward.5} parent=1 // pred_fallthru
      _
    %p16 = scmp.eq.s32.totalorder 0, 0
    // Predicated region
    $region14: #{net_forward.5} parent=1 // pred_check
      %p17 = pneg %p16
    $region15: #{net_forward.5} parent=1 // pred_check_branch
      %19 = sbr.rel (%p17) target = $region17
    $region16: #{net_forward.5} parent=1 // pred_region
      %20 = vst [vmem:[#allocation2] sm:$0x3] 0.0
    $region17: #{net_forward.5} parent=1 // pred_fallthru
      _
    %v21 = vld [vmem:[#allocation2] sm:$0x3]
    %v22 = vld [vmem:[%s0] sm:$0xf]
    %v23 = vld [vmem:[%s1] sm:$0xf]
    %v24 = vld [vmem:[%s1 + $0x4] sm:$0xf]
    %v25 = vld [vmem:[%s1 + $0x8] sm:$0xf]
    %v26 = vld [vmem:[%s1 + $0xc] sm:$0xf]
    %v27 = vld [vmem:[%s1 + $0x10] sm:$0xf]
    %v28 = vld [vmem:[%s1 + $0x14] sm:$0xf]
    %v29 = vld [vmem:[%s1 + $0x18] sm:$0xf]
    %v30 = vld [vmem:[%s1 + $0x1c] sm:$0xf]
    %v31 = vld [vmem:[%s1 + $0x20] sm:$0xf]
    %v32 = vld [vmem:[%s1 + $0x24] sm:$0xf]
    %v33 = vld [vmem:[%s1 + $0x28] sm:$0xf]
    %v34 = vld [vmem:[%s1 + $0x2c] sm:$0xf]
    %v35 = vld [vmem:[%s1 + $0x30] sm:$0xf]
    %v36 = vld [vmem:[%s1 + $0x34] sm:$0xf]
    %v37 = vld [vmem:[%s1 + $0x38] sm:$0xf]
    %v38 = vld [vmem:[%s1 + $0x3c] sm:$0xf]
    %v39 = vld [vmem:[%s1 + $0x40] sm:$0xf]
    %v40 = vld [vmem:[%s1 + $0x44] sm:$0xf]
    %v41 = vld [vmem:[%s1 + $0x48] sm:$0xf]
    %v42 = vld [vmem:[%s1 + $0x4c] sm:$0xf]
    %v43 = vld [vmem:[%s1 + $0x50] sm:$0xf]
    %v44 = vld [vmem:[%s1 + $0x54] sm:$0xf]
    %v45 = vld [vmem:[%s1 + $0x58] sm:$0xf]
    %v46 = vld [vmem:[%s1 + $0x5c] sm:$0xf]
    %v47 = vld [vmem:[%s1 + $0x60] sm:$0xf]
    %v48 = vld [vmem:[%s1 + $0x64] sm:$0xf]
    %v49 = vld [vmem:[%s1 + $0x68] sm:$0xf]
    %v50 = vld [vmem:[%s1 + $0x6c] sm:$0xf]
    %v51 = vld [vmem:[%s1 + $0x70] sm:$0xf]
    %v52 = vld [vmem:[%s1 + $0x74] sm:$0xf]
    %v53 = vld [vmem:[%s1 + $0x78] sm:$0xf]
    %v54 = vld [vmem:[%s1 + $0x7c] sm:$0xf]
    %v55 = vld [vmem:[%s1 + $0x80] sm:$0xf]
    %v56 = vld [vmem:[%s1 + $0x84] sm:$0xf]
    %v57 = vld [vmem:[%s1 + $0x88] sm:$0xf]
    %v58 = vld [vmem:[%s1 + $0x8c] sm:$0xf]
    %v59 = vld [vmem:[%s1 + $0x90] sm:$0xf]
    %v60 = vld [vmem:[%s1 + $0x94] sm:$0xf]
    %v61 = vld [vmem:[%s1 + $0x98] sm:$0xf]
    %v62 = vld [vmem:[%s1 + $0x9c] sm:$0xf]
    %v63 = vld [vmem:[%s1 + $0xa0] sm:$0xf]
    %v64 = vld [vmem:[%s1 + $0xa4] sm:$0xf]
    %v65 = vld [vmem:[%s1 + $0xa8] sm:$0xf]
    %v66 = vld [vmem:[%s1 + $0xac] sm:$0xf]
    %v67 = vld [vmem:[%s1 + $0xb0] sm:$0xf]
    %v68 = vld [vmem:[%s1 + $0xb4] sm:$0xf]
    %v69 = vld [vmem:[%s1 + $0xb8] sm:$0xf]
    %v70 = vld [vmem:[%s1 + $0xbc] sm:$0xf]
    %v71 = vld [vmem:[%s1 + $0xc0] sm:$0xf]
    %v72 = vld [vmem:[%s1 + $0xc4] sm:$0xf]
    %v73 = vld [vmem:[%s1 + $0xc8] sm:$0xf]
    %v74 = vld [vmem:[%s1 + $0xcc] sm:$0xf]
    %v75 = vld [vmem:[%s1 + $0xd0] sm:$0xf]
    %v76 = vld [vmem:[%s1 + $0xd4] sm:$0xf]
    %v77 = vld [vmem:[%s1 + $0xd8] sm:$0xf]
    %v78 = vld [vmem:[%s1 + $0xdc] sm:$0xf]
    %v79 = vld [vmem:[%s1 + $0xe0] sm:$0xf]
    %v80 = vld [vmem:[%s1 + $0xe4] sm:$0xf]
    %v81 = vld [vmem:[%s1 + $0xe8] sm:$0xf]
    %v82 = vld [vmem:[%s1 + $0xec] sm:$0xf]
    %v83 = vld [vmem:[%s1 + $0xf0] sm:$0xf]
    %v84 = vld [vmem:[%s1 + $0xf4] sm:$0xf]
    %v85 = vld [vmem:[%s1 + $0xf8] sm:$0xf]
    %v86 = vld [vmem:[%s1 + $0xfc] sm:$0xf]
    %v89 = vunpack.c.l.s4 1966171168
    %v90 = vunpack.c.0.s8 %v89
    %v91 = vlaneseq
    %v92 = vshrl.u32 %v91, 7
    %v93 = vsub.s32 %v90, %v92
    %v94 = vrot.slane %v22, %v93
    %v95 = vcombine.high %v94, %v94
    %v97 = vunpack.c.l.s4 1966171168
    %v98 = vunpack.c.0.s8 %v97
    %v99 = vlaneseq
    %v100 = vshrl.u32 %v99, 7
    %v101 = vsub.s32 %v98, %v100
    %v102 = vrot.slane %v94, %v101
    %v104 = vunpack.c.l.s4 1966171168
    %v105 = vunpack.c.0.s8 %v104
    %v106 = vlaneseq
    %v107 = vshrl.u32 %v106, 7
    %v108 = vsub.s32 %v105, %v107
    %v109 = vrot.slane %v95, %v108
    %v110 = vcombine.high %v102, %v102
    %v111 = vcombine.high %v109, %v109
    %v180 = vunpack.c.l.b16 %v23
    %v181 = vunpack.c.l.b16 %v24
    %v182 = vunpack.c.l.b16 %v25
    %v183 = vunpack.c.l.b16 %v26
    %v184 = vunpack.c.l.b16 %v27
    %v185 = vunpack.c.l.b16 %v28
    %v186 = vunpack.c.l.b16 %v29
    %v187 = vunpack.c.l.b16 %v30
    %v188 = vunpack.c.l.b16 %v31
    %v189 = vunpack.c.l.b16 %v32
    %v190 = vunpack.c.l.b16 %v33
    %v191 = vunpack.c.l.b16 %v34
    %v192 = vunpack.c.l.b16 %v35
    %v193 = vunpack.c.l.b16 %v36
    %v194 = vunpack.c.l.b16 %v37
    %v195 = vunpack.c.l.b16 %v38
    %v196 = vunpack.c.l.b16 %v39
    %v197 = vunpack.c.l.b16 %v40
    %v198 = vunpack.c.l.b16 %v41
    %v199 = vunpack.c.l.b16 %v42
    %v200 = vunpack.c.l.b16 %v43
    %v201 = vunpack.c.l.b16 %v44
    %v202 = vunpack.c.l.b16 %v45
    %v203 = vunpack.c.l.b16 %v46
    %v204 = vunpack.c.l.b16 %v47
    %v205 = vunpack.c.l.b16 %v48
    %v206 = vunpack.c.l.b16 %v49
    %v207 = vunpack.c.l.b16 %v50
    %v208 = vunpack.c.l.b16 %v51
    %v209 = vunpack.c.l.b16 %v52
    %v210 = vunpack.c.l.b16 %v53
    %v211 = vunpack.c.l.b16 %v54
    %v212 = vunpack.c.l.b16 %v55
    %v213 = vunpack.c.l.b16 %v56
    %v214 = vunpack.c.l.b16 %v57
    %v215 = vunpack.c.l.b16 %v58
    %v216 = vunpack.c.l.b16 %v59
    %v217 = vunpack.c.l.b16 %v60
    %v218 = vunpack.c.l.b16 %v61
    %v219 = vunpack.c.l.b16 %v62
    %v220 = vunpack.c.l.b16 %v63
    %v221 = vunpack.c.l.b16 %v64
    %v222 = vunpack.c.l.b16 %v65
    %v223 = vunpack.c.l.b16 %v66
    %v224 = vunpack.c.l.b16 %v67
    %v225 = vunpack.c.l.b16 %v68
    %v226 = vunpack.c.l.b16 %v69
    %v227 = vunpack.c.l.b16 %v70
    %v228 = vunpack.c.l.b16 %v71
    %v229 = vunpack.c.l.b16 %v72
    %v230 = vunpack.c.l.b16 %v73
    %v231 = vunpack.c.l.b16 %v74
    %v232 = vunpack.c.l.b16 %v75
    %v233 = vunpack.c.l.b16 %v76
    %v234 = vunpack.c.l.b16 %v77
    %v235 = vunpack.c.l.b16 %v78
    %v236 = vunpack.c.l.b16 %v79
    %v237 = vunpack.c.l.b16 %v80
    %v238 = vunpack.c.l.b16 %v81
    %v239 = vunpack.c.l.b16 %v82
    %v240 = vunpack.c.l.b16 %v83
    %v241 = vunpack.c.l.b16 %v84
    %v242 = vunpack.c.l.b16 %v85
    %v243 = vunpack.c.l.b16 %v86
    %v244 = vpack.c.b16 %v181, %v180
    %v245 = vpack.c.b16 %v183, %v182
    %v246 = vpack.c.b16 %v185, %v184
    %v247 = vpack.c.b16 %v187, %v186
    %v248 = vpack.c.b16 %v189, %v188
    %v249 = vpack.c.b16 %v191, %v190
    %v250 = vpack.c.b16 %v193, %v192
    %v251 = vpack.c.b16 %v195, %v194
    %v252 = vpack.c.b16 %v197, %v196
    %v253 = vpack.c.b16 %v199, %v198
    %v254 = vpack.c.b16 %v201, %v200
    %v255 = vpack.c.b16 %v203, %v202
    %v256 = vpack.c.b16 %v205, %v204
    %v257 = vpack.c.b16 %v207, %v206
    %v258 = vpack.c.b16 %v209, %v208
    %v259 = vpack.c.b16 %v211, %v210
    %v260 = vpack.c.b16 %v213, %v212
    %v261 = vpack.c.b16 %v215, %v214
    %v262 = vpack.c.b16 %v217, %v216
    %v263 = vpack.c.b16 %v219, %v218
    %v264 = vpack.c.b16 %v221, %v220
    %v265 = vpack.c.b16 %v223, %v222
    %v266 = vpack.c.b16 %v225, %v224
    %v267 = vpack.c.b16 %v227, %v226
    %v268 = vpack.c.b16 %v229, %v228
    %v269 = vpack.c.b16 %v231, %v230
    %v270 = vpack.c.b16 %v233, %v232
    %v271 = vpack.c.b16 %v235, %v234
    %v272 = vpack.c.b16 %v237, %v236
    %v273 = vpack.c.b16 %v239, %v238
    %v274 = vpack.c.b16 %v241, %v240
    %v275 = vpack.c.b16 %v243, %v242
    %308 = vmatprep.subr.bf16.mxu0 0
    %309 = vmatpush1.bf16.msra.mxu0 %v244
    %310 = vmatprep.subr.bf16.mxu0 0
    %311 = vmatpush1.bf16.msra.mxu0 %v245
    %312 = vmatprep.subr.bf16.mxu0 0
    %313 = vmatpush1.bf16.msra.mxu0 %v246
    %314 = vmatprep.subr.bf16.mxu0 0
    %315 = vmatpush1.bf16.msra.mxu0 %v247
    %316 = vmatprep.subr.bf16.mxu0 0
    %317 = vmatpush1.bf16.msra.mxu0 %v248
    %318 = vmatprep.subr.bf16.mxu0 0
    %319 = vmatpush1.bf16.msra.mxu0 %v249
    %320 = vmatprep.subr.bf16.mxu0 0
    %321 = vmatpush1.bf16.msra.mxu0 %v250
    %322 = vmatprep.subr.bf16.mxu0 0
    %323 = vmatpush1.bf16.msra.mxu0 %v251
    %324 = vmatprep.subr.bf16.mxu0 0
    %325 = vmatpush1.bf16.msra.mxu0 %v252
    %326 = vmatprep.subr.bf16.mxu0 0
    %327 = vmatpush1.bf16.msra.mxu0 %v253
    %328 = vmatprep.subr.bf16.mxu0 0
    %329 = vmatpush1.bf16.msra.mxu0 %v254
    %330 = vmatprep.subr.bf16.mxu0 0
    %331 = vmatpush1.bf16.msra.mxu0 %v255
    %332 = vmatprep.subr.bf16.mxu0 0
    %333 = vmatpush1.bf16.msra.mxu0 %v256
    %334 = vmatprep.subr.bf16.mxu0 0
    %335 = vmatpush1.bf16.msra.mxu0 %v257
    %336 = vmatprep.subr.bf16.mxu0 0
    %337 = vmatpush1.bf16.msra.mxu0 %v258
    %338 = vmatprep.subr.bf16.mxu0 0
    %339 = vmatpush1.bf16.msra.mxu0 %v259
    %340 = vmatprep.mubr.bf16.mxu0 %v109
    %341 = vmatmul.mubr.bf16.gmra.mrb[0].mxu0 %v102
    %v342 = vpop.f32.mrb[0].mxu0
    %v343 = vadd.f32 0.0, %v342
    %v344 = vpop.f32.mrb[0].mxu0
    %v345 = vpop.f32.mrb[0].mxu0
    %v346 = vpop.f32.mrb[0].mxu0
    %347 = vdwg.mxu0
    %348 = vmatprep.subr.bf16.mxu0 0
    %349 = vmatpush1.bf16.msra.mxu0 %v260
    %350 = vmatprep.subr.bf16.mxu0 0
    %351 = vmatpush1.bf16.msra.mxu0 %v261
    %352 = vmatprep.subr.bf16.mxu0 0
    %353 = vmatpush1.bf16.msra.mxu0 %v262
    %354 = vmatprep.subr.bf16.mxu0 0
    %355 = vmatpush1.bf16.msra.mxu0 %v263
    %356 = vmatprep.subr.bf16.mxu0 0
    %357 = vmatpush1.bf16.msra.mxu0 %v264
    %358 = vmatprep.subr.bf16.mxu0 0
    %359 = vmatpush1.bf16.msra.mxu0 %v265
    %360 = vmatprep.subr.bf16.mxu0 0
    %361 = vmatpush1.bf16.msra.mxu0 %v266
    %362 = vmatprep.subr.bf16.mxu0 0
    %363 = vmatpush1.bf16.msra.mxu0 %v267
    %364 = vmatprep.subr.bf16.mxu0 0
    %365 = vmatpush1.bf16.msra.mxu0 %v268
    %366 = vmatprep.subr.bf16.mxu0 0
    %367 = vmatpush1.bf16.msra.mxu0 %v269
    %368 = vmatprep.subr.bf16.mxu0 0
    %369 = vmatpush1.bf16.msra.mxu0 %v270
    %370 = vmatprep.subr.bf16.mxu0 0
    %371 = vmatpush1.bf16.msra.mxu0 %v271
    %372 = vmatprep.subr.bf16.mxu0 0
    %373 = vmatpush1.bf16.msra.mxu0 %v272
    %374 = vmatprep.subr.bf16.mxu0 0
    %375 = vmatpush1.bf16.msra.mxu0 %v273
    %376 = vmatprep.subr.bf16.mxu0 0
    %377 = vmatpush1.bf16.msra.mxu0 %v274
    %378 = vmatprep.subr.bf16.mxu0 0
    %379 = vmatpush1.bf16.msra.mxu0 %v275
    %380 = vmatprep.mubr.bf16.mxu0 %v111
    %381 = vmatmul.mubr.bf16.gmra.mrb[0].mxu0 %v110
    %v382 = vpop.f32.mrb[0].mxu0
    %v383 = vadd.f32 %v343, %v382
    %v384 = vpop.f32.mrb[0].mxu0
    %v385 = vpop.f32.mrb[0].mxu0
    %v386 = vpop.f32.mrb[0].mxu0
    %387 = vdwg.mxu0
    %v388 = vadd.f32 %v21, %v383
    %389 = vst [vmem:[#allocation2] sm:$0x3] %v388
    // Predicated region
    $region18: #{net_forward.5} parent=1 // pred_check
      %p390 = pneg %p16
    $region19: #{net_forward.5} parent=1 // pred_check_branch
      %392 = sbr.rel (%p390) target = $region21
    $region20: #{net_forward.5} parent=1 // pred_region
      %v393 = vld [vmem:[#allocation2] sm:$0x3]
      %v394 = vld [vmem:[%s2] sm:$0x1]
      %v396 = vlaneseq
      %v397 = vshrl.u32 %v396, 7
      %v398 = vsub.s32 0, %v397
      %v399 = vrot.slane %v394, %v398
      %v401 = vadd.f32 %v393, %v399
      %402 = vst [vmem:[#allocation3] sm:$0x3] %v401
    $region21: #{net_forward.5} parent=1 // pred_fallthru
      _
    // Predicated region
    $region22: #{net_forward.5} parent=1 // pred_check
      _
    $region23: #{net_forward.5} parent=1 // pred_check_branch
      %404 = sbr.rel (0) target = $region25
    $region24: #{net_forward.5} parent=1 // pred_region
      %s406 = ssub.s32 32, 32
      %407 = vsyncadd [#allocation4], %s406
      %s409 = sshll.u32 [#allocation3], 4
      %s410 = int_to_ptr.vmem [resolvable:$true] %s409
      %412 = dma.vmem_to_hbm [thread:$0]  %s410, 32, %s3, [#allocation4]
    $region25: #{net_forward.5} parent=1 // pred_fallthru
      _
    // Predicated region
    $region26: #{net_forward.5} parent=1 // pred_check
      _
    $region27: #{net_forward.5} parent=1 // pred_check_branch
      %414 = sbr.rel (0) target = $region29
    $region28: #{net_forward.5} parent=1 // pred_region
      %415 = dma.done [#allocation4], 32
    $region29: #{net_forward.5} parent=1 // pred_fallthru
      _
    %416 = vsyncpa [#allocation4], 1

// kernel: net_forward.4
$region0: #{net_forward.4}
  #allocation0 [shape = 'u32[]', space=smem, size = 0x4, offset = 0x4, fixed_abs, tag = 'smem constant byte address 0x4 - core index']
  #allocation1 [shape = 'u32[144,128]{1,0:T(1,128)}', space=vmem, size = 0x12000, scoped, tag = 'internal scratch']
  #allocation2 [shape = 'f32[12,12,16]{2,1,0:T(8,128)}', space=vmem, size = 0x18000, scoped, tag = 'scratch operand']
  #allocation3 [shape = 'bf16[8,8,400]{2,1,0:T(8,128)(2,1)}', space=vmem, size = 0x10000, scoped, tag = 'scratch operand']
  #allocation4 [shape = 'f32[8,8,32]{2,1,0:T(8,128)}', space=vmem, size = 0x8000, scoped, tag = 'scratch operand']
  %s0 = inlined_call_operand.vmem [shape: bf16[2,8,8,16], index: 0, kind: input, shape index: {}]
  %s1 = inlined_call_operand.vmem [shape: bf16[400,32], index: 1, kind: input, shape index: {}]
  %s2 = inlined_call_operand.vmem [shape: f32[1,32], index: 2, kind: input, shape index: {}]
  %s3 = inlined_call_operand.vmem [shape: f32[1,32], index: 3, kind: input, shape index: {}]
  %s4 = inlined_call_operand.vmem [shape: bf16[2,4,4,32], index: 4, kind: output, shape index: {}]
  %s5 = sld [smem:[#allocation0]]
  $region49: #{net_forward.4} parent=0
    _
  %s7 = ssub.s32 1, %s5
  %s8 = scalar_select 0, %s7, %s5
  loop: start=0, step=1, limit=4
  $region2: #{net_forward.4} parent=0 // loop_pre_header
    _
  $region3: #{net_forward.4} parent=0 // loop_header
    %s10 = sphi 0, %s14
    %p11 = scmp.ge.s32.totalorder %s10, 4
    %s20 = sphi 0, %s22
    %s23 = sphi 0, %s20
    %s24 = sphi 0, %s23
    %s40 = sphi 0, %s24
    %s44 = sphi 0, %s44
    %s46 = sphi 0, %s44
    %s47 = sphi 0, %s46
    %s61 = sphi 0, %s47
    %s65 = sphi 0, %s65
    %s67 = sphi 0, %s65
    %s68 = sphi 0, %s67
    %s82 = sphi 0, %s68
    %s86 = sphi 0, %s86
    %s88 = sphi 0, %s86
    %s89 = sphi 0, %s88
    %s103 = sphi 0, %s89
    %s109 = sphi 0, %s111
    %s112 = sphi 0, %s109
    %s113 = sphi 0, %s112
    %s129 = sphi 0, %s113
  $region4: #{net_forward.4} parent=0 // loop_header_branch
    %13 = sbr.rel (%p11) target = $region8
  $region5: #{net_forward.4} parent=0 // loop_body
    %s15 = ssub.s32 %s10, 1
    %s16 = ssub.s32 %s10, 2
    %s17 = sadd.s32 %s10, 1
    %s18 = ssub.s32 %s10, %s17
    %p19 = scmp.eq.s32.totalorder %s18, 0
    %s21 = sadd.s32 %s20, 1
    %s22 = scalar_select %p19, %s20, %s21
    %p25 = pneg %p19
    %p26 = scmp.eq.s32.totalorder %s10, 1
    %p27 = por %p25, %p26
    %p28 = scmp.ne.s32.totalorder %s20, %s23
    %p29 = scmp.eq.s32.totalorder %s10, 0
    %p30 = por %p28, %p29
    %p31 = scmp.ne.s32.totalorder %s20, %s23
    %p32 = scmp.eq.s32.totalorder %s15, 1
    %p33 = por %p31, %p32
    %p34 = scmp.ne.s32.totalorder %s23, %s24
    %p35 = scmp.eq.s32.totalorder %s15, 0
    %p36 = por %p34, %p35
    %p37 = scmp.ne.s32.totalorder %s23, %s24
    %p38 = scmp.eq.s32.totalorder %s16, 1
    %p39 = por %p37, %p38
    %p41 = scmp.ne.s32.totalorder %s24, %s40
    %p42 = scmp.eq.s32.totalorder %s16, 0
    %p43 = por %p41, %p42
    %s45 = sadd.s32 %s44, 1
    %p48 = scmp.eq.s32.totalorder %s10, 1
    %p49 = scmp.ne.s32.totalorder %s44, %s46
    %p50 = scmp.eq.s32.totalorder %s10, 0
    %p51 = por %p49, %p50
    %p52 = scmp.ne.s32.totalorder %s44, %s46
    %p53 = scmp.eq.s32.totalorder %s15, 1
    %p54 = por %p52, %p53
    %p55 = scmp.ne.s32.totalorder %s46, %s47
    %p56 = scmp.eq.s32.totalorder %s15, 0
    %p57 = por %p55, %p56
    %p58 = scmp.ne.s32.totalorder %s46, %s47
    %p59 = scmp.eq.s32.totalorder %s16, 1
    %p60 = por %p58, %p59
    %p62 = scmp.ne.s32.totalorder %s47, %s61
    %p63 = scmp.eq.s32.totalorder %s16, 0
    %p64 = por %p62, %p63
    %s66 = sadd.s32 %s65, 1
    %p69 = scmp.eq.s32.totalorder %s10, 1
    %p70 = scmp.ne.s32.totalorder %s65, %s67
    %p71 = scmp.eq.s32.totalorder %s10, 0
    %p72 = por %p70, %p71
    %p73 = scmp.ne.s32.totalorder %s65, %s67
    %p74 = scmp.eq.s32.totalorder %s15, 1
    %p75 = por %p73, %p74
    %p76 = scmp.ne.s32.totalorder %s67, %s68
    %p77 = scmp.eq.s32.totalorder %s15, 0
    %p78 = por %p76, %p77
    %p79 = scmp.ne.s32.totalorder %s67, %s68
    %p80 = scmp.eq.s32.totalorder %s16, 1
    %p81 = por %p79, %p80
    %p83 = scmp.ne.s32.totalorder %s68, %s82
    %p84 = scmp.eq.s32.totalorder %s16, 0
    %p85 = por %p83, %p84
    %s87 = sadd.s32 %s86, 1
    %p90 = scmp.eq.s32.totalorder %s10, 1
    %p91 = scmp.ne.s32.totalorder %s86, %s88
    %p92 = scmp.eq.s32.totalorder %s10, 0
    %p93 = por %p91, %p92
    %p94 = scmp.ne.s32.totalorder %s86, %s88
    %p95 = scmp.eq.s32.totalorder %s15, 1
    %p96 = por %p94, %p95
    %p97 = scmp.ne.s32.totalorder %s88, %s89
    %p98 = scmp.eq.s32.totalorder %s15, 0
    %p99 = por %p97, %p98
    %p100 = scmp.ne.s32.totalorder %s88, %s89
    %p101 = scmp.eq.s32.totalorder %s16, 1
    %p102 = por %p100, %p101
    %p104 = scmp.ne.s32.totalorder %s89, %s103
    %p105 = scmp.eq.s32.totalorder %s16, 0
    %p106 = por %p104, %p105
    %s107 = ssub.s32 %s10, %s17
    %p108 = scmp.eq.s32.totalorder %s107, 0
    %s110 = sadd.s32 %s109, 1
    %s111 = scalar_select %p108, %s109, %s110
    %p114 = pneg %p108
    %p115 = scmp.eq.s32.totalorder %s10, 1
    %p116 = por %p114, %p115
    %p117 = scmp.ne.s32.totalorder %s109, %s112
    %p118 = scmp.eq.s32.totalorder %s10, 0
    %p119 = por %p117, %p118
    %p120 = scmp.ne.s32.totalorder %s109, %s112
    %p121 = scmp.eq.s32.totalorder %s15, 1
    %p122 = por %p120, %p121
    %p123 = scmp.ne.s32.totalorder %s112, %s113
    %p124 = scmp.eq.s32.totalorder %s15, 0
    %p125 = por %p123, %p124
    %p126 = scmp.ne.s32.totalorder %s112, %s113
    %p127 = scmp.eq.s32.totalorder %s16, 1
    %p128 = por %p126, %p127
    %p130 = scmp.ne.s32.totalorder %s113, %s129
    %p131 = scmp.eq.s32.totalorder %s16, 0
    %p132 = por %p130, %p131
    %p133 = scmp.le.s32.totalorder 1, %s10
    %p134 = scmp.lt.s32.totalorder %s10, 3
    %p135 = pnand %p133, %p134
    %p136 = pneg %p135
    // Predicated region
    $region9: #{net_forward.4} parent=5 // pred_check
      _
    $region10: #{net_forward.4} parent=5 // pred_check_branch
      %138 = sbr.rel (%p135) target = $region12
    $region11: #{net_forward.4} parent=5 // pred_region
      %s139 = ssub.s32 %s10, 1
      // Predicated region
      $region13: #{net_forward.4} parent=11 // pred_check
        %p140 = pneg %p57
      $region14: #{net_forward.4} parent=11 // pred_check_branch
        %142 = sbr.rel (%p140) target = $region16
      $region15: #{net_forward.4} parent=11 // pred_region
        _
      $region16: #{net_forward.4} parent=11 // pred_fallthru
        _
      // Predicated region
      $region17: #{net_forward.4} parent=11 // pred_check
        %p143 = pneg %p78
      $region18: #{net_forward.4} parent=11 // pred_check_branch
        %145 = sbr.rel (%p143) target = $region20
      $region19: #{net_forward.4} parent=11 // pred_region
        _
      $region20: #{net_forward.4} parent=11 // pred_fallthru
        _
      // Predicated region
      $region21: #{net_forward.4} parent=11 // pred_check
        %p146 = pneg %p99
      $region22: #{net_forward.4} parent=11 // pred_check_branch
        %148 = sbr.rel (%p146) target = $region24
      $region23: #{net_forward.4} parent=11 // pred_region
        _
      $region24: #{net_forward.4} parent=11 // pred_fallthru
        _
    $region12: #{net_forward.4} parent=5 // pred_fallthru
      _
    %p149 = scmp.lt.s32.totalorder %s10, 2
    // Predicated region
    $region25: #{net_forward.4} parent=5 // pred_check
      %p150 = pneg %p149
    $region26: #{net_forward.4} parent=5 // pred_check_branch
      %152 = sbr.rel (%p150) target = $region28
    $region27: #{net_forward.4} parent=5 // pred_region
      // Predicated region
      $region29: #{net_forward.4} parent=27 // pred_check
        %p153 = pneg %p30
      $region30: #{net_forward.4} parent=27 // pred_check_branch
        %155 = sbr.rel (%p153) target = $region32
      $region31: #{net_forward.4} parent=27 // pred_region
        %p156 = scmp.lt.s32.totalorder %s10, 1
        %s157 = scalar_select %p156, %s10, 1
        %s158 = smul.addr %s157, 8
        %s159 = smul.addr %s158, 4
        %s160 = scalar_lea.vmem %s0, %s159
      $region32: #{net_forward.4} parent=27 // pred_fallthru
        _
    $region28: #{net_forward.4} parent=5 // pred_fallthru
      _
    %p161 = scmp.le.s32.totalorder 1, %s10
    %p162 = scmp.lt.s32.totalorder %s10, 3
    %p163 = pnand %p161, %p162
    %p164 = pneg %p163
    // Predicated region
    $region33: #{net_forward.4} parent=5 // pred_check
      _
    $region34: #{net_forward.4} parent=5 // pred_check_branch
      %166 = sbr.rel (%p163) target = $region36
    $region35: #{net_forward.4} parent=5 // pred_region
      %s167 = ssub.s32 %s10, 1
      %p168 = scmp.lt.s32.totalorder %s15, 1
      %s169 = scalar_select %p168, %s15, 1
      %s170 = smul.addr %s169, 8
      %s171 = smul.addr %s170, 4
      %s172 = scalar_lea.vmem %s0, %s171
      %p173 = pneg %p36
      %p174 = pneg %p33
      %p175 = pneg %p57
      %p176 = pneg %p54
      %p177 = pneg %p78
      %p178 = pneg %p75
      %p179 = pneg %p99
      %p180 = pneg %p96
      %p181 = pneg %p125
      %p182 = pneg %p122
      %p183 = scmp.lt.s32.totalorder %s15, 1
      %s184 = scalar_select %p183, %s15, 1
      %s185 = smul.addr %s184, 4
      %s186 = smul.addr %s185, 2
      %s187 = scalar_lea.vmem %s4, %s186
      %p188 = scmp.lt.s32.totalorder %s15, 1
      %s189 = scalar_select %p188, %s15, 1
      %s190 = smul.addr %s189, 8
      %s191 = smul.addr %s190, 4
      %s192 = scalar_lea.vmem %s0, %s191
      %p193 = scmp.lt.s32.totalorder %s15, 1
      %s194 = scalar_select %p193, %s15, 1
      %s195 = smul.addr %s194, 4
      %s196 = smul.addr %s195, 2
      %s197 = scalar_lea.vmem %s4, %s196
      %vm199 = vcmask 130048
      %200 = vst.msk [vmem:[#allocation2] sm:$0xff] %vm199, 0.0
      %vm201 = vcmask 125952
      %202 = vst.msk [vmem:[#allocation2 + $0x8] sm:$0xf] %vm201, 0.0
      %203 = vst.msk [vmem:[#allocation2 + $0x10] sm:$0xff] %vm199, 0.0
      %204 = vst.msk [vmem:[#allocation2 + $0x18] sm:$0xf] %vm201, 0.0
      %205 = vst.msk [vmem:[#allocation2 + $0x20] sm:$0xff] %vm199, 0.0
      %206 = vst.msk [vmem:[#allocation2 + $0x28] sm:$0xf] %vm201, 0.0
      %207 = vst.msk [vmem:[#allocation2 + $0x30] sm:$0xff] %vm199, 0.0
      %208 = vst.msk [vmem:[#allocation2 + $0x38] sm:$0xf] %vm201, 0.0
      %209 = vst.msk [vmem:[#allocation2 + $0x40] sm:$0xff] %vm199, 0.0
      %210 = vst.msk [vmem:[#allocation2 + $0x48] sm:$0xf] %vm201, 0.0
      %211 = vst.msk [vmem:[#allocation2 + $0x50] sm:$0xff] %vm199, 0.0
      %212 = vst.msk [vmem:[#allocation2 + $0x58] sm:$0xf] %vm201, 0.0
      %213 = vst.msk [vmem:[#allocation2 + $0x60] sm:$0xff] %vm199, 0.0
      %214 = vst.msk [vmem:[#allocation2 + $0x68] sm:$0xf] %vm201, 0.0
      %215 = vst.msk [vmem:[#allocation2 + $0x70] sm:$0xff] %vm199, 0.0
      %216 = vst.msk [vmem:[#allocation2 + $0x78] sm:$0xf] %vm201, 0.0
      %217 = vst.msk [vmem:[#allocation2 + $0x80] sm:$0xff] %vm199, 0.0
      %218 = vst.msk [vmem:[#allocation2 + $0x88] sm:$0xf] %vm201, 0.0
      %219 = vst.msk [vmem:[#allocation2 + $0x90] sm:$0xff] %vm199, 0.0
      %220 = vst.msk [vmem:[#allocation2 + $0x98] sm:$0xf] %vm201, 0.0
      %221 = vst.msk [vmem:[#allocation2 + $0xa0] sm:$0xff] %vm199, 0.0
      %222 = vst.msk [vmem:[#allocation2 + $0xa8] sm:$0xf] %vm201, 0.0
      %223 = vst.msk [vmem:[#allocation2 + $0xb0] sm:$0xff] %vm199, 0.0
      %224 = vst.msk [vmem:[#allocation2 + $0xb8] sm:$0xf] %vm201, 0.0
      %v225 = vld [vmem:[%s192] sm:$0xf]
      %v226 = vld [vmem:[%s192 + $0x4] sm:$0xf]
      %v227 = vld [vmem:[%s192 + $0x8] sm:$0xf]
      %v228 = vld [vmem:[%s192 + $0xc] sm:$0xf]
      %v229 = vld [vmem:[%s192 + $0x10] sm:$0xf]
      %v230 = vld [vmem:[%s192 + $0x14] sm:$0xf]
      %v231 = vld [vmem:[%s192 + $0x18] sm:$0xf]
      %v232 = vld [vmem:[%s192 + $0x1c] sm:$0xf]
      %v233 = vunpack.c.l.bf16 %v225
      %v234 = vunpack.c.l.bf16 %v226
      %v235 = vunpack.c.l.bf16 %v227
      %v236 = vunpack.c.l.bf16 %v228
      %v237 = vunpack.c.l.bf16 %v229
      %v238 = vunpack.c.l.bf16 %v230
      %v239 = vunpack.c.l.bf16 %v231
      %v240 = vunpack.c.l.bf16 %v232
      %s241 = scalar_lea.vmem [#allocation2], 32
      %242 = vst.msk [vmem:[%s241 + $0x2] sm:$0xff] %vm199, %v233
      %243 = vst.msk [vmem:[%s241 + $0x12] sm:$0xff] %vm199, %v234
      %244 = vst.msk [vmem:[%s241 + $0x22] sm:$0xff] %vm199, %v235
      %245 = vst.msk [vmem:[%s241 + $0x32] sm:$0xff] %vm199, %v236
      %246 = vst.msk [vmem:[%s241 + $0x42] sm:$0xff] %vm199, %v237
      %247 = vst.msk [vmem:[%s241 + $0x52] sm:$0xff] %vm199, %v238
      %248 = vst.msk [vmem:[%s241 + $0x62] sm:$0xff] %vm199, %v239
      %249 = vst.msk [vmem:[%s241 + $0x72] sm:$0xff] %vm199, %v240
      %v250 = vld [vmem:[#allocation2] sm:$0xff]
      %v251 = vld [vmem:[#allocation2 + $0x10] sm:$0xff]
      %v252 = vld [vmem:[#allocation2 + $0x20] sm:$0xff]
      %v253 = vld [vmem:[#allocation2 + $0x30] sm:$0xff]
      %v254 = vld [vmem:[#allocation2 + $0x40] sm:$0xff]
      %v255 = vld [vmem:[#allocation2 + $0x50] sm:$0xff]
      %v256 = vld [vmem:[#allocation2 + $0x60] sm:$0xff]
      %v257 = vld [vmem:[#allocation2 + $0x70] sm:$0xff]
      %v258 = vpack.c.bf16 %v250, %v250
      %v259 = vpack.c.bf16 %v251, %v251
      %v260 = vpack.c.bf16 %v252, %v252
      %v261 = vpack.c.bf16 %v253, %v253
      %v262 = vpack.c.bf16 %v254, %v254
      %v263 = vpack.c.bf16 %v255, %v255
      %v264 = vpack.c.bf16 %v256, %v256
      %v265 = vpack.c.bf16 %v257, %v257
      %266 = vst.msk [vmem:[#allocation3] sm:$0xf] %vm201, %v258
      %267 = vst.msk [vmem:[#allocation3 + $0x10] sm:$0xf] %vm201, %v259
      %268 = vst.msk [vmem:[#allocation3 + $0x20] sm:$0xf] %vm201, %v260
      %269 = vst.msk [vmem:[#allocation3 + $0x30] sm:$0xf] %vm201, %v261
      %270 = vst.msk [vmem:[#allocation3 + $0x40] sm:$0xf] %vm201, %v262
      %271 = vst.msk [vmem:[#allocation3 + $0x50] sm:$0xf] %vm201, %v263
      %272 = vst.msk [vmem:[#allocation3 + $0x60] sm:$0xf] %vm201, %v264
      %273 = vst.msk [vmem:[#allocation3 + $0x70] sm:$0xf] %vm201, %v265
      %v274 = vld [vmem:[#allocation2 + $0x1] sm:$0xff]
      %v275 = vld [vmem:[#allocation2 + $0x11] sm:$0xff]
      %v276 = vld [vmem:[#allocation2 + $0x21] sm:$0xff]
      %v277 = vld [vmem:[#allocation2 + $0x31] sm:$0xff]
      %v278 = vld [vmem:[#allocation2 + $0x41] sm:$0xff]
      %v279 = vld [vmem:[#allocation2 + $0x51] sm:$0xff]
      %v280 = vld [vmem:[#allocation2 + $0x61] sm:$0xff]
      %v281 = vld [vmem:[#allocation2 + $0x71] sm:$0xff]
      %v282 = vpack.c.bf16 %v274, %v274
      %v283 = vpack.c.bf16 %v275, %v275
      %v284 = vpack.c.bf16 %v276, %v276
      %v285 = vpack.c.bf16 %v277, %v277
      %v286 = vpack.c.bf16 %v278, %v278
      %v287 = vpack.c.bf16 %v279, %v279
      %v288 = vpack.c.bf16 %v280, %v280
      %v289 = vpack.c.bf16 %v281, %v281
      %v298 = vunpack.c.l.b16 %v282
      %v299 = vunpack.c.l.b16 %v283
      %v300 = vunpack.c.l.b16 %v284
      %v301 = vunpack.c.l.b16 %v285
      %v302 = vunpack.c.l.b16 %v286
      %v303 = vunpack.c.l.b16 %v287
      %v304 = vunpack.c.l.b16 %v288
      %v305 = vunpack.c.l.b16 %v289
      %v306 = vpack.c.b16 %v298, %v298
      %v307 = vpack.c.b16 %v299, %v299
      %v308 = vpack.c.b16 %v300, %v300
      %v309 = vpack.c.b16 %v301, %v301
      %v310 = vpack.c.b16 %v302, %v302
      %v311 = vpack.c.b16 %v303, %v303
      %v312 = vpack.c.b16 %v304, %v304
      %v313 = vpack.c.b16 %v305, %v305
      %314 = vrot.lane.b32.xlu0 %v306, 16
      %v315 = vpop.permute.xlu0 %314
      %316 = vrot.lane.b32.xlu0 %v307, 16
      %v317 = vpop.permute.xlu0 %316
      %318 = vrot.lane.b32.xlu0 %v308, 16
      %v319 = vpop.permute.xlu0 %318
      %320 = vrot.lane.b32.xlu0 %v309, 16
      %v321 = vpop.permute.xlu0 %320
      %322 = vrot.lane.b32.xlu0 %v310, 16
      %v323 = vpop.permute.xlu0 %322
      %324 = vrot.lane.b32.xlu0 %v311, 16
      %v325 = vpop.permute.xlu0 %324
      %326 = vrot.lane.b32.xlu0 %v312, 16
      %v327 = vpop.permute.xlu0 %326
      %328 = vrot.lane.b32.xlu0 %v313, 16
      %v329 = vpop.permute.xlu0 %328
      %vm338 = vcmask 257152
      %339 = vst.msk [vmem:[#allocation3] sm:$0xf] %vm338, %v315
      %340 = vst.msk [vmem:[#allocation3 + $0x10] sm:$0xf] %vm338, %v317
      %341 = vst.msk [vmem:[#allocation3 + $0x20] sm:$0xf] %vm338, %v319
      %342 = vst.msk [vmem:[#allocation3 + $0x30] sm:$0xf] %vm338, %v321
      %343 = vst.msk [vmem:[#allocation3 + $0x40] sm:$0xf] %vm338, %v323
      %344 = vst.msk [vmem:[#allocation3 + $0x50] sm:$0xf] %vm338, %v325
      %345 = vst.msk [vmem:[#allocation3 + $0x60] sm:$0xf] %vm338, %v327
      %346 = vst.msk [vmem:[#allocation3 + $0x70] sm:$0xf] %vm338, %v329
      %v347 = vld [vmem:[#allocation2 + $0x2] sm:$0xff]
      %v348 = vld [vmem:[#allocation2 + $0x12] sm:$0xff]
      %v349 = vld [vmem:[#allocation2 + $0x22] sm:$0xff]
      %v350 = vld [vmem:[#allocation2 + $0x32] sm:$0xff]
      %v351 = vld [vmem:[#allocation2 + $0x42] sm:$0xff]
      %v352 = vld [vmem:[#allocation2 + $0x52] sm:$0xff]
      %v353 = vld [vmem:[#allocation2 + $0x62] sm:$0xff]
      %v354 = vld [vmem:[#allocation2 + $0x72] sm:$0xff]
      %v355 = vpack.c.bf16 %v347, %v347
      %v356 = vpack.c.bf16 %v348, %v348
      %v357 = vpack.c.bf16 %v349, %v349
      %v358 = vpack.c.bf16 %v350, %v350
      %v359 = vpack.c.bf16 %v351, %v351
      %v360 = vpack.c.bf16 %v352, %v352
      %v361 = vpack.c.bf16 %v353, %v353
      %v362 = vpack.c.bf16 %v354, %v354
      %v371 = vunpack.c.l.b16 %v355
      %v372 = vunpack.c.l.b16 %v356
      %v373 = vunpack.c.l.b16 %v357
      %v374 = vunpack.c.l.b16 %v358
      %v375 = vunpack.c.l.b16 %v359
      %v376 = vunpack.c.l.b16 %v360
      %v377 = vunpack.c.l.b16 %v361
      %v378 = vunpack.c.l.b16 %v362
      %v379 = vpack.c.b16 %v371, %v371
      %v380 = vpack.c.b16 %v372, %v372
      %v381 = vpack.c.b16 %v373, %v373
      %v382 = vpack.c.b16 %v374, %v374
      %v383 = vpack.c.b16 %v375, %v375
      %v384 = vpack.c.b16 %v376, %v376
      %v385 = vpack.c.b16 %v377, %v377
      %v386 = vpack.c.b16 %v378, %v378
      %387 = vrot.lane.b32.xlu0 %v379, 32
      %v388 = vpop.permute.xlu0 %387
      %389 = vrot.lane.b32.xlu0 %v380, 32
      %v390 = vpop.permute.xlu0 %389
      %391 = vrot.lane.b32.xlu0 %v381, 32
      %v392 = vpop.permute.xlu0 %391
      %393 = vrot.lane.b32.xlu0 %v382, 32
      %v394 = vpop.permute.xlu0 %393
      %395 = vrot.lane.b32.xlu0 %v383, 32
      %v396 = vpop.permute.xlu0 %395
      %397 = vrot.lane.b32.xlu0 %v384, 32
      %v398 = vpop.permute.xlu0 %397
      %399 = vrot.lane.b32.xlu0 %v385, 32
      %v400 = vpop.permute.xlu0 %399
      %401 = vrot.lane.b32.xlu0 %v386, 32
      %v402 = vpop.permute.xlu0 %401
      %vm411 = vcmask 388352
      %412 = vst.msk [vmem:[#allocation3] sm:$0xf] %vm411, %v388
      %413 = vst.msk [vmem:[#allocation3 + $0x10] sm:$0xf] %vm411, %v390
      %414 = vst.msk [vmem:[#allocation3 + $0x20] sm:$0xf] %vm411, %v392
      %415 = vst.msk [vmem:[#allocation3 + $0x30] sm:$0xf] %vm411, %v394
      %416 = vst.msk [vmem:[#allocation3 + $0x40] sm:$0xf] %vm411, %v396
      %417 = vst.msk [vmem:[#allocation3 + $0x50] sm:$0xf] %vm411, %v398
      %418 = vst.msk [vmem:[#allocation3 + $0x60] sm:$0xf] %vm411, %v400
      %419 = vst.msk [vmem:[#allocation3 + $0x70] sm:$0xf] %vm411, %v402
      %v420 = vld [vmem:[#allocation2 + $0x3] sm:$0xff]
      %v421 = vld [vmem:[#allocation2 + $0x13] sm:$0xff]
      %v422 = vld [vmem:[#allocation2 + $0x23] sm:$0xff]
      %v423 = vld [vmem:[#allocation2 + $0x33] sm:$0xff]
      %v424 = vld [vmem:[#allocation2 + $0x43] sm:$0xff]
      %v425 = vld [vmem:[#allocation2 + $0x53] sm:$0xff]
      %v426 = vld [vmem:[#allocation2 + $0x63] sm:$0xff]
      %v427 = vld [vmem:[#allocation2 + $0x73] sm:$0xff]
      %v428 = vpack.c.bf16 %v420, %v420
      %v429 = vpack.c.bf16 %v421, %v421
      %v430 = vpack.c.bf16 %v422, %v422
      %v431 = vpack.c.bf16 %v423, %v423
      %v432 = vpack.c.bf16 %v424, %v424
      %v433 = vpack.c.bf16 %v425, %v425
      %v434 = vpack.c.bf16 %v426, %v426
      %v435 = vpack.c.bf16 %v427, %v427
      %v444 = vunpack.c.l.b16 %v428
      %v445 = vunpack.c.l.b16 %v429
      %v446 = vunpack.c.l.b16 %v430
      %v447 = vunpack.c.l.b16 %v431
      %v448 = vunpack.c.l.b16 %v432
      %v449 = vunpack.c.l.b16 %v433
      %v450 = vunpack.c.l.b16 %v434
      %v451 = vunpack.c.l.b16 %v435
      %v452 = vpack.c.b16 %v444, %v444
      %v453 = vpack.c.b16 %v445, %v445
      %v454 = vpack.c.b16 %v446, %v446
      %v455 = vpack.c.b16 %v447, %v447
      %v456 = vpack.c.b16 %v448, %v448
      %v457 = vpack.c.b16 %v449, %v449
      %v458 = vpack.c.b16 %v450, %v450
      %v459 = vpack.c.b16 %v451, %v451
      %460 = vrot.lane.b32.xlu0 %v452, 48
      %v461 = vpop.permute.xlu0 %460
      %462 = vrot.lane.b32.xlu0 %v453, 48
      %v463 = vpop.permute.xlu0 %462
      %464 = vrot.lane.b32.xlu0 %v454, 48
      %v465 = vpop.permute.xlu0 %464
      %466 = vrot.lane.b32.xlu0 %v455, 48
      %v467 = vpop.permute.xlu0 %466
      %468 = vrot.lane.b32.xlu0 %v456, 48
      %v469 = vpop.permute.xlu0 %468
      %470 = vrot.lane.b32.xlu0 %v457, 48
      %v471 = vpop.permute.xlu0 %470
      %472 = vrot.lane.b32.xlu0 %v458, 48
      %v473 = vpop.permute.xlu0 %472
      %474 = vrot.lane.b32.xlu0 %v459, 48
      %v475 = vpop.permute.xlu0 %474
      %vm484 = vcmask 519552
      %485 = vst.msk [vmem:[#allocation3] sm:$0xf] %vm484, %v461
      %486 = vst.msk [vmem:[#allocation3 + $0x10] sm:$0xf] %vm484, %v463
      %487 = vst.msk [vmem:[#allocation3 + $0x20] sm:$0xf] %vm484, %v465
      %488 = vst.msk [vmem:[#allocation3 + $0x30] sm:$0xf] %vm484, %v467
      %489 = vst.msk [vmem:[#allocation3 + $0x40] sm:$0xf] %vm484, %v469
      %490 = vst.msk [vmem:[#allocation3 + $0x50] sm:$0xf] %vm484, %v471
      %491 = vst.msk [vmem:[#allocation3 + $0x60] sm:$0xf] %vm484, %v473
      %492 = vst.msk [vmem:[#allocation3 + $0x70] sm:$0xf] %vm484, %v475
      %v493 = vld [vmem:[#allocation2 + $0x4] sm:$0xff]
      %v494 = vld [vmem:[#allocation2 + $0x14] sm:$0xff]
      %v495 = vld [vmem:[#allocation2 + $0x24] sm:$0xff]
      %v496 = vld [vmem:[#allocation2 + $0x34] sm:$0xff]
      %v497 = vld [vmem:[#allocation2 + $0x44] sm:$0xff]
      %v498 = vld [vmem:[#allocation2 + $0x54] sm:$0xff]
      %v499 = vld [vmem:[#allocation2 + $0x64] sm:$0xff]
      %v500 = vld [vmem:[#allocation2 + $0x74] sm:$0xff]
      %v501 = vpack.c.bf16 %v493, %v493
      %v502 = vpack.c.bf16 %v494, %v494
      %v503 = vpack.c.bf16 %v495, %v495
      %v504 = vpack.c.bf16 %v496, %v496
      %v505 = vpack.c.bf16 %v497, %v497
      %v506 = vpack.c.bf16 %v498, %v498
      %v507 = vpack.c.bf16 %v499, %v499
      %v508 = vpack.c.bf16 %v500, %v500
      %v517 = vunpack.c.l.b16 %v501
      %v518 = vunpack.c.l.b16 %v502
      %v519 = vunpack.c.l.b16 %v503
      %v520 = vunpack.c.l.b16 %v504
      %v521 = vunpack.c.l.b16 %v505
      %v522 = vunpack.c.l.b16 %v506
      %v523 = vunpack.c.l.b16 %v507
      %v524 = vunpack.c.l.b16 %v508
      %v525 = vpack.c.b16 %v517, %v517
      %v526 = vpack.c.b16 %v518, %v518
      %v527 = vpack.c.b16 %v519, %v519
      %v528 = vpack.c.b16 %v520, %v520
      %v529 = vpack.c.b16 %v521, %v521
      %v530 = vpack.c.b16 %v522, %v522
      %v531 = vpack.c.b16 %v523, %v523
      %v532 = vpack.c.b16 %v524, %v524
      %533 = vrot.lane.b32.xlu0 %v525, 64
      %v534 = vpop.permute.xlu0 %533
      %535 = vrot.lane.b32.xlu0 %v526, 64
      %v536 = vpop.permute.xlu0 %535
      %537 = vrot.lane.b32.xlu0 %v527, 64
      %v538 = vpop.permute.xlu0 %537
      %539 = vrot.lane.b32.xlu0 %v528, 64
      %v540 = vpop.permute.xlu0 %539
      %541 = vrot.lane.b32.xlu0 %v529, 64
      %v542 = vpop.permute.xlu0 %541
      %543 = vrot.lane.b32.xlu0 %v530, 64
      %v544 = vpop.permute.xlu0 %543
      %545 = vrot.lane.b32.xlu0 %v531, 64
      %v546 = vpop.permute.xlu0 %545
      %547 = vrot.lane.b32.xlu0 %v532, 64
      %v548 = vpop.permute.xlu0 %547
      %vm557 = vcmask 650752
      %558 = vst.msk [vmem:[#allocation3] sm:$0xf] %vm557, %v534
      %559 = vst.msk [vmem:[#allocation3 + $0x10] sm:$0xf] %vm557, %v536
      %560 = vst.msk [vmem:[#allocation3 + $0x20] sm:$0xf] %vm557, %v538
      %561 = vst.msk [vmem:[#allocation3 + $0x30] sm:$0xf] %vm557, %v540
      %562 = vst.msk [vmem:[#allocation3 + $0x40] sm:$0xf] %vm557, %v542
      %563 = vst.msk [vmem:[#allocation3 + $0x50] sm:$0xf] %vm557, %v544
      %564 = vst.msk [vmem:[#allocation3 + $0x60] sm:$0xf] %vm557, %v546
      %565 = vst.msk [vmem:[#allocation3 + $0x70] sm:$0xf] %vm557, %v548
      %s566 = scalar_lea.vmem [#allocation2], 16
      %v567 = vld [vmem:[%s566] sm:$0xff]
      %v568 = vld [vmem:[%s566 + $0x10] sm:$0xff]
      %v569 = vld [vmem:[%s566 + $0x20] sm:$0xff]
      %v570 = vld [vmem:[%s566 + $0x30] sm:$0xff]
      %v571 = vld [vmem:[%s566 + $0x40] sm:$0xff]
      %v572 = vld [vmem:[%s566 + $0x50] sm:$0xff]
      %v573 = vld [vmem:[%s566 + $0x60] sm:$0xff]
      %v574 = vld [vmem:[%s566 + $0x70] sm:$0xff]
      %v575 = vpack.c.bf16 %v567, %v567
      %v576 = vpack.c.bf16 %v568, %v568
      %v577 = vpack.c.bf16 %v569, %v569
      %v578 = vpack.c.bf16 %v570, %v570
      %v579 = vpack.c.bf16 %v571, %v571
      %v580 = vpack.c.bf16 %v572, %v572
      %v581 = vpack.c.bf16 %v573, %v573
      %v582 = vpack.c.bf16 %v574, %v574
      %v591 = vunpack.c.l.b16 %v575
      %v592 = vunpack.c.l.b16 %v576
      %v593 = vunpack.c.l.b16 %v577
      %v594 = vunpack.c.l.b16 %v578
      %v595 = vunpack.c.l.b16 %v579
      %v596 = vunpack.c.l.b16 %v580
      %v597 = vunpack.c.l.b16 %v581
      %v598 = vunpack.c.l.b16 %v582
      %v599 = vpack.c.b16 %v591, %v591
      %v600 = vpack.c.b16 %v592, %v592
      %v601 = vpack.c.b16 %v593, %v593
      %v602 = vpack.c.b16 %v594, %v594
      %v603 = vpack.c.b16 %v595, %v595
      %v604 = vpack.c.b16 %v596, %v596
      %v605 = vpack.c.b16 %v597, %v597
      %v606 = vpack.c.b16 %v598, %v598
      %607 = vrot.lane.b32.xlu0 %v599, 80
      %v608 = vpop.permute.xlu0 %607
      %609 = vrot.lane.b32.xlu0 %v600, 80
      %v610 = vpop.permute.xlu0 %609
      %611 = vrot.lane.b32.xlu0 %v601, 80
      %v612 = vpop.permute.xlu0 %611
      %613 = vrot.lane.b32.xlu0 %v602, 80
      %v614 = vpop.permute.xlu0 %613
      %615 = vrot.lane.b32.xlu0 %v603, 80
      %v616 = vpop.permute.xlu0 %615
      %617 = vrot.lane.b32.xlu0 %v604, 80
      %v618 = vpop.permute.xlu0 %617
      %619 = vrot.lane.b32.xlu0 %v605, 80
      %v620 = vpop.permute.xlu0 %619
      %621 = vrot.lane.b32.xlu0 %v606, 80
      %v622 = vpop.permute.xlu0 %621
      %vm631 = vcmask 781952
      %632 = vst.msk [vmem:[#allocation3] sm:$0xf] %vm631, %v608
      %633 = vst.msk [vmem:[#allocation3 + $0x10] sm:$0xf] %vm631, %v610
      %634 = vst.msk [vmem:[#allocation3 + $0x20] sm:$0xf] %vm631, %v612
      %635 = vst.msk [vmem:[#allocation3 + $0x30] sm:$0xf] %vm631, %v614
      %636 = vst.msk [vmem:[#allocation3 + $0x40] sm:$0xf] %vm631, %v616
      %637 = vst.msk [vmem:[#allocation3 + $0x50] sm:$0xf] %vm631, %v618
      %638 = vst.msk [vmem:[#allocation3 + $0x60] sm:$0xf] %vm631, %v620
      %639 = vst.msk [vmem:[#allocation3 + $0x70] sm:$0xf] %vm631, %v622
      %v640 = vld [vmem:[%s566 + $0x1] sm:$0xff]
      %v641 = vld [vmem:[%s566 + $0x11] sm:$0xff]
      %v642 = vld [vmem:[%s566 + $0x21] sm:$0xff]
      %v643 = vld [vmem:[%s566 + $0x31] sm:$0xff]
      %v644 = vld [vmem:[%s566 + $0x41] sm:$0xff]
      %v645 = vld [vmem:[%s566 + $0x51] sm:$0xff]
      %v646 = vld [vmem:[%s566 + $0x61] sm:$0xff]
      %v647 = vld [vmem:[%s566 + $0x71] sm:$0xff]
      %v648 = vpack.c.bf16 %v640, %v640
      %v649 = vpack.c.bf16 %v641, %v641
      %v650 = vpack.c.bf16 %v642, %v642
      %v651 = vpack.c.bf16 %v643, %v643
      %v652 = vpack.c.bf16 %v644, %v644
      %v653 = vpack.c.bf16 %v645, %v645
      %v654 = vpack.c.bf16 %v646, %v646
      %v655 = vpack.c.bf16 %v647, %v647
      %v664 = vunpack.c.l.b16 %v648
      %v665 = vunpack.c.l.b16 %v649
      %v666 = vunpack.c.l.b16 %v650
      %v667 = vunpack.c.l.b16 %v651
      %v668 = vunpack.c.l.b16 %v652
      %v669 = vunpack.c.l.b16 %v653
      %v670 = vunpack.c.l.b16 %v654
      %v671 = vunpack.c.l.b16 %v655
      %v672 = vpack.c.b16 %v664, %v664
      %v673 = vpack.c.b16 %v665, %v665
      %v674 = vpack.c.b16 %v666, %v666
      %v675 = vpack.c.b16 %v667, %v667
      %v676 = vpack.c.b16 %v668, %v668
      %v677 = vpack.c.b16 %v669, %v669
      %v678 = vpack.c.b16 %v670, %v670
      %v679 = vpack.c.b16 %v671, %v671
      %680 = vrot.lane.b32.xlu0 %v672, 96
      %v681 = vpop.permute.xlu0 %680
      %682 = vrot.lane.b32.xlu0 %v673, 96
      %v683 = vpop.permute.xlu0 %682
      %684 = vrot.lane.b32.xlu0 %v674, 96
      %v685 = vpop.permute.xlu0 %684
      %686 = vrot.lane.b32.xlu0 %v675, 96
      %v687 = vpop.permute.xlu0 %686
      %688 = vrot.lane.b32.xlu0 %v676, 96
      %v689 = vpop.permute.xlu0 %688
      %690 = vrot.lane.b32.xlu0 %v677, 96
      %v691 = vpop.permute.xlu0 %690
      %692 = vrot.lane.b32.xlu0 %v678, 96
      %v693 = vpop.permute.xlu0 %692
      %694 = vrot.lane.b32.xlu0 %v679, 96
      %v695 = vpop.permute.xlu0 %694
      %vm704 = vcmask 913152
      %705 = vst.msk [vmem:[#allocation3] sm:$0xf] %vm704, %v681
      %706 = vst.msk [vmem:[#allocation3 + $0x10] sm:$0xf] %vm704, %v683
      %707 = vst.msk [vmem:[#allocation3 + $0x20] sm:$0xf] %vm704, %v685
      %708 = vst.msk [vmem:[#allocation3 + $0x30] sm:$0xf] %vm704, %v687
      %709 = vst.msk [vmem:[#allocation3 + $0x40] sm:$0xf] %vm704, %v689
      %710 = vst.msk [vmem:[#allocation3 + $0x50] sm:$0xf] %vm704, %v691
      %711 = vst.msk [vmem:[#allocation3 + $0x60] sm:$0xf] %vm704, %v693
      %712 = vst.msk [vmem:[#allocation3 + $0x70] sm:$0xf] %vm704, %v695
      %v713 = vld [vmem:[%s566 + $0x2] sm:$0xff]
      %v714 = vld [vmem:[%s566 + $0x12] sm:$0xff]
      %v715 = vld [vmem:[%s566 + $0x22] sm:$0xff]
      %v716 = vld [vmem:[%s566 + $0x32] sm:$0xff]
      %v717 = vld [vmem:[%s566 + $0x42] sm:$0xff]
      %v718 = vld [vmem:[%s566 + $0x52] sm:$0xff]
      %v719 = vld [vmem:[%s566 + $0x62] sm:$0xff]
      %v720 = vld [vmem:[%s566 + $0x72] sm:$0xff]
      %v721 = vpack.c.bf16 %v713, %v713
      %v722 = vpack.c.bf16 %v714, %v714
      %v723 = vpack.c.bf16 %v715, %v715
      %v724 = vpack.c.bf16 %v716, %v716
      %v725 = vpack.c.bf16 %v717, %v717
      %v726 = vpack.c.bf16 %v718, %v718
      %v727 = vpack.c.bf16 %v719, %v719
      %v728 = vpack.c.bf16 %v720, %v720
      %v737 = vunpack.c.l.b16 %v721
      %v738 = vunpack.c.l.b16 %v722
      %v739 = vunpack.c.l.b16 %v723
      %v740 = vunpack.c.l.b16 %v724
      %v741 = vunpack.c.l.b16 %v725
      %v742 = vunpack.c.l.b16 %v726
      %v743 = vunpack.c.l.b16 %v727
      %v744 = vunpack.c.l.b16 %v728
      %v745 = vpack.c.b16 %v737, %v737
      %v746 = vpack.c.b16 %v738, %v738
      %v747 = vpack.c.b16 %v739, %v739
      %v748 = vpack.c.b16 %v740, %v740
      %v749 = vpack.c.b16 %v741, %v741
      %v750 = vpack.c.b16 %v742, %v742
      %v751 = vpack.c.b16 %v743, %v743
      %v752 = vpack.c.b16 %v744, %v744
      %753 = vrot.lane.b32.xlu0 %v745, 112
      %v754 = vpop.permute.xlu0 %753
      %755 = vrot.lane.b32.xlu0 %v746, 112
      %v756 = vpop.permute.xlu0 %755
      %757 = vrot.lane.b32.xlu0 %v747, 112
      %v758 = vpop.permute.xlu0 %757
      %759 = vrot.lane.b32.xlu0 %v748, 112
      %v760 = vpop.permute.xlu0 %759
      %761 = vrot.lane.b32.xlu0 %v749, 112
      %v762 = vpop.permute.xlu0 %761
      %763 = vrot.lane.b32.xlu0 %v750, 112
      %v764 = vpop.permute.xlu0 %763
      %765 = vrot.lane.b32.xlu0 %v751, 112
      %v766 = vpop.permute.xlu0 %765
      %767 = vrot.lane.b32.xlu0 %v752, 112
      %v768 = vpop.permute.xlu0 %767
      %vm777 = vcmask 1044352
      %778 = vst.msk [vmem:[#allocation3] sm:$0xf] %vm777, %v754
      %779 = vst.msk [vmem:[#allocation3 + $0x10] sm:$0xf] %vm777, %v756
      %780 = vst.msk [vmem:[#allocation3 + $0x20] sm:$0xf] %vm777, %v758
      %781 = vst.msk [vmem:[#allocation3 + $0x30] sm:$0xf] %vm777, %v760
      %782 = vst.msk [vmem:[#allocation3 + $0x40] sm:$0xf] %vm777, %v762
      %783 = vst.msk [vmem:[#allocation3 + $0x50] sm:$0xf] %vm777, %v764
      %784 = vst.msk [vmem:[#allocation3 + $0x60] sm:$0xf] %vm777, %v766
      %785 = vst.msk [vmem:[#allocation3 + $0x70] sm:$0xf] %vm777, %v768
      %v786 = vld [vmem:[%s566 + $0x3] sm:$0xff]
      %v787 = vld [vmem:[%s566 + $0x13] sm:$0xff]
      %v788 = vld [vmem:[%s566 + $0x23] sm:$0xff]
      %v789 = vld [vmem:[%s566 + $0x33] sm:$0xff]
      %v790 = vld [vmem:[%s566 + $0x43] sm:$0xff]
      %v791 = vld [vmem:[%s566 + $0x53] sm:$0xff]
      %v792 = vld [vmem:[%s566 + $0x63] sm:$0xff]
      %v793 = vld [vmem:[%s566 + $0x73] sm:$0xff]
      %v794 = vpack.c.bf16 %v786, %v786
      %v795 = vpack.c.bf16 %v787, %v787
      %v796 = vpack.c.bf16 %v788, %v788
      %v797 = vpack.c.bf16 %v789, %v789
      %v798 = vpack.c.bf16 %v790, %v790
      %v799 = vpack.c.bf16 %v791, %v791
      %v800 = vpack.c.bf16 %v792, %v792
      %v801 = vpack.c.bf16 %v793, %v793
      %802 = vst.msk [vmem:[#allocation3 + $0x4] sm:$0xf] %vm201, %v794
      %803 = vst.msk [vmem:[#allocation3 + $0x14] sm:$0xf] %vm201, %v795
      %804 = vst.msk [vmem:[#allocation3 + $0x24] sm:$0xf] %vm201, %v796
      %805 = vst.msk [vmem:[#allocation3 + $0x34] sm:$0xf] %vm201, %v797
      %806 = vst.msk [vmem:[#allocation3 + $0x44] sm:$0xf] %vm201, %v798
      %807 = vst.msk [vmem:[#allocation3 + $0x54] sm:$0xf] %vm201, %v799
      %808 = vst.msk [vmem:[#allocation3 + $0x64] sm:$0xf] %vm201, %v800
      %809 = vst.msk [vmem:[#allocation3 + $0x74] sm:$0xf] %vm201, %v801
      %v810 = vld [vmem:[%s566 + $0x4] sm:$0xff]
      %v811 = vld [vmem:[%s566 + $0x14] sm:$0xff]
      %v812 = vld [vmem:[%s566 + $0x24] sm:$0xff]
      %v813 = vld [vmem:[%s566 + $0x34] sm:$0xff]
      %v814 = vld [vmem:[%s566 + $0x44] sm:$0xff]
      %v815 = vld [vmem:[%s566 + $0x54] sm:$0xff]
      %v816 = vld [vmem:[%s566 + $0x64] sm:$0xff]
      %v817 = vld [vmem:[%s566 + $0x74] sm:$0xff]
      %v818 = vpack.c.bf16 %v810, %v810
      %v819 = vpack.c.bf16 %v811, %v811
      %v820 = vpack.c.bf16 %v812, %v812
      %v821 = vpack.c.bf16 %v813, %v813
      %v822 = vpack.c.bf16 %v814, %v814
      %v823 = vpack.c.bf16 %v815, %v815
      %v824 = vpack.c.bf16 %v816, %v816
      %v825 = vpack.c.bf16 %v817, %v817
      %v834 = vunpack.c.l.b16 %v818
      %v835 = vunpack.c.l.b16 %v819
      %v836 = vunpack.c.l.b16 %v820
      %v837 = vunpack.c.l.b16 %v821
      %v838 = vunpack.c.l.b16 %v822
      %v839 = vunpack.c.l.b16 %v823
      %v840 = vunpack.c.l.b16 %v824
      %v841 = vunpack.c.l.b16 %v825
      %v842 = vpack.c.b16 %v834, %v834
      %v843 = vpack.c.b16 %v835, %v835
      %v844 = vpack.c.b16 %v836, %v836
      %v845 = vpack.c.b16 %v837, %v837
      %v846 = vpack.c.b16 %v838, %v838
      %v847 = vpack.c.b16 %v839, %v839
      %v848 = vpack.c.b16 %v840, %v840
      %v849 = vpack.c.b16 %v841, %v841
      %850 = vrot.lane.b32.xlu0 %v842, 16
      %v851 = vpop.permute.xlu0 %850
      %852 = vrot.lane.b32.xlu0 %v843, 16
      %v853 = vpop.permute.xlu0 %852
      %854 = vrot.lane.b32.xlu0 %v844, 16
      %v855 = vpop.permute.xlu0 %854
      %856 = vrot.lane.b32.xlu0 %v845, 16
      %v857 = vpop.permute.xlu0 %856
      %858 = vrot.lane.b32.xlu0 %v846, 16
      %v859 = vpop.permute.xlu0 %858
      %860 = vrot.lane.b32.xlu0 %v847, 16
      %v861 = vpop.permute.xlu0 %860
      %862 = vrot.lane.b32.xlu0 %v848, 16
      %v863 = vpop.permute.xlu0 %862
      %864 = vrot.lane.b32.xlu0 %v849, 16
      %v865 = vpop.permute.xlu0 %864
      %874 = vst.msk [vmem:[#allocation3 + $0x4] sm:$0xf] %vm338, %v851
      %875 = vst.msk [vmem:[#allocation3 + $0x14] sm:$0xf] %vm338, %v853
      %876 = vst.msk [vmem:[#allocation3 + $0x24] sm:$0xf] %vm338, %v855
      %877 = vst.msk [vmem:[#allocation3 + $0x34] sm:$0xf] %vm338, %v857
      %878 = vst.msk [vmem:[#allocation3 + $0x44] sm:$0xf] %vm338, %v859
      %879 = vst.msk [vmem:[#allocation3 + $0x54] sm:$0xf] %vm338, %v861
      %880 = vst.msk [vmem:[#allocation3 + $0x64] sm:$0xf] %vm338, %v863
      %881 = vst.msk [vmem:[#allocation3 + $0x74] sm:$0xf] %vm338, %v865
      %v882 = vld [vmem:[%s241] sm:$0xff]
      %v883 = vld [vmem:[%s241 + $0x10] sm:$0xff]
      %v884 = vld [vmem:[%s241 + $0x20] sm:$0xff]
      %v885 = vld [vmem:[%s241 + $0x30] sm:$0xff]
      %v886 = vld [vmem:[%s241 + $0x40] sm:$0xff]
      %v887 = vld [vmem:[%s241 + $0x50] sm:$0xff]
      %v888 = vld [vmem:[%s241 + $0x60] sm:$0xff]
      %v889 = vld [vmem:[%s241 + $0x70] sm:$0xff]
      %v890 = vpack.c.bf16 %v882, %v882
      %v891 = vpack.c.bf16 %v883, %v883
      %v892 = vpack.c.bf16 %v884, %v884
      %v893 = vpack.c.bf16 %v885, %v885
      %v894 = vpack.c.bf16 %v886, %v886
      %v895 = vpack.c.bf16 %v887, %v887
      %v896 = vpack.c.bf16 %v888, %v888
      %v897 = vpack.c.bf16 %v889, %v889
      %v906 = vunpack.c.l.b16 %v890
      %v907 = vunpack.c.l.b16 %v891
      %v908 = vunpack.c.l.b16 %v892
      %v909 = vunpack.c.l.b16 %v893
      %v910 = vunpack.c.l.b16 %v894
      %v911 = vunpack.c.l.b16 %v895
      %v912 = vunpack.c.l.b16 %v896
      %v913 = vunpack.c.l.b16 %v897
      %v914 = vpack.c.b16 %v906, %v906
      %v915 = vpack.c.b16 %v907, %v907
      %v916 = vpack.c.b16 %v908, %v908
      %v917 = vpack.c.b16 %v909, %v909
      %v918 = vpack.c.b16 %v910, %v910
      %v919 = vpack.c.b16 %v911, %v911
      %v920 = vpack.c.b16 %v912, %v912
      %v921 = vpack.c.b16 %v913, %v913
      %922 = vrot.lane.b32.xlu0 %v914, 32
      %v923 = vpop.permute.xlu0 %922
      %924 = vrot.lane.b32.xlu0 %v915, 32
      %v925 = vpop.permute.xlu0 %924
      %926 = vrot.lane.b32.xlu0 %v916, 32
      %v927 = vpop.permute.xlu0 %926
      %928 = vrot.lane.b32.xlu0 %v917, 32
      %v929 = vpop.permute.xlu0 %928
      %930 = vrot.lane.b32.xlu0 %v918, 32
      %v931 = vpop.permute.xlu0 %930
      %932 = vrot.lane.b32.xlu0 %v919, 32
      %v933 = vpop.permute.xlu0 %932
      %934 = vrot.lane.b32.xlu0 %v920, 32
      %v935 = vpop.permute.xlu0 %934
      %936 = vrot.lane.b32.xlu0 %v921, 32
      %v937 = vpop.permute.xlu0 %936
      %946 = vst.msk [vmem:[#allocation3 + $0x4] sm:$0xf] %vm411, %v923
      %947 = vst.msk [vmem:[#allocation3 + $0x14] sm:$0xf] %vm411, %v925
      %948 = vst.msk [vmem:[#allocation3 + $0x24] sm:$0xf] %vm411, %v927
      %949 = vst.msk [vmem:[#allocation3 + $0x34] sm:$0xf] %vm411, %v929
      %950 = vst.msk [vmem:[#allocation3 + $0x44] sm:$0xf] %vm411, %v931
      %951 = vst.msk [vmem:[#allocation3 + $0x54] sm:$0xf] %vm411, %v933
      %952 = vst.msk [vmem:[#allocation3 + $0x64] sm:$0xf] %vm411, %v935
      %953 = vst.msk [vmem:[#allocation3 + $0x74] sm:$0xf] %vm411, %v937
      %v954 = vld [vmem:[%s241 + $0x1] sm:$0xff]
      %v955 = vld [vmem:[%s241 + $0x11] sm:$0xff]
      %v956 = vld [vmem:[%s241 + $0x21] sm:$0xff]
      %v957 = vld [vmem:[%s241 + $0x31] sm:$0xff]
      %v958 = vld [vmem:[%s241 + $0x41] sm:$0xff]
      %v959 = vld [vmem:[%s241 + $0x51] sm:$0xff]
      %v960 = vld [vmem:[%s241 + $0x61] sm:$0xff]
      %v961 = vld [vmem:[%s241 + $0x71] sm:$0xff]
      %v962 = vpack.c.bf16 %v954, %v954
      %v963 = vpack.c.bf16 %v955, %v955
      %v964 = vpack.c.bf16 %v956, %v956
      %v965 = vpack.c.bf16 %v957, %v957
      %v966 = vpack.c.bf16 %v958, %v958
      %v967 = vpack.c.bf16 %v959, %v959
      %v968 = vpack.c.bf16 %v960, %v960
      %v969 = vpack.c.bf16 %v961, %v961
      %v978 = vunpack.c.l.b16 %v962
      %v979 = vunpack.c.l.b16 %v963
      %v980 = vunpack.c.l.b16 %v964
      %v981 = vunpack.c.l.b16 %v965
      %v982 = vunpack.c.l.b16 %v966
      %v983 = vunpack.c.l.b16 %v967
      %v984 = vunpack.c.l.b16 %v968
      %v985 = vunpack.c.l.b16 %v969
      %v986 = vpack.c.b16 %v978, %v978
      %v987 = vpack.c.b16 %v979, %v979
      %v988 = vpack.c.b16 %v980, %v980
      %v989 = vpack.c.b16 %v981, %v981
      %v990 = vpack.c.b16 %v982, %v982
      %v991 = vpack.c.b16 %v983, %v983
      %v992 = vpack.c.b16 %v984, %v984
      %v993 = vpack.c.b16 %v985, %v985
      %994 = vrot.lane.b32.xlu0 %v986, 48
      %v995 = vpop.permute.xlu0 %994
      %996 = vrot.lane.b32.xlu0 %v987, 48
      %v997 = vpop.permute.xlu0 %996
      %998 = vrot.lane.b32.xlu0 %v988, 48
      %v999 = vpop.permute.xlu0 %998
      %1000 = vrot.lane.b32.xlu0 %v989, 48
      %v1001 = vpop.permute.xlu0 %1000
      %1002 = vrot.lane.b32.xlu0 %v990, 48
      %v1003 = vpop.permute.xlu0 %1002
      %1004 = vrot.lane.b32.xlu0 %v991, 48
      %v1005 = vpop.permute.xlu0 %1004
      %1006 = vrot.lane.b32.xlu0 %v992, 48
      %v1007 = vpop.permute.xlu0 %1006
      %1008 = vrot.lane.b32.xlu0 %v993, 48
      %v1009 = vpop.permute.xlu0 %1008
      %1018 = vst.msk [vmem:[#allocation3 + $0x4] sm:$0xf] %vm484, %v995
      %1019 = vst.msk [vmem:[#allocation3 + $0x14] sm:$0xf] %vm484, %v997
      %1020 = vst.msk [vmem:[#allocation3 + $0x24] sm:$0xf] %vm484, %v999
      %1021 = vst.msk [vmem:[#allocation3 + $0x34] sm:$0xf] %vm484, %v1001
      %1022 = vst.msk [vmem:[#allocation3 + $0x44] sm:$0xf] %vm484, %v1003
      %1023 = vst.msk [vmem:[#allocation3 + $0x54] sm:$0xf] %vm484, %v1005
      %1024 = vst.msk [vmem:[#allocation3 + $0x64] sm:$0xf] %vm484, %v1007
      %1025 = vst.msk [vmem:[#allocation3 + $0x74] sm:$0xf] %vm484, %v1009
      %v1026 = vld [vmem:[%s241 + $0x2] sm:$0xff]
      %v1027 = vld [vmem:[%s241 + $0x12] sm:$0xff]
      %v1028 = vld [vmem:[%s241 + $0x22] sm:$0xff]
      %v1029 = vld [vmem:[%s241 + $0x32] sm:$0xff]
      %v1030 = vld [vmem:[%s241 + $0x42] sm:$0xff]
      %v1031 = vld [vmem:[%s241 + $0x52] sm:$0xff]
      %v1032 = vld [vmem:[%s241 + $0x62] sm:$0xff]
      %v1033 = vld [vmem:[%s241 + $0x72] sm:$0xff]
      %v1034 = vpack.c.bf16 %v1026, %v1026
      %v1035 = vpack.c.bf16 %v1027, %v1027
      %v1036 = vpack.c.bf16 %v1028, %v1028
      %v1037 = vpack.c.bf16 %v1029, %v1029
      %v1038 = vpack.c.bf16 %v1030, %v1030
      %v1039 = vpack.c.bf16 %v1031, %v1031
      %v1040 = vpack.c.bf16 %v1032, %v1032
      %v1041 = vpack.c.bf16 %v1033, %v1033
      %v1050 = vunpack.c.l.b16 %v1034
      %v1051 = vunpack.c.l.b16 %v1035
      %v1052 = vunpack.c.l.b16 %v1036
      %v1053 = vunpack.c.l.b16 %v1037
      %v1054 = vunpack.c.l.b16 %v1038
      %v1055 = vunpack.c.l.b16 %v1039
      %v1056 = vunpack.c.l.b16 %v1040
      %v1057 = vunpack.c.l.b16 %v1041
      %v1058 = vpack.c.b16 %v1050, %v1050
      %v1059 = vpack.c.b16 %v1051, %v1051
      %v1060 = vpack.c.b16 %v1052, %v1052
      %v1061 = vpack.c.b16 %v1053, %v1053
      %v1062 = vpack.c.b16 %v1054, %v1054
      %v1063 = vpack.c.b16 %v1055, %v1055
      %v1064 = vpack.c.b16 %v1056, %v1056
      %v1065 = vpack.c.b16 %v1057, %v1057
      %1066 = vrot.lane.b32.xlu0 %v1058, 64
      %v1067 = vpop.permute.xlu0 %1066
      %1068 = vrot.lane.b32.xlu0 %v1059, 64
      %v1069 = vpop.permute.xlu0 %1068
      %1070 = vrot.lane.b32.xlu0 %v1060, 64
      %v1071 = vpop.permute.xlu0 %1070
      %1072 = vrot.lane.b32.xlu0 %v1061, 64
      %v1073 = vpop.permute.xlu0 %1072
      %1074 = vrot.lane.b32.xlu0 %v1062, 64
      %v1075 = vpop.permute.xlu0 %1074
      %1076 = vrot.lane.b32.xlu0 %v1063, 64
      %v1077 = vpop.permute.xlu0 %1076
      %1078 = vrot.lane.b32.xlu0 %v1064, 64
      %v1079 = vpop.permute.xlu0 %1078
      %1080 = vrot.lane.b32.xlu0 %v1065, 64
      %v1081 = vpop.permute.xlu0 %1080
      %1090 = vst.msk [vmem:[#allocation3 + $0x4] sm:$0xf] %vm557, %v1067
      %1091 = vst.msk [vmem:[#allocation3 + $0x14] sm:$0xf] %vm557, %v1069
      %1092 = vst.msk [vmem:[#allocation3 + $0x24] sm:$0xf] %vm557, %v1071
      %1093 = vst.msk [vmem:[#allocation3 + $0x34] sm:$0xf] %vm557, %v1073
      %1094 = vst.msk [vmem:[#allocation3 + $0x44] sm:$0xf] %vm557, %v1075
      %1095 = vst.msk [vmem:[#allocation3 + $0x54] sm:$0xf] %vm557, %v1077
      %1096 = vst.msk [vmem:[#allocation3 + $0x64] sm:$0xf] %vm557, %v1079
      %1097 = vst.msk [vmem:[#allocation3 + $0x74] sm:$0xf] %vm557, %v1081
      %v1098 = vld [vmem:[%s241 + $0x3] sm:$0xff]
      %v1099 = vld [vmem:[%s241 + $0x13] sm:$0xff]
      %v1100 = vld [vmem:[%s241 + $0x23] sm:$0xff]
      %v1101 = vld [vmem:[%s241 + $0x33] sm:$0xff]
      %v1102 = vld [vmem:[%s241 + $0x43] sm:$0xff]
      %v1103 = vld [vmem:[%s241 + $0x53] sm:$0xff]
      %v1104 = vld [vmem:[%s241 + $0x63] sm:$0xff]
      %v1105 = vld [vmem:[%s241 + $0x73] sm:$0xff]
      %v1106 = vpack.c.bf16 %v1098, %v1098
      %v1107 = vpack.c.bf16 %v1099, %v1099
      %v1108 = vpack.c.bf16 %v1100, %v1100
      %v1109 = vpack.c.bf16 %v1101, %v1101
      %v1110 = vpack.c.bf16 %v1102, %v1102
      %v1111 = vpack.c.bf16 %v1103, %v1103
      %v1112 = vpack.c.bf16 %v1104, %v1104
      %v1113 = vpack.c.bf16 %v1105, %v1105
      %v1122 = vunpack.c.l.b16 %v1106
      %v1123 = vunpack.c.l.b16 %v1107
      %v1124 = vunpack.c.l.b16 %v1108
      %v1125 = vunpack.c.l.b16 %v1109
      %v1126 = vunpack.c.l.b16 %v1110
      %v1127 = vunpack.c.l.b16 %v1111
      %v1128 = vunpack.c.l.b16 %v1112
      %v1129 = vunpack.c.l.b16 %v1113
      %v1130 = vpack.c.b16 %v1122, %v1122
      %v1131 = vpack.c.b16 %v1123, %v1123
      %v1132 = vpack.c.b16 %v1124, %v1124
      %v1133 = vpack.c.b16 %v1125, %v1125
      %v1134 = vpack.c.b16 %v1126, %v1126
      %v1135 = vpack.c.b16 %v1127, %v1127
      %v1136 = vpack.c.b16 %v1128, %v1128
      %v1137 = vpack.c.b16 %v1129, %v1129
      %1138 = vrot.lane.b32.xlu0 %v1130, 80
      %v1139 = vpop.permute.xlu0 %1138
      %1140 = vrot.lane.b32.xlu0 %v1131, 80
      %v1141 = vpop.permute.xlu0 %1140
      %1142 = vrot.lane.b32.xlu0 %v1132, 80
      %v1143 = vpop.permute.xlu0 %1142
      %1144 = vrot.lane.b32.xlu0 %v1133, 80
      %v1145 = vpop.permute.xlu0 %1144
      %1146 = vrot.lane.b32.xlu0 %v1134, 80
      %v1147 = vpop.permute.xlu0 %1146
      %1148 = vrot.lane.b32.xlu0 %v1135, 80
      %v1149 = vpop.permute.xlu0 %1148
      %1150 = vrot.lane.b32.xlu0 %v1136, 80
      %v1151 = vpop.permute.xlu0 %1150
      %1152 = vrot.lane.b32.xlu0 %v1137, 80
      %v1153 = vpop.permute.xlu0 %1152
      %1162 = vst.msk [vmem:[#allocation3 + $0x4] sm:$0xf] %vm631, %v1139
      %1163 = vst.msk [vmem:[#allocation3 + $0x14] sm:$0xf] %vm631, %v1141
      %1164 = vst.msk [vmem:[#allocation3 + $0x24] sm:$0xf] %vm631, %v1143
      %1165 = vst.msk [vmem:[#allocation3 + $0x34] sm:$0xf] %vm631, %v1145
      %1166 = vst.msk [vmem:[#allocation3 + $0x44] sm:$0xf] %vm631, %v1147
      %1167 = vst.msk [vmem:[#allocation3 + $0x54] sm:$0xf] %vm631, %v1149
      %1168 = vst.msk [vmem:[#allocation3 + $0x64] sm:$0xf] %vm631, %v1151
      %1169 = vst.msk [vmem:[#allocation3 + $0x74] sm:$0xf] %vm631, %v1153
      %v1170 = vld [vmem:[%s241 + $0x4] sm:$0xff]
      %v1171 = vld [vmem:[%s241 + $0x14] sm:$0xff]
      %v1172 = vld [vmem:[%s241 + $0x24] sm:$0xff]
      %v1173 = vld [vmem:[%s241 + $0x34] sm:$0xff]
      %v1174 = vld [vmem:[%s241 + $0x44] sm:$0xff]
      %v1175 = vld [vmem:[%s241 + $0x54] sm:$0xff]
      %v1176 = vld [vmem:[%s241 + $0x64] sm:$0xff]
      %v1177 = vld [vmem:[%s241 + $0x74] sm:$0xff]
      %v1178 = vpack.c.bf16 %v1170, %v1170
      %v1179 = vpack.c.bf16 %v1171, %v1171
      %v1180 = vpack.c.bf16 %v1172, %v1172
      %v1181 = vpack.c.bf16 %v1173, %v1173
      %v1182 = vpack.c.bf16 %v1174, %v1174
      %v1183 = vpack.c.bf16 %v1175, %v1175
      %v1184 = vpack.c.bf16 %v1176, %v1176
      %v1185 = vpack.c.bf16 %v1177, %v1177
      %v1194 = vunpack.c.l.b16 %v1178
      %v1195 = vunpack.c.l.b16 %v1179
      %v1196 = vunpack.c.l.b16 %v1180
      %v1197 = vunpack.c.l.b16 %v1181
      %v1198 = vunpack.c.l.b16 %v1182
      %v1199 = vunpack.c.l.b16 %v1183
      %v1200 = vunpack.c.l.b16 %v1184
      %v1201 = vunpack.c.l.b16 %v1185
      %v1202 = vpack.c.b16 %v1194, %v1194
      %v1203 = vpack.c.b16 %v1195, %v1195
      %v1204 = vpack.c.b16 %v1196, %v1196
      %v1205 = vpack.c.b16 %v1197, %v1197
      %v1206 = vpack.c.b16 %v1198, %v1198
      %v1207 = vpack.c.b16 %v1199, %v1199
      %v1208 = vpack.c.b16 %v1200, %v1200
      %v1209 = vpack.c.b16 %v1201, %v1201
      %1210 = vrot.lane.b32.xlu0 %v1202, 96
      %v1211 = vpop.permute.xlu0 %1210
      %1212 = vrot.lane.b32.xlu0 %v1203, 96
      %v1213 = vpop.permute.xlu0 %1212
      %1214 = vrot.lane.b32.xlu0 %v1204, 96
      %v1215 = vpop.permute.xlu0 %1214
      %1216 = vrot.lane.b32.xlu0 %v1205, 96
      %v1217 = vpop.permute.xlu0 %1216
      %1218 = vrot.lane.b32.xlu0 %v1206, 96
      %v1219 = vpop.permute.xlu0 %1218
      %1220 = vrot.lane.b32.xlu0 %v1207, 96
      %v1221 = vpop.permute.xlu0 %1220
      %1222 = vrot.lane.b32.xlu0 %v1208, 96
      %v1223 = vpop.permute.xlu0 %1222
      %1224 = vrot.lane.b32.xlu0 %v1209, 96
      %v1225 = vpop.permute.xlu0 %1224
      %1234 = vst.msk [vmem:[#allocation3 + $0x4] sm:$0xf] %vm704, %v1211
      %1235 = vst.msk [vmem:[#allocation3 + $0x14] sm:$0xf] %vm704, %v1213
      %1236 = vst.msk [vmem:[#allocation3 + $0x24] sm:$0xf] %vm704, %v1215
      %1237 = vst.msk [vmem:[#allocation3 + $0x34] sm:$0xf] %vm704, %v1217
      %1238 = vst.msk [vmem:[#allocation3 + $0x44] sm:$0xf] %vm704, %v1219
      %1239 = vst.msk [vmem:[#allocation3 + $0x54] sm:$0xf] %vm704, %v1221
      %1240 = vst.msk [vmem:[#allocation3 + $0x64] sm:$0xf] %vm704, %v1223
      %1241 = vst.msk [vmem:[#allocation3 + $0x74] sm:$0xf] %vm704, %v1225
      %s1242 = scalar_lea.vmem [#allocation2], 48
      %v1243 = vld [vmem:[%s1242] sm:$0xff]
      %v1244 = vld [vmem:[%s1242 + $0x10] sm:$0xff]
      %v1245 = vld [vmem:[%s1242 + $0x20] sm:$0xff]
      %v1246 = vld [vmem:[%s1242 + $0x30] sm:$0xff]
      %v1247 = vld [vmem:[%s1242 + $0x40] sm:$0xff]
      %v1248 = vld [vmem:[%s1242 + $0x50] sm:$0xff]
      %v1249 = vld [vmem:[%s1242 + $0x60] sm:$0xff]
      %v1250 = vld [vmem:[%s1242 + $0x70] sm:$0xff]
      %v1251 = vpack.c.bf16 %v1243, %v1243
      %v1252 = vpack.c.bf16 %v1244, %v1244
      %v1253 = vpack.c.bf16 %v1245, %v1245
      %v1254 = vpack.c.bf16 %v1246, %v1246
      %v1255 = vpack.c.bf16 %v1247, %v1247
      %v1256 = vpack.c.bf16 %v1248, %v1248
      %v1257 = vpack.c.bf16 %v1249, %v1249
      %v1258 = vpack.c.bf16 %v1250, %v1250
      %v1267 = vunpack.c.l.b16 %v1251
      %v1268 = vunpack.c.l.b16 %v1252
      %v1269 = vunpack.c.l.b16 %v1253
      %v1270 = vunpack.c.l.b16 %v1254
      %v1271 = vunpack.c.l.b16 %v1255
      %v1272 = vunpack.c.l.b16 %v1256
      %v1273 = vunpack.c.l.b16 %v1257
      %v1274 = vunpack.c.l.b16 %v1258
      %v1275 = vpack.c.b16 %v1267, %v1267
      %v1276 = vpack.c.b16 %v1268, %v1268
      %v1277 = vpack.c.b16 %v1269, %v1269
      %v1278 = vpack.c.b16 %v1270, %v1270
      %v1279 = vpack.c.b16 %v1271, %v1271
      %v1280 = vpack.c.b16 %v1272, %v1272
      %v1281 = vpack.c.b16 %v1273, %v1273
      %v1282 = vpack.c.b16 %v1274, %v1274
      %1283 = vrot.lane.b32.xlu0 %v1275, 112
      %v1284 = vpop.permute.xlu0 %1283
      %1285 = vrot.lane.b32.xlu0 %v1276, 112
      %v1286 = vpop.permute.xlu0 %1285
      %1287 = vrot.lane.b32.xlu0 %v1277, 112
      %v1288 = vpop.permute.xlu0 %1287
      %1289 = vrot.lane.b32.xlu0 %v1278, 112
      %v1290 = vpop.permute.xlu0 %1289
      %1291 = vrot.lane.b32.xlu0 %v1279, 112
      %v1292 = vpop.permute.xlu0 %1291
      %1293 = vrot.lane.b32.xlu0 %v1280, 112
      %v1294 = vpop.permute.xlu0 %1293
      %1295 = vrot.lane.b32.xlu0 %v1281, 112
      %v1296 = vpop.permute.xlu0 %1295
      %1297 = vrot.lane.b32.xlu0 %v1282, 112
      %v1298 = vpop.permute.xlu0 %1297
      %1307 = vst.msk [vmem:[#allocation3 + $0x4] sm:$0xf] %vm777, %v1284
      %1308 = vst.msk [vmem:[#allocation3 + $0x14] sm:$0xf] %vm777, %v1286
      %1309 = vst.msk [vmem:[#allocation3 + $0x24] sm:$0xf] %vm777, %v1288
      %1310 = vst.msk [vmem:[#allocation3 + $0x34] sm:$0xf] %vm777, %v1290
      %1311 = vst.msk [vmem:[#allocation3 + $0x44] sm:$0xf] %vm777, %v1292
      %1312 = vst.msk [vmem:[#allocation3 + $0x54] sm:$0xf] %vm777, %v1294
      %1313 = vst.msk [vmem:[#allocation3 + $0x64] sm:$0xf] %vm777, %v1296
      %1314 = vst.msk [vmem:[#allocation3 + $0x74] sm:$0xf] %vm777, %v1298
      %v1315 = vld [vmem:[%s1242 + $0x1] sm:$0xff]
      %v1316 = vld [vmem:[%s1242 + $0x11] sm:$0xff]
      %v1317 = vld [vmem:[%s1242 + $0x21] sm:$0xff]
      %v1318 = vld [vmem:[%s1242 + $0x31] sm:$0xff]
      %v1319 = vld [vmem:[%s1242 + $0x41] sm:$0xff]
      %v1320 = vld [vmem:[%s1242 + $0x51] sm:$0xff]
      %v1321 = vld [vmem:[%s1242 + $0x61] sm:$0xff]
      %v1322 = vld [vmem:[%s1242 + $0x71] sm:$0xff]
      %v1323 = vpack.c.bf16 %v1315, %v1315
      %v1324 = vpack.c.bf16 %v1316, %v1316
      %v1325 = vpack.c.bf16 %v1317, %v1317
      %v1326 = vpack.c.bf16 %v1318, %v1318
      %v1327 = vpack.c.bf16 %v1319, %v1319
      %v1328 = vpack.c.bf16 %v1320, %v1320
      %v1329 = vpack.c.bf16 %v1321, %v1321
      %v1330 = vpack.c.bf16 %v1322, %v1322
      %1331 = vst.msk [vmem:[#allocation3 + $0x8] sm:$0xf] %vm201, %v1323
      %1332 = vst.msk [vmem:[#allocation3 + $0x18] sm:$0xf] %vm201, %v1324
      %1333 = vst.msk [vmem:[#allocation3 + $0x28] sm:$0xf] %vm201, %v1325
      %1334 = vst.msk [vmem:[#allocation3 + $0x38] sm:$0xf] %vm201, %v1326
      %1335 = vst.msk [vmem:[#allocation3 + $0x48] sm:$0xf] %vm201, %v1327
      %1336 = vst.msk [vmem:[#allocation3 + $0x58] sm:$0xf] %vm201, %v1328
      %1337 = vst.msk [vmem:[#allocation3 + $0x68] sm:$0xf] %vm201, %v1329
      %1338 = vst.msk [vmem:[#allocation3 + $0x78] sm:$0xf] %vm201, %v1330
      %v1339 = vld [vmem:[%s1242 + $0x2] sm:$0xff]
      %v1340 = vld [vmem:[%s1242 + $0x12] sm:$0xff]
      %v1341 = vld [vmem:[%s1242 + $0x22] sm:$0xff]
      %v1342 = vld [vmem:[%s1242 + $0x32] sm:$0xff]
      %v1343 = vld [vmem:[%s1242 + $0x42] sm:$0xff]
      %v1344 = vld [vmem:[%s1242 + $0x52] sm:$0xff]
      %v1345 = vld [vmem:[%s1242 + $0x62] sm:$0xff]
      %v1346 = vld [vmem:[%s1242 + $0x72] sm:$0xff]
      %v1347 = vpack.c.bf16 %v1339, %v1339
      %v1348 = vpack.c.bf16 %v1340, %v1340
      %v1349 = vpack.c.bf16 %v1341, %v1341
      %v1350 = vpack.c.bf16 %v1342, %v1342
      %v1351 = vpack.c.bf16 %v1343, %v1343
      %v1352 = vpack.c.bf16 %v1344, %v1344
      %v1353 = vpack.c.bf16 %v1345, %v1345
      %v1354 = vpack.c.bf16 %v1346, %v1346
      %v1363 = vunpack.c.l.b16 %v1347
      %v1364 = vunpack.c.l.b16 %v1348
      %v1365 = vunpack.c.l.b16 %v1349
      %v1366 = vunpack.c.l.b16 %v1350
      %v1367 = vunpack.c.l.b16 %v1351
      %v1368 = vunpack.c.l.b16 %v1352
      %v1369 = vunpack.c.l.b16 %v1353
      %v1370 = vunpack.c.l.b16 %v1354
      %v1371 = vpack.c.b16 %v1363, %v1363
      %v1372 = vpack.c.b16 %v1364, %v1364
      %v1373 = vpack.c.b16 %v1365, %v1365
      %v1374 = vpack.c.b16 %v1366, %v1366
      %v1375 = vpack.c.b16 %v1367, %v1367
      %v1376 = vpack.c.b16 %v1368, %v1368
      %v1377 = vpack.c.b16 %v1369, %v1369
      %v1378 = vpack.c.b16 %v1370, %v1370
      %1379 = vrot.lane.b32.xlu0 %v1371, 16
      %v1380 = vpop.permute.xlu0 %1379
      %1381 = vrot.lane.b32.xlu0 %v1372, 16
      %v1382 = vpop.permute.xlu0 %1381
      %1383 = vrot.lane.b32.xlu0 %v1373, 16
      %v1384 = vpop.permute.xlu0 %1383
      %1385 = vrot.lane.b32.xlu0 %v1374, 16
      %v1386 = vpop.permute.xlu0 %1385
      %1387 = vrot.lane.b32.xlu0 %v1375, 16
      %v1388 = vpop.permute.xlu0 %1387
      %1389 = vrot.lane.b32.xlu0 %v1376, 16
      %v1390 = vpop.permute.xlu0 %1389
      %1391 = vrot.lane.b32.xlu0 %v1377, 16
      %v1392 = vpop.permute.xlu0 %1391
      %1393 = vrot.lane.b32.xlu0 %v1378, 16
      %v1394 = vpop.permute.xlu0 %1393
      %1403 = vst.msk [vmem:[#allocation3 + $0x8] sm:$0xf] %vm338, %v1380
      %1404 = vst.msk [vmem:[#allocation3 + $0x18] sm:$0xf] %vm338, %v1382
      %1405 = vst.msk [vmem:[#allocation3 + $0x28] sm:$0xf] %vm338, %v1384
      %1406 = vst.msk [vmem:[#allocation3 + $0x38] sm:$0xf] %vm338, %v1386
      %1407 = vst.msk [vmem:[#allocation3 + $0x48] sm:$0xf] %vm338, %v1388
      %1408 = vst.msk [vmem:[#allocation3 + $0x58] sm:$0xf] %vm338, %v1390
      %1409 = vst.msk [vmem:[#allocation3 + $0x68] sm:$0xf] %vm338, %v1392
      %1410 = vst.msk [vmem:[#allocation3 + $0x78] sm:$0xf] %vm338, %v1394
      %v1411 = vld [vmem:[%s1242 + $0x3] sm:$0xff]
      %v1412 = vld [vmem:[%s1242 + $0x13] sm:$0xff]
      %v1413 = vld [vmem:[%s1242 + $0x23] sm:$0xff]
      %v1414 = vld [vmem:[%s1242 + $0x33] sm:$0xff]
      %v1415 = vld [vmem:[%s1242 + $0x43] sm:$0xff]
      %v1416 = vld [vmem:[%s1242 + $0x53] sm:$0xff]
      %v1417 = vld [vmem:[%s1242 + $0x63] sm:$0xff]
      %v1418 = vld [vmem:[%s1242 + $0x73] sm:$0xff]
      %v1419 = vpack.c.bf16 %v1411, %v1411
      %v1420 = vpack.c.bf16 %v1412, %v1412
      %v1421 = vpack.c.bf16 %v1413, %v1413
      %v1422 = vpack.c.bf16 %v1414, %v1414
      %v1423 = vpack.c.bf16 %v1415, %v1415
      %v1424 = vpack.c.bf16 %v1416, %v1416
      %v1425 = vpack.c.bf16 %v1417, %v1417
      %v1426 = vpack.c.bf16 %v1418, %v1418
      %v1435 = vunpack.c.l.b16 %v1419
      %v1436 = vunpack.c.l.b16 %v1420
      %v1437 = vunpack.c.l.b16 %v1421
      %v1438 = vunpack.c.l.b16 %v1422
      %v1439 = vunpack.c.l.b16 %v1423
      %v1440 = vunpack.c.l.b16 %v1424
      %v1441 = vunpack.c.l.b16 %v1425
      %v1442 = vunpack.c.l.b16 %v1426
      %v1443 = vpack.c.b16 %v1435, %v1435
      %v1444 = vpack.c.b16 %v1436, %v1436
      %v1445 = vpack.c.b16 %v1437, %v1437
      %v1446 = vpack.c.b16 %v1438, %v1438
      %v1447 = vpack.c.b16 %v1439, %v1439
      %v1448 = vpack.c.b16 %v1440, %v1440
      %v1449 = vpack.c.b16 %v1441, %v1441
      %v1450 = vpack.c.b16 %v1442, %v1442
      %1451 = vrot.lane.b32.xlu0 %v1443, 32
      %v1452 = vpop.permute.xlu0 %1451
      %1453 = vrot.lane.b32.xlu0 %v1444, 32
      %v1454 = vpop.permute.xlu0 %1453
      %1455 = vrot.lane.b32.xlu0 %v1445, 32
      %v1456 = vpop.permute.xlu0 %1455
      %1457 = vrot.lane.b32.xlu0 %v1446, 32
      %v1458 = vpop.permute.xlu0 %1457
      %1459 = vrot.lane.b32.xlu0 %v1447, 32
      %v1460 = vpop.permute.xlu0 %1459
      %1461 = vrot.lane.b32.xlu0 %v1448, 32
      %v1462 = vpop.permute.xlu0 %1461
      %1463 = vrot.lane.b32.xlu0 %v1449, 32
      %v1464 = vpop.permute.xlu0 %1463
      %1465 = vrot.lane.b32.xlu0 %v1450, 32
      %v1466 = vpop.permute.xlu0 %1465
      %1475 = vst.msk [vmem:[#allocation3 + $0x8] sm:$0xf] %vm411, %v1452
      %1476 = vst.msk [vmem:[#allocation3 + $0x18] sm:$0xf] %vm411, %v1454
      %1477 = vst.msk [vmem:[#allocation3 + $0x28] sm:$0xf] %vm411, %v1456
      %1478 = vst.msk [vmem:[#allocation3 + $0x38] sm:$0xf] %vm411, %v1458
      %1479 = vst.msk [vmem:[#allocation3 + $0x48] sm:$0xf] %vm411, %v1460
      %1480 = vst.msk [vmem:[#allocation3 + $0x58] sm:$0xf] %vm411, %v1462
      %1481 = vst.msk [vmem:[#allocation3 + $0x68] sm:$0xf] %vm411, %v1464
      %1482 = vst.msk [vmem:[#allocation3 + $0x78] sm:$0xf] %vm411, %v1466
      %v1483 = vld [vmem:[%s1242 + $0x4] sm:$0xff]
      %v1484 = vld [vmem:[%s1242 + $0x14] sm:$0xff]
      %v1485 = vld [vmem:[%s1242 + $0x24] sm:$0xff]
      %v1486 = vld [vmem:[%s1242 + $0x34] sm:$0xff]
      %v1487 = vld [vmem:[%s1242 + $0x44] sm:$0xff]
      %v1488 = vld [vmem:[%s1242 + $0x54] sm:$0xff]
      %v1489 = vld [vmem:[%s1242 + $0x64] sm:$0xff]
      %v1490 = vld [vmem:[%s1242 + $0x74] sm:$0xff]
      %v1491 = vpack.c.bf16 %v1483, %v1483
      %v1492 = vpack.c.bf16 %v1484, %v1484
      %v1493 = vpack.c.bf16 %v1485, %v1485
      %v1494 = vpack.c.bf16 %v1486, %v1486
      %v1495 = vpack.c.bf16 %v1487, %v1487
      %v1496 = vpack.c.bf16 %v1488, %v1488
      %v1497 = vpack.c.bf16 %v1489, %v1489
      %v1498 = vpack.c.bf16 %v1490, %v1490
      %v1507 = vunpack.c.l.b16 %v1491
      %v1508 = vunpack.c.l.b16 %v1492
      %v1509 = vunpack.c.l.b16 %v1493
      %v1510 = vunpack.c.l.b16 %v1494
      %v1511 = vunpack.c.l.b16 %v1495
      %v1512 = vunpack.c.l.b16 %v1496
      %v1513 = vunpack.c.l.b16 %v1497
      %v1514 = vunpack.c.l.b16 %v1498
      %v1515 = vpack.c.b16 %v1507, %v1507
      %v1516 = vpack.c.b16 %v1508, %v1508
      %v1517 = vpack.c.b16 %v1509, %v1509
      %v1518 = vpack.c.b16 %v1510, %v1510
      %v1519 = vpack.c.b16 %v1511, %v1511
      %v1520 = vpack.c.b16 %v1512, %v1512
      %v1521 = vpack.c.b16 %v1513, %v1513
      %v1522 = vpack.c.b16 %v1514, %v1514
      %1523 = vrot.lane.b32.xlu0 %v1515, 48
      %v1524 = vpop.permute.xlu0 %1523
      %1525 = vrot.lane.b32.xlu0 %v1516, 48
      %v1526 = vpop.permute.xlu0 %1525
      %1527 = vrot.lane.b32.xlu0 %v1517, 48
      %v1528 = vpop.permute.xlu0 %1527
      %1529 = vrot.lane.b32.xlu0 %v1518, 48
      %v1530 = vpop.permute.xlu0 %1529
      %1531 = vrot.lane.b32.xlu0 %v1519, 48
      %v1532 = vpop.permute.xlu0 %1531
      %1533 = vrot.lane.b32.xlu0 %v1520, 48
      %v1534 = vpop.permute.xlu0 %1533
      %1535 = vrot.lane.b32.xlu0 %v1521, 48
      %v1536 = vpop.permute.xlu0 %1535
      %1537 = vrot.lane.b32.xlu0 %v1522, 48
      %v1538 = vpop.permute.xlu0 %1537
      %1547 = vst.msk [vmem:[#allocation3 + $0x8] sm:$0xf] %vm484, %v1524
      %1548 = vst.msk [vmem:[#allocation3 + $0x18] sm:$0xf] %vm484, %v1526
      %1549 = vst.msk [vmem:[#allocation3 + $0x28] sm:$0xf] %vm484, %v1528
      %1550 = vst.msk [vmem:[#allocation3 + $0x38] sm:$0xf] %vm484, %v1530
      %1551 = vst.msk [vmem:[#allocation3 + $0x48] sm:$0xf] %vm484, %v1532
      %1552 = vst.msk [vmem:[#allocation3 + $0x58] sm:$0xf] %vm484, %v1534
      %1553 = vst.msk [vmem:[#allocation3 + $0x68] sm:$0xf] %vm484, %v1536
      %1554 = vst.msk [vmem:[#allocation3 + $0x78] sm:$0xf] %vm484, %v1538
      %s1555 = scalar_lea.vmem [#allocation2], 64
      %v1556 = vld [vmem:[%s1555] sm:$0xff]
      %v1557 = vld [vmem:[%s1555 + $0x10] sm:$0xff]
      %v1558 = vld [vmem:[%s1555 + $0x20] sm:$0xff]
      %v1559 = vld [vmem:[%s1555 + $0x30] sm:$0xff]
      %v1560 = vld [vmem:[%s1555 + $0x40] sm:$0xff]
      %v1561 = vld [vmem:[%s1555 + $0x50] sm:$0xff]
      %v1562 = vld [vmem:[%s1555 + $0x60] sm:$0xff]
      %v1563 = vld [vmem:[%s1555 + $0x70] sm:$0xff]
      %v1564 = vpack.c.bf16 %v1556, %v1556
      %v1565 = vpack.c.bf16 %v1557, %v1557
      %v1566 = vpack.c.bf16 %v1558, %v1558
      %v1567 = vpack.c.bf16 %v1559, %v1559
      %v1568 = vpack.c.bf16 %v1560, %v1560
      %v1569 = vpack.c.bf16 %v1561, %v1561
      %v1570 = vpack.c.bf16 %v1562, %v1562
      %v1571 = vpack.c.bf16 %v1563, %v1563
      %v1580 = vunpack.c.l.b16 %v1564
      %v1581 = vunpack.c.l.b16 %v1565
      %v1582 = vunpack.c.l.b16 %v1566
      %v1583 = vunpack.c.l.b16 %v1567
      %v1584 = vunpack.c.l.b16 %v1568
      %v1585 = vunpack.c.l.b16 %v1569
      %v1586 = vunpack.c.l.b16 %v1570
      %v1587 = vunpack.c.l.b16 %v1571
      %v1588 = vpack.c.b16 %v1580, %v1580
      %v1589 = vpack.c.b16 %v1581, %v1581
      %v1590 = vpack.c.b16 %v1582, %v1582
      %v1591 = vpack.c.b16 %v1583, %v1583
      %v1592 = vpack.c.b16 %v1584, %v1584
      %v1593 = vpack.c.b16 %v1585, %v1585
      %v1594 = vpack.c.b16 %v1586, %v1586
      %v1595 = vpack.c.b16 %v1587, %v1587
      %1596 = vrot.lane.b32.xlu0 %v1588, 64
      %v1597 = vpop.permute.xlu0 %1596
      %1598 = vrot.lane.b32.xlu0 %v1589, 64
      %v1599 = vpop.permute.xlu0 %1598
      %1600 = vrot.lane.b32.xlu0 %v1590, 64
      %v1601 = vpop.permute.xlu0 %1600
      %1602 = vrot.lane.b32.xlu0 %v1591, 64
      %v1603 = vpop.permute.xlu0 %1602
      %1604 = vrot.lane.b32.xlu0 %v1592, 64
      %v1605 = vpop.permute.xlu0 %1604
      %1606 = vrot.lane.b32.xlu0 %v1593, 64
      %v1607 = vpop.permute.xlu0 %1606
      %1608 = vrot.lane.b32.xlu0 %v1594, 64
      %v1609 = vpop.permute.xlu0 %1608
      %1610 = vrot.lane.b32.xlu0 %v1595, 64
      %v1611 = vpop.permute.xlu0 %1610
      %1620 = vst.msk [vmem:[#allocation3 + $0x8] sm:$0xf] %vm557, %v1597
      %1621 = vst.msk [vmem:[#allocation3 + $0x18] sm:$0xf] %vm557, %v1599
      %1622 = vst.msk [vmem:[#allocation3 + $0x28] sm:$0xf] %vm557, %v1601
      %1623 = vst.msk [vmem:[#allocation3 + $0x38] sm:$0xf] %vm557, %v1603
      %1624 = vst.msk [vmem:[#allocation3 + $0x48] sm:$0xf] %vm557, %v1605
      %1625 = vst.msk [vmem:[#allocation3 + $0x58] sm:$0xf] %vm557, %v1607
      %1626 = vst.msk [vmem:[#allocation3 + $0x68] sm:$0xf] %vm557, %v1609
      %1627 = vst.msk [vmem:[#allocation3 + $0x78] sm:$0xf] %vm557, %v1611
      %v1628 = vld [vmem:[%s1555 + $0x1] sm:$0xff]
      %v1629 = vld [vmem:[%s1555 + $0x11] sm:$0xff]
      %v1630 = vld [vmem:[%s1555 + $0x21] sm:$0xff]
      %v1631 = vld [vmem:[%s1555 + $0x31] sm:$0xff]
      %v1632 = vld [vmem:[%s1555 + $0x41] sm:$0xff]
      %v1633 = vld [vmem:[%s1555 + $0x51] sm:$0xff]
      %v1634 = vld [vmem:[%s1555 + $0x61] sm:$0xff]
      %v1635 = vld [vmem:[%s1555 + $0x71] sm:$0xff]
      %v1636 = vpack.c.bf16 %v1628, %v1628
      %v1637 = vpack.c.bf16 %v1629, %v1629
      %v1638 = vpack.c.bf16 %v1630, %v1630
      %v1639 = vpack.c.bf16 %v1631, %v1631
      %v1640 = vpack.c.bf16 %v1632, %v1632
      %v1641 = vpack.c.bf16 %v1633, %v1633
      %v1642 = vpack.c.bf16 %v1634, %v1634
      %v1643 = vpack.c.bf16 %v1635, %v1635
      %v1652 = vunpack.c.l.b16 %v1636
      %v1653 = vunpack.c.l.b16 %v1637
      %v1654 = vunpack.c.l.b16 %v1638
      %v1655 = vunpack.c.l.b16 %v1639
      %v1656 = vunpack.c.l.b16 %v1640
      %v1657 = vunpack.c.l.b16 %v1641
      %v1658 = vunpack.c.l.b16 %v1642
      %v1659 = vunpack.c.l.b16 %v1643
      %v1660 = vpack.c.b16 %v1652, %v1652
      %v1661 = vpack.c.b16 %v1653, %v1653
      %v1662 = vpack.c.b16 %v1654, %v1654
      %v1663 = vpack.c.b16 %v1655, %v1655
      %v1664 = vpack.c.b16 %v1656, %v1656
      %v1665 = vpack.c.b16 %v1657, %v1657
      %v1666 = vpack.c.b16 %v1658, %v1658
      %v1667 = vpack.c.b16 %v1659, %v1659
      %1668 = vrot.lane.b32.xlu0 %v1660, 80
      %v1669 = vpop.permute.xlu0 %1668
      %1670 = vrot.lane.b32.xlu0 %v1661, 80
      %v1671 = vpop.permute.xlu0 %1670
      %1672 = vrot.lane.b32.xlu0 %v1662, 80
      %v1673 = vpop.permute.xlu0 %1672
      %1674 = vrot.lane.b32.xlu0 %v1663, 80
      %v1675 = vpop.permute.xlu0 %1674
      %1676 = vrot.lane.b32.xlu0 %v1664, 80
      %v1677 = vpop.permute.xlu0 %1676
      %1678 = vrot.lane.b32.xlu0 %v1665, 80
      %v1679 = vpop.permute.xlu0 %1678
      %1680 = vrot.lane.b32.xlu0 %v1666, 80
      %v1681 = vpop.permute.xlu0 %1680
      %1682 = vrot.lane.b32.xlu0 %v1667, 80
      %v1683 = vpop.permute.xlu0 %1682
      %1692 = vst.msk [vmem:[#allocation3 + $0x8] sm:$0xf] %vm631, %v1669
      %1693 = vst.msk [vmem:[#allocation3 + $0x18] sm:$0xf] %vm631, %v1671
      %1694 = vst.msk [vmem:[#allocation3 + $0x28] sm:$0xf] %vm631, %v1673
      %1695 = vst.msk [vmem:[#allocation3 + $0x38] sm:$0xf] %vm631, %v1675
      %1696 = vst.msk [vmem:[#allocation3 + $0x48] sm:$0xf] %vm631, %v1677
      %1697 = vst.msk [vmem:[#allocation3 + $0x58] sm:$0xf] %vm631, %v1679
      %1698 = vst.msk [vmem:[#allocation3 + $0x68] sm:$0xf] %vm631, %v1681
      %1699 = vst.msk [vmem:[#allocation3 + $0x78] sm:$0xf] %vm631, %v1683
      %v1700 = vld [vmem:[%s1555 + $0x2] sm:$0xff]
      %v1701 = vld [vmem:[%s1555 + $0x12] sm:$0xff]
      %v1702 = vld [vmem:[%s1555 + $0x22] sm:$0xff]
      %v1703 = vld [vmem:[%s1555 + $0x32] sm:$0xff]
      %v1704 = vld [vmem:[%s1555 + $0x42] sm:$0xff]
      %v1705 = vld [vmem:[%s1555 + $0x52] sm:$0xff]
      %v1706 = vld [vmem:[%s1555 + $0x62] sm:$0xff]
      %v1707 = vld [vmem:[%s1555 + $0x72] sm:$0xff]
      %v1708 = vpack.c.bf16 %v1700, %v1700
      %v1709 = vpack.c.bf16 %v1701, %v1701
      %v1710 = vpack.c.bf16 %v1702, %v1702
      %v1711 = vpack.c.bf16 %v1703, %v1703
      %v1712 = vpack.c.bf16 %v1704, %v1704
      %v1713 = vpack.c.bf16 %v1705, %v1705
      %v1714 = vpack.c.bf16 %v1706, %v1706
      %v1715 = vpack.c.bf16 %v1707, %v1707
      %v1724 = vunpack.c.l.b16 %v1708
      %v1725 = vunpack.c.l.b16 %v1709
      %v1726 = vunpack.c.l.b16 %v1710
      %v1727 = vunpack.c.l.b16 %v1711
      %v1728 = vunpack.c.l.b16 %v1712
      %v1729 = vunpack.c.l.b16 %v1713
      %v1730 = vunpack.c.l.b16 %v1714
      %v1731 = vunpack.c.l.b16 %v1715
      %v1732 = vpack.c.b16 %v1724, %v1724
      %v1733 = vpack.c.b16 %v1725, %v1725
      %v1734 = vpack.c.b16 %v1726, %v1726
      %v1735 = vpack.c.b16 %v1727, %v1727
      %v1736 = vpack.c.b16 %v1728, %v1728
      %v1737 = vpack.c.b16 %v1729, %v1729
      %v1738 = vpack.c.b16 %v1730, %v1730
      %v1739 = vpack.c.b16 %v1731, %v1731
      %1740 = vrot.lane.b32.xlu0 %v1732, 96
      %v1741 = vpop.permute.xlu0 %1740
      %1742 = vrot.lane.b32.xlu0 %v1733, 96
      %v1743 = vpop.permute.xlu0 %1742
      %1744 = vrot.lane.b32.xlu0 %v1734, 96
      %v1745 = vpop.permute.xlu0 %1744
      %1746 = vrot.lane.b32.xlu0 %v1735, 96
      %v1747 = vpop.permute.xlu0 %1746
      %1748 = vrot.lane.b32.xlu0 %v1736, 96
      %v1749 = vpop.permute.xlu0 %1748
      %1750 = vrot.lane.b32.xlu0 %v1737, 96
      %v1751 = vpop.permute.xlu0 %1750
      %1752 = vrot.lane.b32.xlu0 %v1738, 96
      %v1753 = vpop.permute.xlu0 %1752
      %1754 = vrot.lane.b32.xlu0 %v1739, 96
      %v1755 = vpop.permute.xlu0 %1754
      %1764 = vst.msk [vmem:[#allocation3 + $0x8] sm:$0xf] %vm704, %v1741
      %1765 = vst.msk [vmem:[#allocation3 + $0x18] sm:$0xf] %vm704, %v1743
      %1766 = vst.msk [vmem:[#allocation3 + $0x28] sm:$0xf] %vm704, %v1745
      %1767 = vst.msk [vmem:[#allocation3 + $0x38] sm:$0xf] %vm704, %v1747
      %1768 = vst.msk [vmem:[#allocation3 + $0x48] sm:$0xf] %vm704, %v1749
      %1769 = vst.msk [vmem:[#allocation3 + $0x58] sm:$0xf] %vm704, %v1751
      %1770 = vst.msk [vmem:[#allocation3 + $0x68] sm:$0xf] %vm704, %v1753
      %1771 = vst.msk [vmem:[#allocation3 + $0x78] sm:$0xf] %vm704, %v1755
      %v1772 = vld [vmem:[%s1555 + $0x3] sm:$0xff]
      %v1773 = vld [vmem:[%s1555 + $0x13] sm:$0xff]
      %v1774 = vld [vmem:[%s1555 + $0x23] sm:$0xff]
      %v1775 = vld [vmem:[%s1555 + $0x33] sm:$0xff]
      %v1776 = vld [vmem:[%s1555 + $0x43] sm:$0xff]
      %v1777 = vld [vmem:[%s1555 + $0x53] sm:$0xff]
      %v1778 = vld [vmem:[%s1555 + $0x63] sm:$0xff]
      %v1779 = vld [vmem:[%s1555 + $0x73] sm:$0xff]
      %v1780 = vpack.c.bf16 %v1772, %v1772
      %v1781 = vpack.c.bf16 %v1773, %v1773
      %v1782 = vpack.c.bf16 %v1774, %v1774
      %v1783 = vpack.c.bf16 %v1775, %v1775
      %v1784 = vpack.c.bf16 %v1776, %v1776
      %v1785 = vpack.c.bf16 %v1777, %v1777
      %v1786 = vpack.c.bf16 %v1778, %v1778
      %v1787 = vpack.c.bf16 %v1779, %v1779
      %v1796 = vunpack.c.l.b16 %v1780
      %v1797 = vunpack.c.l.b16 %v1781
      %v1798 = vunpack.c.l.b16 %v1782
      %v1799 = vunpack.c.l.b16 %v1783
      %v1800 = vunpack.c.l.b16 %v1784
      %v1801 = vunpack.c.l.b16 %v1785
      %v1802 = vunpack.c.l.b16 %v1786
      %v1803 = vunpack.c.l.b16 %v1787
      %v1804 = vpack.c.b16 %v1796, %v1796
      %v1805 = vpack.c.b16 %v1797, %v1797
      %v1806 = vpack.c.b16 %v1798, %v1798
      %v1807 = vpack.c.b16 %v1799, %v1799
      %v1808 = vpack.c.b16 %v1800, %v1800
      %v1809 = vpack.c.b16 %v1801, %v1801
      %v1810 = vpack.c.b16 %v1802, %v1802
      %v1811 = vpack.c.b16 %v1803, %v1803
      %1812 = vrot.lane.b32.xlu0 %v1804, 112
      %v1813 = vpop.permute.xlu0 %1812
      %1814 = vrot.lane.b32.xlu0 %v1805, 112
      %v1815 = vpop.permute.xlu0 %1814
      %1816 = vrot.lane.b32.xlu0 %v1806, 112
      %v1817 = vpop.permute.xlu0 %1816
      %1818 = vrot.lane.b32.xlu0 %v1807, 112
      %v1819 = vpop.permute.xlu0 %1818
      %1820 = vrot.lane.b32.xlu0 %v1808, 112
      %v1821 = vpop.permute.xlu0 %1820
      %1822 = vrot.lane.b32.xlu0 %v1809, 112
      %v1823 = vpop.permute.xlu0 %1822
      %1824 = vrot.lane.b32.xlu0 %v1810, 112
      %v1825 = vpop.permute.xlu0 %1824
      %1826 = vrot.lane.b32.xlu0 %v1811, 112
      %v1827 = vpop.permute.xlu0 %1826
      %1836 = vst.msk [vmem:[#allocation3 + $0x8] sm:$0xf] %vm777, %v1813
      %1837 = vst.msk [vmem:[#allocation3 + $0x18] sm:$0xf] %vm777, %v1815
      %1838 = vst.msk [vmem:[#allocation3 + $0x28] sm:$0xf] %vm777, %v1817
      %1839 = vst.msk [vmem:[#allocation3 + $0x38] sm:$0xf] %vm777, %v1819
      %1840 = vst.msk [vmem:[#allocation3 + $0x48] sm:$0xf] %vm777, %v1821
      %1841 = vst.msk [vmem:[#allocation3 + $0x58] sm:$0xf] %vm777, %v1823
      %1842 = vst.msk [vmem:[#allocation3 + $0x68] sm:$0xf] %vm777, %v1825
      %1843 = vst.msk [vmem:[#allocation3 + $0x78] sm:$0xf] %vm777, %v1827
      %v1844 = vld [vmem:[%s1555 + $0x4] sm:$0xff]
      %v1845 = vld [vmem:[%s1555 + $0x14] sm:$0xff]
      %v1846 = vld [vmem:[%s1555 + $0x24] sm:$0xff]
      %v1847 = vld [vmem:[%s1555 + $0x34] sm:$0xff]
      %v1848 = vld [vmem:[%s1555 + $0x44] sm:$0xff]
      %v1849 = vld [vmem:[%s1555 + $0x54] sm:$0xff]
      %v1850 = vld [vmem:[%s1555 + $0x64] sm:$0xff]
      %v1851 = vld [vmem:[%s1555 + $0x74] sm:$0xff]
      %v1852 = vpack.c.bf16 %v1844, %v1844
      %v1853 = vpack.c.bf16 %v1845, %v1845
      %v1854 = vpack.c.bf16 %v1846, %v1846
      %v1855 = vpack.c.bf16 %v1847, %v1847
      %v1856 = vpack.c.bf16 %v1848, %v1848
      %v1857 = vpack.c.bf16 %v1849, %v1849
      %v1858 = vpack.c.bf16 %v1850, %v1850
      %v1859 = vpack.c.bf16 %v1851, %v1851
      %1860 = vst.msk [vmem:[#allocation3 + $0xc] sm:$0xf] %vm201, %v1852
      %1861 = vst.msk [vmem:[#allocation3 + $0x1c] sm:$0xf] %vm201, %v1853
      %1862 = vst.msk [vmem:[#allocation3 + $0x2c] sm:$0xf] %vm201, %v1854
      %1863 = vst.msk [vmem:[#allocation3 + $0x3c] sm:$0xf] %vm201, %v1855
      %1864 = vst.msk [vmem:[#allocation3 + $0x4c] sm:$0xf] %vm201, %v1856
      %1865 = vst.msk [vmem:[#allocation3 + $0x5c] sm:$0xf] %vm201, %v1857
      %1866 = vst.msk [vmem:[#allocation3 + $0x6c] sm:$0xf] %vm201, %v1858
      %1867 = vst.msk [vmem:[#allocation3 + $0x7c] sm:$0xf] %vm201, %v1859
      %v1868 = vld [vmem:[#allocation3] sm:$0xff]
      %v1869 = vld [vmem:[#allocation3 + $0x8] sm:$0xff]
      %v1870 = vld [vmem:[#allocation3 + $0x10] sm:$0xff]
      %v1871 = vld [vmem:[#allocation3 + $0x18] sm:$0xff]
      %v1872 = vld [vmem:[#allocation3 + $0x20] sm:$0xff]
      %v1873 = vld [vmem:[#allocation3 + $0x28] sm:$0xff]
      %v1874 = vld [vmem:[#allocation3 + $0x30] sm:$0xff]
      %v1875 = vld [vmem:[#allocation3 + $0x38] sm:$0xff]
      %v1876 = vld [vmem:[#allocation3 + $0x40] sm:$0xff]
      %v1877 = vld [vmem:[#allocation3 + $0x48] sm:$0xff]
      %v1878 = vld [vmem:[#allocation3 + $0x50] sm:$0xff]
      %v1879 = vld [vmem:[#allocation3 + $0x58] sm:$0xff]
      %v1880 = vld [vmem:[#allocation3 + $0x60] sm:$0xff]
      %v1881 = vld [vmem:[#allocation3 + $0x68] sm:$0xff]
      %v1882 = vld [vmem:[#allocation3 + $0x70] sm:$0xff]
      %v1883 = vld [vmem:[#allocation3 + $0x78] sm:$0xff]
      %v1884 = vld [vmem:[%s1] sm:$0xf]
      %v1885 = vld [vmem:[%s1 + $0x4] sm:$0xf]
      %v1886 = vld [vmem:[%s1 + $0x8] sm:$0xf]
      %v1887 = vld [vmem:[%s1 + $0xc] sm:$0xf]
      %v1888 = vld [vmem:[%s1 + $0x10] sm:$0xf]
      %v1889 = vld [vmem:[%s1 + $0x14] sm:$0xf]
      %v1890 = vld [vmem:[%s1 + $0x18] sm:$0xf]
      %v1891 = vld [vmem:[%s1 + $0x1c] sm:$0xf]
      %v1892 = vld [vmem:[%s1 + $0x20] sm:$0xf]
      %v1893 = vld [vmem:[%s1 + $0x24] sm:$0xf]
      %v1894 = vld [vmem:[%s1 + $0x28] sm:$0xf]
      %v1895 = vld [vmem:[%s1 + $0x2c] sm:$0xf]
      %v1896 = vld [vmem:[%s1 + $0x30] sm:$0xf]
      %v1897 = vld [vmem:[%s1 + $0x34] sm:$0xf]
      %v1898 = vld [vmem:[%s1 + $0x38] sm:$0xf]
      %v1899 = vld [vmem:[%s1 + $0x3c] sm:$0xf]
      %v1900 = vld [vmem:[%s1 + $0x40] sm:$0xf]
      %v1901 = vld [vmem:[%s1 + $0x44] sm:$0xf]
      %v1902 = vld [vmem:[%s1 + $0x48] sm:$0xf]
      %v1903 = vld [vmem:[%s1 + $0x4c] sm:$0xf]
      %v1904 = vld [vmem:[%s1 + $0x50] sm:$0xf]
      %v1905 = vld [vmem:[%s1 + $0x54] sm:$0xf]
      %v1906 = vld [vmem:[%s1 + $0x58] sm:$0xf]
      %v1907 = vld [vmem:[%s1 + $0x5c] sm:$0xf]
      %v1908 = vld [vmem:[%s1 + $0x60] sm:$0xf]
      %v1909 = vld [vmem:[%s1 + $0x64] sm:$0xf]
      %v1910 = vld [vmem:[%s1 + $0x68] sm:$0xf]
      %v1911 = vld [vmem:[%s1 + $0x6c] sm:$0xf]
      %v1912 = vld [vmem:[%s1 + $0x70] sm:$0xf]
      %v1913 = vld [vmem:[%s1 + $0x74] sm:$0xf]
      %v1914 = vld [vmem:[%s1 + $0x78] sm:$0xf]
      %v1915 = vld [vmem:[%s1 + $0x7c] sm:$0xf]
      %v1916 = vld [vmem:[%s1 + $0x80] sm:$0xf]
      %v1917 = vld [vmem:[%s1 + $0x84] sm:$0xf]
      %v1918 = vld [vmem:[%s1 + $0x88] sm:$0xf]
      %v1919 = vld [vmem:[%s1 + $0x8c] sm:$0xf]
      %v1920 = vld [vmem:[%s1 + $0x90] sm:$0xf]
      %v1921 = vld [vmem:[%s1 + $0x94] sm:$0xf]
      %v1922 = vld [vmem:[%s1 + $0x98] sm:$0xf]
      %v1923 = vld [vmem:[%s1 + $0x9c] sm:$0xf]
      %v1924 = vld [vmem:[%s1 + $0xa0] sm:$0xf]
      %v1925 = vld [vmem:[%s1 + $0xa4] sm:$0xf]
      %v1926 = vld [vmem:[%s1 + $0xa8] sm:$0xf]
      %v1927 = vld [vmem:[%s1 + $0xac] sm:$0xf]
      %v1928 = vld [vmem:[%s1 + $0xb0] sm:$0xf]
      %v1929 = vld [vmem:[%s1 + $0xb4] sm:$0xf]
      %v1930 = vld [vmem:[%s1 + $0xb8] sm:$0xf]
      %v1931 = vld [vmem:[%s1 + $0xbc] sm:$0xf]
      %v1932 = vld [vmem:[%s1 + $0xc0] sm:$0xf]
      %v1933 = vld [vmem:[%s1 + $0xc4] sm:$0xf]
      %v1950 = vunpack.c.l.b16 %v1868
      %v1951 = vunpack.c.h.b16 %v1868
      %v1952 = vunpack.c.l.b16 %v1869
      %v1953 = vunpack.c.h.b16 %v1869
      %v1954 = vunpack.c.l.b16 %v1870
      %v1955 = vunpack.c.h.b16 %v1870
      %v1956 = vunpack.c.l.b16 %v1871
      %v1957 = vunpack.c.h.b16 %v1871
      %v1958 = vunpack.c.l.b16 %v1872
      %v1959 = vunpack.c.h.b16 %v1872
      %v1960 = vunpack.c.l.b16 %v1873
      %v1961 = vunpack.c.h.b16 %v1873
      %v1962 = vunpack.c.l.b16 %v1874
      %v1963 = vunpack.c.h.b16 %v1874
      %v1964 = vunpack.c.l.b16 %v1875
      %v1965 = vunpack.c.h.b16 %v1875
      %v1966 = vunpack.c.l.b16 %v1876
      %v1967 = vunpack.c.h.b16 %v1876
      %v1968 = vunpack.c.l.b16 %v1877
      %v1969 = vunpack.c.h.b16 %v1877
      %v1970 = vunpack.c.l.b16 %v1878
      %v1971 = vunpack.c.h.b16 %v1878
      %v1972 = vunpack.c.l.b16 %v1879
      %v1973 = vunpack.c.h.b16 %v1879
      %v1974 = vunpack.c.l.b16 %v1880
      %v1975 = vunpack.c.h.b16 %v1880
      %v1976 = vunpack.c.l.b16 %v1881
      %v1977 = vunpack.c.h.b16 %v1881
      %v1978 = vunpack.c.l.b16 %v1882
      %v1979 = vunpack.c.h.b16 %v1882
      %v1980 = vunpack.c.l.b16 %v1883
      %v1981 = vunpack.c.h.b16 %v1883
      %v1982 = vpack.c.b16 %v1954, %v1950
      %v1983 = vpack.c.b16 %v1955, %v1951
      %v1984 = vpack.c.b16 %v1956, %v1952
      %v1985 = vpack.c.b16 %v1957, %v1953
      %v1986 = vpack.c.b16 %v1962, %v1958
      %v1987 = vpack.c.b16 %v1963, %v1959
      %v1988 = vpack.c.b16 %v1964, %v1960
      %v1989 = vpack.c.b16 %v1965, %v1961
      %v1990 = vpack.c.b16 %v1970, %v1966
      %v1991 = vpack.c.b16 %v1971, %v1967
      %v1992 = vpack.c.b16 %v1972, %v1968
      %v1993 = vpack.c.b16 %v1973, %v1969
      %v1994 = vpack.c.b16 %v1978, %v1974
      %v1995 = vpack.c.b16 %v1979, %v1975
      %v1996 = vpack.c.b16 %v1980, %v1976
      %v1997 = vpack.c.b16 %v1981, %v1977
      %v2060 = vunpack.c.l.b16 %v1884
      %v2061 = vunpack.c.l.b16 %v1885
      %v2062 = vunpack.c.l.b16 %v1886
      %v2063 = vunpack.c.l.b16 %v1887
      %v2064 = vunpack.c.l.b16 %v1888
      %v2065 = vunpack.c.l.b16 %v1889
      %v2066 = vunpack.c.l.b16 %v1890
      %v2067 = vunpack.c.l.b16 %v1891
      %v2068 = vunpack.c.l.b16 %v1892
      %v2069 = vunpack.c.l.b16 %v1893
      %v2070 = vunpack.c.l.b16 %v1894
      %v2071 = vunpack.c.l.b16 %v1895
      %v2072 = vunpack.c.l.b16 %v1896
      %v2073 = vunpack.c.l.b16 %v1897
      %v2074 = vunpack.c.l.b16 %v1898
      %v2075 = vunpack.c.l.b16 %v1899
      %v2076 = vunpack.c.l.b16 %v1900
      %v2077 = vunpack.c.l.b16 %v1901
      %v2078 = vunpack.c.l.b16 %v1902
      %v2079 = vunpack.c.l.b16 %v1903
      %v2080 = vunpack.c.l.b16 %v1904
      %v2081 = vunpack.c.l.b16 %v1905
      %v2082 = vunpack.c.l.b16 %v1906
      %v2083 = vunpack.c.l.b16 %v1907
      %v2084 = vunpack.c.l.b16 %v1908
      %v2085 = vunpack.c.l.b16 %v1909
      %v2086 = vunpack.c.l.b16 %v1910
      %v2087 = vunpack.c.l.b16 %v1911
      %v2088 = vunpack.c.l.b16 %v1912
      %v2089 = vunpack.c.l.b16 %v1913
      %v2090 = vunpack.c.l.b16 %v1914
      %v2091 = vunpack.c.l.b16 %v1915
      %v2092 = vunpack.c.l.b16 %v1916
      %v2093 = vunpack.c.l.b16 %v1917
      %v2094 = vunpack.c.l.b16 %v1918
      %v2095 = vunpack.c.l.b16 %v1919
      %v2096 = vunpack.c.l.b16 %v1920
      %v2097 = vunpack.c.l.b16 %v1921
      %v2098 = vunpack.c.l.b16 %v1922
      %v2099 = vunpack.c.l.b16 %v1923
      %v2100 = vunpack.c.l.b16 %v1924
      %v2101 = vunpack.c.l.b16 %v1925
      %v2102 = vunpack.c.l.b16 %v1926
      %v2103 = vunpack.c.l.b16 %v1927
      %v2104 = vunpack.c.l.b16 %v1928
      %v2105 = vunpack.c.l.b16 %v1929
      %v2106 = vunpack.c.l.b16 %v1930
      %v2107 = vunpack.c.l.b16 %v1931
      %v2108 = vunpack.c.l.b16 %v1932
      %v2109 = vunpack.c.l.b16 %v1933
      %v2110 = vpack.c.b16 %v2061, %v2060
      %v2111 = vpack.c.b16 %v2063, %v2062
      %v2112 = vpack.c.b16 %v2065, %v2064
      %v2113 = vpack.c.b16 %v2067, %v2066
      %v2114 = vpack.c.b16 %v2069, %v2068
      %v2115 = vpack.c.b16 %v2071, %v2070
      %v2116 = vpack.c.b16 %v2073, %v2072
      %v2117 = vpack.c.b16 %v2075, %v2074
      %v2118 = vpack.c.b16 %v2077, %v2076
      %v2119 = vpack.c.b16 %v2079, %v2078
      %v2120 = vpack.c.b16 %v2081, %v2080
      %v2121 = vpack.c.b16 %v2083, %v2082
      %v2122 = vpack.c.b16 %v2085, %v2084
      %v2123 = vpack.c.b16 %v2087, %v2086
      %v2124 = vpack.c.b16 %v2089, %v2088
      %v2125 = vpack.c.b16 %v2091, %v2090
      %v2126 = vpack.c.b16 %v2093, %v2092
      %v2127 = vpack.c.b16 %v2095, %v2094
      %v2128 = vpack.c.b16 %v2097, %v2096
      %v2129 = vpack.c.b16 %v2099, %v2098
      %v2130 = vpack.c.b16 %v2101, %v2100
      %v2131 = vpack.c.b16 %v2103, %v2102
      %v2132 = vpack.c.b16 %v2105, %v2104
      %v2133 = vpack.c.b16 %v2107, %v2106
      %v2134 = vpack.c.b16 %v2109, %v2108
      %v2161 = vsel %vm199, %v1985, 0
      %v2164 = vsel %vm199, %v1989, 0
      %v2167 = vsel %vm199, %v1993, 0
      %v2170 = vsel %vm199, %v1997, 0
      %2172 = vmatprep.subr.bf16.mxu0 0
      %2173 = vmatpush1.bf16.msra.mxu0 %v2110
      %2174 = vmatprep.subr.bf16.mxu0 0
      %2175 = vmatpush1.bf16.msra.mxu0 %v2111
      %2176 = vmatprep.subr.bf16.mxu0 0
      %2177 = vmatpush1.bf16.msra.mxu0 %v2112
      %2178 = vmatprep.subr.bf16.mxu0 0
      %2179 = vmatpush1.bf16.msra.mxu0 %v2113
      %2180 = vmatprep.subr.bf16.mxu0 0
      %2181 = vmatpush1.bf16.msra.mxu0 %v2114
      %2182 = vmatprep.subr.bf16.mxu0 0
      %2183 = vmatpush1.bf16.msra.mxu0 %v2115
      %2184 = vmatprep.subr.bf16.mxu0 0
      %2185 = vmatpush1.bf16.msra.mxu0 %v2116
      %2186 = vmatprep.subr.bf16.mxu0 0
      %2187 = vmatpush1.bf16.msra.mxu0 %v2117
      %2188 = vmatprep.subr.bf16.mxu0 0
      %2189 = vmatpush1.bf16.msra.mxu0 %v2118
      %2190 = vmatprep.subr.bf16.mxu0 0
      %2191 = vmatpush1.bf16.msra.mxu0 %v2119
      %2192 = vmatprep.subr.bf16.mxu0 0
      %2193 = vmatpush1.bf16.msra.mxu0 %v2120
      %2194 = vmatprep.subr.bf16.mxu0 0
      %2195 = vmatpush1.bf16.msra.mxu0 %v2121
      %2196 = vmatprep.subr.bf16.mxu0 0
      %2197 = vmatpush1.bf16.msra.mxu0 %v2122
      %2198 = vmatprep.subr.bf16.mxu0 0
      %2199 = vmatpush1.bf16.msra.mxu0 %v2123
      %2200 = vmatprep.subr.bf16.mxu0 0
      %2201 = vmatpush1.bf16.msra.mxu0 %v2124
      %2202 = vmatprep.subr.bf16.mxu0 0
      %2203 = vmatpush1.bf16.msra.mxu0 %v2125
      %2204 = vmatprep.mubr.bf16.mxu0 %v1983
      %2205 = vmatmul.mubr.bf16.gmra.mrb[0].mxu0 %v1982
      %v2206 = vpop.f32.mrb[0].mxu0
      %v2207 = vadd.f32 0.0, %v2206
      %v2208 = vpop.f32.mrb[0].mxu0
      %v2209 = vpop.f32.mrb[0].mxu0
      %v2210 = vadd.f32 0.0, %v2209
      %v2211 = vpop.f32.mrb[0].mxu0
      %2212 = vmatprep.mubr.bf16.mxu0 %v1987
      %2213 = vmatmul.mubr.bf16.gmra.mrb[0].mxu0 %v1986
      %v2214 = vpop.f32.mrb[0].mxu0
      %v2215 = vadd.f32 0.0, %v2214
      %v2216 = vpop.f32.mrb[0].mxu0
      %v2217 = vpop.f32.mrb[0].mxu0
      %v2218 = vadd.f32 0.0, %v2217
      %v2219 = vpop.f32.mrb[0].mxu0
      %2220 = vmatprep.mubr.bf16.mxu0 %v1991
      %2221 = vmatmul.mubr.bf16.gmra.mrb[0].mxu0 %v1990
      %v2222 = vpop.f32.mrb[0].mxu0
      %v2223 = vadd.f32 0.0, %v2222
      %v2224 = vpop.f32.mrb[0].mxu0
      %v2225 = vpop.f32.mrb[0].mxu0
      %v2226 = vadd.f32 0.0, %v2225
      %v2227 = vpop.f32.mrb[0].mxu0
      %2228 = vmatprep.mubr.bf16.mxu0 %v1995
      %2229 = vmatmul.mubr.bf16.gmra.mrb[0].mxu0 %v1994
      %v2230 = vpop.f32.mrb[0].mxu0
      %v2231 = vadd.f32 0.0, %v2230
      %v2232 = vpop.f32.mrb[0].mxu0
      %v2233 = vpop.f32.mrb[0].mxu0
      %v2234 = vadd.f32 0.0, %v2233
      %v2235 = vpop.f32.mrb[0].mxu0
      %2236 = vdwg.mxu0
      %2237 = vmatprep.subr.bf16.mxu0 0
      %2238 = vmatpush1.bf16.msra.mxu0 %v2126
      %2239 = vmatprep.subr.bf16.mxu0 0
      %2240 = vmatpush1.bf16.msra.mxu0 %v2127
      %2241 = vmatprep.subr.bf16.mxu0 0
      %2242 = vmatpush1.bf16.msra.mxu0 %v2128
      %2243 = vmatprep.subr.bf16.mxu0 0
      %2244 = vmatpush1.bf16.msra.mxu0 %v2129
      %2245 = vmatprep.subr.bf16.mxu0 0
      %2246 = vmatpush1.bf16.msra.mxu0 %v2130
      %2247 = vmatprep.subr.bf16.mxu0 0
      %2248 = vmatpush1.bf16.msra.mxu0 %v2131
      %2249 = vmatprep.subr.bf16.mxu0 0
      %2250 = vmatpush1.bf16.msra.mxu0 %v2132
      %2251 = vmatprep.subr.bf16.mxu0 0
      %2252 = vmatpush1.bf16.msra.mxu0 %v2133
      %2253 = vmatprep.subr.bf16.mxu0 0
      %2254 = vmatpush1.bf16.msra.mxu0 %v2134
      %2255 = vmatprep.subr.bf16.mxu0 0
      %2256 = vmatpush1.bf16.msra.mxu0 0
      %2257 = vmatprep.subr.bf16.mxu0 0
      %2258 = vmatpush1.bf16.msra.mxu0 0
      %2259 = vmatprep.subr.bf16.mxu0 0
      %2260 = vmatpush1.bf16.msra.mxu0 0
      %2261 = vmatprep.subr.bf16.mxu0 0
      %2262 = vmatpush1.bf16.msra.mxu0 0
      %2263 = vmatprep.subr.bf16.mxu0 0
      %2264 = vmatpush1.bf16.msra.mxu0 0
      %2265 = vmatprep.subr.bf16.mxu0 0
      %2266 = vmatpush1.bf16.msra.mxu0 0
      %2267 = vmatprep.subr.bf16.mxu0 0
      %2268 = vmatpush1.bf16.msra.mxu0 0
      %2269 = vmatprep.mubr.bf16.mxu0 %v2161
      %2270 = vmatmul.mubr.bf16.gmra.mrb[0].mxu0 %v1984
      %v2271 = vpop.f32.mrb[0].mxu0
      %v2272 = vadd.f32 %v2207, %v2271
      %v2273 = vpop.f32.mrb[0].mxu0
      %v2274 = vpop.f32.mrb[0].mxu0
      %v2275 = vadd.f32 %v2210, %v2274
      %v2276 = vpop.f32.mrb[0].mxu0
      %2277 = vmatprep.mubr.bf16.mxu0 %v2164
      %2278 = vmatmul.mubr.bf16.gmra.mrb[0].mxu0 %v1988
      %v2279 = vpop.f32.mrb[0].mxu0
      %v2280 = vadd.f32 %v2215, %v2279
      %v2281 = vpop.f32.mrb[0].mxu0
      %v2282 = vpop.f32.mrb[0].mxu0
      %v2283 = vadd.f32 %v2218, %v2282
      %v2284 = vpop.f32.mrb[0].mxu0
      %2285 = vmatprep.mubr.bf16.mxu0 %v2167
      %2286 = vmatmul.mubr.bf16.gmra.mrb[0].mxu0 %v1992
      %v2287 = vpop.f32.mrb[0].mxu0
      %v2288 = vadd.f32 %v2223, %v2287
      %v2289 = vpop.f32.mrb[0].mxu0
      %v2290 = vpop.f32.mrb[0].mxu0
      %v2291 = vadd.f32 %v2226, %v2290
      %v2292 = vpop.f32.mrb[0].mxu0
      %2293 = vmatprep.mubr.bf16.mxu0 %v2170
      %2294 = vmatmul.mubr.bf16.gmra.mrb[0].mxu0 %v1996
      %v2295 = vpop.f32.mrb[0].mxu0
      %v2296 = vadd.f32 %v2231, %v2295
      %v2297 = vpop.f32.mrb[0].mxu0
      %v2298 = vpop.f32.mrb[0].mxu0
      %v2299 = vadd.f32 %v2234, %v2298
      %v2300 = vpop.f32.mrb[0].mxu0
      %2301 = vdwg.mxu0
      %v2302 = vld [vmem:[%s2] sm:$0x1]
      %v2304 = vlaneseq
      %v2305 = vshrl.u32 %v2304, 7
      %v2306 = vsub.s32 0, %v2305
      %v2307 = vrot.slane %v2302, %v2306
      %v2309 = vmul.f32 %v2272, %v2307
      %v2310 = vmul.f32 %v2275, %v2307
      %v2311 = vmul.f32 %v2280, %v2307
      %v2312 = vmul.f32 %v2283, %v2307
      %v2313 = vmul.f32 %v2288, %v2307
      %v2314 = vmul.f32 %v2291, %v2307
      %v2315 = vmul.f32 %v2296, %v2307
      %v2316 = vmul.f32 %v2299, %v2307
      %v2317 = vld [vmem:[%s3] sm:$0x1]
      %v2319 = vlaneseq
      %v2320 = vshrl.u32 %v2319, 7
      %v2321 = vsub.s32 0, %v2320
      %v2322 = vrot.slane %v2317, %v2321
      %v2324 = vadd.f32 %v2309, %v2322
      %v2325 = vadd.f32 %v2310, %v2322
      %v2326 = vadd.f32 %v2311, %v2322
      %v2327 = vadd.f32 %v2312, %v2322
      %v2328 = vadd.f32 %v2313, %v2322
      %v2329 = vadd.f32 %v2314, %v2322
      %v2330 = vadd.f32 %v2315, %v2322
      %v2331 = vadd.f32 %v2316, %v2322
      %v2332 = vmax.f32 %v2324, 0.0
      %v2333 = vmax.f32 %v2325, 0.0
      %v2334 = vmax.f32 %v2326, 0.0
      %v2335 = vmax.f32 %v2327, 0.0
      %v2336 = vmax.f32 %v2328, 0.0
      %v2337 = vmax.f32 %v2329, 0.0
      %v2338 = vmax.f32 %v2330, 0.0
      %v2339 = vmax.f32 %v2331, 0.0
      %vm2340 = vcmask 261120
      %2341 = vst.msk [vmem:[#allocation4] sm:$0xff] %vm2340, %v2332
      %2342 = vst.msk [vmem:[#allocation4 + $0x8] sm:$0xff] %vm2340, %v2333
      %2343 = vst.msk [vmem:[#allocation4 + $0x10] sm:$0xff] %vm2340, %v2334
      %2344 = vst.msk [vmem:[#allocation4 + $0x18] sm:$0xff] %vm2340, %v2335
      %2345 = vst.msk [vmem:[#allocation4 + $0x20] sm:$0xff] %vm2340, %v2336
      %2346 = vst.msk [vmem:[#allocation4 + $0x28] sm:$0xff] %vm2340, %v2337
      %2347 = vst.msk [vmem:[#allocation4 + $0x30] sm:$0xff] %vm2340, %v2338
      %2348 = vst.msk [vmem:[#allocation4 + $0x38] sm:$0xff] %vm2340, %v2339
      %v2349 = vld [vmem:[#allocation4] ss:$2 sm:$0xf]
      %s2350 = scalar_lea.vmem [#allocation4], 16
      %v2351 = vld [vmem:[%s2350] ss:$2 sm:$0xf]
      %s2352 = scalar_lea.vmem [#allocation4], 32
      %v2353 = vld [vmem:[%s2352] ss:$2 sm:$0xf]
      %s2354 = scalar_lea.vmem [#allocation4], 48
      %v2355 = vld [vmem:[%s2354] ss:$2 sm:$0xf]
      %s2356 = scalar_lea.vmem [#allocation4], 1
      %v2357 = vld [vmem:[%s2356] ss:$2 sm:$0xf]
      %s2358 = scalar_lea.vmem [#allocation4], 17
      %v2359 = vld [vmem:[%s2358] ss:$2 sm:$0xf]
      %s2360 = scalar_lea.vmem [#allocation4], 33
      %v2361 = vld [vmem:[%s2360] ss:$2 sm:$0xf]
      %s2362 = scalar_lea.vmem [#allocation4], 49
      %v2363 = vld [vmem:[%s2362] ss:$2 sm:$0xf]
      %s2364 = scalar_lea.vmem [#allocation4], 8
      %v2365 = vld [vmem:[%s2364] ss:$2 sm:$0xf]
      %s2366 = scalar_lea.vmem %s2364, 16 [#allocation4]
      %v2367 = vld [vmem:[%s2366] ss:$2 sm:$0xf]
      %s2368 = scalar_lea.vmem %s2364, 32 [#allocation4]
      %v2369 = vld [vmem:[%s2368] ss:$2 sm:$0xf]
      %s2370 = scalar_lea.vmem %s2364, 48 [#allocation4]
      %v2371 = vld [vmem:[%s2370] ss:$2 sm:$0xf]
      %s2372 = scalar_lea.vmem %s2364, 1 [#allocation4]
      %v2373 = vld [vmem:[%s2372] ss:$2 sm:$0xf]
      %s2374 = scalar_lea.vmem %s2364, 17 [#allocation4]
      %v2375 = vld [vmem:[%s2374] ss:$2 sm:$0xf]
      %s2376 = scalar_lea.vmem %s2364, 33 [#allocation4]
      %v2377 = vld [vmem:[%s2376] ss:$2 sm:$0xf]
      %s2378 = scalar_lea.vmem %s2364, 49 [#allocation4]
      %v2379 = vld [vmem:[%s2378] ss:$2 sm:$0xf]
      %v2380 = vmax.f32 %v2349, %v2357
      %v2381 = vmax.f32 %v2351, %v2359
      %v2382 = vmax.f32 %v2353, %v2361
      %v2383 = vmax.f32 %v2355, %v2363
      %v2384 = vmax.f32 %v2365, %v2373
      %v2385 = vmax.f32 %v2367, %v2375
      %v2386 = vmax.f32 %v2369, %v2377
      %v2387 = vmax.f32 %v2371, %v2379
      %v2388 = vmax.f32 %v2380, %v2384
      %v2389 = vmax.f32 %v2381, %v2385
      %v2390 = vmax.f32 %v2382, %v2386
      %v2391 = vmax.f32 %v2383, %v2387
      %v2392 = vpack.c.bf16 %v2388, %v2388
      %v2393 = vpack.c.bf16 %v2389, %v2389
      %v2394 = vpack.c.bf16 %v2390, %v2390
      %v2395 = vpack.c.bf16 %v2391, %v2391
      %vm2396 = vcmask 254976
      %2397 = vst.msk [vmem:[%s197] sm:$0x3] %vm2396, %v2392
      %2398 = vst.msk [vmem:[%s197 + $0x2] sm:$0x3] %vm2396, %v2393
      %2399 = vst.msk [vmem:[%s197 + $0x4] sm:$0x3] %vm2396, %v2394
      %2400 = vst.msk [vmem:[%s197 + $0x6] sm:$0x3] %vm2396, %v2395
      %p2401 = scmp.lt.s32.totalorder %s15, 1
      %s2402 = scalar_select %p2401, %s15, 1
      %s2403 = smul.addr %s2402, 4
      %s2404 = smul.addr %s2403, 2
      %s2405 = scalar_lea.vmem %s4, %s2404
      // Predicated region
      $region37: #{net_forward.4} parent=35 // pred_check
        %p2406 = pneg %p122
      $region38: #{net_forward.4} parent=35 // pred_check_branch
        %2408 = sbr.rel (%p2406) target = $region40
      $region39: #{net_forward.4} parent=35 // pred_region
        _
      $region40: #{net_forward.4} parent=35 // pred_fallthru
        _
    $region36: #{net_forward.4} parent=5 // pred_fallthru
      _
    %p2409 = scmp.le.s32.totalorder 2, %s10
    // Predicated region
    $region41: #{net_forward.4} parent=5 // pred_check
      %p2410 = pneg %p2409
    $region42: #{net_forward.4} parent=5 // pred_check_branch
      %2412 = sbr.rel (%p2410) target = $region44
    $region43: #{net_forward.4} parent=5 // pred_region
      %s2413 = ssub.s32 %s10, 2
      // Predicated region
      $region45: #{net_forward.4} parent=43 // pred_check
        %p2414 = pneg %p128
      $region46: #{net_forward.4} parent=43 // pred_check_branch
        %2416 = sbr.rel (%p2414) target = $region48
      $region47: #{net_forward.4} parent=43 // pred_region
        %p2417 = scmp.lt.s32.totalorder %s16, 1
        %s2418 = scalar_select %p2417, %s16, 1
        %s2419 = smul.addr %s2418, 4
        %s2420 = smul.addr %s2419, 2
        %s2421 = scalar_lea.vmem %s4, %s2420
      $region48: #{net_forward.4} parent=43 // pred_fallthru
        _
    $region44: #{net_forward.4} parent=5 // pred_fallthru
      _
  $region6: #{net_forward.4} parent=0 // loop_footer
    %s14 = sadd.s32 1, %s10
  $region7: #{net_forward.4} parent=0 // loop_footer_branch
    %9 = sbr.rel target = $region3
  $region8: #{net_forward.4} parent=0 // loop_exit
    _

// kernel: net_forward.3
$region0: #{net_forward.3}
  #allocation0 [shape = 'u32[]', space=smem, size = 0x4, offset = 0x4, fixed_abs, tag = 'smem constant byte address 0x4 - core index']
  #allocation1 [shape = 'u32[144,128]{1,0:T(1,128)}', space=vmem, size = 0x12000, scoped, tag = 'internal scratch']
  #allocation2 [shape = 'f32[20,20,1]{2,1,0:T(8,128)}', space=vmem, size = 0x3c000, scoped, tag = 'scratch operand']
  #allocation3 [shape = 'bf16[16,16,25]{2,1,0:T(16,128)(2,1)}', space=vmem, size = 0x10000, scoped, tag = 'scratch operand']
  #allocation4 [shape = 'f32[16,16,16]{2,1,0:T(8,128)}', space=vmem, size = 0x20000, scoped, tag = 'scratch operand']
  %s0 = inlined_call_operand.vmem [shape: bf16[2,16,16,1], index: 0, kind: input, shape index: {}]
  %s1 = inlined_call_operand.vmem [shape: bf16[25,16], index: 1, kind: input, shape index: {}]
  %s2 = inlined_call_operand.vmem [shape: f32[1,16], index: 2, kind: input, shape index: {}]
  %s3 = inlined_call_operand.vmem [shape: f32[1,16], index: 3, kind: input, shape index: {}]
  %s4 = inlined_call_operand.vmem [shape: bf16[2,8,8,16], index: 4, kind: output, shape index: {}]
  %s5 = sld [smem:[#allocation0]]
  $region49: #{net_forward.3} parent=0
    _
  %s7 = ssub.s32 1, %s5
  %s8 = scalar_select 0, %s7, %s5
  loop: start=0, step=1, limit=4
  $region2: #{net_forward.3} parent=0 // loop_pre_header
    _
  $region3: #{net_forward.3} parent=0 // loop_header
    %s10 = sphi 0, %s14
    %p11 = scmp.ge.s32.totalorder %s10, 4
    %s20 = sphi 0, %s22
    %s23 = sphi 0, %s20
    %s24 = sphi 0, %s23
    %s40 = sphi 0, %s24
    %s44 = sphi 0, %s44
    %s46 = sphi 0, %s44
    %s47 = sphi 0, %s46
    %s61 = sphi 0, %s47
    %s65 = sphi 0, %s65
    %s67 = sphi 0, %s65
    %s68 = sphi 0, %s67
    %s82 = sphi 0, %s68
    %s86 = sphi 0, %s86
    %s88 = sphi 0, %s86
    %s89 = sphi 0, %s88
    %s103 = sphi 0, %s89
    %s109 = sphi 0, %s111
    %s112 = sphi 0, %s109
    %s113 = sphi 0, %s112
    %s129 = sphi 0, %s113
  $region4: #{net_forward.3} parent=0 // loop_header_branch
    %13 = sbr.rel (%p11) target = $region8
  $region5: #{net_forward.3} parent=0 // loop_body
    %s15 = ssub.s32 %s10, 1
    %s16 = ssub.s32 %s10, 2
    %s17 = sadd.s32 %s10, 1
    %s18 = ssub.s32 %s10, %s17
    %p19 = scmp.eq.s32.totalorder %s18, 0
    %s21 = sadd.s32 %s20, 1
    %s22 = scalar_select %p19, %s20, %s21
    %p25 = pneg %p19
    %p26 = scmp.eq.s32.totalorder %s10, 1
    %p27 = por %p25, %p26
    %p28 = scmp.ne.s32.totalorder %s20, %s23
    %p29 = scmp.eq.s32.totalorder %s10, 0
    %p30 = por %p28, %p29
    %p31 = scmp.ne.s32.totalorder %s20, %s23
    %p32 = scmp.eq.s32.totalorder %s15, 1
    %p33 = por %p31, %p32
    %p34 = scmp.ne.s32.totalorder %s23, %s24
    %p35 = scmp.eq.s32.totalorder %s15, 0
    %p36 = por %p34, %p35
    %p37 = scmp.ne.s32.totalorder %s23, %s24
    %p38 = scmp.eq.s32.totalorder %s16, 1
    %p39 = por %p37, %p38
    %p41 = scmp.ne.s32.totalorder %s24, %s40
    %p42 = scmp.eq.s32.totalorder %s16, 0
    %p43 = por %p41, %p42
    %s45 = sadd.s32 %s44, 1
    %p48 = scmp.eq.s32.totalorder %s10, 1
    %p49 = scmp.ne.s32.totalorder %s44, %s46
    %p50 = scmp.eq.s32.totalorder %s10, 0
    %p51 = por %p49, %p50
    %p52 = scmp.ne.s32.totalorder %s44, %s46
    %p53 = scmp.eq.s32.totalorder %s15, 1
    %p54 = por %p52, %p53
    %p55 = scmp.ne.s32.totalorder %s46, %s47
    %p56 = scmp.eq.s32.totalorder %s15, 0
    %p57 = por %p55, %p56
    %p58 = scmp.ne.s32.totalorder %s46, %s47
    %p59 = scmp.eq.s32.totalorder %s16, 1
    %p60 = por %p58, %p59
    %p62 = scmp.ne.s32.totalorder %s47, %s61
    %p63 = scmp.eq.s32.totalorder %s16, 0
    %p64 = por %p62, %p63
    %s66 = sadd.s32 %s65, 1
    %p69 = scmp.eq.s32.totalorder %s10, 1
    %p70 = scmp.ne.s32.totalorder %s65, %s67
    %p71 = scmp.eq.s32.totalorder %s10, 0
    %p72 = por %p70, %p71
    %p73 = scmp.ne.s32.totalorder %s65, %s67
    %p74 = scmp.eq.s32.totalorder %s15, 1
    %p75 = por %p73, %p74
    %p76 = scmp.ne.s32.totalorder %s67, %s68
    %p77 = scmp.eq.s32.totalorder %s15, 0
    %p78 = por %p76, %p77
    %p79 = scmp.ne.s32.totalorder %s67, %s68
    %p80 = scmp.eq.s32.totalorder %s16, 1
    %p81 = por %p79, %p80
    %p83 = scmp.ne.s32.totalorder %s68, %s82
    %p84 = scmp.eq.s32.totalorder %s16, 0
    %p85 = por %p83, %p84
    %s87 = sadd.s32 %s86, 1
    %p90 = scmp.eq.s32.totalorder %s10, 1
    %p91 = scmp.ne.s32.totalorder %s86, %s88
    %p92 = scmp.eq.s32.totalorder %s10, 0
    %p93 = por %p91, %p92
    %p94 = scmp.ne.s32.totalorder %s86, %s88
    %p95 = scmp.eq.s32.totalorder %s15, 1
    %p96 = por %p94, %p95
    %p97 = scmp.ne.s32.totalorder %s88, %s89
    %p98 = scmp.eq.s32.totalorder %s15, 0
    %p99 = por %p97, %p98
    %p100 = scmp.ne.s32.totalorder %s88, %s89
    %p101 = scmp.eq.s32.totalorder %s16, 1
    %p102 = por %p100, %p101
    %p104 = scmp.ne.s32.totalorder %s89, %s103
    %p105 = scmp.eq.s32.totalorder %s16, 0
    %p106 = por %p104, %p105
    %s107 = ssub.s32 %s10, %s17
    %p108 = scmp.eq.s32.totalorder %s107, 0
    %s110 = sadd.s32 %s109, 1
    %s111 = scalar_select %p108, %s109, %s110
    %p114 = pneg %p108
    %p115 = scmp.eq.s32.totalorder %s10, 1
    %p116 = por %p114, %p115
    %p117 = scmp.ne.s32.totalorder %s109, %s112
    %p118 = scmp.eq.s32.totalorder %s10, 0
    %p119 = por %p117, %p118
    %p120 = scmp.ne.s32.totalorder %s109, %s112
    %p121 = scmp.eq.s32.totalorder %s15, 1
    %p122 = por %p120, %p121
    %p123 = scmp.ne.s32.totalorder %s112, %s113
    %p124 = scmp.eq.s32.totalorder %s15, 0
    %p125 = por %p123, %p124
    %p126 = scmp.ne.s32.totalorder %s112, %s113
    %p127 = scmp.eq.s32.totalorder %s16, 1
    %p128 = por %p126, %p127
    %p130 = scmp.ne.s32.totalorder %s113, %s129
    %p131 = scmp.eq.s32.totalorder %s16, 0
    %p132 = por %p130, %p131
    %p133 = scmp.le.s32.totalorder 1, %s10
    %p134 = scmp.lt.s32.totalorder %s10, 3
    %p135 = pnand %p133, %p134
    %p136 = pneg %p135
    // Predicated region
    $region9: #{net_forward.3} parent=5 // pred_check
      _
    $region10: #{net_forward.3} parent=5 // pred_check_branch
      %138 = sbr.rel (%p135) target = $region12
    $region11: #{net_forward.3} parent=5 // pred_region
      %s139 = ssub.s32 %s10, 1
      // Predicated region
      $region13: #{net_forward.3} parent=11 // pred_check
        %p140 = pneg %p57
      $region14: #{net_forward.3} parent=11 // pred_check_branch
        %142 = sbr.rel (%p140) target = $region16
      $region15: #{net_forward.3} parent=11 // pred_region
        _
      $region16: #{net_forward.3} parent=11 // pred_fallthru
        _
      // Predicated region
      $region17: #{net_forward.3} parent=11 // pred_check
        %p143 = pneg %p78
      $region18: #{net_forward.3} parent=11 // pred_check_branch
        %145 = sbr.rel (%p143) target = $region20
      $region19: #{net_forward.3} parent=11 // pred_region
        _
      $region20: #{net_forward.3} parent=11 // pred_fallthru
        _
      // Predicated region
      $region21: #{net_forward.3} parent=11 // pred_check
        %p146 = pneg %p99
      $region22: #{net_forward.3} parent=11 // pred_check_branch
        %148 = sbr.rel (%p146) target = $region24
      $region23: #{net_forward.3} parent=11 // pred_region
        _
      $region24: #{net_forward.3} parent=11 // pred_fallthru
        _
    $region12: #{net_forward.3} parent=5 // pred_fallthru
      _
    %p149 = scmp.lt.s32.totalorder %s10, 2
    // Predicated region
    $region25: #{net_forward.3} parent=5 // pred_check
      %p150 = pneg %p149
    $region26: #{net_forward.3} parent=5 // pred_check_branch
      %152 = sbr.rel (%p150) target = $region28
    $region27: #{net_forward.3} parent=5 // pred_region
      // Predicated region
      $region29: #{net_forward.3} parent=27 // pred_check
        %p153 = pneg %p30
      $region30: #{net_forward.3} parent=27 // pred_check_branch
        %155 = sbr.rel (%p153) target = $region32
      $region31: #{net_forward.3} parent=27 // pred_region
        %p156 = scmp.lt.s32.totalorder %s10, 1
        %s157 = scalar_select %p156, %s10, 1
        %s158 = smul.addr %s157, 32
        %s159 = smul.addr %s158, 4
        %s160 = scalar_lea.vmem %s0, %s159
      $region32: #{net_forward.3} parent=27 // pred_fallthru
        _
    $region28: #{net_forward.3} parent=5 // pred_fallthru
      _
    %p161 = scmp.le.s32.totalorder 1, %s10
    %p162 = scmp.lt.s32.totalorder %s10, 3
    %p163 = pnand %p161, %p162
    %p164 = pneg %p163
    // Predicated region
    $region33: #{net_forward.3} parent=5 // pred_check
      _
    $region34: #{net_forward.3} parent=5 // pred_check_branch
      %166 = sbr.rel (%p163) target = $region36
    $region35: #{net_forward.3} parent=5 // pred_region
      %s167 = ssub.s32 %s10, 1
      %p168 = scmp.lt.s32.totalorder %s15, 1
      %s169 = scalar_select %p168, %s15, 1
      %s170 = smul.addr %s169, 32
      %s171 = smul.addr %s170, 4
      %s172 = scalar_lea.vmem %s0, %s171
      %p173 = pneg %p36
      %p174 = pneg %p33
      %p175 = pneg %p57
      %p176 = pneg %p54
      %p177 = pneg %p78
      %p178 = pneg %p75
      %p179 = pneg %p99
      %p180 = pneg %p96
      %p181 = pneg %p125
      %p182 = pneg %p122
      %p183 = scmp.lt.s32.totalorder %s15, 1
      %s184 = scalar_select %p183, %s15, 1
      %s185 = smul.addr %s184, 8
      %s186 = smul.addr %s185, 4
      %s187 = scalar_lea.vmem %s4, %s186
      %p188 = scmp.lt.s32.totalorder %s15, 1
      %s189 = scalar_select %p188, %s15, 1
      %s190 = smul.addr %s189, 32
      %s191 = smul.addr %s190, 4
      %s192 = scalar_lea.vmem %s0, %s191
      %p193 = scmp.lt.s32.totalorder %s15, 1
      %s194 = scalar_select %p193, %s15, 1
      %s195 = smul.addr %s194, 8
      %s196 = smul.addr %s195, 4
      %s197 = scalar_lea.vmem %s4, %s196
      %vm199 = vcmask 7168
      %200 = vst.msk [vmem:[#allocation2] sm:$0xff] %vm199, 0.0
      %201 = vst.msk [vmem:[#allocation2 + $0x8] sm:$0xff] %vm199, 0.0
      %vm202 = vcmask 3072
      %203 = vst.msk [vmem:[#allocation2 + $0x10] sm:$0xf] %vm202, 0.0
      %204 = vst.msk [vmem:[#allocation2 + $0x18] sm:$0xff] %vm199, 0.0
      %205 = vst.msk [vmem:[#allocation2 + $0x20] sm:$0xff] %vm199, 0.0
      %206 = vst.msk [vmem:[#allocation2 + $0x28] sm:$0xf] %vm202, 0.0
      %207 = vst.msk [vmem:[#allocation2 + $0x30] sm:$0xff] %vm199, 0.0
      %208 = vst.msk [vmem:[#allocation2 + $0x38] sm:$0xff] %vm199, 0.0
      %209 = vst.msk [vmem:[#allocation2 + $0x40] sm:$0xf] %vm202, 0.0
      %210 = vst.msk [vmem:[#allocation2 + $0x48] sm:$0xff] %vm199, 0.0
      %211 = vst.msk [vmem:[#allocation2 + $0x50] sm:$0xff] %vm199, 0.0
      %212 = vst.msk [vmem:[#allocation2 + $0x58] sm:$0xf] %vm202, 0.0
      %213 = vst.msk [vmem:[#allocation2 + $0x60] sm:$0xff] %vm199, 0.0
      %214 = vst.msk [vmem:[#allocation2 + $0x68] sm:$0xff] %vm199, 0.0
      %215 = vst.msk [vmem:[#allocation2 + $0x70] sm:$0xf] %vm202, 0.0
      %216 = vst.msk [vmem:[#allocation2 + $0x78] sm:$0xff] %vm199, 0.0
      %217 = vst.msk [vmem:[#allocation2 + $0x80] sm:$0xff] %vm199, 0.0
      %218 = vst.msk [vmem:[#allocation2 + $0x88] sm:$0xf] %vm202, 0.0
      %219 = vst.msk [vmem:[#allocation2 + $0x90] sm:$0xff] %vm199, 0.0
      %220 = vst.msk [vmem:[#allocation2 + $0x98] sm:$0xff] %vm199, 0.0
      %221 = vst.msk [vmem:[#allocation2 + $0xa0] sm:$0xf] %vm202, 0.0
      %222 = vst.msk [vmem:[#allocation2 + $0xa8] sm:$0xff] %vm199, 0.0
      %223 = vst.msk [vmem:[#allocation2 + $0xb0] sm:$0xff] %vm199, 0.0
      %224 = vst.msk [vmem:[#allocation2 + $0xb8] sm:$0xf] %vm202, 0.0
      %225 = vst.msk [vmem:[#allocation2 + $0xc0] sm:$0xff] %vm199, 0.0
      %226 = vst.msk [vmem:[#allocation2 + $0xc8] sm:$0xff] %vm199, 0.0
      %227 = vst.msk [vmem:[#allocation2 + $0xd0] sm:$0xf] %vm202, 0.0
      %228 = vst.msk [vmem:[#allocation2 + $0xd8] sm:$0xff] %vm199, 0.0
      %229 = vst.msk [vmem:[#allocation2 + $0xe0] sm:$0xff] %vm199, 0.0
      %230 = vst.msk [vmem:[#allocation2 + $0xe8] sm:$0xf] %vm202, 0.0
      %231 = vst.msk [vmem:[#allocation2 + $0xf0] sm:$0xff] %vm199, 0.0
      %232 = vst.msk [vmem:[#allocation2 + $0xf8] sm:$0xff] %vm199, 0.0
      %233 = vst.msk [vmem:[#allocation2 + $0x100] sm:$0xf] %vm202, 0.0
      %234 = vst.msk [vmem:[#allocation2 + $0x108] sm:$0xff] %vm199, 0.0
      %235 = vst.msk [vmem:[#allocation2 + $0x110] sm:$0xff] %vm199, 0.0
      %236 = vst.msk [vmem:[#allocation2 + $0x118] sm:$0xf] %vm202, 0.0
      %237 = vst.msk [vmem:[#allocation2 + $0x120] sm:$0xff] %vm199, 0.0
      %238 = vst.msk [vmem:[#allocation2 + $0x128] sm:$0xff] %vm199, 0.0
      %239 = vst.msk [vmem:[#allocation2 + $0x130] sm:$0xf] %vm202, 0.0
      %240 = vst.msk [vmem:[#allocation2 + $0x138] sm:$0xff] %vm199, 0.0
      %241 = vst.msk [vmem:[#allocation2 + $0x140] sm:$0xff] %vm199, 0.0
      %242 = vst.msk [vmem:[#allocation2 + $0x148] sm:$0xf] %vm202, 0.0
      %243 = vst.msk [vmem:[#allocation2 + $0x150] sm:$0xff] %vm199, 0.0
      %244 = vst.msk [vmem:[#allocation2 + $0x158] sm:$0xff] %vm199, 0.0
      %245 = vst.msk [vmem:[#allocation2 + $0x160] sm:$0xf] %vm202, 0.0
      %246 = vst.msk [vmem:[#allocation2 + $0x168] sm:$0xff] %vm199, 0.0
      %247 = vst.msk [vmem:[#allocation2 + $0x170] sm:$0xff] %vm199, 0.0
      %248 = vst.msk [vmem:[#allocation2 + $0x178] sm:$0xf] %vm202, 0.0
      %249 = vst.msk [vmem:[#allocation2 + $0x180] sm:$0xff] %vm199, 0.0
      %250 = vst.msk [vmem:[#allocation2 + $0x188] sm:$0xff] %vm199, 0.0
      %251 = vst.msk [vmem:[#allocation2 + $0x190] sm:$0xf] %vm202, 0.0
      %252 = vst.msk [vmem:[#allocation2 + $0x198] sm:$0xff] %vm199, 0.0
      %253 = vst.msk [vmem:[#allocation2 + $0x1a0] sm:$0xff] %vm199, 0.0
      %254 = vst.msk [vmem:[#allocation2 + $0x1a8] sm:$0xf] %vm202, 0.0
      %255 = vst.msk [vmem:[#allocation2 + $0x1b0] sm:$0xff] %vm199, 0.0
      %256 = vst.msk [vmem:[#allocation2 + $0x1b8] sm:$0xff] %vm199, 0.0
      %257 = vst.msk [vmem:[#allocation2 + $0x1c0] sm:$0xf] %vm202, 0.0
      %258 = vst.msk [vmem:[#allocation2 + $0x1c8] sm:$0xff] %vm199, 0.0
      %259 = vst.msk [vmem:[#allocation2 + $0x1d0] sm:$0xff] %vm199, 0.0
      %260 = vst.msk [vmem:[#allocation2 + $0x1d8] sm:$0xf] %vm202, 0.0
      %v261 = vld [vmem:[%s192] sm:$0xf]
      %v262 = vld [vmem:[%s192 + $0x4] sm:$0xf]
      %v263 = vld [vmem:[%s192 + $0x8] sm:$0xf]
      %v264 = vld [vmem:[%s192 + $0xc] sm:$0xf]
      %v265 = vld [vmem:[%s192 + $0x10] sm:$0xf]
      %v266 = vld [vmem:[%s192 + $0x14] sm:$0xf]
      %v267 = vld [vmem:[%s192 + $0x18] sm:$0xf]
      %v268 = vld [vmem:[%s192 + $0x1c] sm:$0xf]
      %v269 = vld [vmem:[%s192 + $0x20] sm:$0xf]
      %v270 = vld [vmem:[%s192 + $0x24] sm:$0xf]
      %v271 = vld [vmem:[%s192 + $0x28] sm:$0xf]
      %v272 = vld [vmem:[%s192 + $0x2c] sm:$0xf]
      %v273 = vld [vmem:[%s192 + $0x30] sm:$0xf]
      %v274 = vld [vmem:[%s192 + $0x34] sm:$0xf]
      %v275 = vld [vmem:[%s192 + $0x38] sm:$0xf]
      %v276 = vld [vmem:[%s192 + $0x3c] sm:$0xf]
      %v277 = vld [vmem:[%s192 + $0x40] sm:$0xf]
      %v278 = vld [vmem:[%s192 + $0x44] sm:$0xf]
      %v279 = vld [vmem:[%s192 + $0x48] sm:$0xf]
      %v280 = vld [vmem:[%s192 + $0x4c] sm:$0xf]
      %v281 = vld [vmem:[%s192 + $0x50] sm:$0xf]
      %v282 = vld [vmem:[%s192 + $0x54] sm:$0xf]
      %v283 = vld [vmem:[%s192 + $0x58] sm:$0xf]
      %v284 = vld [vmem:[%s192 + $0x5c] sm:$0xf]
      %v285 = vld [vmem:[%s192 + $0x60] sm:$0xf]
      %v286 = vld [vmem:[%s192 + $0x64] sm:$0xf]
      %v287 = vld [vmem:[%s192 + $0x68] sm:$0xf]
      %v288 = vld [vmem:[%s192 + $0x6c] sm:$0xf]
      %v289 = vld [vmem:[%s192 + $0x70] sm:$0xf]
      %v290 = vld [vmem:[%s192 + $0x74] sm:$0xf]
      %v291 = vld [vmem:[%s192 + $0x78] sm:$0xf]
      %v292 = vld [vmem:[%s192 + $0x7c] sm:$0xf]
      %v293 = vunpack.c.l.bf16 %v261
      %v294 = vunpack.c.l.bf16 %v262
      %v295 = vunpack.c.l.bf16 %v263
      %v296 = vunpack.c.l.bf16 %v264
      %v297 = vunpack.c.l.bf16 %v265
      %v298 = vunpack.c.l.bf16 %v266
      %v299 = vunpack.c.l.bf16 %v267
      %v300 = vunpack.c.l.bf16 %v268
      %v301 = vunpack.c.l.bf16 %v269
      %v302 = vunpack.c.l.bf16 %v270
      %v303 = vunpack.c.l.bf16 %v271
      %v304 = vunpack.c.l.bf16 %v272
      %v305 = vunpack.c.l.bf16 %v273
      %v306 = vunpack.c.l.bf16 %v274
      %v307 = vunpack.c.l.bf16 %v275
      %v308 = vunpack.c.l.bf16 %v276
      %v309 = vunpack.c.l.bf16 %v277
      %v310 = vunpack.c.l.bf16 %v278
      %v311 = vunpack.c.l.bf16 %v279
      %v312 = vunpack.c.l.bf16 %v280
      %v313 = vunpack.c.l.bf16 %v281
      %v314 = vunpack.c.l.bf16 %v282
      %v315 = vunpack.c.l.bf16 %v283
      %v316 = vunpack.c.l.bf16 %v284
      %v317 = vunpack.c.l.bf16 %v285
      %v318 = vunpack.c.l.bf16 %v286
      %v319 = vunpack.c.l.bf16 %v287
      %v320 = vunpack.c.l.bf16 %v288
      %v321 = vunpack.c.l.bf16 %v289
      %v322 = vunpack.c.l.bf16 %v290
      %v323 = vunpack.c.l.bf16 %v291
      %v324 = vunpack.c.l.bf16 %v292
      %s325 = scalar_lea.vmem [#allocation2], 48
      %326 = vst.msk [vmem:[%s325 + $0x2] sm:$0xff] %vm199, %v293
      %327 = vst.msk [vmem:[%s325 + $0xa] sm:$0xff] %vm199, %v294
      %328 = vst.msk [vmem:[%s325 + $0x1a] sm:$0xff] %vm199, %v295
      %329 = vst.msk [vmem:[%s325 + $0x22] sm:$0xff] %vm199, %v296
      %330 = vst.msk [vmem:[%s325 + $0x32] sm:$0xff] %vm199, %v297
      %331 = vst.msk [vmem:[%s325 + $0x3a] sm:$0xff] %vm199, %v298
      %332 = vst.msk [vmem:[%s325 + $0x4a] sm:$0xff] %vm199, %v299
      %333 = vst.msk [vmem:[%s325 + $0x52] sm:$0xff] %vm199, %v300
      %334 = vst.msk [vmem:[%s325 + $0x62] sm:$0xff] %vm199, %v301
      %335 = vst.msk [vmem:[%s325 + $0x6a] sm:$0xff] %vm199, %v302
      %336 = vst.msk [vmem:[%s325 + $0x7a] sm:$0xff] %vm199, %v303
      %337 = vst.msk [vmem:[%s325 + $0x82] sm:$0xff] %vm199, %v304
      %338 = vst.msk [vmem:[%s325 + $0x92] sm:$0xff] %vm199, %v305
      %339 = vst.msk [vmem:[%s325 + $0x9a] sm:$0xff] %vm199, %v306
      %340 = vst.msk [vmem:[%s325 + $0xaa] sm:$0xff] %vm199, %v307
      %341 = vst.msk [vmem:[%s325 + $0xb2] sm:$0xff] %vm199, %v308
      %342 = vst.msk [vmem:[%s325 + $0xc2] sm:$0xff] %vm199, %v309
      %343 = vst.msk [vmem:[%s325 + $0xca] sm:$0xff] %vm199, %v310
      %344 = vst.msk [vmem:[%s325 + $0xda] sm:$0xff] %vm199, %v311
      %345 = vst.msk [vmem:[%s325 + $0xe2] sm:$0xff] %vm199, %v312
      %346 = vst.msk [vmem:[%s325 + $0xf2] sm:$0xff] %vm199, %v313
      %347 = vst.msk [vmem:[%s325 + $0xfa] sm:$0xff] %vm199, %v314
      %348 = vst.msk [vmem:[%s325 + $0x10a] sm:$0xff] %vm199, %v315
      %349 = vst.msk [vmem:[%s325 + $0x112] sm:$0xff] %vm199, %v316
      %350 = vst.msk [vmem:[%s325 + $0x122] sm:$0xff] %vm199, %v317
      %351 = vst.msk [vmem:[%s325 + $0x12a] sm:$0xff] %vm199, %v318
      %352 = vst.msk [vmem:[%s325 + $0x13a] sm:$0xff] %vm199, %v319
      %353 = vst.msk [vmem:[%s325 + $0x142] sm:$0xff] %vm199, %v320
      %354 = vst.msk [vmem:[%s325 + $0x152] sm:$0xff] %vm199, %v321
      %355 = vst.msk [vmem:[%s325 + $0x15a] sm:$0xff] %vm199, %v322
      %356 = vst.msk [vmem:[%s325 + $0x16a] sm:$0xff] %vm199, %v323
      %357 = vst.msk [vmem:[%s325 + $0x172] sm:$0xff] %vm199, %v324
      %v358 = vld [vmem:[#allocation2] sm:$0xff]
      %v359 = vld [vmem:[#allocation2 + $0x8] sm:$0xff]
      %v360 = vld [vmem:[#allocation2 + $0x18] sm:$0xff]
      %v361 = vld [vmem:[#allocation2 + $0x20] sm:$0xff]
      %v362 = vld [vmem:[#allocation2 + $0x30] sm:$0xff]
      %v363 = vld [vmem:[#allocation2 + $0x38] sm:$0xff]
      %v364 = vld [vmem:[#allocation2 + $0x48] sm:$0xff]
      %v365 = vld [vmem:[#allocation2 + $0x50] sm:$0xff]
      %v366 = vld [vmem:[#allocation2 + $0x60] sm:$0xff]
      %v367 = vld [vmem:[#allocation2 + $0x68] sm:$0xff]
      %v368 = vld [vmem:[#allocation2 + $0x78] sm:$0xff]
      %v369 = vld [vmem:[#allocation2 + $0x80] sm:$0xff]
      %v370 = vld [vmem:[#allocation2 + $0x90] sm:$0xff]
      %v371 = vld [vmem:[#allocation2 + $0x98] sm:$0xff]
      %v372 = vld [vmem:[#allocation2 + $0xa8] sm:$0xff]
      %v373 = vld [vmem:[#allocation2 + $0xb0] sm:$0xff]
      %v374 = vld [vmem:[#allocation2 + $0xc0] sm:$0xff]
      %v375 = vld [vmem:[#allocation2 + $0xc8] sm:$0xff]
      %v376 = vld [vmem:[#allocation2 + $0xd8] sm:$0xff]
      %v377 = vld [vmem:[#allocation2 + $0xe0] sm:$0xff]
      %v378 = vld [vmem:[#allocation2 + $0xf0] sm:$0xff]
      %v379 = vld [vmem:[#allocation2 + $0xf8] sm:$0xff]
      %v380 = vld [vmem:[#allocation2 + $0x108] sm:$0xff]
      %v381 = vld [vmem:[#allocation2 + $0x110] sm:$0xff]
      %v382 = vld [vmem:[#allocation2 + $0x120] sm:$0xff]
      %v383 = vld [vmem:[#allocation2 + $0x128] sm:$0xff]
      %v384 = vld [vmem:[#allocation2 + $0x138] sm:$0xff]
      %v385 = vld [vmem:[#allocation2 + $0x140] sm:$0xff]
      %v386 = vld [vmem:[#allocation2 + $0x150] sm:$0xff]
      %v387 = vld [vmem:[#allocation2 + $0x158] sm:$0xff]
      %v388 = vld [vmem:[#allocation2 + $0x168] sm:$0xff]
      %v389 = vld [vmem:[#allocation2 + $0x170] sm:$0xff]
      %v390 = vpack.c.bf16 %v359, %v358
      %v391 = vpack.c.bf16 %v361, %v360
      %v392 = vpack.c.bf16 %v363, %v362
      %v393 = vpack.c.bf16 %v365, %v364
      %v394 = vpack.c.bf16 %v367, %v366
      %v395 = vpack.c.bf16 %v369, %v368
      %v396 = vpack.c.bf16 %v371, %v370
      %v397 = vpack.c.bf16 %v373, %v372
      %v398 = vpack.c.bf16 %v375, %v374
      %v399 = vpack.c.bf16 %v377, %v376
      %v400 = vpack.c.bf16 %v379, %v378
      %v401 = vpack.c.bf16 %v381, %v380
      %v402 = vpack.c.bf16 %v383, %v382
      %v403 = vpack.c.bf16 %v385, %v384
      %v404 = vpack.c.bf16 %v387, %v386
      %v405 = vpack.c.bf16 %v389, %v388
      %406 = vst.msk [vmem:[#allocation3] sm:$0xff] %vm199, %v390
      %407 = vst.msk [vmem:[#allocation3 + $0x8] sm:$0xff] %vm199, %v391
      %408 = vst.msk [vmem:[#allocation3 + $0x10] sm:$0xff] %vm199, %v392
      %409 = vst.msk [vmem:[#allocation3 + $0x18] sm:$0xff] %vm199, %v393
      %410 = vst.msk [vmem:[#allocation3 + $0x20] sm:$0xff] %vm199, %v394
      %411 = vst.msk [vmem:[#allocation3 + $0x28] sm:$0xff] %vm199, %v395
      %412 = vst.msk [vmem:[#allocation3 + $0x30] sm:$0xff] %vm199, %v396
      %413 = vst.msk [vmem:[#allocation3 + $0x38] sm:$0xff] %vm199, %v397
      %414 = vst.msk [vmem:[#allocation3 + $0x40] sm:$0xff] %vm199, %v398
      %415 = vst.msk [vmem:[#allocation3 + $0x48] sm:$0xff] %vm199, %v399
      %416 = vst.msk [vmem:[#allocation3 + $0x50] sm:$0xff] %vm199, %v400
      %417 = vst.msk [vmem:[#allocation3 + $0x58] sm:$0xff] %vm199, %v401
      %418 = vst.msk [vmem:[#allocation3 + $0x60] sm:$0xff] %vm199, %v402
      %419 = vst.msk [vmem:[#allocation3 + $0x68] sm:$0xff] %vm199, %v403
      %420 = vst.msk [vmem:[#allocation3 + $0x70] sm:$0xff] %vm199, %v404
      %421 = vst.msk [vmem:[#allocation3 + $0x78] sm:$0xff] %vm199, %v405
      %v422 = vld [vmem:[#allocation2 + $0x1] sm:$0xff]
      %v423 = vld [vmem:[#allocation2 + $0x9] sm:$0xff]
      %v424 = vld [vmem:[#allocation2 + $0x19] sm:$0xff]
      %v425 = vld [vmem:[#allocation2 + $0x21] sm:$0xff]
      %v426 = vld [vmem:[#allocation2 + $0x31] sm:$0xff]
      %v427 = vld [vmem:[#allocation2 + $0x39] sm:$0xff]
      %v428 = vld [vmem:[#allocation2 + $0x49] sm:$0xff]
      %v429 = vld [vmem:[#allocation2 + $0x51] sm:$0xff]
      %v430 = vld [vmem:[#allocation2 + $0x61] sm:$0xff]
      %v431 = vld [vmem:[#allocation2 + $0x69] sm:$0xff]
      %v432 = vld [vmem:[#allocation2 + $0x79] sm:$0xff]
      %v433 = vld [vmem:[#allocation2 + $0x81] sm:$0xff]
      %v434 = vld [vmem:[#allocation2 + $0x91] sm:$0xff]
      %v435 = vld [vmem:[#allocation2 + $0x99] sm:$0xff]
      %v436 = vld [vmem:[#allocation2 + $0xa9] sm:$0xff]
      %v437 = vld [vmem:[#allocation2 + $0xb1] sm:$0xff]
      %v438 = vld [vmem:[#allocation2 + $0xc1] sm:$0xff]
      %v439 = vld [vmem:[#allocation2 + $0xc9] sm:$0xff]
      %v440 = vld [vmem:[#allocation2 + $0xd9] sm:$0xff]
      %v441 = vld [vmem:[#allocation2 + $0xe1] sm:$0xff]
      %v442 = vld [vmem:[#allocation2 + $0xf1] sm:$0xff]
      %v443 = vld [vmem:[#allocation2 + $0xf9] sm:$0xff]
      %v444 = vld [vmem:[#allocation2 + $0x109] sm:$0xff]
      %v445 = vld [vmem:[#allocation2 + $0x111] sm:$0xff]
      %v446 = vld [vmem:[#allocation2 + $0x121] sm:$0xff]
      %v447 = vld [vmem:[#allocation2 + $0x129] sm:$0xff]
      %v448 = vld [vmem:[#allocation2 + $0x139] sm:$0xff]
      %v449 = vld [vmem:[#allocation2 + $0x141] sm:$0xff]
      %v450 = vld [vmem:[#allocation2 + $0x151] sm:$0xff]
      %v451 = vld [vmem:[#allocation2 + $0x159] sm:$0xff]
      %v452 = vld [vmem:[#allocation2 + $0x169] sm:$0xff]
      %v453 = vld [vmem:[#allocation2 + $0x171] sm:$0xff]
      %v454 = vpack.c.bf16 %v423, %v422
      %v455 = vpack.c.bf16 %v425, %v424
      %v456 = vpack.c.bf16 %v427, %v426
      %v457 = vpack.c.bf16 %v429, %v428
      %v458 = vpack.c.bf16 %v431, %v430
      %v459 = vpack.c.bf16 %v433, %v432
      %v460 = vpack.c.bf16 %v435, %v434
      %v461 = vpack.c.bf16 %v437, %v436
      %v462 = vpack.c.bf16 %v439, %v438
      %v463 = vpack.c.bf16 %v441, %v440
      %v464 = vpack.c.bf16 %v443, %v442
      %v465 = vpack.c.bf16 %v445, %v444
      %v466 = vpack.c.bf16 %v447, %v446
      %v467 = vpack.c.bf16 %v449, %v448
      %v468 = vpack.c.bf16 %v451, %v450
      %v469 = vpack.c.bf16 %v453, %v452
      %486 = vrot.lane.b32.xlu0 %v454, 1
      %v487 = vpop.permute.xlu0 %486
      %488 = vrot.lane.b32.xlu0 %v455, 1
      %v489 = vpop.permute.xlu0 %488
      %490 = vrot.lane.b32.xlu0 %v456, 1
      %v491 = vpop.permute.xlu0 %490
      %492 = vrot.lane.b32.xlu0 %v457, 1
      %v493 = vpop.permute.xlu0 %492
      %494 = vrot.lane.b32.xlu0 %v458, 1
      %v495 = vpop.permute.xlu0 %494
      %496 = vrot.lane.b32.xlu0 %v459, 1
      %v497 = vpop.permute.xlu0 %496
      %498 = vrot.lane.b32.xlu0 %v460, 1
      %v499 = vpop.permute.xlu0 %498
      %500 = vrot.lane.b32.xlu0 %v461, 1
      %v501 = vpop.permute.xlu0 %500
      %502 = vrot.lane.b32.xlu0 %v462, 1
      %v503 = vpop.permute.xlu0 %502
      %504 = vrot.lane.b32.xlu0 %v463, 1
      %v505 = vpop.permute.xlu0 %504
      %506 = vrot.lane.b32.xlu0 %v464, 1
      %v507 = vpop.permute.xlu0 %506
      %508 = vrot.lane.b32.xlu0 %v465, 1
      %v509 = vpop.permute.xlu0 %508
      %510 = vrot.lane.b32.xlu0 %v466, 1
      %v511 = vpop.permute.xlu0 %510
      %512 = vrot.lane.b32.xlu0 %v467, 1
      %v513 = vpop.permute.xlu0 %512
      %514 = vrot.lane.b32.xlu0 %v468, 1
      %v515 = vpop.permute.xlu0 %514
      %516 = vrot.lane.b32.xlu0 %v469, 1
      %v517 = vpop.permute.xlu0 %516
      %vm534 = vcmask 15368
      %535 = vst.msk [vmem:[#allocation3] sm:$0xff] %vm534, %v487
      %536 = vst.msk [vmem:[#allocation3 + $0x8] sm:$0xff] %vm534, %v489
      %537 = vst.msk [vmem:[#allocation3 + $0x10] sm:$0xff] %vm534, %v491
      %538 = vst.msk [vmem:[#allocation3 + $0x18] sm:$0xff] %vm534, %v493
      %539 = vst.msk [vmem:[#allocation3 + $0x20] sm:$0xff] %vm534, %v495
      %540 = vst.msk [vmem:[#allocation3 + $0x28] sm:$0xff] %vm534, %v497
      %541 = vst.msk [vmem:[#allocation3 + $0x30] sm:$0xff] %vm534, %v499
      %542 = vst.msk [vmem:[#allocation3 + $0x38] sm:$0xff] %vm534, %v501
      %543 = vst.msk [vmem:[#allocation3 + $0x40] sm:$0xff] %vm534, %v503
      %544 = vst.msk [vmem:[#allocation3 + $0x48] sm:$0xff] %vm534, %v505
      %545 = vst.msk [vmem:[#allocation3 + $0x50] sm:$0xff] %vm534, %v507
      %546 = vst.msk [vmem:[#allocation3 + $0x58] sm:$0xff] %vm534, %v509
      %547 = vst.msk [vmem:[#allocation3 + $0x60] sm:$0xff] %vm534, %v511
      %548 = vst.msk [vmem:[#allocation3 + $0x68] sm:$0xff] %vm534, %v513
      %549 = vst.msk [vmem:[#allocation3 + $0x70] sm:$0xff] %vm534, %v515
      %550 = vst.msk [vmem:[#allocation3 + $0x78] sm:$0xff] %vm534, %v517
      %v551 = vld [vmem:[#allocation2 + $0x2] sm:$0xff]
      %v552 = vld [vmem:[#allocation2 + $0xa] sm:$0xff]
      %v553 = vld [vmem:[#allocation2 + $0x1a] sm:$0xff]
      %v554 = vld [vmem:[#allocation2 + $0x22] sm:$0xff]
      %v555 = vld [vmem:[#allocation2 + $0x32] sm:$0xff]
      %v556 = vld [vmem:[#allocation2 + $0x3a] sm:$0xff]
      %v557 = vld [vmem:[#allocation2 + $0x4a] sm:$0xff]
      %v558 = vld [vmem:[#allocation2 + $0x52] sm:$0xff]
      %v559 = vld [vmem:[#allocation2 + $0x62] sm:$0xff]
      %v560 = vld [vmem:[#allocation2 + $0x6a] sm:$0xff]
      %v561 = vld [vmem:[#allocation2 + $0x7a] sm:$0xff]
      %v562 = vld [vmem:[#allocation2 + $0x82] sm:$0xff]
      %v563 = vld [vmem:[#allocation2 + $0x92] sm:$0xff]
      %v564 = vld [vmem:[#allocation2 + $0x9a] sm:$0xff]
      %v565 = vld [vmem:[#allocation2 + $0xaa] sm:$0xff]
      %v566 = vld [vmem:[#allocation2 + $0xb2] sm:$0xff]
      %v567 = vld [vmem:[#allocation2 + $0xc2] sm:$0xff]
      %v568 = vld [vmem:[#allocation2 + $0xca] sm:$0xff]
      %v569 = vld [vmem:[#allocation2 + $0xda] sm:$0xff]
      %v570 = vld [vmem:[#allocation2 + $0xe2] sm:$0xff]
      %v571 = vld [vmem:[#allocation2 + $0xf2] sm:$0xff]
      %v572 = vld [vmem:[#allocation2 + $0xfa] sm:$0xff]
      %v573 = vld [vmem:[#allocation2 + $0x10a] sm:$0xff]
      %v574 = vld [vmem:[#allocation2 + $0x112] sm:$0xff]
      %v575 = vld [vmem:[#allocation2 + $0x122] sm:$0xff]
      %v576 = vld [vmem:[#allocation2 + $0x12a] sm:$0xff]
      %v577 = vld [vmem:[#allocation2 + $0x13a] sm:$0xff]
      %v578 = vld [vmem:[#allocation2 + $0x142] sm:$0xff]
      %v579 = vld [vmem:[#allocation2 + $0x152] sm:$0xff]
      %v580 = vld [vmem:[#allocation2 + $0x15a] sm:$0xff]
      %v581 = vld [vmem:[#allocation2 + $0x16a] sm:$0xff]
      %v582 = vld [vmem:[#allocation2 + $0x172] sm:$0xff]
      %v583 = vpack.c.bf16 %v552, %v551
      %v584 = vpack.c.bf16 %v554, %v553
      %v585 = vpack.c.bf16 %v556, %v555
      %v586 = vpack.c.bf16 %v558, %v557
      %v587 = vpack.c.bf16 %v560, %v559
      %v588 = vpack.c.bf16 %v562, %v561
      %v589 = vpack.c.bf16 %v564, %v563
      %v590 = vpack.c.bf16 %v566, %v565
      %v591 = vpack.c.bf16 %v568, %v567
      %v592 = vpack.c.bf16 %v570, %v569
      %v593 = vpack.c.bf16 %v572, %v571
      %v594 = vpack.c.bf16 %v574, %v573
      %v595 = vpack.c.bf16 %v576, %v575
      %v596 = vpack.c.bf16 %v578, %v577
      %v597 = vpack.c.bf16 %v580, %v579
      %v598 = vpack.c.bf16 %v582, %v581
      %615 = vrot.lane.b32.xlu0 %v583, 2
      %v616 = vpop.permute.xlu0 %615
      %617 = vrot.lane.b32.xlu0 %v584, 2
      %v618 = vpop.permute.xlu0 %617
      %619 = vrot.lane.b32.xlu0 %v585, 2
      %v620 = vpop.permute.xlu0 %619
      %621 = vrot.lane.b32.xlu0 %v586, 2
      %v622 = vpop.permute.xlu0 %621
      %623 = vrot.lane.b32.xlu0 %v587, 2
      %v624 = vpop.permute.xlu0 %623
      %625 = vrot.lane.b32.xlu0 %v588, 2
      %v626 = vpop.permute.xlu0 %625
      %627 = vrot.lane.b32.xlu0 %v589, 2
      %v628 = vpop.permute.xlu0 %627
      %629 = vrot.lane.b32.xlu0 %v590, 2
      %v630 = vpop.permute.xlu0 %629
      %631 = vrot.lane.b32.xlu0 %v591, 2
      %v632 = vpop.permute.xlu0 %631
      %633 = vrot.lane.b32.xlu0 %v592, 2
      %v634 = vpop.permute.xlu0 %633
      %635 = vrot.lane.b32.xlu0 %v593, 2
      %v636 = vpop.permute.xlu0 %635
      %637 = vrot.lane.b32.xlu0 %v594, 2
      %v638 = vpop.permute.xlu0 %637
      %639 = vrot.lane.b32.xlu0 %v595, 2
      %v640 = vpop.permute.xlu0 %639
      %641 = vrot.lane.b32.xlu0 %v596, 2
      %v642 = vpop.permute.xlu0 %641
      %643 = vrot.lane.b32.xlu0 %v597, 2
      %v644 = vpop.permute.xlu0 %643
      %645 = vrot.lane.b32.xlu0 %v598, 2
      %v646 = vpop.permute.xlu0 %645
      %vm663 = vcmask 23568
      %664 = vst.msk [vmem:[#allocation3] sm:$0xff] %vm663, %v616
      %665 = vst.msk [vmem:[#allocation3 + $0x8] sm:$0xff] %vm663, %v618
      %666 = vst.msk [vmem:[#allocation3 + $0x10] sm:$0xff] %vm663, %v620
      %667 = vst.msk [vmem:[#allocation3 + $0x18] sm:$0xff] %vm663, %v622
      %668 = vst.msk [vmem:[#allocation3 + $0x20] sm:$0xff] %vm663, %v624
      %669 = vst.msk [vmem:[#allocation3 + $0x28] sm:$0xff] %vm663, %v626
      %670 = vst.msk [vmem:[#allocation3 + $0x30] sm:$0xff] %vm663, %v628
      %671 = vst.msk [vmem:[#allocation3 + $0x38] sm:$0xff] %vm663, %v630
      %672 = vst.msk [vmem:[#allocation3 + $0x40] sm:$0xff] %vm663, %v632
      %673 = vst.msk [vmem:[#allocation3 + $0x48] sm:$0xff] %vm663, %v634
      %674 = vst.msk [vmem:[#allocation3 + $0x50] sm:$0xff] %vm663, %v636
      %675 = vst.msk [vmem:[#allocation3 + $0x58] sm:$0xff] %vm663, %v638
      %676 = vst.msk [vmem:[#allocation3 + $0x60] sm:$0xff] %vm663, %v640
      %677 = vst.msk [vmem:[#allocation3 + $0x68] sm:$0xff] %vm663, %v642
      %678 = vst.msk [vmem:[#allocation3 + $0x70] sm:$0xff] %vm663, %v644
      %679 = vst.msk [vmem:[#allocation3 + $0x78] sm:$0xff] %vm663, %v646
      %v680 = vld [vmem:[#allocation2 + $0x3] sm:$0xff]
      %v681 = vld [vmem:[#allocation2 + $0xb] sm:$0xff]
      %v682 = vld [vmem:[#allocation2 + $0x1b] sm:$0xff]
      %v683 = vld [vmem:[#allocation2 + $0x23] sm:$0xff]
      %v684 = vld [vmem:[#allocation2 + $0x33] sm:$0xff]
      %v685 = vld [vmem:[#allocation2 + $0x3b] sm:$0xff]
      %v686 = vld [vmem:[#allocation2 + $0x4b] sm:$0xff]
      %v687 = vld [vmem:[#allocation2 + $0x53] sm:$0xff]
      %v688 = vld [vmem:[#allocation2 + $0x63] sm:$0xff]
      %v689 = vld [vmem:[#allocation2 + $0x6b] sm:$0xff]
      %v690 = vld [vmem:[#allocation2 + $0x7b] sm:$0xff]
      %v691 = vld [vmem:[#allocation2 + $0x83] sm:$0xff]
      %v692 = vld [vmem:[#allocation2 + $0x93] sm:$0xff]
      %v693 = vld [vmem:[#allocation2 + $0x9b] sm:$0xff]
      %v694 = vld [vmem:[#allocation2 + $0xab] sm:$0xff]
      %v695 = vld [vmem:[#allocation2 + $0xb3] sm:$0xff]
      %v696 = vld [vmem:[#allocation2 + $0xc3] sm:$0xff]
      %v697 = vld [vmem:[#allocation2 + $0xcb] sm:$0xff]
      %v698 = vld [vmem:[#allocation2 + $0xdb] sm:$0xff]
      %v699 = vld [vmem:[#allocation2 + $0xe3] sm:$0xff]
      %v700 = vld [vmem:[#allocation2 + $0xf3] sm:$0xff]
      %v701 = vld [vmem:[#allocation2 + $0xfb] sm:$0xff]
      %v702 = vld [vmem:[#allocation2 + $0x10b] sm:$0xff]
      %v703 = vld [vmem:[#allocation2 + $0x113] sm:$0xff]
      %v704 = vld [vmem:[#allocation2 + $0x123] sm:$0xff]
      %v705 = vld [vmem:[#allocation2 + $0x12b] sm:$0xff]
      %v706 = vld [vmem:[#allocation2 + $0x13b] sm:$0xff]
      %v707 = vld [vmem:[#allocation2 + $0x143] sm:$0xff]
      %v708 = vld [vmem:[#allocation2 + $0x153] sm:$0xff]
      %v709 = vld [vmem:[#allocation2 + $0x15b] sm:$0xff]
      %v710 = vld [vmem:[#allocation2 + $0x16b] sm:$0xff]
      %v711 = vld [vmem:[#allocation2 + $0x173] sm:$0xff]
      %v712 = vpack.c.bf16 %v681, %v680
      %v713 = vpack.c.bf16 %v683, %v682
      %v714 = vpack.c.bf16 %v685, %v684
      %v715 = vpack.c.bf16 %v687, %v686
      %v716 = vpack.c.bf16 %v689, %v688
      %v717 = vpack.c.bf16 %v691, %v690
      %v718 = vpack.c.bf16 %v693, %v692
      %v719 = vpack.c.bf16 %v695, %v694
      %v720 = vpack.c.bf16 %v697, %v696
      %v721 = vpack.c.bf16 %v699, %v698
      %v722 = vpack.c.bf16 %v701, %v700
      %v723 = vpack.c.bf16 %v703, %v702
      %v724 = vpack.c.bf16 %v705, %v704
      %v725 = vpack.c.bf16 %v707, %v706
      %v726 = vpack.c.bf16 %v709, %v708
      %v727 = vpack.c.bf16 %v711, %v710
      %744 = vrot.lane.b32.xlu0 %v712, 3
      %v745 = vpop.permute.xlu0 %744
      %746 = vrot.lane.b32.xlu0 %v713, 3
      %v747 = vpop.permute.xlu0 %746
      %748 = vrot.lane.b32.xlu0 %v714, 3
      %v749 = vpop.permute.xlu0 %748
      %750 = vrot.lane.b32.xlu0 %v715, 3
      %v751 = vpop.permute.xlu0 %750
      %752 = vrot.lane.b32.xlu0 %v716, 3
      %v753 = vpop.permute.xlu0 %752
      %754 = vrot.lane.b32.xlu0 %v717, 3
      %v755 = vpop.permute.xlu0 %754
      %756 = vrot.lane.b32.xlu0 %v718, 3
      %v757 = vpop.permute.xlu0 %756
      %758 = vrot.lane.b32.xlu0 %v719, 3
      %v759 = vpop.permute.xlu0 %758
      %760 = vrot.lane.b32.xlu0 %v720, 3
      %v761 = vpop.permute.xlu0 %760
      %762 = vrot.lane.b32.xlu0 %v721, 3
      %v763 = vpop.permute.xlu0 %762
      %764 = vrot.lane.b32.xlu0 %v722, 3
      %v765 = vpop.permute.xlu0 %764
      %766 = vrot.lane.b32.xlu0 %v723, 3
      %v767 = vpop.permute.xlu0 %766
      %768 = vrot.lane.b32.xlu0 %v724, 3
      %v769 = vpop.permute.xlu0 %768
      %770 = vrot.lane.b32.xlu0 %v725, 3
      %v771 = vpop.permute.xlu0 %770
      %772 = vrot.lane.b32.xlu0 %v726, 3
      %v773 = vpop.permute.xlu0 %772
      %774 = vrot.lane.b32.xlu0 %v727, 3
      %v775 = vpop.permute.xlu0 %774
      %vm792 = vcmask 31768
      %793 = vst.msk [vmem:[#allocation3] sm:$0xff] %vm792, %v745
      %794 = vst.msk [vmem:[#allocation3 + $0x8] sm:$0xff] %vm792, %v747
      %795 = vst.msk [vmem:[#allocation3 + $0x10] sm:$0xff] %vm792, %v749
      %796 = vst.msk [vmem:[#allocation3 + $0x18] sm:$0xff] %vm792, %v751
      %797 = vst.msk [vmem:[#allocation3 + $0x20] sm:$0xff] %vm792, %v753
      %798 = vst.msk [vmem:[#allocation3 + $0x28] sm:$0xff] %vm792, %v755
      %799 = vst.msk [vmem:[#allocation3 + $0x30] sm:$0xff] %vm792, %v757
      %800 = vst.msk [vmem:[#allocation3 + $0x38] sm:$0xff] %vm792, %v759
      %801 = vst.msk [vmem:[#allocation3 + $0x40] sm:$0xff] %vm792, %v761
      %802 = vst.msk [vmem:[#allocation3 + $0x48] sm:$0xff] %vm792, %v763
      %803 = vst.msk [vmem:[#allocation3 + $0x50] sm:$0xff] %vm792, %v765
      %804 = vst.msk [vmem:[#allocation3 + $0x58] sm:$0xff] %vm792, %v767
      %805 = vst.msk [vmem:[#allocation3 + $0x60] sm:$0xff] %vm792, %v769
      %806 = vst.msk [vmem:[#allocation3 + $0x68] sm:$0xff] %vm792, %v771
      %807 = vst.msk [vmem:[#allocation3 + $0x70] sm:$0xff] %vm792, %v773
      %808 = vst.msk [vmem:[#allocation3 + $0x78] sm:$0xff] %vm792, %v775
      %v809 = vld [vmem:[#allocation2 + $0x4] sm:$0xff]
      %v810 = vld [vmem:[#allocation2 + $0xc] sm:$0xff]
      %v811 = vld [vmem:[#allocation2 + $0x1c] sm:$0xff]
      %v812 = vld [vmem:[#allocation2 + $0x24] sm:$0xff]
      %v813 = vld [vmem:[#allocation2 + $0x34] sm:$0xff]
      %v814 = vld [vmem:[#allocation2 + $0x3c] sm:$0xff]
      %v815 = vld [vmem:[#allocation2 + $0x4c] sm:$0xff]
      %v816 = vld [vmem:[#allocation2 + $0x54] sm:$0xff]
      %v817 = vld [vmem:[#allocation2 + $0x64] sm:$0xff]
      %v818 = vld [vmem:[#allocation2 + $0x6c] sm:$0xff]
      %v819 = vld [vmem:[#allocation2 + $0x7c] sm:$0xff]
      %v820 = vld [vmem:[#allocation2 + $0x84] sm:$0xff]
      %v821 = vld [vmem:[#allocation2 + $0x94] sm:$0xff]
      %v822 = vld [vmem:[#allocation2 + $0x9c] sm:$0xff]
      %v823 = vld [vmem:[#allocation2 + $0xac] sm:$0xff]
      %v824 = vld [vmem:[#allocation2 + $0xb4] sm:$0xff]
      %v825 = vld [vmem:[#allocation2 + $0xc4] sm:$0xff]
      %v826 = vld [vmem:[#allocation2 + $0xcc] sm:$0xff]
      %v827 = vld [vmem:[#allocation2 + $0xdc] sm:$0xff]
      %v828 = vld [vmem:[#allocation2 + $0xe4] sm:$0xff]
      %v829 = vld [vmem:[#allocation2 + $0xf4] sm:$0xff]
      %v830 = vld [vmem:[#allocation2 + $0xfc] sm:$0xff]
      %v831 = vld [vmem:[#allocation2 + $0x10c] sm:$0xff]
      %v832 = vld [vmem:[#allocation2 + $0x114] sm:$0xff]
      %v833 = vld [vmem:[#allocation2 + $0x124] sm:$0xff]
      %v834 = vld [vmem:[#allocation2 + $0x12c] sm:$0xff]
      %v835 = vld [vmem:[#allocation2 + $0x13c] sm:$0xff]
      %v836 = vld [vmem:[#allocation2 + $0x144] sm:$0xff]
      %v837 = vld [vmem:[#allocation2 + $0x154] sm:$0xff]
      %v838 = vld [vmem:[#allocation2 + $0x15c] sm:$0xff]
      %v839 = vld [vmem:[#allocation2 + $0x16c] sm:$0xff]
      %v840 = vld [vmem:[#allocation2 + $0x174] sm:$0xff]
      %v841 = vpack.c.bf16 %v810, %v809
      %v842 = vpack.c.bf16 %v812, %v811
      %v843 = vpack.c.bf16 %v814, %v813
      %v844 = vpack.c.bf16 %v816, %v815
      %v845 = vpack.c.bf16 %v818, %v817
      %v846 = vpack.c.bf16 %v820, %v819
      %v847 = vpack.c.bf16 %v822, %v821
      %v848 = vpack.c.bf16 %v824, %v823
      %v849 = vpack.c.bf16 %v826, %v825
      %v850 = vpack.c.bf16 %v828, %v827
      %v851 = vpack.c.bf16 %v830, %v829
      %v852 = vpack.c.bf16 %v832, %v831
      %v853 = vpack.c.bf16 %v834, %v833
      %v854 = vpack.c.bf16 %v836, %v835
      %v855 = vpack.c.bf16 %v838, %v837
      %v856 = vpack.c.bf16 %v840, %v839
      %873 = vrot.lane.b32.xlu0 %v841, 4
      %v874 = vpop.permute.xlu0 %873
      %875 = vrot.lane.b32.xlu0 %v842, 4
      %v876 = vpop.permute.xlu0 %875
      %877 = vrot.lane.b32.xlu0 %v843, 4
      %v878 = vpop.permute.xlu0 %877
      %879 = vrot.lane.b32.xlu0 %v844, 4
      %v880 = vpop.permute.xlu0 %879
      %881 = vrot.lane.b32.xlu0 %v845, 4
      %v882 = vpop.permute.xlu0 %881
      %883 = vrot.lane.b32.xlu0 %v846, 4
      %v884 = vpop.permute.xlu0 %883
      %885 = vrot.lane.b32.xlu0 %v847, 4
      %v886 = vpop.permute.xlu0 %885
      %887 = vrot.lane.b32.xlu0 %v848, 4
      %v888 = vpop.permute.xlu0 %887
      %889 = vrot.lane.b32.xlu0 %v849, 4
      %v890 = vpop.permute.xlu0 %889
      %891 = vrot.lane.b32.xlu0 %v850, 4
      %v892 = vpop.permute.xlu0 %891
      %893 = vrot.lane.b32.xlu0 %v851, 4
      %v894 = vpop.permute.xlu0 %893
      %895 = vrot.lane.b32.xlu0 %v852, 4
      %v896 = vpop.permute.xlu0 %895
      %897 = vrot.lane.b32.xlu0 %v853, 4
      %v898 = vpop.permute.xlu0 %897
      %899 = vrot.lane.b32.xlu0 %v854, 4
      %v900 = vpop.permute.xlu0 %899
      %901 = vrot.lane.b32.xlu0 %v855, 4
      %v902 = vpop.permute.xlu0 %901
      %903 = vrot.lane.b32.xlu0 %v856, 4
      %v904 = vpop.permute.xlu0 %903
      %vm921 = vcmask 39968
      %922 = vst.msk [vmem:[#allocation3] sm:$0xff] %vm921, %v874
      %923 = vst.msk [vmem:[#allocation3 + $0x8] sm:$0xff] %vm921, %v876
      %924 = vst.msk [vmem:[#allocation3 + $0x10] sm:$0xff] %vm921, %v878
      %925 = vst.msk [vmem:[#allocation3 + $0x18] sm:$0xff] %vm921, %v880
      %926 = vst.msk [vmem:[#allocation3 + $0x20] sm:$0xff] %vm921, %v882
      %927 = vst.msk [vmem:[#allocation3 + $0x28] sm:$0xff] %vm921, %v884
      %928 = vst.msk [vmem:[#allocation3 + $0x30] sm:$0xff] %vm921, %v886
      %929 = vst.msk [vmem:[#allocation3 + $0x38] sm:$0xff] %vm921, %v888
      %930 = vst.msk [vmem:[#allocation3 + $0x40] sm:$0xff] %vm921, %v890
      %931 = vst.msk [vmem:[#allocation3 + $0x48] sm:$0xff] %vm921, %v892
      %932 = vst.msk [vmem:[#allocation3 + $0x50] sm:$0xff] %vm921, %v894
      %933 = vst.msk [vmem:[#allocation3 + $0x58] sm:$0xff] %vm921, %v896
      %934 = vst.msk [vmem:[#allocation3 + $0x60] sm:$0xff] %vm921, %v898
      %935 = vst.msk [vmem:[#allocation3 + $0x68] sm:$0xff] %vm921, %v900
      %936 = vst.msk [vmem:[#allocation3 + $0x70] sm:$0xff] %vm921, %v902
      %937 = vst.msk [vmem:[#allocation3 + $0x78] sm:$0xff] %vm921, %v904
      %s938 = scalar_lea.vmem [#allocation2], 24
      %v939 = vld [vmem:[%s938] sm:$0xff]
      %v940 = vld [vmem:[%s938 + $0x8] sm:$0xff]
      %v941 = vld [vmem:[%s938 + $0x18] sm:$0xff]
      %v942 = vld [vmem:[%s938 + $0x20] sm:$0xff]
      %v943 = vld [vmem:[%s938 + $0x30] sm:$0xff]
      %v944 = vld [vmem:[%s938 + $0x38] sm:$0xff]
      %v945 = vld [vmem:[%s938 + $0x48] sm:$0xff]
      %v946 = vld [vmem:[%s938 + $0x50] sm:$0xff]
      %v947 = vld [vmem:[%s938 + $0x60] sm:$0xff]
      %v948 = vld [vmem:[%s938 + $0x68] sm:$0xff]
      %v949 = vld [vmem:[%s938 + $0x78] sm:$0xff]
      %v950 = vld [vmem:[%s938 + $0x80] sm:$0xff]
      %v951 = vld [vmem:[%s938 + $0x90] sm:$0xff]
      %v952 = vld [vmem:[%s938 + $0x98] sm:$0xff]
      %v953 = vld [vmem:[%s938 + $0xa8] sm:$0xff]
      %v954 = vld [vmem:[%s938 + $0xb0] sm:$0xff]
      %v955 = vld [vmem:[%s938 + $0xc0] sm:$0xff]
      %v956 = vld [vmem:[%s938 + $0xc8] sm:$0xff]
      %v957 = vld [vmem:[%s938 + $0xd8] sm:$0xff]
      %v958 = vld [vmem:[%s938 + $0xe0] sm:$0xff]
      %v959 = vld [vmem:[%s938 + $0xf0] sm:$0xff]
      %v960 = vld [vmem:[%s938 + $0xf8] sm:$0xff]
      %v961 = vld [vmem:[%s938 + $0x108] sm:$0xff]
      %v962 = vld [vmem:[%s938 + $0x110] sm:$0xff]
      %v963 = vld [vmem:[%s938 + $0x120] sm:$0xff]
      %v964 = vld [vmem:[%s938 + $0x128] sm:$0xff]
      %v965 = vld [vmem:[%s938 + $0x138] sm:$0xff]
      %v966 = vld [vmem:[%s938 + $0x140] sm:$0xff]
      %v967 = vld [vmem:[%s938 + $0x150] sm:$0xff]
      %v968 = vld [vmem:[%s938 + $0x158] sm:$0xff]
      %v969 = vld [vmem:[%s938 + $0x168] sm:$0xff]
      %v970 = vld [vmem:[%s938 + $0x170] sm:$0xff]
      %v971 = vpack.c.bf16 %v940, %v939
      %v972 = vpack.c.bf16 %v942, %v941
      %v973 = vpack.c.bf16 %v944, %v943
      %v974 = vpack.c.bf16 %v946, %v945
      %v975 = vpack.c.bf16 %v948, %v947
      %v976 = vpack.c.bf16 %v950, %v949
      %v977 = vpack.c.bf16 %v952, %v951
      %v978 = vpack.c.bf16 %v954, %v953
      %v979 = vpack.c.bf16 %v956, %v955
      %v980 = vpack.c.bf16 %v958, %v957
      %v981 = vpack.c.bf16 %v960, %v959
      %v982 = vpack.c.bf16 %v962, %v961
      %v983 = vpack.c.bf16 %v964, %v963
      %v984 = vpack.c.bf16 %v966, %v965
      %v985 = vpack.c.bf16 %v968, %v967
      %v986 = vpack.c.bf16 %v970, %v969
      %1003 = vrot.lane.b32.xlu0 %v971, 5
      %v1004 = vpop.permute.xlu0 %1003
      %1005 = vrot.lane.b32.xlu0 %v972, 5
      %v1006 = vpop.permute.xlu0 %1005
      %1007 = vrot.lane.b32.xlu0 %v973, 5
      %v1008 = vpop.permute.xlu0 %1007
      %1009 = vrot.lane.b32.xlu0 %v974, 5
      %v1010 = vpop.permute.xlu0 %1009
      %1011 = vrot.lane.b32.xlu0 %v975, 5
      %v1012 = vpop.permute.xlu0 %1011
      %1013 = vrot.lane.b32.xlu0 %v976, 5
      %v1014 = vpop.permute.xlu0 %1013
      %1015 = vrot.lane.b32.xlu0 %v977, 5
      %v1016 = vpop.permute.xlu0 %1015
      %1017 = vrot.lane.b32.xlu0 %v978, 5
      %v1018 = vpop.permute.xlu0 %1017
      %1019 = vrot.lane.b32.xlu0 %v979, 5
      %v1020 = vpop.permute.xlu0 %1019
      %1021 = vrot.lane.b32.xlu0 %v980, 5
      %v1022 = vpop.permute.xlu0 %1021
      %1023 = vrot.lane.b32.xlu0 %v981, 5
      %v1024 = vpop.permute.xlu0 %1023
      %1025 = vrot.lane.b32.xlu0 %v982, 5
      %v1026 = vpop.permute.xlu0 %1025
      %1027 = vrot.lane.b32.xlu0 %v983, 5
      %v1028 = vpop.permute.xlu0 %1027
      %1029 = vrot.lane.b32.xlu0 %v984, 5
      %v1030 = vpop.permute.xlu0 %1029
      %1031 = vrot.lane.b32.xlu0 %v985, 5
      %v1032 = vpop.permute.xlu0 %1031
      %1033 = vrot.lane.b32.xlu0 %v986, 5
      %v1034 = vpop.permute.xlu0 %1033
      %vm1051 = vcmask 48168
      %1052 = vst.msk [vmem:[#allocation3] sm:$0xff] %vm1051, %v1004
      %1053 = vst.msk [vmem:[#allocation3 + $0x8] sm:$0xff] %vm1051, %v1006
      %1054 = vst.msk [vmem:[#allocation3 + $0x10] sm:$0xff] %vm1051, %v1008
      %1055 = vst.msk [vmem:[#allocation3 + $0x18] sm:$0xff] %vm1051, %v1010
      %1056 = vst.msk [vmem:[#allocation3 + $0x20] sm:$0xff] %vm1051, %v1012
      %1057 = vst.msk [vmem:[#allocation3 + $0x28] sm:$0xff] %vm1051, %v1014
      %1058 = vst.msk [vmem:[#allocation3 + $0x30] sm:$0xff] %vm1051, %v1016
      %1059 = vst.msk [vmem:[#allocation3 + $0x38] sm:$0xff] %vm1051, %v1018
      %1060 = vst.msk [vmem:[#allocation3 + $0x40] sm:$0xff] %vm1051, %v1020
      %1061 = vst.msk [vmem:[#allocation3 + $0x48] sm:$0xff] %vm1051, %v1022
      %1062 = vst.msk [vmem:[#allocation3 + $0x50] sm:$0xff] %vm1051, %v1024
      %1063 = vst.msk [vmem:[#allocation3 + $0x58] sm:$0xff] %vm1051, %v1026
      %1064 = vst.msk [vmem:[#allocation3 + $0x60] sm:$0xff] %vm1051, %v1028
      %1065 = vst.msk [vmem:[#allocation3 + $0x68] sm:$0xff] %vm1051, %v1030
      %1066 = vst.msk [vmem:[#allocation3 + $0x70] sm:$0xff] %vm1051, %v1032
      %1067 = vst.msk [vmem:[#allocation3 + $0x78] sm:$0xff] %vm1051, %v1034
      %v1068 = vld [vmem:[%s938 + $0x1] sm:$0xff]
      %v1069 = vld [vmem:[%s938 + $0x9] sm:$0xff]
      %v1070 = vld [vmem:[%s938 + $0x19] sm:$0xff]
      %v1071 = vld [vmem:[%s938 + $0x21] sm:$0xff]
      %v1072 = vld [vmem:[%s938 + $0x31] sm:$0xff]
      %v1073 = vld [vmem:[%s938 + $0x39] sm:$0xff]
      %v1074 = vld [vmem:[%s938 + $0x49] sm:$0xff]
      %v1075 = vld [vmem:[%s938 + $0x51] sm:$0xff]
      %v1076 = vld [vmem:[%s938 + $0x61] sm:$0xff]
      %v1077 = vld [vmem:[%s938 + $0x69] sm:$0xff]
      %v1078 = vld [vmem:[%s938 + $0x79] sm:$0xff]
      %v1079 = vld [vmem:[%s938 + $0x81] sm:$0xff]
      %v1080 = vld [vmem:[%s938 + $0x91] sm:$0xff]
      %v1081 = vld [vmem:[%s938 + $0x99] sm:$0xff]
      %v1082 = vld [vmem:[%s938 + $0xa9] sm:$0xff]
      %v1083 = vld [vmem:[%s938 + $0xb1] sm:$0xff]
      %v1084 = vld [vmem:[%s938 + $0xc1] sm:$0xff]
      %v1085 = vld [vmem:[%s938 + $0xc9] sm:$0xff]
      %v1086 = vld [vmem:[%s938 + $0xd9] sm:$0xff]
      %v1087 = vld [vmem:[%s938 + $0xe1] sm:$0xff]
      %v1088 = vld [vmem:[%s938 + $0xf1] sm:$0xff]
      %v1089 = vld [vmem:[%s938 + $0xf9] sm:$0xff]
      %v1090 = vld [vmem:[%s938 + $0x109] sm:$0xff]
      %v1091 = vld [vmem:[%s938 + $0x111] sm:$0xff]
      %v1092 = vld [vmem:[%s938 + $0x121] sm:$0xff]
      %v1093 = vld [vmem:[%s938 + $0x129] sm:$0xff]
      %v1094 = vld [vmem:[%s938 + $0x139] sm:$0xff]
      %v1095 = vld [vmem:[%s938 + $0x141] sm:$0xff]
      %v1096 = vld [vmem:[%s938 + $0x151] sm:$0xff]
      %v1097 = vld [vmem:[%s938 + $0x159] sm:$0xff]
      %v1098 = vld [vmem:[%s938 + $0x169] sm:$0xff]
      %v1099 = vld [vmem:[%s938 + $0x171] sm:$0xff]
      %v1100 = vpack.c.bf16 %v1069, %v1068
      %v1101 = vpack.c.bf16 %v1071, %v1070
      %v1102 = vpack.c.bf16 %v1073, %v1072
      %v1103 = vpack.c.bf16 %v1075, %v1074
      %v1104 = vpack.c.bf16 %v1077, %v1076
      %v1105 = vpack.c.bf16 %v1079, %v1078
      %v1106 = vpack.c.bf16 %v1081, %v1080
      %v1107 = vpack.c.bf16 %v1083, %v1082
      %v1108 = vpack.c.bf16 %v1085, %v1084
      %v1109 = vpack.c.bf16 %v1087, %v1086
      %v1110 = vpack.c.bf16 %v1089, %v1088
      %v1111 = vpack.c.bf16 %v1091, %v1090
      %v1112 = vpack.c.bf16 %v1093, %v1092
      %v1113 = vpack.c.bf16 %v1095, %v1094
      %v1114 = vpack.c.bf16 %v1097, %v1096
      %v1115 = vpack.c.bf16 %v1099, %v1098
      %1132 = vrot.lane.b32.xlu0 %v1100, 6
      %v1133 = vpop.permute.xlu0 %1132
      %1134 = vrot.lane.b32.xlu0 %v1101, 6
      %v1135 = vpop.permute.xlu0 %1134
      %1136 = vrot.lane.b32.xlu0 %v1102, 6
      %v1137 = vpop.permute.xlu0 %1136
      %1138 = vrot.lane.b32.xlu0 %v1103, 6
      %v1139 = vpop.permute.xlu0 %1138
      %1140 = vrot.lane.b32.xlu0 %v1104, 6
      %v1141 = vpop.permute.xlu0 %1140
      %1142 = vrot.lane.b32.xlu0 %v1105, 6
      %v1143 = vpop.permute.xlu0 %1142
      %1144 = vrot.lane.b32.xlu0 %v1106, 6
      %v1145 = vpop.permute.xlu0 %1144
      %1146 = vrot.lane.b32.xlu0 %v1107, 6
      %v1147 = vpop.permute.xlu0 %1146
      %1148 = vrot.lane.b32.xlu0 %v1108, 6
      %v1149 = vpop.permute.xlu0 %1148
      %1150 = vrot.lane.b32.xlu0 %v1109, 6
      %v1151 = vpop.permute.xlu0 %1150
      %1152 = vrot.lane.b32.xlu0 %v1110, 6
      %v1153 = vpop.permute.xlu0 %1152
      %1154 = vrot.lane.b32.xlu0 %v1111, 6
      %v1155 = vpop.permute.xlu0 %1154
      %1156 = vrot.lane.b32.xlu0 %v1112, 6
      %v1157 = vpop.permute.xlu0 %1156
      %1158 = vrot.lane.b32.xlu0 %v1113, 6
      %v1159 = vpop.permute.xlu0 %1158
      %1160 = vrot.lane.b32.xlu0 %v1114, 6
      %v1161 = vpop.permute.xlu0 %1160
      %1162 = vrot.lane.b32.xlu0 %v1115, 6
      %v1163 = vpop.permute.xlu0 %1162
      %vm1180 = vcmask 56368
      %1181 = vst.msk [vmem:[#allocation3] sm:$0xff] %vm1180, %v1133
      %1182 = vst.msk [vmem:[#allocation3 + $0x8] sm:$0xff] %vm1180, %v1135
      %1183 = vst.msk [vmem:[#allocation3 + $0x10] sm:$0xff] %vm1180, %v1137
      %1184 = vst.msk [vmem:[#allocation3 + $0x18] sm:$0xff] %vm1180, %v1139
      %1185 = vst.msk [vmem:[#allocation3 + $0x20] sm:$0xff] %vm1180, %v1141
      %1186 = vst.msk [vmem:[#allocation3 + $0x28] sm:$0xff] %vm1180, %v1143
      %1187 = vst.msk [vmem:[#allocation3 + $0x30] sm:$0xff] %vm1180, %v1145
      %1188 = vst.msk [vmem:[#allocation3 + $0x38] sm:$0xff] %vm1180, %v1147
      %1189 = vst.msk [vmem:[#allocation3 + $0x40] sm:$0xff] %vm1180, %v1149
      %1190 = vst.msk [vmem:[#allocation3 + $0x48] sm:$0xff] %vm1180, %v1151
      %1191 = vst.msk [vmem:[#allocation3 + $0x50] sm:$0xff] %vm1180, %v1153
      %1192 = vst.msk [vmem:[#allocation3 + $0x58] sm:$0xff] %vm1180, %v1155
      %1193 = vst.msk [vmem:[#allocation3 + $0x60] sm:$0xff] %vm1180, %v1157
      %1194 = vst.msk [vmem:[#allocation3 + $0x68] sm:$0xff] %vm1180, %v1159
      %1195 = vst.msk [vmem:[#allocation3 + $0x70] sm:$0xff] %vm1180, %v1161
      %1196 = vst.msk [vmem:[#allocation3 + $0x78] sm:$0xff] %vm1180, %v1163
      %v1197 = vld [vmem:[%s938 + $0x2] sm:$0xff]
      %v1198 = vld [vmem:[%s938 + $0xa] sm:$0xff]
      %v1199 = vld [vmem:[%s938 + $0x1a] sm:$0xff]
      %v1200 = vld [vmem:[%s938 + $0x22] sm:$0xff]
      %v1201 = vld [vmem:[%s938 + $0x32] sm:$0xff]
      %v1202 = vld [vmem:[%s938 + $0x3a] sm:$0xff]
      %v1203 = vld [vmem:[%s938 + $0x4a] sm:$0xff]
      %v1204 = vld [vmem:[%s938 + $0x52] sm:$0xff]
      %v1205 = vld [vmem:[%s938 + $0x62] sm:$0xff]
      %v1206 = vld [vmem:[%s938 + $0x6a] sm:$0xff]
      %v1207 = vld [vmem:[%s938 + $0x7a] sm:$0xff]
      %v1208 = vld [vmem:[%s938 + $0x82] sm:$0xff]
      %v1209 = vld [vmem:[%s938 + $0x92] sm:$0xff]
      %v1210 = vld [vmem:[%s938 + $0x9a] sm:$0xff]
      %v1211 = vld [vmem:[%s938 + $0xaa] sm:$0xff]
      %v1212 = vld [vmem:[%s938 + $0xb2] sm:$0xff]
      %v1213 = vld [vmem:[%s938 + $0xc2] sm:$0xff]
      %v1214 = vld [vmem:[%s938 + $0xca] sm:$0xff]
      %v1215 = vld [vmem:[%s938 + $0xda] sm:$0xff]
      %v1216 = vld [vmem:[%s938 + $0xe2] sm:$0xff]
      %v1217 = vld [vmem:[%s938 + $0xf2] sm:$0xff]
      %v1218 = vld [vmem:[%s938 + $0xfa] sm:$0xff]
      %v1219 = vld [vmem:[%s938 + $0x10a] sm:$0xff]
      %v1220 = vld [vmem:[%s938 + $0x112] sm:$0xff]
      %v1221 = vld [vmem:[%s938 + $0x122] sm:$0xff]
      %v1222 = vld [vmem:[%s938 + $0x12a] sm:$0xff]
      %v1223 = vld [vmem:[%s938 + $0x13a] sm:$0xff]
      %v1224 = vld [vmem:[%s938 + $0x142] sm:$0xff]
      %v1225 = vld [vmem:[%s938 + $0x152] sm:$0xff]
      %v1226 = vld [vmem:[%s938 + $0x15a] sm:$0xff]
      %v1227 = vld [vmem:[%s938 + $0x16a] sm:$0xff]
      %v1228 = vld [vmem:[%s938 + $0x172] sm:$0xff]
      %v1229 = vpack.c.bf16 %v1198, %v1197
      %v1230 = vpack.c.bf16 %v1200, %v1199
      %v1231 = vpack.c.bf16 %v1202, %v1201
      %v1232 = vpack.c.bf16 %v1204, %v1203
      %v1233 = vpack.c.bf16 %v1206, %v1205
      %v1234 = vpack.c.bf16 %v1208, %v1207
      %v1235 = vpack.c.bf16 %v1210, %v1209
      %v1236 = vpack.c.bf16 %v1212, %v1211
      %v1237 = vpack.c.bf16 %v1214, %v1213
      %v1238 = vpack.c.bf16 %v1216, %v1215
      %v1239 = vpack.c.bf16 %v1218, %v1217
      %v1240 = vpack.c.bf16 %v1220, %v1219
      %v1241 = vpack.c.bf16 %v1222, %v1221
      %v1242 = vpack.c.bf16 %v1224, %v1223
      %v1243 = vpack.c.bf16 %v1226, %v1225
      %v1244 = vpack.c.bf16 %v1228, %v1227
      %1261 = vrot.lane.b32.xlu0 %v1229, 7
      %v1262 = vpop.permute.xlu0 %1261
      %1263 = vrot.lane.b32.xlu0 %v1230, 7
      %v1264 = vpop.permute.xlu0 %1263
      %1265 = vrot.lane.b32.xlu0 %v1231, 7
      %v1266 = vpop.permute.xlu0 %1265
      %1267 = vrot.lane.b32.xlu0 %v1232, 7
      %v1268 = vpop.permute.xlu0 %1267
      %1269 = vrot.lane.b32.xlu0 %v1233, 7
      %v1270 = vpop.permute.xlu0 %1269
      %1271 = vrot.lane.b32.xlu0 %v1234, 7
      %v1272 = vpop.permute.xlu0 %1271
      %1273 = vrot.lane.b32.xlu0 %v1235, 7
      %v1274 = vpop.permute.xlu0 %1273
      %1275 = vrot.lane.b32.xlu0 %v1236, 7
      %v1276 = vpop.permute.xlu0 %1275
      %1277 = vrot.lane.b32.xlu0 %v1237, 7
      %v1278 = vpop.permute.xlu0 %1277
      %1279 = vrot.lane.b32.xlu0 %v1238, 7
      %v1280 = vpop.permute.xlu0 %1279
      %1281 = vrot.lane.b32.xlu0 %v1239, 7
      %v1282 = vpop.permute.xlu0 %1281
      %1283 = vrot.lane.b32.xlu0 %v1240, 7
      %v1284 = vpop.permute.xlu0 %1283
      %1285 = vrot.lane.b32.xlu0 %v1241, 7
      %v1286 = vpop.permute.xlu0 %1285
      %1287 = vrot.lane.b32.xlu0 %v1242, 7
      %v1288 = vpop.permute.xlu0 %1287
      %1289 = vrot.lane.b32.xlu0 %v1243, 7
      %v1290 = vpop.permute.xlu0 %1289
      %1291 = vrot.lane.b32.xlu0 %v1244, 7
      %v1292 = vpop.permute.xlu0 %1291
      %vm1309 = vcmask 64568
      %1310 = vst.msk [vmem:[#allocation3] sm:$0xff] %vm1309, %v1262
      %1311 = vst.msk [vmem:[#allocation3 + $0x8] sm:$0xff] %vm1309, %v1264
      %1312 = vst.msk [vmem:[#allocation3 + $0x10] sm:$0xff] %vm1309, %v1266
      %1313 = vst.msk [vmem:[#allocation3 + $0x18] sm:$0xff] %vm1309, %v1268
      %1314 = vst.msk [vmem:[#allocation3 + $0x20] sm:$0xff] %vm1309, %v1270
      %1315 = vst.msk [vmem:[#allocation3 + $0x28] sm:$0xff] %vm1309, %v1272
      %1316 = vst.msk [vmem:[#allocation3 + $0x30] sm:$0xff] %vm1309, %v1274
      %1317 = vst.msk [vmem:[#allocation3 + $0x38] sm:$0xff] %vm1309, %v1276
      %1318 = vst.msk [vmem:[#allocation3 + $0x40] sm:$0xff] %vm1309, %v1278
      %1319 = vst.msk [vmem:[#allocation3 + $0x48] sm:$0xff] %vm1309, %v1280
      %1320 = vst.msk [vmem:[#allocation3 + $0x50] sm:$0xff] %vm1309, %v1282
      %1321 = vst.msk [vmem:[#allocation3 + $0x58] sm:$0xff] %vm1309, %v1284
      %1322 = vst.msk [vmem:[#allocation3 + $0x60] sm:$0xff] %vm1309, %v1286
      %1323 = vst.msk [vmem:[#allocation3 + $0x68] sm:$0xff] %vm1309, %v1288
      %1324 = vst.msk [vmem:[#allocation3 + $0x70] sm:$0xff] %vm1309, %v1290
      %1325 = vst.msk [vmem:[#allocation3 + $0x78] sm:$0xff] %vm1309, %v1292
      %v1326 = vld [vmem:[%s938 + $0x3] sm:$0xff]
      %v1327 = vld [vmem:[%s938 + $0xb] sm:$0xff]
      %v1328 = vld [vmem:[%s938 + $0x1b] sm:$0xff]
      %v1329 = vld [vmem:[%s938 + $0x23] sm:$0xff]
      %v1330 = vld [vmem:[%s938 + $0x33] sm:$0xff]
      %v1331 = vld [vmem:[%s938 + $0x3b] sm:$0xff]
      %v1332 = vld [vmem:[%s938 + $0x4b] sm:$0xff]
      %v1333 = vld [vmem:[%s938 + $0x53] sm:$0xff]
      %v1334 = vld [vmem:[%s938 + $0x63] sm:$0xff]
      %v1335 = vld [vmem:[%s938 + $0x6b] sm:$0xff]
      %v1336 = vld [vmem:[%s938 + $0x7b] sm:$0xff]
      %v1337 = vld [vmem:[%s938 + $0x83] sm:$0xff]
      %v1338 = vld [vmem:[%s938 + $0x93] sm:$0xff]
      %v1339 = vld [vmem:[%s938 + $0x9b] sm:$0xff]
      %v1340 = vld [vmem:[%s938 + $0xab] sm:$0xff]
      %v1341 = vld [vmem:[%s938 + $0xb3] sm:$0xff]
      %v1342 = vld [vmem:[%s938 + $0xc3] sm:$0xff]
      %v1343 = vld [vmem:[%s938 + $0xcb] sm:$0xff]
      %v1344 = vld [vmem:[%s938 + $0xdb] sm:$0xff]
      %v1345 = vld [vmem:[%s938 + $0xe3] sm:$0xff]
      %v1346 = vld [vmem:[%s938 + $0xf3] sm:$0xff]
      %v1347 = vld [vmem:[%s938 + $0xfb] sm:$0xff]
      %v1348 = vld [vmem:[%s938 + $0x10b] sm:$0xff]
      %v1349 = vld [vmem:[%s938 + $0x113] sm:$0xff]
      %v1350 = vld [vmem:[%s938 + $0x123] sm:$0xff]
      %v1351 = vld [vmem:[%s938 + $0x12b] sm:$0xff]
      %v1352 = vld [vmem:[%s938 + $0x13b] sm:$0xff]
      %v1353 = vld [vmem:[%s938 + $0x143] sm:$0xff]
      %v1354 = vld [vmem:[%s938 + $0x153] sm:$0xff]
      %v1355 = vld [vmem:[%s938 + $0x15b] sm:$0xff]
      %v1356 = vld [vmem:[%s938 + $0x16b] sm:$0xff]
      %v1357 = vld [vmem:[%s938 + $0x173] sm:$0xff]
      %v1358 = vpack.c.bf16 %v1327, %v1326
      %v1359 = vpack.c.bf16 %v1329, %v1328
      %v1360 = vpack.c.bf16 %v1331, %v1330
      %v1361 = vpack.c.bf16 %v1333, %v1332
      %v1362 = vpack.c.bf16 %v1335, %v1334
      %v1363 = vpack.c.bf16 %v1337, %v1336
      %v1364 = vpack.c.bf16 %v1339, %v1338
      %v1365 = vpack.c.bf16 %v1341, %v1340
      %v1366 = vpack.c.bf16 %v1343, %v1342
      %v1367 = vpack.c.bf16 %v1345, %v1344
      %v1368 = vpack.c.bf16 %v1347, %v1346
      %v1369 = vpack.c.bf16 %v1349, %v1348
      %v1370 = vpack.c.bf16 %v1351, %v1350
      %v1371 = vpack.c.bf16 %v1353, %v1352
      %v1372 = vpack.c.bf16 %v1355, %v1354
      %v1373 = vpack.c.bf16 %v1357, %v1356
      %1390 = vrot.lane.b32.xlu0 %v1358, 8
      %v1391 = vpop.permute.xlu0 %1390
      %1392 = vrot.lane.b32.xlu0 %v1359, 8
      %v1393 = vpop.permute.xlu0 %1392
      %1394 = vrot.lane.b32.xlu0 %v1360, 8
      %v1395 = vpop.permute.xlu0 %1394
      %1396 = vrot.lane.b32.xlu0 %v1361, 8
      %v1397 = vpop.permute.xlu0 %1396
      %1398 = vrot.lane.b32.xlu0 %v1362, 8
      %v1399 = vpop.permute.xlu0 %1398
      %1400 = vrot.lane.b32.xlu0 %v1363, 8
      %v1401 = vpop.permute.xlu0 %1400
      %1402 = vrot.lane.b32.xlu0 %v1364, 8
      %v1403 = vpop.permute.xlu0 %1402
      %1404 = vrot.lane.b32.xlu0 %v1365, 8
      %v1405 = vpop.permute.xlu0 %1404
      %1406 = vrot.lane.b32.xlu0 %v1366, 8
      %v1407 = vpop.permute.xlu0 %1406
      %1408 = vrot.lane.b32.xlu0 %v1367, 8
      %v1409 = vpop.permute.xlu0 %1408
      %1410 = vrot.lane.b32.xlu0 %v1368, 8
      %v1411 = vpop.permute.xlu0 %1410
      %1412 = vrot.lane.b32.xlu0 %v1369, 8
      %v1413 = vpop.permute.xlu0 %1412
      %1414 = vrot.lane.b32.xlu0 %v1370, 8
      %v1415 = vpop.permute.xlu0 %1414
      %1416 = vrot.lane.b32.xlu0 %v1371, 8
      %v1417 = vpop.permute.xlu0 %1416
      %1418 = vrot.lane.b32.xlu0 %v1372, 8
      %v1419 = vpop.permute.xlu0 %1418
      %1420 = vrot.lane.b32.xlu0 %v1373, 8
      %v1421 = vpop.permute.xlu0 %1420
      %vm1438 = vcmask 72768
      %1439 = vst.msk [vmem:[#allocation3] sm:$0xff] %vm1438, %v1391
      %1440 = vst.msk [vmem:[#allocation3 + $0x8] sm:$0xff] %vm1438, %v1393
      %1441 = vst.msk [vmem:[#allocation3 + $0x10] sm:$0xff] %vm1438, %v1395
      %1442 = vst.msk [vmem:[#allocation3 + $0x18] sm:$0xff] %vm1438, %v1397
      %1443 = vst.msk [vmem:[#allocation3 + $0x20] sm:$0xff] %vm1438, %v1399
      %1444 = vst.msk [vmem:[#allocation3 + $0x28] sm:$0xff] %vm1438, %v1401
      %1445 = vst.msk [vmem:[#allocation3 + $0x30] sm:$0xff] %vm1438, %v1403
      %1446 = vst.msk [vmem:[#allocation3 + $0x38] sm:$0xff] %vm1438, %v1405
      %1447 = vst.msk [vmem:[#allocation3 + $0x40] sm:$0xff] %vm1438, %v1407
      %1448 = vst.msk [vmem:[#allocation3 + $0x48] sm:$0xff] %vm1438, %v1409
      %1449 = vst.msk [vmem:[#allocation3 + $0x50] sm:$0xff] %vm1438, %v1411
      %1450 = vst.msk [vmem:[#allocation3 + $0x58] sm:$0xff] %vm1438, %v1413
      %1451 = vst.msk [vmem:[#allocation3 + $0x60] sm:$0xff] %vm1438, %v1415
      %1452 = vst.msk [vmem:[#allocation3 + $0x68] sm:$0xff] %vm1438, %v1417
      %1453 = vst.msk [vmem:[#allocation3 + $0x70] sm:$0xff] %vm1438, %v1419
      %1454 = vst.msk [vmem:[#allocation3 + $0x78] sm:$0xff] %vm1438, %v1421
      %v1455 = vld [vmem:[%s938 + $0x4] sm:$0xff]
      %v1456 = vld [vmem:[%s938 + $0xc] sm:$0xff]
      %v1457 = vld [vmem:[%s938 + $0x1c] sm:$0xff]
      %v1458 = vld [vmem:[%s938 + $0x24] sm:$0xff]
      %v1459 = vld [vmem:[%s938 + $0x34] sm:$0xff]
      %v1460 = vld [vmem:[%s938 + $0x3c] sm:$0xff]
      %v1461 = vld [vmem:[%s938 + $0x4c] sm:$0xff]
      %v1462 = vld [vmem:[%s938 + $0x54] sm:$0xff]
      %v1463 = vld [vmem:[%s938 + $0x64] sm:$0xff]
      %v1464 = vld [vmem:[%s938 + $0x6c] sm:$0xff]
      %v1465 = vld [vmem:[%s938 + $0x7c] sm:$0xff]
      %v1466 = vld [vmem:[%s938 + $0x84] sm:$0xff]
      %v1467 = vld [vmem:[%s938 + $0x94] sm:$0xff]
      %v1468 = vld [vmem:[%s938 + $0x9c] sm:$0xff]
      %v1469 = vld [vmem:[%s938 + $0xac] sm:$0xff]
      %v1470 = vld [vmem:[%s938 + $0xb4] sm:$0xff]
      %v1471 = vld [vmem:[%s938 + $0xc4] sm:$0xff]
      %v1472 = vld [vmem:[%s938 + $0xcc] sm:$0xff]
      %v1473 = vld [vmem:[%s938 + $0xdc] sm:$0xff]
      %v1474 = vld [vmem:[%s938 + $0xe4] sm:$0xff]
      %v1475 = vld [vmem:[%s938 + $0xf4] sm:$0xff]
      %v1476 = vld [vmem:[%s938 + $0xfc] sm:$0xff]
      %v1477 = vld [vmem:[%s938 + $0x10c] sm:$0xff]
      %v1478 = vld [vmem:[%s938 + $0x114] sm:$0xff]
      %v1479 = vld [vmem:[%s938 + $0x124] sm:$0xff]
      %v1480 = vld [vmem:[%s938 + $0x12c] sm:$0xff]
      %v1481 = vld [vmem:[%s938 + $0x13c] sm:$0xff]
      %v1482 = vld [vmem:[%s938 + $0x144] sm:$0xff]
      %v1483 = vld [vmem:[%s938 + $0x154] sm:$0xff]
      %v1484 = vld [vmem:[%s938 + $0x15c] sm:$0xff]
      %v1485 = vld [vmem:[%s938 + $0x16c] sm:$0xff]
      %v1486 = vld [vmem:[%s938 + $0x174] sm:$0xff]
      %v1487 = vpack.c.bf16 %v1456, %v1455
      %v1488 = vpack.c.bf16 %v1458, %v1457
      %v1489 = vpack.c.bf16 %v1460, %v1459
      %v1490 = vpack.c.bf16 %v1462, %v1461
      %v1491 = vpack.c.bf16 %v1464, %v1463
      %v1492 = vpack.c.bf16 %v1466, %v1465
      %v1493 = vpack.c.bf16 %v1468, %v1467
      %v1494 = vpack.c.bf16 %v1470, %v1469
      %v1495 = vpack.c.bf16 %v1472, %v1471
      %v1496 = vpack.c.bf16 %v1474, %v1473
      %v1497 = vpack.c.bf16 %v1476, %v1475
      %v1498 = vpack.c.bf16 %v1478, %v1477
      %v1499 = vpack.c.bf16 %v1480, %v1479
      %v1500 = vpack.c.bf16 %v1482, %v1481
      %v1501 = vpack.c.bf16 %v1484, %v1483
      %v1502 = vpack.c.bf16 %v1486, %v1485
      %1519 = vrot.lane.b32.xlu0 %v1487, 9
      %v1520 = vpop.permute.xlu0 %1519
      %1521 = vrot.lane.b32.xlu0 %v1488, 9
      %v1522 = vpop.permute.xlu0 %1521
      %1523 = vrot.lane.b32.xlu0 %v1489, 9
      %v1524 = vpop.permute.xlu0 %1523
      %1525 = vrot.lane.b32.xlu0 %v1490, 9
      %v1526 = vpop.permute.xlu0 %1525
      %1527 = vrot.lane.b32.xlu0 %v1491, 9
      %v1528 = vpop.permute.xlu0 %1527
      %1529 = vrot.lane.b32.xlu0 %v1492, 9
      %v1530 = vpop.permute.xlu0 %1529
      %1531 = vrot.lane.b32.xlu0 %v1493, 9
      %v1532 = vpop.permute.xlu0 %1531
      %1533 = vrot.lane.b32.xlu0 %v1494, 9
      %v1534 = vpop.permute.xlu0 %1533
      %1535 = vrot.lane.b32.xlu0 %v1495, 9
      %v1536 = vpop.permute.xlu0 %1535
      %1537 = vrot.lane.b32.xlu0 %v1496, 9
      %v1538 = vpop.permute.xlu0 %1537
      %1539 = vrot.lane.b32.xlu0 %v1497, 9
      %v1540 = vpop.permute.xlu0 %1539
      %1541 = vrot.lane.b32.xlu0 %v1498, 9
      %v1542 = vpop.permute.xlu0 %1541
      %1543 = vrot.lane.b32.xlu0 %v1499, 9
      %v1544 = vpop.permute.xlu0 %1543
      %1545 = vrot.lane.b32.xlu0 %v1500, 9
      %v1546 = vpop.permute.xlu0 %1545
      %1547 = vrot.lane.b32.xlu0 %v1501, 9
      %v1548 = vpop.permute.xlu0 %1547
      %1549 = vrot.lane.b32.xlu0 %v1502, 9
      %v1550 = vpop.permute.xlu0 %1549
      %vm1567 = vcmask 80968
      %1568 = vst.msk [vmem:[#allocation3] sm:$0xff] %vm1567, %v1520
      %1569 = vst.msk [vmem:[#allocation3 + $0x8] sm:$0xff] %vm1567, %v1522
      %1570 = vst.msk [vmem:[#allocation3 + $0x10] sm:$0xff] %vm1567, %v1524
      %1571 = vst.msk [vmem:[#allocation3 + $0x18] sm:$0xff] %vm1567, %v1526
      %1572 = vst.msk [vmem:[#allocation3 + $0x20] sm:$0xff] %vm1567, %v1528
      %1573 = vst.msk [vmem:[#allocation3 + $0x28] sm:$0xff] %vm1567, %v1530
      %1574 = vst.msk [vmem:[#allocation3 + $0x30] sm:$0xff] %vm1567, %v1532
      %1575 = vst.msk [vmem:[#allocation3 + $0x38] sm:$0xff] %vm1567, %v1534
      %1576 = vst.msk [vmem:[#allocation3 + $0x40] sm:$0xff] %vm1567, %v1536
      %1577 = vst.msk [vmem:[#allocation3 + $0x48] sm:$0xff] %vm1567, %v1538
      %1578 = vst.msk [vmem:[#allocation3 + $0x50] sm:$0xff] %vm1567, %v1540
      %1579 = vst.msk [vmem:[#allocation3 + $0x58] sm:$0xff] %vm1567, %v1542
      %1580 = vst.msk [vmem:[#allocation3 + $0x60] sm:$0xff] %vm1567, %v1544
      %1581 = vst.msk [vmem:[#allocation3 + $0x68] sm:$0xff] %vm1567, %v1546
      %1582 = vst.msk [vmem:[#allocation3 + $0x70] sm:$0xff] %vm1567, %v1548
      %1583 = vst.msk [vmem:[#allocation3 + $0x78] sm:$0xff] %vm1567, %v1550
      %v1584 = vld [vmem:[%s325] sm:$0xff]
      %v1585 = vld [vmem:[%s325 + $0x8] sm:$0xff]
      %v1586 = vld [vmem:[%s325 + $0x18] sm:$0xff]
      %v1587 = vld [vmem:[%s325 + $0x20] sm:$0xff]
      %v1588 = vld [vmem:[%s325 + $0x30] sm:$0xff]
      %v1589 = vld [vmem:[%s325 + $0x38] sm:$0xff]
      %v1590 = vld [vmem:[%s325 + $0x48] sm:$0xff]
      %v1591 = vld [vmem:[%s325 + $0x50] sm:$0xff]
      %v1592 = vld [vmem:[%s325 + $0x60] sm:$0xff]
      %v1593 = vld [vmem:[%s325 + $0x68] sm:$0xff]
      %v1594 = vld [vmem:[%s325 + $0x78] sm:$0xff]
      %v1595 = vld [vmem:[%s325 + $0x80] sm:$0xff]
      %v1596 = vld [vmem:[%s325 + $0x90] sm:$0xff]
      %v1597 = vld [vmem:[%s325 + $0x98] sm:$0xff]
      %v1598 = vld [vmem:[%s325 + $0xa8] sm:$0xff]
      %v1599 = vld [vmem:[%s325 + $0xb0] sm:$0xff]
      %v1600 = vld [vmem:[%s325 + $0xc0] sm:$0xff]
      %v1601 = vld [vmem:[%s325 + $0xc8] sm:$0xff]
      %v1602 = vld [vmem:[%s325 + $0xd8] sm:$0xff]
      %v1603 = vld [vmem:[%s325 + $0xe0] sm:$0xff]
      %v1604 = vld [vmem:[%s325 + $0xf0] sm:$0xff]
      %v1605 = vld [vmem:[%s325 + $0xf8] sm:$0xff]
      %v1606 = vld [vmem:[%s325 + $0x108] sm:$0xff]
      %v1607 = vld [vmem:[%s325 + $0x110] sm:$0xff]
      %v1608 = vld [vmem:[%s325 + $0x120] sm:$0xff]
      %v1609 = vld [vmem:[%s325 + $0x128] sm:$0xff]
      %v1610 = vld [vmem:[%s325 + $0x138] sm:$0xff]
      %v1611 = vld [vmem:[%s325 + $0x140] sm:$0xff]
      %v1612 = vld [vmem:[%s325 + $0x150] sm:$0xff]
      %v1613 = vld [vmem:[%s325 + $0x158] sm:$0xff]
      %v1614 = vld [vmem:[%s325 + $0x168] sm:$0xff]
      %v1615 = vld [vmem:[%s325 + $0x170] sm:$0xff]
      %v1616 = vpack.c.bf16 %v1585, %v1584
      %v1617 = vpack.c.bf16 %v1587, %v1586
      %v1618 = vpack.c.bf16 %v1589, %v1588
      %v1619 = vpack.c.bf16 %v1591, %v1590
      %v1620 = vpack.c.bf16 %v1593, %v1592
      %v1621 = vpack.c.bf16 %v1595, %v1594
      %v1622 = vpack.c.bf16 %v1597, %v1596
      %v1623 = vpack.c.bf16 %v1599, %v1598
      %v1624 = vpack.c.bf16 %v1601, %v1600
      %v1625 = vpack.c.bf16 %v1603, %v1602
      %v1626 = vpack.c.bf16 %v1605, %v1604
      %v1627 = vpack.c.bf16 %v1607, %v1606
      %v1628 = vpack.c.bf16 %v1609, %v1608
      %v1629 = vpack.c.bf16 %v1611, %v1610
      %v1630 = vpack.c.bf16 %v1613, %v1612
      %v1631 = vpack.c.bf16 %v1615, %v1614
      %1648 = vrot.lane.b32.xlu0 %v1616, 10
      %v1649 = vpop.permute.xlu0 %1648
      %1650 = vrot.lane.b32.xlu0 %v1617, 10
      %v1651 = vpop.permute.xlu0 %1650
      %1652 = vrot.lane.b32.xlu0 %v1618, 10
      %v1653 = vpop.permute.xlu0 %1652
      %1654 = vrot.lane.b32.xlu0 %v1619, 10
      %v1655 = vpop.permute.xlu0 %1654
      %1656 = vrot.lane.b32.xlu0 %v1620, 10
      %v1657 = vpop.permute.xlu0 %1656
      %1658 = vrot.lane.b32.xlu0 %v1621, 10
      %v1659 = vpop.permute.xlu0 %1658
      %1660 = vrot.lane.b32.xlu0 %v1622, 10
      %v1661 = vpop.permute.xlu0 %1660
      %1662 = vrot.lane.b32.xlu0 %v1623, 10
      %v1663 = vpop.permute.xlu0 %1662
      %1664 = vrot.lane.b32.xlu0 %v1624, 10
      %v1665 = vpop.permute.xlu0 %1664
      %1666 = vrot.lane.b32.xlu0 %v1625, 10
      %v1667 = vpop.permute.xlu0 %1666
      %1668 = vrot.lane.b32.xlu0 %v1626, 10
      %v1669 = vpop.permute.xlu0 %1668
      %1670 = vrot.lane.b32.xlu0 %v1627, 10
      %v1671 = vpop.permute.xlu0 %1670
      %1672 = vrot.lane.b32.xlu0 %v1628, 10
      %v1673 = vpop.permute.xlu0 %1672
      %1674 = vrot.lane.b32.xlu0 %v1629, 10
      %v1675 = vpop.permute.xlu0 %1674
      %1676 = vrot.lane.b32.xlu0 %v1630, 10
      %v1677 = vpop.permute.xlu0 %1676
      %1678 = vrot.lane.b32.xlu0 %v1631, 10
      %v1679 = vpop.permute.xlu0 %1678
      %vm1696 = vcmask 89168
      %1697 = vst.msk [vmem:[#allocation3] sm:$0xff] %vm1696, %v1649
      %1698 = vst.msk [vmem:[#allocation3 + $0x8] sm:$0xff] %vm1696, %v1651
      %1699 = vst.msk [vmem:[#allocation3 + $0x10] sm:$0xff] %vm1696, %v1653
      %1700 = vst.msk [vmem:[#allocation3 + $0x18] sm:$0xff] %vm1696, %v1655
      %1701 = vst.msk [vmem:[#allocation3 + $0x20] sm:$0xff] %vm1696, %v1657
      %1702 = vst.msk [vmem:[#allocation3 + $0x28] sm:$0xff] %vm1696, %v1659
      %1703 = vst.msk [vmem:[#allocation3 + $0x30] sm:$0xff] %vm1696, %v1661
      %1704 = vst.msk [vmem:[#allocation3 + $0x38] sm:$0xff] %vm1696, %v1663
      %1705 = vst.msk [vmem:[#allocation3 + $0x40] sm:$0xff] %vm1696, %v1665
      %1706 = vst.msk [vmem:[#allocation3 + $0x48] sm:$0xff] %vm1696, %v1667
      %1707 = vst.msk [vmem:[#allocation3 + $0x50] sm:$0xff] %vm1696, %v1669
      %1708 = vst.msk [vmem:[#allocation3 + $0x58] sm:$0xff] %vm1696, %v1671
      %1709 = vst.msk [vmem:[#allocation3 + $0x60] sm:$0xff] %vm1696, %v1673
      %1710 = vst.msk [vmem:[#allocation3 + $0x68] sm:$0xff] %vm1696, %v1675
      %1711 = vst.msk [vmem:[#allocation3 + $0x70] sm:$0xff] %vm1696, %v1677
      %1712 = vst.msk [vmem:[#allocation3 + $0x78] sm:$0xff] %vm1696, %v1679
      %v1713 = vld [vmem:[%s325 + $0x1] sm:$0xff]
      %v1714 = vld [vmem:[%s325 + $0x9] sm:$0xff]
      %v1715 = vld [vmem:[%s325 + $0x19] sm:$0xff]
      %v1716 = vld [vmem:[%s325 + $0x21] sm:$0xff]
      %v1717 = vld [vmem:[%s325 + $0x31] sm:$0xff]
      %v1718 = vld [vmem:[%s325 + $0x39] sm:$0xff]
      %v1719 = vld [vmem:[%s325 + $0x49] sm:$0xff]
      %v1720 = vld [vmem:[%s325 + $0x51] sm:$0xff]
      %v1721 = vld [vmem:[%s325 + $0x61] sm:$0xff]
      %v1722 = vld [vmem:[%s325 + $0x69] sm:$0xff]
      %v1723 = vld [vmem:[%s325 + $0x79] sm:$0xff]
      %v1724 = vld [vmem:[%s325 + $0x81] sm:$0xff]
      %v1725 = vld [vmem:[%s325 + $0x91] sm:$0xff]
      %v1726 = vld [vmem:[%s325 + $0x99] sm:$0xff]
      %v1727 = vld [vmem:[%s325 + $0xa9] sm:$0xff]
      %v1728 = vld [vmem:[%s325 + $0xb1] sm:$0xff]
      %v1729 = vld [vmem:[%s325 + $0xc1] sm:$0xff]
      %v1730 = vld [vmem:[%s325 + $0xc9] sm:$0xff]
      %v1731 = vld [vmem:[%s325 + $0xd9] sm:$0xff]
      %v1732 = vld [vmem:[%s325 + $0xe1] sm:$0xff]
      %v1733 = vld [vmem:[%s325 + $0xf1] sm:$0xff]
      %v1734 = vld [vmem:[%s325 + $0xf9] sm:$0xff]
      %v1735 = vld [vmem:[%s325 + $0x109] sm:$0xff]
      %v1736 = vld [vmem:[%s325 + $0x111] sm:$0xff]
      %v1737 = vld [vmem:[%s325 + $0x121] sm:$0xff]
      %v1738 = vld [vmem:[%s325 + $0x129] sm:$0xff]
      %v1739 = vld [vmem:[%s325 + $0x139] sm:$0xff]
      %v1740 = vld [vmem:[%s325 + $0x141] sm:$0xff]
      %v1741 = vld [vmem:[%s325 + $0x151] sm:$0xff]
      %v1742 = vld [vmem:[%s325 + $0x159] sm:$0xff]
      %v1743 = vld [vmem:[%s325 + $0x169] sm:$0xff]
      %v1744 = vld [vmem:[%s325 + $0x171] sm:$0xff]
      %v1745 = vpack.c.bf16 %v1714, %v1713
      %v1746 = vpack.c.bf16 %v1716, %v1715
      %v1747 = vpack.c.bf16 %v1718, %v1717
      %v1748 = vpack.c.bf16 %v1720, %v1719
      %v1749 = vpack.c.bf16 %v1722, %v1721
      %v1750 = vpack.c.bf16 %v1724, %v1723
      %v1751 = vpack.c.bf16 %v1726, %v1725
      %v1752 = vpack.c.bf16 %v1728, %v1727
      %v1753 = vpack.c.bf16 %v1730, %v1729
      %v1754 = vpack.c.bf16 %v1732, %v1731
      %v1755 = vpack.c.bf16 %v1734, %v1733
      %v1756 = vpack.c.bf16 %v1736, %v1735
      %v1757 = vpack.c.bf16 %v1738, %v1737
      %v1758 = vpack.c.bf16 %v1740, %v1739
      %v1759 = vpack.c.bf16 %v1742, %v1741
      %v1760 = vpack.c.bf16 %v1744, %v1743
      %1777 = vrot.lane.b32.xlu0 %v1745, 11
      %v1778 = vpop.permute.xlu0 %1777
      %1779 = vrot.lane.b32.xlu0 %v1746, 11
      %v1780 = vpop.permute.xlu0 %1779
      %1781 = vrot.lane.b32.xlu0 %v1747, 11
      %v1782 = vpop.permute.xlu0 %1781
      %1783 = vrot.lane.b32.xlu0 %v1748, 11
      %v1784 = vpop.permute.xlu0 %1783
      %1785 = vrot.lane.b32.xlu0 %v1749, 11
      %v1786 = vpop.permute.xlu0 %1785
      %1787 = vrot.lane.b32.xlu0 %v1750, 11
      %v1788 = vpop.permute.xlu0 %1787
      %1789 = vrot.lane.b32.xlu0 %v1751, 11
      %v1790 = vpop.permute.xlu0 %1789
      %1791 = vrot.lane.b32.xlu0 %v1752, 11
      %v1792 = vpop.permute.xlu0 %1791
      %1793 = vrot.lane.b32.xlu0 %v1753, 11
      %v1794 = vpop.permute.xlu0 %1793
      %1795 = vrot.lane.b32.xlu0 %v1754, 11
      %v1796 = vpop.permute.xlu0 %1795
      %1797 = vrot.lane.b32.xlu0 %v1755, 11
      %v1798 = vpop.permute.xlu0 %1797
      %1799 = vrot.lane.b32.xlu0 %v1756, 11
      %v1800 = vpop.permute.xlu0 %1799
      %1801 = vrot.lane.b32.xlu0 %v1757, 11
      %v1802 = vpop.permute.xlu0 %1801
      %1803 = vrot.lane.b32.xlu0 %v1758, 11
      %v1804 = vpop.permute.xlu0 %1803
      %1805 = vrot.lane.b32.xlu0 %v1759, 11
      %v1806 = vpop.permute.xlu0 %1805
      %1807 = vrot.lane.b32.xlu0 %v1760, 11
      %v1808 = vpop.permute.xlu0 %1807
      %vm1825 = vcmask 97368
      %1826 = vst.msk [vmem:[#allocation3] sm:$0xff] %vm1825, %v1778
      %1827 = vst.msk [vmem:[#allocation3 + $0x8] sm:$0xff] %vm1825, %v1780
      %1828 = vst.msk [vmem:[#allocation3 + $0x10] sm:$0xff] %vm1825, %v1782
      %1829 = vst.msk [vmem:[#allocation3 + $0x18] sm:$0xff] %vm1825, %v1784
      %1830 = vst.msk [vmem:[#allocation3 + $0x20] sm:$0xff] %vm1825, %v1786
      %1831 = vst.msk [vmem:[#allocation3 + $0x28] sm:$0xff] %vm1825, %v1788
      %1832 = vst.msk [vmem:[#allocation3 + $0x30] sm:$0xff] %vm1825, %v1790
      %1833 = vst.msk [vmem:[#allocation3 + $0x38] sm:$0xff] %vm1825, %v1792
      %1834 = vst.msk [vmem:[#allocation3 + $0x40] sm:$0xff] %vm1825, %v1794
      %1835 = vst.msk [vmem:[#allocation3 + $0x48] sm:$0xff] %vm1825, %v1796
      %1836 = vst.msk [vmem:[#allocation3 + $0x50] sm:$0xff] %vm1825, %v1798
      %1837 = vst.msk [vmem:[#allocation3 + $0x58] sm:$0xff] %vm1825, %v1800
      %1838 = vst.msk [vmem:[#allocation3 + $0x60] sm:$0xff] %vm1825, %v1802
      %1839 = vst.msk [vmem:[#allocation3 + $0x68] sm:$0xff] %vm1825, %v1804
      %1840 = vst.msk [vmem:[#allocation3 + $0x70] sm:$0xff] %vm1825, %v1806
      %1841 = vst.msk [vmem:[#allocation3 + $0x78] sm:$0xff] %vm1825, %v1808
      %v1842 = vld [vmem:[%s325 + $0x2] sm:$0xff]
      %v1843 = vld [vmem:[%s325 + $0xa] sm:$0xff]
      %v1844 = vld [vmem:[%s325 + $0x1a] sm:$0xff]
      %v1845 = vld [vmem:[%s325 + $0x22] sm:$0xff]
      %v1846 = vld [vmem:[%s325 + $0x32] sm:$0xff]
      %v1847 = vld [vmem:[%s325 + $0x3a] sm:$0xff]
      %v1848 = vld [vmem:[%s325 + $0x4a] sm:$0xff]
      %v1849 = vld [vmem:[%s325 + $0x52] sm:$0xff]
      %v1850 = vld [vmem:[%s325 + $0x62] sm:$0xff]
      %v1851 = vld [vmem:[%s325 + $0x6a] sm:$0xff]
      %v1852 = vld [vmem:[%s325 + $0x7a] sm:$0xff]
      %v1853 = vld [vmem:[%s325 + $0x82] sm:$0xff]
      %v1854 = vld [vmem:[%s325 + $0x92] sm:$0xff]
      %v1855 = vld [vmem:[%s325 + $0x9a] sm:$0xff]
      %v1856 = vld [vmem:[%s325 + $0xaa] sm:$0xff]
      %v1857 = vld [vmem:[%s325 + $0xb2] sm:$0xff]
      %v1858 = vld [vmem:[%s325 + $0xc2] sm:$0xff]
      %v1859 = vld [vmem:[%s325 + $0xca] sm:$0xff]
      %v1860 = vld [vmem:[%s325 + $0xda] sm:$0xff]
      %v1861 = vld [vmem:[%s325 + $0xe2] sm:$0xff]
      %v1862 = vld [vmem:[%s325 + $0xf2] sm:$0xff]
      %v1863 = vld [vmem:[%s325 + $0xfa] sm:$0xff]
      %v1864 = vld [vmem:[%s325 + $0x10a] sm:$0xff]
      %v1865 = vld [vmem:[%s325 + $0x112] sm:$0xff]
      %v1866 = vld [vmem:[%s325 + $0x122] sm:$0xff]
      %v1867 = vld [vmem:[%s325 + $0x12a] sm:$0xff]
      %v1868 = vld [vmem:[%s325 + $0x13a] sm:$0xff]
      %v1869 = vld [vmem:[%s325 + $0x142] sm:$0xff]
      %v1870 = vld [vmem:[%s325 + $0x152] sm:$0xff]
      %v1871 = vld [vmem:[%s325 + $0x15a] sm:$0xff]
      %v1872 = vld [vmem:[%s325 + $0x16a] sm:$0xff]
      %v1873 = vld [vmem:[%s325 + $0x172] sm:$0xff]
      %v1874 = vpack.c.bf16 %v1843, %v1842
      %v1875 = vpack.c.bf16 %v1845, %v1844
      %v1876 = vpack.c.bf16 %v1847, %v1846
      %v1877 = vpack.c.bf16 %v1849, %v1848
      %v1878 = vpack.c.bf16 %v1851, %v1850
      %v1879 = vpack.c.bf16 %v1853, %v1852
      %v1880 = vpack.c.bf16 %v1855, %v1854
      %v1881 = vpack.c.bf16 %v1857, %v1856
      %v1882 = vpack.c.bf16 %v1859, %v1858
      %v1883 = vpack.c.bf16 %v1861, %v1860
      %v1884 = vpack.c.bf16 %v1863, %v1862
      %v1885 = vpack.c.bf16 %v1865, %v1864
      %v1886 = vpack.c.bf16 %v1867, %v1866
      %v1887 = vpack.c.bf16 %v1869, %v1868
      %v1888 = vpack.c.bf16 %v1871, %v1870
      %v1889 = vpack.c.bf16 %v1873, %v1872
      %1906 = vrot.lane.b32.xlu0 %v1874, 12
      %v1907 = vpop.permute.xlu0 %1906
      %1908 = vrot.lane.b32.xlu0 %v1875, 12
      %v1909 = vpop.permute.xlu0 %1908
      %1910 = vrot.lane.b32.xlu0 %v1876, 12
      %v1911 = vpop.permute.xlu0 %1910
      %1912 = vrot.lane.b32.xlu0 %v1877, 12
      %v1913 = vpop.permute.xlu0 %1912
      %1914 = vrot.lane.b32.xlu0 %v1878, 12
      %v1915 = vpop.permute.xlu0 %1914
      %1916 = vrot.lane.b32.xlu0 %v1879, 12
      %v1917 = vpop.permute.xlu0 %1916
      %1918 = vrot.lane.b32.xlu0 %v1880, 12
      %v1919 = vpop.permute.xlu0 %1918
      %1920 = vrot.lane.b32.xlu0 %v1881, 12
      %v1921 = vpop.permute.xlu0 %1920
      %1922 = vrot.lane.b32.xlu0 %v1882, 12
      %v1923 = vpop.permute.xlu0 %1922
      %1924 = vrot.lane.b32.xlu0 %v1883, 12
      %v1925 = vpop.permute.xlu0 %1924
      %1926 = vrot.lane.b32.xlu0 %v1884, 12
      %v1927 = vpop.permute.xlu0 %1926
      %1928 = vrot.lane.b32.xlu0 %v1885, 12
      %v1929 = vpop.permute.xlu0 %1928
      %1930 = vrot.lane.b32.xlu0 %v1886, 12
      %v1931 = vpop.permute.xlu0 %1930
      %1932 = vrot.lane.b32.xlu0 %v1887, 12
      %v1933 = vpop.permute.xlu0 %1932
      %1934 = vrot.lane.b32.xlu0 %v1888, 12
      %v1935 = vpop.permute.xlu0 %1934
      %1936 = vrot.lane.b32.xlu0 %v1889, 12
      %v1937 = vpop.permute.xlu0 %1936
      %vm1954 = vcmask 105568
      %1955 = vst.msk [vmem:[#allocation3] sm:$0xff] %vm1954, %v1907
      %1956 = vst.msk [vmem:[#allocation3 + $0x8] sm:$0xff] %vm1954, %v1909
      %1957 = vst.msk [vmem:[#allocation3 + $0x10] sm:$0xff] %vm1954, %v1911
      %1958 = vst.msk [vmem:[#allocation3 + $0x18] sm:$0xff] %vm1954, %v1913
      %1959 = vst.msk [vmem:[#allocation3 + $0x20] sm:$0xff] %vm1954, %v1915
      %1960 = vst.msk [vmem:[#allocation3 + $0x28] sm:$0xff] %vm1954, %v1917
      %1961 = vst.msk [vmem:[#allocation3 + $0x30] sm:$0xff] %vm1954, %v1919
      %1962 = vst.msk [vmem:[#allocation3 + $0x38] sm:$0xff] %vm1954, %v1921
      %1963 = vst.msk [vmem:[#allocation3 + $0x40] sm:$0xff] %vm1954, %v1923
      %1964 = vst.msk [vmem:[#allocation3 + $0x48] sm:$0xff] %vm1954, %v1925
      %1965 = vst.msk [vmem:[#allocation3 + $0x50] sm:$0xff] %vm1954, %v1927
      %1966 = vst.msk [vmem:[#allocation3 + $0x58] sm:$0xff] %vm1954, %v1929
      %1967 = vst.msk [vmem:[#allocation3 + $0x60] sm:$0xff] %vm1954, %v1931
      %1968 = vst.msk [vmem:[#allocation3 + $0x68] sm:$0xff] %vm1954, %v1933
      %1969 = vst.msk [vmem:[#allocation3 + $0x70] sm:$0xff] %vm1954, %v1935
      %1970 = vst.msk [vmem:[#allocation3 + $0x78] sm:$0xff] %vm1954, %v1937
      %v1971 = vld [vmem:[%s325 + $0x3] sm:$0xff]
      %v1972 = vld [vmem:[%s325 + $0xb] sm:$0xff]
      %v1973 = vld [vmem:[%s325 + $0x1b] sm:$0xff]
      %v1974 = vld [vmem:[%s325 + $0x23] sm:$0xff]
      %v1975 = vld [vmem:[%s325 + $0x33] sm:$0xff]
      %v1976 = vld [vmem:[%s325 + $0x3b] sm:$0xff]
      %v1977 = vld [vmem:[%s325 + $0x4b] sm:$0xff]
      %v1978 = vld [vmem:[%s325 + $0x53] sm:$0xff]
      %v1979 = vld [vmem:[%s325 + $0x63] sm:$0xff]
      %v1980 = vld [vmem:[%s325 + $0x6b] sm:$0xff]
      %v1981 = vld [vmem:[%s325 + $0x7b] sm:$0xff]
      %v1982 = vld [vmem:[%s325 + $0x83] sm:$0xff]
      %v1983 = vld [vmem:[%s325 + $0x93] sm:$0xff]
      %v1984 = vld [vmem:[%s325 + $0x9b] sm:$0xff]
      %v1985 = vld [vmem:[%s325 + $0xab] sm:$0xff]
      %v1986 = vld [vmem:[%s325 + $0xb3] sm:$0xff]
      %v1987 = vld [vmem:[%s325 + $0xc3] sm:$0xff]
      %v1988 = vld [vmem:[%s325 + $0xcb] sm:$0xff]
      %v1989 = vld [vmem:[%s325 + $0xdb] sm:$0xff]
      %v1990 = vld [vmem:[%s325 + $0xe3] sm:$0xff]
      %v1991 = vld [vmem:[%s325 + $0xf3] sm:$0xff]
      %v1992 = vld [vmem:[%s325 + $0xfb] sm:$0xff]
      %v1993 = vld [vmem:[%s325 + $0x10b] sm:$0xff]
      %v1994 = vld [vmem:[%s325 + $0x113] sm:$0xff]
      %v1995 = vld [vmem:[%s325 + $0x123] sm:$0xff]
      %v1996 = vld [vmem:[%s325 + $0x12b] sm:$0xff]
      %v1997 = vld [vmem:[%s325 + $0x13b] sm:$0xff]
      %v1998 = vld [vmem:[%s325 + $0x143] sm:$0xff]
      %v1999 = vld [vmem:[%s325 + $0x153] sm:$0xff]
      %v2000 = vld [vmem:[%s325 + $0x15b] sm:$0xff]
      %v2001 = vld [vmem:[%s325 + $0x16b] sm:$0xff]
      %v2002 = vld [vmem:[%s325 + $0x173] sm:$0xff]
      %v2003 = vpack.c.bf16 %v1972, %v1971
      %v2004 = vpack.c.bf16 %v1974, %v1973
      %v2005 = vpack.c.bf16 %v1976, %v1975
      %v2006 = vpack.c.bf16 %v1978, %v1977
      %v2007 = vpack.c.bf16 %v1980, %v1979
      %v2008 = vpack.c.bf16 %v1982, %v1981
      %v2009 = vpack.c.bf16 %v1984, %v1983
      %v2010 = vpack.c.bf16 %v1986, %v1985
      %v2011 = vpack.c.bf16 %v1988, %v1987
      %v2012 = vpack.c.bf16 %v1990, %v1989
      %v2013 = vpack.c.bf16 %v1992, %v1991
      %v2014 = vpack.c.bf16 %v1994, %v1993
      %v2015 = vpack.c.bf16 %v1996, %v1995
      %v2016 = vpack.c.bf16 %v1998, %v1997
      %v2017 = vpack.c.bf16 %v2000, %v1999
      %v2018 = vpack.c.bf16 %v2002, %v2001
      %2035 = vrot.lane.b32.xlu0 %v2003, 13
      %v2036 = vpop.permute.xlu0 %2035
      %2037 = vrot.lane.b32.xlu0 %v2004, 13
      %v2038 = vpop.permute.xlu0 %2037
      %2039 = vrot.lane.b32.xlu0 %v2005, 13
      %v2040 = vpop.permute.xlu0 %2039
      %2041 = vrot.lane.b32.xlu0 %v2006, 13
      %v2042 = vpop.permute.xlu0 %2041
      %2043 = vrot.lane.b32.xlu0 %v2007, 13
      %v2044 = vpop.permute.xlu0 %2043
      %2045 = vrot.lane.b32.xlu0 %v2008, 13
      %v2046 = vpop.permute.xlu0 %2045
      %2047 = vrot.lane.b32.xlu0 %v2009, 13
      %v2048 = vpop.permute.xlu0 %2047
      %2049 = vrot.lane.b32.xlu0 %v2010, 13
      %v2050 = vpop.permute.xlu0 %2049
      %2051 = vrot.lane.b32.xlu0 %v2011, 13
      %v2052 = vpop.permute.xlu0 %2051
      %2053 = vrot.lane.b32.xlu0 %v2012, 13
      %v2054 = vpop.permute.xlu0 %2053
      %2055 = vrot.lane.b32.xlu0 %v2013, 13
      %v2056 = vpop.permute.xlu0 %2055
      %2057 = vrot.lane.b32.xlu0 %v2014, 13
      %v2058 = vpop.permute.xlu0 %2057
      %2059 = vrot.lane.b32.xlu0 %v2015, 13
      %v2060 = vpop.permute.xlu0 %2059
      %2061 = vrot.lane.b32.xlu0 %v2016, 13
      %v2062 = vpop.permute.xlu0 %2061
      %2063 = vrot.lane.b32.xlu0 %v2017, 13
      %v2064 = vpop.permute.xlu0 %2063
      %2065 = vrot.lane.b32.xlu0 %v2018, 13
      %v2066 = vpop.permute.xlu0 %2065
      %vm2083 = vcmask 113768
      %2084 = vst.msk [vmem:[#allocation3] sm:$0xff] %vm2083, %v2036
      %2085 = vst.msk [vmem:[#allocation3 + $0x8] sm:$0xff] %vm2083, %v2038
      %2086 = vst.msk [vmem:[#allocation3 + $0x10] sm:$0xff] %vm2083, %v2040
      %2087 = vst.msk [vmem:[#allocation3 + $0x18] sm:$0xff] %vm2083, %v2042
      %2088 = vst.msk [vmem:[#allocation3 + $0x20] sm:$0xff] %vm2083, %v2044
      %2089 = vst.msk [vmem:[#allocation3 + $0x28] sm:$0xff] %vm2083, %v2046
      %2090 = vst.msk [vmem:[#allocation3 + $0x30] sm:$0xff] %vm2083, %v2048
      %2091 = vst.msk [vmem:[#allocation3 + $0x38] sm:$0xff] %vm2083, %v2050
      %2092 = vst.msk [vmem:[#allocation3 + $0x40] sm:$0xff] %vm2083, %v2052
      %2093 = vst.msk [vmem:[#allocation3 + $0x48] sm:$0xff] %vm2083, %v2054
      %2094 = vst.msk [vmem:[#allocation3 + $0x50] sm:$0xff] %vm2083, %v2056
      %2095 = vst.msk [vmem:[#allocation3 + $0x58] sm:$0xff] %vm2083, %v2058
      %2096 = vst.msk [vmem:[#allocation3 + $0x60] sm:$0xff] %vm2083, %v2060
      %2097 = vst.msk [vmem:[#allocation3 + $0x68] sm:$0xff] %vm2083, %v2062
      %2098 = vst.msk [vmem:[#allocation3 + $0x70] sm:$0xff] %vm2083, %v2064
      %2099 = vst.msk [vmem:[#allocation3 + $0x78] sm:$0xff] %vm2083, %v2066
      %v2100 = vld [vmem:[%s325 + $0x4] sm:$0xff]
      %v2101 = vld [vmem:[%s325 + $0xc] sm:$0xff]
      %v2102 = vld [vmem:[%s325 + $0x1c] sm:$0xff]
      %v2103 = vld [vmem:[%s325 + $0x24] sm:$0xff]
      %v2104 = vld [vmem:[%s325 + $0x34] sm:$0xff]
      %v2105 = vld [vmem:[%s325 + $0x3c] sm:$0xff]
      %v2106 = vld [vmem:[%s325 + $0x4c] sm:$0xff]
      %v2107 = vld [vmem:[%s325 + $0x54] sm:$0xff]
      %v2108 = vld [vmem:[%s325 + $0x64] sm:$0xff]
      %v2109 = vld [vmem:[%s325 + $0x6c] sm:$0xff]
      %v2110 = vld [vmem:[%s325 + $0x7c] sm:$0xff]
      %v2111 = vld [vmem:[%s325 + $0x84] sm:$0xff]
      %v2112 = vld [vmem:[%s325 + $0x94] sm:$0xff]
      %v2113 = vld [vmem:[%s325 + $0x9c] sm:$0xff]
      %v2114 = vld [vmem:[%s325 + $0xac] sm:$0xff]
      %v2115 = vld [vmem:[%s325 + $0xb4] sm:$0xff]
      %v2116 = vld [vmem:[%s325 + $0xc4] sm:$0xff]
      %v2117 = vld [vmem:[%s325 + $0xcc] sm:$0xff]
      %v2118 = vld [vmem:[%s325 + $0xdc] sm:$0xff]
      %v2119 = vld [vmem:[%s325 + $0xe4] sm:$0xff]
      %v2120 = vld [vmem:[%s325 + $0xf4] sm:$0xff]
      %v2121 = vld [vmem:[%s325 + $0xfc] sm:$0xff]
      %v2122 = vld [vmem:[%s325 + $0x10c] sm:$0xff]
      %v2123 = vld [vmem:[%s325 + $0x114] sm:$0xff]
      %v2124 = vld [vmem:[%s325 + $0x124] sm:$0xff]
      %v2125 = vld [vmem:[%s325 + $0x12c] sm:$0xff]
      %v2126 = vld [vmem:[%s325 + $0x13c] sm:$0xff]
      %v2127 = vld [vmem:[%s325 + $0x144] sm:$0xff]
      %v2128 = vld [vmem:[%s325 + $0x154] sm:$0xff]
      %v2129 = vld [vmem:[%s325 + $0x15c] sm:$0xff]
      %v2130 = vld [vmem:[%s325 + $0x16c] sm:$0xff]
      %v2131 = vld [vmem:[%s325 + $0x174] sm:$0xff]
      %v2132 = vpack.c.bf16 %v2101, %v2100
      %v2133 = vpack.c.bf16 %v2103, %v2102
      %v2134 = vpack.c.bf16 %v2105, %v2104
      %v2135 = vpack.c.bf16 %v2107, %v2106
      %v2136 = vpack.c.bf16 %v2109, %v2108
      %v2137 = vpack.c.bf16 %v2111, %v2110
      %v2138 = vpack.c.bf16 %v2113, %v2112
      %v2139 = vpack.c.bf16 %v2115, %v2114
      %v2140 = vpack.c.bf16 %v2117, %v2116
      %v2141 = vpack.c.bf16 %v2119, %v2118
      %v2142 = vpack.c.bf16 %v2121, %v2120
      %v2143 = vpack.c.bf16 %v2123, %v2122
      %v2144 = vpack.c.bf16 %v2125, %v2124
      %v2145 = vpack.c.bf16 %v2127, %v2126
      %v2146 = vpack.c.bf16 %v2129, %v2128
      %v2147 = vpack.c.bf16 %v2131, %v2130
      %2164 = vrot.lane.b32.xlu0 %v2132, 14
      %v2165 = vpop.permute.xlu0 %2164
      %2166 = vrot.lane.b32.xlu0 %v2133, 14
      %v2167 = vpop.permute.xlu0 %2166
      %2168 = vrot.lane.b32.xlu0 %v2134, 14
      %v2169 = vpop.permute.xlu0 %2168
      %2170 = vrot.lane.b32.xlu0 %v2135, 14
      %v2171 = vpop.permute.xlu0 %2170
      %2172 = vrot.lane.b32.xlu0 %v2136, 14
      %v2173 = vpop.permute.xlu0 %2172
      %2174 = vrot.lane.b32.xlu0 %v2137, 14
      %v2175 = vpop.permute.xlu0 %2174
      %2176 = vrot.lane.b32.xlu0 %v2138, 14
      %v2177 = vpop.permute.xlu0 %2176
      %2178 = vrot.lane.b32.xlu0 %v2139, 14
      %v2179 = vpop.permute.xlu0 %2178
      %2180 = vrot.lane.b32.xlu0 %v2140, 14
      %v2181 = vpop.permute.xlu0 %2180
      %2182 = vrot.lane.b32.xlu0 %v2141, 14
      %v2183 = vpop.permute.xlu0 %2182
      %2184 = vrot.lane.b32.xlu0 %v2142, 14
      %v2185 = vpop.permute.xlu0 %2184
      %2186 = vrot.lane.b32.xlu0 %v2143, 14
      %v2187 = vpop.permute.xlu0 %2186
      %2188 = vrot.lane.b32.xlu0 %v2144, 14
      %v2189 = vpop.permute.xlu0 %2188
      %2190 = vrot.lane.b32.xlu0 %v2145, 14
      %v2191 = vpop.permute.xlu0 %2190
      %2192 = vrot.lane.b32.xlu0 %v2146, 14
      %v2193 = vpop.permute.xlu0 %2192
      %2194 = vrot.lane.b32.xlu0 %v2147, 14
      %v2195 = vpop.permute.xlu0 %2194
      %vm2212 = vcmask 121968
      %2213 = vst.msk [vmem:[#allocation3] sm:$0xff] %vm2212, %v2165
      %2214 = vst.msk [vmem:[#allocation3 + $0x8] sm:$0xff] %vm2212, %v2167
      %2215 = vst.msk [vmem:[#allocation3 + $0x10] sm:$0xff] %vm2212, %v2169
      %2216 = vst.msk [vmem:[#allocation3 + $0x18] sm:$0xff] %vm2212, %v2171
      %2217 = vst.msk [vmem:[#allocation3 + $0x20] sm:$0xff] %vm2212, %v2173
      %2218 = vst.msk [vmem:[#allocation3 + $0x28] sm:$0xff] %vm2212, %v2175
      %2219 = vst.msk [vmem:[#allocation3 + $0x30] sm:$0xff] %vm2212, %v2177
      %2220 = vst.msk [vmem:[#allocation3 + $0x38] sm:$0xff] %vm2212, %v2179
      %2221 = vst.msk [vmem:[#allocation3 + $0x40] sm:$0xff] %vm2212, %v2181
      %2222 = vst.msk [vmem:[#allocation3 + $0x48] sm:$0xff] %vm2212, %v2183
      %2223 = vst.msk [vmem:[#allocation3 + $0x50] sm:$0xff] %vm2212, %v2185
      %2224 = vst.msk [vmem:[#allocation3 + $0x58] sm:$0xff] %vm2212, %v2187
      %2225 = vst.msk [vmem:[#allocation3 + $0x60] sm:$0xff] %vm2212, %v2189
      %2226 = vst.msk [vmem:[#allocation3 + $0x68] sm:$0xff] %vm2212, %v2191
      %2227 = vst.msk [vmem:[#allocation3 + $0x70] sm:$0xff] %vm2212, %v2193
      %2228 = vst.msk [vmem:[#allocation3 + $0x78] sm:$0xff] %vm2212, %v2195
      %s2229 = scalar_lea.vmem [#allocation2], 72
      %v2230 = vld [vmem:[%s2229] sm:$0xff]
      %v2231 = vld [vmem:[%s2229 + $0x8] sm:$0xff]
      %v2232 = vld [vmem:[%s2229 + $0x18] sm:$0xff]
      %v2233 = vld [vmem:[%s2229 + $0x20] sm:$0xff]
      %v2234 = vld [vmem:[%s2229 + $0x30] sm:$0xff]
      %v2235 = vld [vmem:[%s2229 + $0x38] sm:$0xff]
      %v2236 = vld [vmem:[%s2229 + $0x48] sm:$0xff]
      %v2237 = vld [vmem:[%s2229 + $0x50] sm:$0xff]
      %v2238 = vld [vmem:[%s2229 + $0x60] sm:$0xff]
      %v2239 = vld [vmem:[%s2229 + $0x68] sm:$0xff]
      %v2240 = vld [vmem:[%s2229 + $0x78] sm:$0xff]
      %v2241 = vld [vmem:[%s2229 + $0x80] sm:$0xff]
      %v2242 = vld [vmem:[%s2229 + $0x90] sm:$0xff]
      %v2243 = vld [vmem:[%s2229 + $0x98] sm:$0xff]
      %v2244 = vld [vmem:[%s2229 + $0xa8] sm:$0xff]
      %v2245 = vld [vmem:[%s2229 + $0xb0] sm:$0xff]
      %v2246 = vld [vmem:[%s2229 + $0xc0] sm:$0xff]
      %v2247 = vld [vmem:[%s2229 + $0xc8] sm:$0xff]
      %v2248 = vld [vmem:[%s2229 + $0xd8] sm:$0xff]
      %v2249 = vld [vmem:[%s2229 + $0xe0] sm:$0xff]
      %v2250 = vld [vmem:[%s2229 + $0xf0] sm:$0xff]
      %v2251 = vld [vmem:[%s2229 + $0xf8] sm:$0xff]
      %v2252 = vld [vmem:[%s2229 + $0x108] sm:$0xff]
      %v2253 = vld [vmem:[%s2229 + $0x110] sm:$0xff]
      %v2254 = vld [vmem:[%s2229 + $0x120] sm:$0xff]
      %v2255 = vld [vmem:[%s2229 + $0x128] sm:$0xff]
      %v2256 = vld [vmem:[%s2229 + $0x138] sm:$0xff]
      %v2257 = vld [vmem:[%s2229 + $0x140] sm:$0xff]
      %v2258 = vld [vmem:[%s2229 + $0x150] sm:$0xff]
      %v2259 = vld [vmem:[%s2229 + $0x158] sm:$0xff]
      %v2260 = vld [vmem:[%s2229 + $0x168] sm:$0xff]
      %v2261 = vld [vmem:[%s2229 + $0x170] sm:$0xff]
      %v2262 = vpack.c.bf16 %v2231, %v2230
      %v2263 = vpack.c.bf16 %v2233, %v2232
      %v2264 = vpack.c.bf16 %v2235, %v2234
      %v2265 = vpack.c.bf16 %v2237, %v2236
      %v2266 = vpack.c.bf16 %v2239, %v2238
      %v2267 = vpack.c.bf16 %v2241, %v2240
      %v2268 = vpack.c.bf16 %v2243, %v2242
      %v2269 = vpack.c.bf16 %v2245, %v2244
      %v2270 = vpack.c.bf16 %v2247, %v2246
      %v2271 = vpack.c.bf16 %v2249, %v2248
      %v2272 = vpack.c.bf16 %v2251, %v2250
      %v2273 = vpack.c.bf16 %v2253, %v2252
      %v2274 = vpack.c.bf16 %v2255, %v2254
      %v2275 = vpack.c.bf16 %v2257, %v2256
      %v2276 = vpack.c.bf16 %v2259, %v2258
      %v2277 = vpack.c.bf16 %v2261, %v2260
      %2294 = vrot.lane.b32.xlu0 %v2262, 15
      %v2295 = vpop.permute.xlu0 %2294
      %2296 = vrot.lane.b32.xlu0 %v2263, 15
      %v2297 = vpop.permute.xlu0 %2296
      %2298 = vrot.lane.b32.xlu0 %v2264, 15
      %v2299 = vpop.permute.xlu0 %2298
      %2300 = vrot.lane.b32.xlu0 %v2265, 15
      %v2301 = vpop.permute.xlu0 %2300
      %2302 = vrot.lane.b32.xlu0 %v2266, 15
      %v2303 = vpop.permute.xlu0 %2302
      %2304 = vrot.lane.b32.xlu0 %v2267, 15
      %v2305 = vpop.permute.xlu0 %2304
      %2306 = vrot.lane.b32.xlu0 %v2268, 15
      %v2307 = vpop.permute.xlu0 %2306
      %2308 = vrot.lane.b32.xlu0 %v2269, 15
      %v2309 = vpop.permute.xlu0 %2308
      %2310 = vrot.lane.b32.xlu0 %v2270, 15
      %v2311 = vpop.permute.xlu0 %2310
      %2312 = vrot.lane.b32.xlu0 %v2271, 15
      %v2313 = vpop.permute.xlu0 %2312
      %2314 = vrot.lane.b32.xlu0 %v2272, 15
      %v2315 = vpop.permute.xlu0 %2314
      %2316 = vrot.lane.b32.xlu0 %v2273, 15
      %v2317 = vpop.permute.xlu0 %2316
      %2318 = vrot.lane.b32.xlu0 %v2274, 15
      %v2319 = vpop.permute.xlu0 %2318
      %2320 = vrot.lane.b32.xlu0 %v2275, 15
      %v2321 = vpop.permute.xlu0 %2320
      %2322 = vrot.lane.b32.xlu0 %v2276, 15
      %v2323 = vpop.permute.xlu0 %2322
      %2324 = vrot.lane.b32.xlu0 %v2277, 15
      %v2325 = vpop.permute.xlu0 %2324
      %vm2342 = vcmask 130168
      %2343 = vst.msk [vmem:[#allocation3] sm:$0xff] %vm2342, %v2295
      %2344 = vst.msk [vmem:[#allocation3 + $0x8] sm:$0xff] %vm2342, %v2297
      %2345 = vst.msk [vmem:[#allocation3 + $0x10] sm:$0xff] %vm2342, %v2299
      %2346 = vst.msk [vmem:[#allocation3 + $0x18] sm:$0xff] %vm2342, %v2301
      %2347 = vst.msk [vmem:[#allocation3 + $0x20] sm:$0xff] %vm2342, %v2303
      %2348 = vst.msk [vmem:[#allocation3 + $0x28] sm:$0xff] %vm2342, %v2305
      %2349 = vst.msk [vmem:[#allocation3 + $0x30] sm:$0xff] %vm2342, %v2307
      %2350 = vst.msk [vmem:[#allocation3 + $0x38] sm:$0xff] %vm2342, %v2309
      %2351 = vst.msk [vmem:[#allocation3 + $0x40] sm:$0xff] %vm2342, %v2311
      %2352 = vst.msk [vmem:[#allocation3 + $0x48] sm:$0xff] %vm2342, %v2313
      %2353 = vst.msk [vmem:[#allocation3 + $0x50] sm:$0xff] %vm2342, %v2315
      %2354 = vst.msk [vmem:[#allocation3 + $0x58] sm:$0xff] %vm2342, %v2317
      %2355 = vst.msk [vmem:[#allocation3 + $0x60] sm:$0xff] %vm2342, %v2319
      %2356 = vst.msk [vmem:[#allocation3 + $0x68] sm:$0xff] %vm2342, %v2321
      %2357 = vst.msk [vmem:[#allocation3 + $0x70] sm:$0xff] %vm2342, %v2323
      %2358 = vst.msk [vmem:[#allocation3 + $0x78] sm:$0xff] %vm2342, %v2325
      %v2359 = vld [vmem:[%s2229 + $0x1] sm:$0xff]
      %v2360 = vld [vmem:[%s2229 + $0x9] sm:$0xff]
      %v2361 = vld [vmem:[%s2229 + $0x19] sm:$0xff]
      %v2362 = vld [vmem:[%s2229 + $0x21] sm:$0xff]
      %v2363 = vld [vmem:[%s2229 + $0x31] sm:$0xff]
      %v2364 = vld [vmem:[%s2229 + $0x39] sm:$0xff]
      %v2365 = vld [vmem:[%s2229 + $0x49] sm:$0xff]
      %v2366 = vld [vmem:[%s2229 + $0x51] sm:$0xff]
      %v2367 = vld [vmem:[%s2229 + $0x61] sm:$0xff]
      %v2368 = vld [vmem:[%s2229 + $0x69] sm:$0xff]
      %v2369 = vld [vmem:[%s2229 + $0x79] sm:$0xff]
      %v2370 = vld [vmem:[%s2229 + $0x81] sm:$0xff]
      %v2371 = vld [vmem:[%s2229 + $0x91] sm:$0xff]
      %v2372 = vld [vmem:[%s2229 + $0x99] sm:$0xff]
      %v2373 = vld [vmem:[%s2229 + $0xa9] sm:$0xff]
      %v2374 = vld [vmem:[%s2229 + $0xb1] sm:$0xff]
      %v2375 = vld [vmem:[%s2229 + $0xc1] sm:$0xff]
      %v2376 = vld [vmem:[%s2229 + $0xc9] sm:$0xff]
      %v2377 = vld [vmem:[%s2229 + $0xd9] sm:$0xff]
      %v2378 = vld [vmem:[%s2229 + $0xe1] sm:$0xff]
      %v2379 = vld [vmem:[%s2229 + $0xf1] sm:$0xff]
      %v2380 = vld [vmem:[%s2229 + $0xf9] sm:$0xff]
      %v2381 = vld [vmem:[%s2229 + $0x109] sm:$0xff]
      %v2382 = vld [vmem:[%s2229 + $0x111] sm:$0xff]
      %v2383 = vld [vmem:[%s2229 + $0x121] sm:$0xff]
      %v2384 = vld [vmem:[%s2229 + $0x129] sm:$0xff]
      %v2385 = vld [vmem:[%s2229 + $0x139] sm:$0xff]
      %v2386 = vld [vmem:[%s2229 + $0x141] sm:$0xff]
      %v2387 = vld [vmem:[%s2229 + $0x151] sm:$0xff]
      %v2388 = vld [vmem:[%s2229 + $0x159] sm:$0xff]
      %v2389 = vld [vmem:[%s2229 + $0x169] sm:$0xff]
      %v2390 = vld [vmem:[%s2229 + $0x171] sm:$0xff]
      %v2391 = vpack.c.bf16 %v2360, %v2359
      %v2392 = vpack.c.bf16 %v2362, %v2361
      %v2393 = vpack.c.bf16 %v2364, %v2363
      %v2394 = vpack.c.bf16 %v2366, %v2365
      %v2395 = vpack.c.bf16 %v2368, %v2367
      %v2396 = vpack.c.bf16 %v2370, %v2369
      %v2397 = vpack.c.bf16 %v2372, %v2371
      %v2398 = vpack.c.bf16 %v2374, %v2373
      %v2399 = vpack.c.bf16 %v2376, %v2375
      %v2400 = vpack.c.bf16 %v2378, %v2377
      %v2401 = vpack.c.bf16 %v2380, %v2379
      %v2402 = vpack.c.bf16 %v2382, %v2381
      %v2403 = vpack.c.bf16 %v2384, %v2383
      %v2404 = vpack.c.bf16 %v2386, %v2385
      %v2405 = vpack.c.bf16 %v2388, %v2387
      %v2406 = vpack.c.bf16 %v2390, %v2389
      %2423 = vrot.lane.b32.xlu0 %v2391, 16
      %v2424 = vpop.permute.xlu0 %2423
      %2425 = vrot.lane.b32.xlu0 %v2392, 16
      %v2426 = vpop.permute.xlu0 %2425
      %2427 = vrot.lane.b32.xlu0 %v2393, 16
      %v2428 = vpop.permute.xlu0 %2427
      %2429 = vrot.lane.b32.xlu0 %v2394, 16
      %v2430 = vpop.permute.xlu0 %2429
      %2431 = vrot.lane.b32.xlu0 %v2395, 16
      %v2432 = vpop.permute.xlu0 %2431
      %2433 = vrot.lane.b32.xlu0 %v2396, 16
      %v2434 = vpop.permute.xlu0 %2433
      %2435 = vrot.lane.b32.xlu0 %v2397, 16
      %v2436 = vpop.permute.xlu0 %2435
      %2437 = vrot.lane.b32.xlu0 %v2398, 16
      %v2438 = vpop.permute.xlu0 %2437
      %2439 = vrot.lane.b32.xlu0 %v2399, 16
      %v2440 = vpop.permute.xlu0 %2439
      %2441 = vrot.lane.b32.xlu0 %v2400, 16
      %v2442 = vpop.permute.xlu0 %2441
      %2443 = vrot.lane.b32.xlu0 %v2401, 16
      %v2444 = vpop.permute.xlu0 %2443
      %2445 = vrot.lane.b32.xlu0 %v2402, 16
      %v2446 = vpop.permute.xlu0 %2445
      %2447 = vrot.lane.b32.xlu0 %v2403, 16
      %v2448 = vpop.permute.xlu0 %2447
      %2449 = vrot.lane.b32.xlu0 %v2404, 16
      %v2450 = vpop.permute.xlu0 %2449
      %2451 = vrot.lane.b32.xlu0 %v2405, 16
      %v2452 = vpop.permute.xlu0 %2451
      %2453 = vrot.lane.b32.xlu0 %v2406, 16
      %v2454 = vpop.permute.xlu0 %2453
      %vm2471 = vcmask 138368
      %2472 = vst.msk [vmem:[#allocation3] sm:$0xff] %vm2471, %v2424
      %2473 = vst.msk [vmem:[#allocation3 + $0x8] sm:$0xff] %vm2471, %v2426
      %2474 = vst.msk [vmem:[#allocation3 + $0x10] sm:$0xff] %vm2471, %v2428
      %2475 = vst.msk [vmem:[#allocation3 + $0x18] sm:$0xff] %vm2471, %v2430
      %2476 = vst.msk [vmem:[#allocation3 + $0x20] sm:$0xff] %vm2471, %v2432
      %2477 = vst.msk [vmem:[#allocation3 + $0x28] sm:$0xff] %vm2471, %v2434
      %2478 = vst.msk [vmem:[#allocation3 + $0x30] sm:$0xff] %vm2471, %v2436
      %2479 = vst.msk [vmem:[#allocation3 + $0x38] sm:$0xff] %vm2471, %v2438
      %2480 = vst.msk [vmem:[#allocation3 + $0x40] sm:$0xff] %vm2471, %v2440
      %2481 = vst.msk [vmem:[#allocation3 + $0x48] sm:$0xff] %vm2471, %v2442
      %2482 = vst.msk [vmem:[#allocation3 + $0x50] sm:$0xff] %vm2471, %v2444
      %2483 = vst.msk [vmem:[#allocation3 + $0x58] sm:$0xff] %vm2471, %v2446
      %2484 = vst.msk [vmem:[#allocation3 + $0x60] sm:$0xff] %vm2471, %v2448
      %2485 = vst.msk [vmem:[#allocation3 + $0x68] sm:$0xff] %vm2471, %v2450
      %2486 = vst.msk [vmem:[#allocation3 + $0x70] sm:$0xff] %vm2471, %v2452
      %2487 = vst.msk [vmem:[#allocation3 + $0x78] sm:$0xff] %vm2471, %v2454
      %v2488 = vld [vmem:[%s2229 + $0x2] sm:$0xff]
      %v2489 = vld [vmem:[%s2229 + $0xa] sm:$0xff]
      %v2490 = vld [vmem:[%s2229 + $0x1a] sm:$0xff]
      %v2491 = vld [vmem:[%s2229 + $0x22] sm:$0xff]
      %v2492 = vld [vmem:[%s2229 + $0x32] sm:$0xff]
      %v2493 = vld [vmem:[%s2229 + $0x3a] sm:$0xff]
      %v2494 = vld [vmem:[%s2229 + $0x4a] sm:$0xff]
      %v2495 = vld [vmem:[%s2229 + $0x52] sm:$0xff]
      %v2496 = vld [vmem:[%s2229 + $0x62] sm:$0xff]
      %v2497 = vld [vmem:[%s2229 + $0x6a] sm:$0xff]
      %v2498 = vld [vmem:[%s2229 + $0x7a] sm:$0xff]
      %v2499 = vld [vmem:[%s2229 + $0x82] sm:$0xff]
      %v2500 = vld [vmem:[%s2229 + $0x92] sm:$0xff]
      %v2501 = vld [vmem:[%s2229 + $0x9a] sm:$0xff]
      %v2502 = vld [vmem:[%s2229 + $0xaa] sm:$0xff]
      %v2503 = vld [vmem:[%s2229 + $0xb2] sm:$0xff]
      %v2504 = vld [vmem:[%s2229 + $0xc2] sm:$0xff]
      %v2505 = vld [vmem:[%s2229 + $0xca] sm:$0xff]
      %v2506 = vld [vmem:[%s2229 + $0xda] sm:$0xff]
      %v2507 = vld [vmem:[%s2229 + $0xe2] sm:$0xff]
      %v2508 = vld [vmem:[%s2229 + $0xf2] sm:$0xff]
      %v2509 = vld [vmem:[%s2229 + $0xfa] sm:$0xff]
      %v2510 = vld [vmem:[%s2229 + $0x10a] sm:$0xff]
      %v2511 = vld [vmem:[%s2229 + $0x112] sm:$0xff]
      %v2512 = vld [vmem:[%s2229 + $0x122] sm:$0xff]
      %v2513 = vld [vmem:[%s2229 + $0x12a] sm:$0xff]
      %v2514 = vld [vmem:[%s2229 + $0x13a] sm:$0xff]
      %v2515 = vld [vmem:[%s2229 + $0x142] sm:$0xff]
      %v2516 = vld [vmem:[%s2229 + $0x152] sm:$0xff]
      %v2517 = vld [vmem:[%s2229 + $0x15a] sm:$0xff]
      %v2518 = vld [vmem:[%s2229 + $0x16a] sm:$0xff]
      %v2519 = vld [vmem:[%s2229 + $0x172] sm:$0xff]
      %v2520 = vpack.c.bf16 %v2489, %v2488
      %v2521 = vpack.c.bf16 %v2491, %v2490
      %v2522 = vpack.c.bf16 %v2493, %v2492
      %v2523 = vpack.c.bf16 %v2495, %v2494
      %v2524 = vpack.c.bf16 %v2497, %v2496
      %v2525 = vpack.c.bf16 %v2499, %v2498
      %v2526 = vpack.c.bf16 %v2501, %v2500
      %v2527 = vpack.c.bf16 %v2503, %v2502
      %v2528 = vpack.c.bf16 %v2505, %v2504
      %v2529 = vpack.c.bf16 %v2507, %v2506
      %v2530 = vpack.c.bf16 %v2509, %v2508
      %v2531 = vpack.c.bf16 %v2511, %v2510
      %v2532 = vpack.c.bf16 %v2513, %v2512
      %v2533 = vpack.c.bf16 %v2515, %v2514
      %v2534 = vpack.c.bf16 %v2517, %v2516
      %v2535 = vpack.c.bf16 %v2519, %v2518
      %2552 = vrot.lane.b32.xlu0 %v2520, 17
      %v2553 = vpop.permute.xlu0 %2552
      %2554 = vrot.lane.b32.xlu0 %v2521, 17
      %v2555 = vpop.permute.xlu0 %2554
      %2556 = vrot.lane.b32.xlu0 %v2522, 17
      %v2557 = vpop.permute.xlu0 %2556
      %2558 = vrot.lane.b32.xlu0 %v2523, 17
      %v2559 = vpop.permute.xlu0 %2558
      %2560 = vrot.lane.b32.xlu0 %v2524, 17
      %v2561 = vpop.permute.xlu0 %2560
      %2562 = vrot.lane.b32.xlu0 %v2525, 17
      %v2563 = vpop.permute.xlu0 %2562
      %2564 = vrot.lane.b32.xlu0 %v2526, 17
      %v2565 = vpop.permute.xlu0 %2564
      %2566 = vrot.lane.b32.xlu0 %v2527, 17
      %v2567 = vpop.permute.xlu0 %2566
      %2568 = vrot.lane.b32.xlu0 %v2528, 17
      %v2569 = vpop.permute.xlu0 %2568
      %2570 = vrot.lane.b32.xlu0 %v2529, 17
      %v2571 = vpop.permute.xlu0 %2570
      %2572 = vrot.lane.b32.xlu0 %v2530, 17
      %v2573 = vpop.permute.xlu0 %2572
      %2574 = vrot.lane.b32.xlu0 %v2531, 17
      %v2575 = vpop.permute.xlu0 %2574
      %2576 = vrot.lane.b32.xlu0 %v2532, 17
      %v2577 = vpop.permute.xlu0 %2576
      %2578 = vrot.lane.b32.xlu0 %v2533, 17
      %v2579 = vpop.permute.xlu0 %2578
      %2580 = vrot.lane.b32.xlu0 %v2534, 17
      %v2581 = vpop.permute.xlu0 %2580
      %2582 = vrot.lane.b32.xlu0 %v2535, 17
      %v2583 = vpop.permute.xlu0 %2582
      %vm2600 = vcmask 146568
      %2601 = vst.msk [vmem:[#allocation3] sm:$0xff] %vm2600, %v2553
      %2602 = vst.msk [vmem:[#allocation3 + $0x8] sm:$0xff] %vm2600, %v2555
      %2603 = vst.msk [vmem:[#allocation3 + $0x10] sm:$0xff] %vm2600, %v2557
      %2604 = vst.msk [vmem:[#allocation3 + $0x18] sm:$0xff] %vm2600, %v2559
      %2605 = vst.msk [vmem:[#allocation3 + $0x20] sm:$0xff] %vm2600, %v2561
      %2606 = vst.msk [vmem:[#allocation3 + $0x28] sm:$0xff] %vm2600, %v2563
      %2607 = vst.msk [vmem:[#allocation3 + $0x30] sm:$0xff] %vm2600, %v2565
      %2608 = vst.msk [vmem:[#allocation3 + $0x38] sm:$0xff] %vm2600, %v2567
      %2609 = vst.msk [vmem:[#allocation3 + $0x40] sm:$0xff] %vm2600, %v2569
      %2610 = vst.msk [vmem:[#allocation3 + $0x48] sm:$0xff] %vm2600, %v2571
      %2611 = vst.msk [vmem:[#allocation3 + $0x50] sm:$0xff] %vm2600, %v2573
      %2612 = vst.msk [vmem:[#allocation3 + $0x58] sm:$0xff] %vm2600, %v2575
      %2613 = vst.msk [vmem:[#allocation3 + $0x60] sm:$0xff] %vm2600, %v2577
      %2614 = vst.msk [vmem:[#allocation3 + $0x68] sm:$0xff] %vm2600, %v2579
      %2615 = vst.msk [vmem:[#allocation3 + $0x70] sm:$0xff] %vm2600, %v2581
      %2616 = vst.msk [vmem:[#allocation3 + $0x78] sm:$0xff] %vm2600, %v2583
      %v2617 = vld [vmem:[%s2229 + $0x3] sm:$0xff]
      %v2618 = vld [vmem:[%s2229 + $0xb] sm:$0xff]
      %v2619 = vld [vmem:[%s2229 + $0x1b] sm:$0xff]
      %v2620 = vld [vmem:[%s2229 + $0x23] sm:$0xff]
      %v2621 = vld [vmem:[%s2229 + $0x33] sm:$0xff]
      %v2622 = vld [vmem:[%s2229 + $0x3b] sm:$0xff]
      %v2623 = vld [vmem:[%s2229 + $0x4b] sm:$0xff]
      %v2624 = vld [vmem:[%s2229 + $0x53] sm:$0xff]
      %v2625 = vld [vmem:[%s2229 + $0x63] sm:$0xff]
      %v2626 = vld [vmem:[%s2229 + $0x6b] sm:$0xff]
      %v2627 = vld [vmem:[%s2229 + $0x7b] sm:$0xff]
      %v2628 = vld [vmem:[%s2229 + $0x83] sm:$0xff]
      %v2629 = vld [vmem:[%s2229 + $0x93] sm:$0xff]
      %v2630 = vld [vmem:[%s2229 + $0x9b] sm:$0xff]
      %v2631 = vld [vmem:[%s2229 + $0xab] sm:$0xff]
      %v2632 = vld [vmem:[%s2229 + $0xb3] sm:$0xff]
      %v2633 = vld [vmem:[%s2229 + $0xc3] sm:$0xff]
      %v2634 = vld [vmem:[%s2229 + $0xcb] sm:$0xff]
      %v2635 = vld [vmem:[%s2229 + $0xdb] sm:$0xff]
      %v2636 = vld [vmem:[%s2229 + $0xe3] sm:$0xff]
      %v2637 = vld [vmem:[%s2229 + $0xf3] sm:$0xff]
      %v2638 = vld [vmem:[%s2229 + $0xfb] sm:$0xff]
      %v2639 = vld [vmem:[%s2229 + $0x10b] sm:$0xff]
      %v2640 = vld [vmem:[%s2229 + $0x113] sm:$0xff]
      %v2641 = vld [vmem:[%s2229 + $0x123] sm:$0xff]
      %v2642 = vld [vmem:[%s2229 + $0x12b] sm:$0xff]
      %v2643 = vld [vmem:[%s2229 + $0x13b] sm:$0xff]
      %v2644 = vld [vmem:[%s2229 + $0x143] sm:$0xff]
      %v2645 = vld [vmem:[%s2229 + $0x153] sm:$0xff]
      %v2646 = vld [vmem:[%s2229 + $0x15b] sm:$0xff]
      %v2647 = vld [vmem:[%s2229 + $0x16b] sm:$0xff]
      %v2648 = vld [vmem:[%s2229 + $0x173] sm:$0xff]
      %v2649 = vpack.c.bf16 %v2618, %v2617
      %v2650 = vpack.c.bf16 %v2620, %v2619
      %v2651 = vpack.c.bf16 %v2622, %v2621
      %v2652 = vpack.c.bf16 %v2624, %v2623
      %v2653 = vpack.c.bf16 %v2626, %v2625
      %v2654 = vpack.c.bf16 %v2628, %v2627
      %v2655 = vpack.c.bf16 %v2630, %v2629
      %v2656 = vpack.c.bf16 %v2632, %v2631
      %v2657 = vpack.c.bf16 %v2634, %v2633
      %v2658 = vpack.c.bf16 %v2636, %v2635
      %v2659 = vpack.c.bf16 %v2638, %v2637
      %v2660 = vpack.c.bf16 %v2640, %v2639
      %v2661 = vpack.c.bf16 %v2642, %v2641
      %v2662 = vpack.c.bf16 %v2644, %v2643
      %v2663 = vpack.c.bf16 %v2646, %v2645
      %v2664 = vpack.c.bf16 %v2648, %v2647
      %2681 = vrot.lane.b32.xlu0 %v2649, 18
      %v2682 = vpop.permute.xlu0 %2681
      %2683 = vrot.lane.b32.xlu0 %v2650, 18
      %v2684 = vpop.permute.xlu0 %2683
      %2685 = vrot.lane.b32.xlu0 %v2651, 18
      %v2686 = vpop.permute.xlu0 %2685
      %2687 = vrot.lane.b32.xlu0 %v2652, 18
      %v2688 = vpop.permute.xlu0 %2687
      %2689 = vrot.lane.b32.xlu0 %v2653, 18
      %v2690 = vpop.permute.xlu0 %2689
      %2691 = vrot.lane.b32.xlu0 %v2654, 18
      %v2692 = vpop.permute.xlu0 %2691
      %2693 = vrot.lane.b32.xlu0 %v2655, 18
      %v2694 = vpop.permute.xlu0 %2693
      %2695 = vrot.lane.b32.xlu0 %v2656, 18
      %v2696 = vpop.permute.xlu0 %2695
      %2697 = vrot.lane.b32.xlu0 %v2657, 18
      %v2698 = vpop.permute.xlu0 %2697
      %2699 = vrot.lane.b32.xlu0 %v2658, 18
      %v2700 = vpop.permute.xlu0 %2699
      %2701 = vrot.lane.b32.xlu0 %v2659, 18
      %v2702 = vpop.permute.xlu0 %2701
      %2703 = vrot.lane.b32.xlu0 %v2660, 18
      %v2704 = vpop.permute.xlu0 %2703
      %2705 = vrot.lane.b32.xlu0 %v2661, 18
      %v2706 = vpop.permute.xlu0 %2705
      %2707 = vrot.lane.b32.xlu0 %v2662, 18
      %v2708 = vpop.permute.xlu0 %2707
      %2709 = vrot.lane.b32.xlu0 %v2663, 18
      %v2710 = vpop.permute.xlu0 %2709
      %2711 = vrot.lane.b32.xlu0 %v2664, 18
      %v2712 = vpop.permute.xlu0 %2711
      %vm2729 = vcmask 154768
      %2730 = vst.msk [vmem:[#allocation3] sm:$0xff] %vm2729, %v2682
      %2731 = vst.msk [vmem:[#allocation3 + $0x8] sm:$0xff] %vm2729, %v2684
      %2732 = vst.msk [vmem:[#allocation3 + $0x10] sm:$0xff] %vm2729, %v2686
      %2733 = vst.msk [vmem:[#allocation3 + $0x18] sm:$0xff] %vm2729, %v2688
      %2734 = vst.msk [vmem:[#allocation3 + $0x20] sm:$0xff] %vm2729, %v2690
      %2735 = vst.msk [vmem:[#allocation3 + $0x28] sm:$0xff] %vm2729, %v2692
      %2736 = vst.msk [vmem:[#allocation3 + $0x30] sm:$0xff] %vm2729, %v2694
      %2737 = vst.msk [vmem:[#allocation3 + $0x38] sm:$0xff] %vm2729, %v2696
      %2738 = vst.msk [vmem:[#allocation3 + $0x40] sm:$0xff] %vm2729, %v2698
      %2739 = vst.msk [vmem:[#allocation3 + $0x48] sm:$0xff] %vm2729, %v2700
      %2740 = vst.msk [vmem:[#allocation3 + $0x50] sm:$0xff] %vm2729, %v2702
      %2741 = vst.msk [vmem:[#allocation3 + $0x58] sm:$0xff] %vm2729, %v2704
      %2742 = vst.msk [vmem:[#allocation3 + $0x60] sm:$0xff] %vm2729, %v2706
      %2743 = vst.msk [vmem:[#allocation3 + $0x68] sm:$0xff] %vm2729, %v2708
      %2744 = vst.msk [vmem:[#allocation3 + $0x70] sm:$0xff] %vm2729, %v2710
      %2745 = vst.msk [vmem:[#allocation3 + $0x78] sm:$0xff] %vm2729, %v2712
      %v2746 = vld [vmem:[%s2229 + $0x4] sm:$0xff]
      %v2747 = vld [vmem:[%s2229 + $0xc] sm:$0xff]
      %v2748 = vld [vmem:[%s2229 + $0x1c] sm:$0xff]
      %v2749 = vld [vmem:[%s2229 + $0x24] sm:$0xff]
      %v2750 = vld [vmem:[%s2229 + $0x34] sm:$0xff]
      %v2751 = vld [vmem:[%s2229 + $0x3c] sm:$0xff]
      %v2752 = vld [vmem:[%s2229 + $0x4c] sm:$0xff]
      %v2753 = vld [vmem:[%s2229 + $0x54] sm:$0xff]
      %v2754 = vld [vmem:[%s2229 + $0x64] sm:$0xff]
      %v2755 = vld [vmem:[%s2229 + $0x6c] sm:$0xff]
      %v2756 = vld [vmem:[%s2229 + $0x7c] sm:$0xff]
      %v2757 = vld [vmem:[%s2229 + $0x84] sm:$0xff]
      %v2758 = vld [vmem:[%s2229 + $0x94] sm:$0xff]
      %v2759 = vld [vmem:[%s2229 + $0x9c] sm:$0xff]
      %v2760 = vld [vmem:[%s2229 + $0xac] sm:$0xff]
      %v2761 = vld [vmem:[%s2229 + $0xb4] sm:$0xff]
      %v2762 = vld [vmem:[%s2229 + $0xc4] sm:$0xff]
      %v2763 = vld [vmem:[%s2229 + $0xcc] sm:$0xff]
      %v2764 = vld [vmem:[%s2229 + $0xdc] sm:$0xff]
      %v2765 = vld [vmem:[%s2229 + $0xe4] sm:$0xff]
      %v2766 = vld [vmem:[%s2229 + $0xf4] sm:$0xff]
      %v2767 = vld [vmem:[%s2229 + $0xfc] sm:$0xff]
      %v2768 = vld [vmem:[%s2229 + $0x10c] sm:$0xff]
      %v2769 = vld [vmem:[%s2229 + $0x114] sm:$0xff]
      %v2770 = vld [vmem:[%s2229 + $0x124] sm:$0xff]
      %v2771 = vld [vmem:[%s2229 + $0x12c] sm:$0xff]
      %v2772 = vld [vmem:[%s2229 + $0x13c] sm:$0xff]
      %v2773 = vld [vmem:[%s2229 + $0x144] sm:$0xff]
      %v2774 = vld [vmem:[%s2229 + $0x154] sm:$0xff]
      %v2775 = vld [vmem:[%s2229 + $0x15c] sm:$0xff]
      %v2776 = vld [vmem:[%s2229 + $0x16c] sm:$0xff]
      %v2777 = vld [vmem:[%s2229 + $0x174] sm:$0xff]
      %v2778 = vpack.c.bf16 %v2747, %v2746
      %v2779 = vpack.c.bf16 %v2749, %v2748
      %v2780 = vpack.c.bf16 %v2751, %v2750
      %v2781 = vpack.c.bf16 %v2753, %v2752
      %v2782 = vpack.c.bf16 %v2755, %v2754
      %v2783 = vpack.c.bf16 %v2757, %v2756
      %v2784 = vpack.c.bf16 %v2759, %v2758
      %v2785 = vpack.c.bf16 %v2761, %v2760
      %v2786 = vpack.c.bf16 %v2763, %v2762
      %v2787 = vpack.c.bf16 %v2765, %v2764
      %v2788 = vpack.c.bf16 %v2767, %v2766
      %v2789 = vpack.c.bf16 %v2769, %v2768
      %v2790 = vpack.c.bf16 %v2771, %v2770
      %v2791 = vpack.c.bf16 %v2773, %v2772
      %v2792 = vpack.c.bf16 %v2775, %v2774
      %v2793 = vpack.c.bf16 %v2777, %v2776
      %2810 = vrot.lane.b32.xlu0 %v2778, 19
      %v2811 = vpop.permute.xlu0 %2810
      %2812 = vrot.lane.b32.xlu0 %v2779, 19
      %v2813 = vpop.permute.xlu0 %2812
      %2814 = vrot.lane.b32.xlu0 %v2780, 19
      %v2815 = vpop.permute.xlu0 %2814
      %2816 = vrot.lane.b32.xlu0 %v2781, 19
      %v2817 = vpop.permute.xlu0 %2816
      %2818 = vrot.lane.b32.xlu0 %v2782, 19
      %v2819 = vpop.permute.xlu0 %2818
      %2820 = vrot.lane.b32.xlu0 %v2783, 19
      %v2821 = vpop.permute.xlu0 %2820
      %2822 = vrot.lane.b32.xlu0 %v2784, 19
      %v2823 = vpop.permute.xlu0 %2822
      %2824 = vrot.lane.b32.xlu0 %v2785, 19
      %v2825 = vpop.permute.xlu0 %2824
      %2826 = vrot.lane.b32.xlu0 %v2786, 19
      %v2827 = vpop.permute.xlu0 %2826
      %2828 = vrot.lane.b32.xlu0 %v2787, 19
      %v2829 = vpop.permute.xlu0 %2828
      %2830 = vrot.lane.b32.xlu0 %v2788, 19
      %v2831 = vpop.permute.xlu0 %2830
      %2832 = vrot.lane.b32.xlu0 %v2789, 19
      %v2833 = vpop.permute.xlu0 %2832
      %2834 = vrot.lane.b32.xlu0 %v2790, 19
      %v2835 = vpop.permute.xlu0 %2834
      %2836 = vrot.lane.b32.xlu0 %v2791, 19
      %v2837 = vpop.permute.xlu0 %2836
      %2838 = vrot.lane.b32.xlu0 %v2792, 19
      %v2839 = vpop.permute.xlu0 %2838
      %2840 = vrot.lane.b32.xlu0 %v2793, 19
      %v2841 = vpop.permute.xlu0 %2840
      %vm2858 = vcmask 162968
      %2859 = vst.msk [vmem:[#allocation3] sm:$0xff] %vm2858, %v2811
      %2860 = vst.msk [vmem:[#allocation3 + $0x8] sm:$0xff] %vm2858, %v2813
      %2861 = vst.msk [vmem:[#allocation3 + $0x10] sm:$0xff] %vm2858, %v2815
      %2862 = vst.msk [vmem:[#allocation3 + $0x18] sm:$0xff] %vm2858, %v2817
      %2863 = vst.msk [vmem:[#allocation3 + $0x20] sm:$0xff] %vm2858, %v2819
      %2864 = vst.msk [vmem:[#allocation3 + $0x28] sm:$0xff] %vm2858, %v2821
      %2865 = vst.msk [vmem:[#allocation3 + $0x30] sm:$0xff] %vm2858, %v2823
      %2866 = vst.msk [vmem:[#allocation3 + $0x38] sm:$0xff] %vm2858, %v2825
      %2867 = vst.msk [vmem:[#allocation3 + $0x40] sm:$0xff] %vm2858, %v2827
      %2868 = vst.msk [vmem:[#allocation3 + $0x48] sm:$0xff] %vm2858, %v2829
      %2869 = vst.msk [vmem:[#allocation3 + $0x50] sm:$0xff] %vm2858, %v2831
      %2870 = vst.msk [vmem:[#allocation3 + $0x58] sm:$0xff] %vm2858, %v2833
      %2871 = vst.msk [vmem:[#allocation3 + $0x60] sm:$0xff] %vm2858, %v2835
      %2872 = vst.msk [vmem:[#allocation3 + $0x68] sm:$0xff] %vm2858, %v2837
      %2873 = vst.msk [vmem:[#allocation3 + $0x70] sm:$0xff] %vm2858, %v2839
      %2874 = vst.msk [vmem:[#allocation3 + $0x78] sm:$0xff] %vm2858, %v2841
      %s2875 = scalar_lea.vmem [#allocation2], 96
      %v2876 = vld [vmem:[%s2875] sm:$0xff]
      %v2877 = vld [vmem:[%s2875 + $0x8] sm:$0xff]
      %v2878 = vld [vmem:[%s2875 + $0x18] sm:$0xff]
      %v2879 = vld [vmem:[%s2875 + $0x20] sm:$0xff]
      %v2880 = vld [vmem:[%s2875 + $0x30] sm:$0xff]
      %v2881 = vld [vmem:[%s2875 + $0x38] sm:$0xff]
      %v2882 = vld [vmem:[%s2875 + $0x48] sm:$0xff]
      %v2883 = vld [vmem:[%s2875 + $0x50] sm:$0xff]
      %v2884 = vld [vmem:[%s2875 + $0x60] sm:$0xff]
      %v2885 = vld [vmem:[%s2875 + $0x68] sm:$0xff]
      %v2886 = vld [vmem:[%s2875 + $0x78] sm:$0xff]
      %v2887 = vld [vmem:[%s2875 + $0x80] sm:$0xff]
      %v2888 = vld [vmem:[%s2875 + $0x90] sm:$0xff]
      %v2889 = vld [vmem:[%s2875 + $0x98] sm:$0xff]
      %v2890 = vld [vmem:[%s2875 + $0xa8] sm:$0xff]
      %v2891 = vld [vmem:[%s2875 + $0xb0] sm:$0xff]
      %v2892 = vld [vmem:[%s2875 + $0xc0] sm:$0xff]
      %v2893 = vld [vmem:[%s2875 + $0xc8] sm:$0xff]
      %v2894 = vld [vmem:[%s2875 + $0xd8] sm:$0xff]
      %v2895 = vld [vmem:[%s2875 + $0xe0] sm:$0xff]
      %v2896 = vld [vmem:[%s2875 + $0xf0] sm:$0xff]
      %v2897 = vld [vmem:[%s2875 + $0xf8] sm:$0xff]
      %v2898 = vld [vmem:[%s2875 + $0x108] sm:$0xff]
      %v2899 = vld [vmem:[%s2875 + $0x110] sm:$0xff]
      %v2900 = vld [vmem:[%s2875 + $0x120] sm:$0xff]
      %v2901 = vld [vmem:[%s2875 + $0x128] sm:$0xff]
      %v2902 = vld [vmem:[%s2875 + $0x138] sm:$0xff]
      %v2903 = vld [vmem:[%s2875 + $0x140] sm:$0xff]
      %v2904 = vld [vmem:[%s2875 + $0x150] sm:$0xff]
      %v2905 = vld [vmem:[%s2875 + $0x158] sm:$0xff]
      %v2906 = vld [vmem:[%s2875 + $0x168] sm:$0xff]
      %v2907 = vld [vmem:[%s2875 + $0x170] sm:$0xff]
      %v2908 = vpack.c.bf16 %v2877, %v2876
      %v2909 = vpack.c.bf16 %v2879, %v2878
      %v2910 = vpack.c.bf16 %v2881, %v2880
      %v2911 = vpack.c.bf16 %v2883, %v2882
      %v2912 = vpack.c.bf16 %v2885, %v2884
      %v2913 = vpack.c.bf16 %v2887, %v2886
      %v2914 = vpack.c.bf16 %v2889, %v2888
      %v2915 = vpack.c.bf16 %v2891, %v2890
      %v2916 = vpack.c.bf16 %v2893, %v2892
      %v2917 = vpack.c.bf16 %v2895, %v2894
      %v2918 = vpack.c.bf16 %v2897, %v2896
      %v2919 = vpack.c.bf16 %v2899, %v2898
      %v2920 = vpack.c.bf16 %v2901, %v2900
      %v2921 = vpack.c.bf16 %v2903, %v2902
      %v2922 = vpack.c.bf16 %v2905, %v2904
      %v2923 = vpack.c.bf16 %v2907, %v2906
      %2940 = vrot.lane.b32.xlu0 %v2908, 20
      %v2941 = vpop.permute.xlu0 %2940
      %2942 = vrot.lane.b32.xlu0 %v2909, 20
      %v2943 = vpop.permute.xlu0 %2942
      %2944 = vrot.lane.b32.xlu0 %v2910, 20
      %v2945 = vpop.permute.xlu0 %2944
      %2946 = vrot.lane.b32.xlu0 %v2911, 20
      %v2947 = vpop.permute.xlu0 %2946
      %2948 = vrot.lane.b32.xlu0 %v2912, 20
      %v2949 = vpop.permute.xlu0 %2948
      %2950 = vrot.lane.b32.xlu0 %v2913, 20
      %v2951 = vpop.permute.xlu0 %2950
      %2952 = vrot.lane.b32.xlu0 %v2914, 20
      %v2953 = vpop.permute.xlu0 %2952
      %2954 = vrot.lane.b32.xlu0 %v2915, 20
      %v2955 = vpop.permute.xlu0 %2954
      %2956 = vrot.lane.b32.xlu0 %v2916, 20
      %v2957 = vpop.permute.xlu0 %2956
      %2958 = vrot.lane.b32.xlu0 %v2917, 20
      %v2959 = vpop.permute.xlu0 %2958
      %2960 = vrot.lane.b32.xlu0 %v2918, 20
      %v2961 = vpop.permute.xlu0 %2960
      %2962 = vrot.lane.b32.xlu0 %v2919, 20
      %v2963 = vpop.permute.xlu0 %2962
      %2964 = vrot.lane.b32.xlu0 %v2920, 20
      %v2965 = vpop.permute.xlu0 %2964
      %2966 = vrot.lane.b32.xlu0 %v2921, 20
      %v2967 = vpop.permute.xlu0 %2966
      %2968 = vrot.lane.b32.xlu0 %v2922, 20
      %v2969 = vpop.permute.xlu0 %2968
      %2970 = vrot.lane.b32.xlu0 %v2923, 20
      %v2971 = vpop.permute.xlu0 %2970
      %vm2988 = vcmask 171168
      %2989 = vst.msk [vmem:[#allocation3] sm:$0xff] %vm2988, %v2941
      %2990 = vst.msk [vmem:[#allocation3 + $0x8] sm:$0xff] %vm2988, %v2943
      %2991 = vst.msk [vmem:[#allocation3 + $0x10] sm:$0xff] %vm2988, %v2945
      %2992 = vst.msk [vmem:[#allocation3 + $0x18] sm:$0xff] %vm2988, %v2947
      %2993 = vst.msk [vmem:[#allocation3 + $0x20] sm:$0xff] %vm2988, %v2949
      %2994 = vst.msk [vmem:[#allocation3 + $0x28] sm:$0xff] %vm2988, %v2951
      %2995 = vst.msk [vmem:[#allocation3 + $0x30] sm:$0xff] %vm2988, %v2953
      %2996 = vst.msk [vmem:[#allocation3 + $0x38] sm:$0xff] %vm2988, %v2955
      %2997 = vst.msk [vmem:[#allocation3 + $0x40] sm:$0xff] %vm2988, %v2957
      %2998 = vst.msk [vmem:[#allocation3 + $0x48] sm:$0xff] %vm2988, %v2959
      %2999 = vst.msk [vmem:[#allocation3 + $0x50] sm:$0xff] %vm2988, %v2961
      %3000 = vst.msk [vmem:[#allocation3 + $0x58] sm:$0xff] %vm2988, %v2963
      %3001 = vst.msk [vmem:[#allocation3 + $0x60] sm:$0xff] %vm2988, %v2965
      %3002 = vst.msk [vmem:[#allocation3 + $0x68] sm:$0xff] %vm2988, %v2967
      %3003 = vst.msk [vmem:[#allocation3 + $0x70] sm:$0xff] %vm2988, %v2969
      %3004 = vst.msk [vmem:[#allocation3 + $0x78] sm:$0xff] %vm2988, %v2971
      %v3005 = vld [vmem:[%s2875 + $0x1] sm:$0xff]
      %v3006 = vld [vmem:[%s2875 + $0x9] sm:$0xff]
      %v3007 = vld [vmem:[%s2875 + $0x19] sm:$0xff]
      %v3008 = vld [vmem:[%s2875 + $0x21] sm:$0xff]
      %v3009 = vld [vmem:[%s2875 + $0x31] sm:$0xff]
      %v3010 = vld [vmem:[%s2875 + $0x39] sm:$0xff]
      %v3011 = vld [vmem:[%s2875 + $0x49] sm:$0xff]
      %v3012 = vld [vmem:[%s2875 + $0x51] sm:$0xff]
      %v3013 = vld [vmem:[%s2875 + $0x61] sm:$0xff]
      %v3014 = vld [vmem:[%s2875 + $0x69] sm:$0xff]
      %v3015 = vld [vmem:[%s2875 + $0x79] sm:$0xff]
      %v3016 = vld [vmem:[%s2875 + $0x81] sm:$0xff]
      %v3017 = vld [vmem:[%s2875 + $0x91] sm:$0xff]
      %v3018 = vld [vmem:[%s2875 + $0x99] sm:$0xff]
      %v3019 = vld [vmem:[%s2875 + $0xa9] sm:$0xff]
      %v3020 = vld [vmem:[%s2875 + $0xb1] sm:$0xff]
      %v3021 = vld [vmem:[%s2875 + $0xc1] sm:$0xff]
      %v3022 = vld [vmem:[%s2875 + $0xc9] sm:$0xff]
      %v3023 = vld [vmem:[%s2875 + $0xd9] sm:$0xff]
      %v3024 = vld [vmem:[%s2875 + $0xe1] sm:$0xff]
      %v3025 = vld [vmem:[%s2875 + $0xf1] sm:$0xff]
      %v3026 = vld [vmem:[%s2875 + $0xf9] sm:$0xff]
      %v3027 = vld [vmem:[%s2875 + $0x109] sm:$0xff]
      %v3028 = vld [vmem:[%s2875 + $0x111] sm:$0xff]
      %v3029 = vld [vmem:[%s2875 + $0x121] sm:$0xff]
      %v3030 = vld [vmem:[%s2875 + $0x129] sm:$0xff]
      %v3031 = vld [vmem:[%s2875 + $0x139] sm:$0xff]
      %v3032 = vld [vmem:[%s2875 + $0x141] sm:$0xff]
      %v3033 = vld [vmem:[%s2875 + $0x151] sm:$0xff]
      %v3034 = vld [vmem:[%s2875 + $0x159] sm:$0xff]
      %v3035 = vld [vmem:[%s2875 + $0x169] sm:$0xff]
      %v3036 = vld [vmem:[%s2875 + $0x171] sm:$0xff]
      %v3037 = vpack.c.bf16 %v3006, %v3005
      %v3038 = vpack.c.bf16 %v3008, %v3007
      %v3039 = vpack.c.bf16 %v3010, %v3009
      %v3040 = vpack.c.bf16 %v3012, %v3011
      %v3041 = vpack.c.bf16 %v3014, %v3013
      %v3042 = vpack.c.bf16 %v3016, %v3015
      %v3043 = vpack.c.bf16 %v3018, %v3017
      %v3044 = vpack.c.bf16 %v3020, %v3019
      %v3045 = vpack.c.bf16 %v3022, %v3021
      %v3046 = vpack.c.bf16 %v3024, %v3023
      %v3047 = vpack.c.bf16 %v3026, %v3025
      %v3048 = vpack.c.bf16 %v3028, %v3027
      %v3049 = vpack.c.bf16 %v3030, %v3029
      %v3050 = vpack.c.bf16 %v3032, %v3031
      %v3051 = vpack.c.bf16 %v3034, %v3033
      %v3052 = vpack.c.bf16 %v3036, %v3035
      %3069 = vrot.lane.b32.xlu0 %v3037, 21
      %v3070 = vpop.permute.xlu0 %3069
      %3071 = vrot.lane.b32.xlu0 %v3038, 21
      %v3072 = vpop.permute.xlu0 %3071
      %3073 = vrot.lane.b32.xlu0 %v3039, 21
      %v3074 = vpop.permute.xlu0 %3073
      %3075 = vrot.lane.b32.xlu0 %v3040, 21
      %v3076 = vpop.permute.xlu0 %3075
      %3077 = vrot.lane.b32.xlu0 %v3041, 21
      %v3078 = vpop.permute.xlu0 %3077
      %3079 = vrot.lane.b32.xlu0 %v3042, 21
      %v3080 = vpop.permute.xlu0 %3079
      %3081 = vrot.lane.b32.xlu0 %v3043, 21
      %v3082 = vpop.permute.xlu0 %3081
      %3083 = vrot.lane.b32.xlu0 %v3044, 21
      %v3084 = vpop.permute.xlu0 %3083
      %3085 = vrot.lane.b32.xlu0 %v3045, 21
      %v3086 = vpop.permute.xlu0 %3085
      %3087 = vrot.lane.b32.xlu0 %v3046, 21
      %v3088 = vpop.permute.xlu0 %3087
      %3089 = vrot.lane.b32.xlu0 %v3047, 21
      %v3090 = vpop.permute.xlu0 %3089
      %3091 = vrot.lane.b32.xlu0 %v3048, 21
      %v3092 = vpop.permute.xlu0 %3091
      %3093 = vrot.lane.b32.xlu0 %v3049, 21
      %v3094 = vpop.permute.xlu0 %3093
      %3095 = vrot.lane.b32.xlu0 %v3050, 21
      %v3096 = vpop.permute.xlu0 %3095
      %3097 = vrot.lane.b32.xlu0 %v3051, 21
      %v3098 = vpop.permute.xlu0 %3097
      %3099 = vrot.lane.b32.xlu0 %v3052, 21
      %v3100 = vpop.permute.xlu0 %3099
      %vm3117 = vcmask 179368
      %3118 = vst.msk [vmem:[#allocation3] sm:$0xff] %vm3117, %v3070
      %3119 = vst.msk [vmem:[#allocation3 + $0x8] sm:$0xff] %vm3117, %v3072
      %3120 = vst.msk [vmem:[#allocation3 + $0x10] sm:$0xff] %vm3117, %v3074
      %3121 = vst.msk [vmem:[#allocation3 + $0x18] sm:$0xff] %vm3117, %v3076
      %3122 = vst.msk [vmem:[#allocation3 + $0x20] sm:$0xff] %vm3117, %v3078
      %3123 = vst.msk [vmem:[#allocation3 + $0x28] sm:$0xff] %vm3117, %v3080
      %3124 = vst.msk [vmem:[#allocation3 + $0x30] sm:$0xff] %vm3117, %v3082
      %3125 = vst.msk [vmem:[#allocation3 + $0x38] sm:$0xff] %vm3117, %v3084
      %3126 = vst.msk [vmem:[#allocation3 + $0x40] sm:$0xff] %vm3117, %v3086
      %3127 = vst.msk [vmem:[#allocation3 + $0x48] sm:$0xff] %vm3117, %v3088
      %3128 = vst.msk [vmem:[#allocation3 + $0x50] sm:$0xff] %vm3117, %v3090
      %3129 = vst.msk [vmem:[#allocation3 + $0x58] sm:$0xff] %vm3117, %v3092
      %3130 = vst.msk [vmem:[#allocation3 + $0x60] sm:$0xff] %vm3117, %v3094
      %3131 = vst.msk [vmem:[#allocation3 + $0x68] sm:$0xff] %vm3117, %v3096
      %3132 = vst.msk [vmem:[#allocation3 + $0x70] sm:$0xff] %vm3117, %v3098
      %3133 = vst.msk [vmem:[#allocation3 + $0x78] sm:$0xff] %vm3117, %v3100
      %v3134 = vld [vmem:[%s2875 + $0x2] sm:$0xff]
      %v3135 = vld [vmem:[%s2875 + $0xa] sm:$0xff]
      %v3136 = vld [vmem:[%s2875 + $0x1a] sm:$0xff]
      %v3137 = vld [vmem:[%s2875 + $0x22] sm:$0xff]
      %v3138 = vld [vmem:[%s2875 + $0x32] sm:$0xff]
      %v3139 = vld [vmem:[%s2875 + $0x3a] sm:$0xff]
      %v3140 = vld [vmem:[%s2875 + $0x4a] sm:$0xff]
      %v3141 = vld [vmem:[%s2875 + $0x52] sm:$0xff]
      %v3142 = vld [vmem:[%s2875 + $0x62] sm:$0xff]
      %v3143 = vld [vmem:[%s2875 + $0x6a] sm:$0xff]
      %v3144 = vld [vmem:[%s2875 + $0x7a] sm:$0xff]
      %v3145 = vld [vmem:[%s2875 + $0x82] sm:$0xff]
      %v3146 = vld [vmem:[%s2875 + $0x92] sm:$0xff]
      %v3147 = vld [vmem:[%s2875 + $0x9a] sm:$0xff]
      %v3148 = vld [vmem:[%s2875 + $0xaa] sm:$0xff]
      %v3149 = vld [vmem:[%s2875 + $0xb2] sm:$0xff]
      %v3150 = vld [vmem:[%s2875 + $0xc2] sm:$0xff]
      %v3151 = vld [vmem:[%s2875 + $0xca] sm:$0xff]
      %v3152 = vld [vmem:[%s2875 + $0xda] sm:$0xff]
      %v3153 = vld [vmem:[%s2875 + $0xe2] sm:$0xff]
      %v3154 = vld [vmem:[%s2875 + $0xf2] sm:$0xff]
      %v3155 = vld [vmem:[%s2875 + $0xfa] sm:$0xff]
      %v3156 = vld [vmem:[%s2875 + $0x10a] sm:$0xff]
      %v3157 = vld [vmem:[%s2875 + $0x112] sm:$0xff]
      %v3158 = vld [vmem:[%s2875 + $0x122] sm:$0xff]
      %v3159 = vld [vmem:[%s2875 + $0x12a] sm:$0xff]
      %v3160 = vld [vmem:[%s2875 + $0x13a] sm:$0xff]
      %v3161 = vld [vmem:[%s2875 + $0x142] sm:$0xff]
      %v3162 = vld [vmem:[%s2875 + $0x152] sm:$0xff]
      %v3163 = vld [vmem:[%s2875 + $0x15a] sm:$0xff]
      %v3164 = vld [vmem:[%s2875 + $0x16a] sm:$0xff]
      %v3165 = vld [vmem:[%s2875 + $0x172] sm:$0xff]
      %v3166 = vpack.c.bf16 %v3135, %v3134
      %v3167 = vpack.c.bf16 %v3137, %v3136
      %v3168 = vpack.c.bf16 %v3139, %v3138
      %v3169 = vpack.c.bf16 %v3141, %v3140
      %v3170 = vpack.c.bf16 %v3143, %v3142
      %v3171 = vpack.c.bf16 %v3145, %v3144
      %v3172 = vpack.c.bf16 %v3147, %v3146
      %v3173 = vpack.c.bf16 %v3149, %v3148
      %v3174 = vpack.c.bf16 %v3151, %v3150
      %v3175 = vpack.c.bf16 %v3153, %v3152
      %v3176 = vpack.c.bf16 %v3155, %v3154
      %v3177 = vpack.c.bf16 %v3157, %v3156
      %v3178 = vpack.c.bf16 %v3159, %v3158
      %v3179 = vpack.c.bf16 %v3161, %v3160
      %v3180 = vpack.c.bf16 %v3163, %v3162
      %v3181 = vpack.c.bf16 %v3165, %v3164
      %3198 = vrot.lane.b32.xlu0 %v3166, 22
      %v3199 = vpop.permute.xlu0 %3198
      %3200 = vrot.lane.b32.xlu0 %v3167, 22
      %v3201 = vpop.permute.xlu0 %3200
      %3202 = vrot.lane.b32.xlu0 %v3168, 22
      %v3203 = vpop.permute.xlu0 %3202
      %3204 = vrot.lane.b32.xlu0 %v3169, 22
      %v3205 = vpop.permute.xlu0 %3204
      %3206 = vrot.lane.b32.xlu0 %v3170, 22
      %v3207 = vpop.permute.xlu0 %3206
      %3208 = vrot.lane.b32.xlu0 %v3171, 22
      %v3209 = vpop.permute.xlu0 %3208
      %3210 = vrot.lane.b32.xlu0 %v3172, 22
      %v3211 = vpop.permute.xlu0 %3210
      %3212 = vrot.lane.b32.xlu0 %v3173, 22
      %v3213 = vpop.permute.xlu0 %3212
      %3214 = vrot.lane.b32.xlu0 %v3174, 22
      %v3215 = vpop.permute.xlu0 %3214
      %3216 = vrot.lane.b32.xlu0 %v3175, 22
      %v3217 = vpop.permute.xlu0 %3216
      %3218 = vrot.lane.b32.xlu0 %v3176, 22
      %v3219 = vpop.permute.xlu0 %3218
      %3220 = vrot.lane.b32.xlu0 %v3177, 22
      %v3221 = vpop.permute.xlu0 %3220
      %3222 = vrot.lane.b32.xlu0 %v3178, 22
      %v3223 = vpop.permute.xlu0 %3222
      %3224 = vrot.lane.b32.xlu0 %v3179, 22
      %v3225 = vpop.permute.xlu0 %3224
      %3226 = vrot.lane.b32.xlu0 %v3180, 22
      %v3227 = vpop.permute.xlu0 %3226
      %3228 = vrot.lane.b32.xlu0 %v3181, 22
      %v3229 = vpop.permute.xlu0 %3228
      %vm3246 = vcmask 187568
      %3247 = vst.msk [vmem:[#allocation3] sm:$0xff] %vm3246, %v3199
      %3248 = vst.msk [vmem:[#allocation3 + $0x8] sm:$0xff] %vm3246, %v3201
      %3249 = vst.msk [vmem:[#allocation3 + $0x10] sm:$0xff] %vm3246, %v3203
      %3250 = vst.msk [vmem:[#allocation3 + $0x18] sm:$0xff] %vm3246, %v3205
      %3251 = vst.msk [vmem:[#allocation3 + $0x20] sm:$0xff] %vm3246, %v3207
      %3252 = vst.msk [vmem:[#allocation3 + $0x28] sm:$0xff] %vm3246, %v3209
      %3253 = vst.msk [vmem:[#allocation3 + $0x30] sm:$0xff] %vm3246, %v3211
      %3254 = vst.msk [vmem:[#allocation3 + $0x38] sm:$0xff] %vm3246, %v3213
      %3255 = vst.msk [vmem:[#allocation3 + $0x40] sm:$0xff] %vm3246, %v3215
      %3256 = vst.msk [vmem:[#allocation3 + $0x48] sm:$0xff] %vm3246, %v3217
      %3257 = vst.msk [vmem:[#allocation3 + $0x50] sm:$0xff] %vm3246, %v3219
      %3258 = vst.msk [vmem:[#allocation3 + $0x58] sm:$0xff] %vm3246, %v3221
      %3259 = vst.msk [vmem:[#allocation3 + $0x60] sm:$0xff] %vm3246, %v3223
      %3260 = vst.msk [vmem:[#allocation3 + $0x68] sm:$0xff] %vm3246, %v3225
      %3261 = vst.msk [vmem:[#allocation3 + $0x70] sm:$0xff] %vm3246, %v3227
      %3262 = vst.msk [vmem:[#allocation3 + $0x78] sm:$0xff] %vm3246, %v3229
      %v3263 = vld [vmem:[%s2875 + $0x3] sm:$0xff]
      %v3264 = vld [vmem:[%s2875 + $0xb] sm:$0xff]
      %v3265 = vld [vmem:[%s2875 + $0x1b] sm:$0xff]
      %v3266 = vld [vmem:[%s2875 + $0x23] sm:$0xff]
      %v3267 = vld [vmem:[%s2875 + $0x33] sm:$0xff]
      %v3268 = vld [vmem:[%s2875 + $0x3b] sm:$0xff]
      %v3269 = vld [vmem:[%s2875 + $0x4b] sm:$0xff]
      %v3270 = vld [vmem:[%s2875 + $0x53] sm:$0xff]
      %v3271 = vld [vmem:[%s2875 + $0x63] sm:$0xff]
      %v3272 = vld [vmem:[%s2875 + $0x6b] sm:$0xff]
      %v3273 = vld [vmem:[%s2875 + $0x7b] sm:$0xff]
      %v3274 = vld [vmem:[%s2875 + $0x83] sm:$0xff]
      %v3275 = vld [vmem:[%s2875 + $0x93] sm:$0xff]
      %v3276 = vld [vmem:[%s2875 + $0x9b] sm:$0xff]
      %v3277 = vld [vmem:[%s2875 + $0xab] sm:$0xff]
      %v3278 = vld [vmem:[%s2875 + $0xb3] sm:$0xff]
      %v3279 = vld [vmem:[%s2875 + $0xc3] sm:$0xff]
      %v3280 = vld [vmem:[%s2875 + $0xcb] sm:$0xff]
      %v3281 = vld [vmem:[%s2875 + $0xdb] sm:$0xff]
      %v3282 = vld [vmem:[%s2875 + $0xe3] sm:$0xff]
      %v3283 = vld [vmem:[%s2875 + $0xf3] sm:$0xff]
      %v3284 = vld [vmem:[%s2875 + $0xfb] sm:$0xff]
      %v3285 = vld [vmem:[%s2875 + $0x10b] sm:$0xff]
      %v3286 = vld [vmem:[%s2875 + $0x113] sm:$0xff]
      %v3287 = vld [vmem:[%s2875 + $0x123] sm:$0xff]
      %v3288 = vld [vmem:[%s2875 + $0x12b] sm:$0xff]
      %v3289 = vld [vmem:[%s2875 + $0x13b] sm:$0xff]
      %v3290 = vld [vmem:[%s2875 + $0x143] sm:$0xff]
      %v3291 = vld [vmem:[%s2875 + $0x153] sm:$0xff]
      %v3292 = vld [vmem:[%s2875 + $0x15b] sm:$0xff]
      %v3293 = vld [vmem:[%s2875 + $0x16b] sm:$0xff]
      %v3294 = vld [vmem:[%s2875 + $0x173] sm:$0xff]
      %v3295 = vpack.c.bf16 %v3264, %v3263
      %v3296 = vpack.c.bf16 %v3266, %v3265
      %v3297 = vpack.c.bf16 %v3268, %v3267
      %v3298 = vpack.c.bf16 %v3270, %v3269
      %v3299 = vpack.c.bf16 %v3272, %v3271
      %v3300 = vpack.c.bf16 %v3274, %v3273
      %v3301 = vpack.c.bf16 %v3276, %v3275
      %v3302 = vpack.c.bf16 %v3278, %v3277
      %v3303 = vpack.c.bf16 %v3280, %v3279
      %v3304 = vpack.c.bf16 %v3282, %v3281
      %v3305 = vpack.c.bf16 %v3284, %v3283
      %v3306 = vpack.c.bf16 %v3286, %v3285
      %v3307 = vpack.c.bf16 %v3288, %v3287
      %v3308 = vpack.c.bf16 %v3290, %v3289
      %v3309 = vpack.c.bf16 %v3292, %v3291
      %v3310 = vpack.c.bf16 %v3294, %v3293
      %3327 = vrot.lane.b32.xlu0 %v3295, 23
      %v3328 = vpop.permute.xlu0 %3327
      %3329 = vrot.lane.b32.xlu0 %v3296, 23
      %v3330 = vpop.permute.xlu0 %3329
      %3331 = vrot.lane.b32.xlu0 %v3297, 23
      %v3332 = vpop.permute.xlu0 %3331
      %3333 = vrot.lane.b32.xlu0 %v3298, 23
      %v3334 = vpop.permute.xlu0 %3333
      %3335 = vrot.lane.b32.xlu0 %v3299, 23
      %v3336 = vpop.permute.xlu0 %3335
      %3337 = vrot.lane.b32.xlu0 %v3300, 23
      %v3338 = vpop.permute.xlu0 %3337
      %3339 = vrot.lane.b32.xlu0 %v3301, 23
      %v3340 = vpop.permute.xlu0 %3339
      %3341 = vrot.lane.b32.xlu0 %v3302, 23
      %v3342 = vpop.permute.xlu0 %3341
      %3343 = vrot.lane.b32.xlu0 %v3303, 23
      %v3344 = vpop.permute.xlu0 %3343
      %3345 = vrot.lane.b32.xlu0 %v3304, 23
      %v3346 = vpop.permute.xlu0 %3345
      %3347 = vrot.lane.b32.xlu0 %v3305, 23
      %v3348 = vpop.permute.xlu0 %3347
      %3349 = vrot.lane.b32.xlu0 %v3306, 23
      %v3350 = vpop.permute.xlu0 %3349
      %3351 = vrot.lane.b32.xlu0 %v3307, 23
      %v3352 = vpop.permute.xlu0 %3351
      %3353 = vrot.lane.b32.xlu0 %v3308, 23
      %v3354 = vpop.permute.xlu0 %3353
      %3355 = vrot.lane.b32.xlu0 %v3309, 23
      %v3356 = vpop.permute.xlu0 %3355
      %3357 = vrot.lane.b32.xlu0 %v3310, 23
      %v3358 = vpop.permute.xlu0 %3357
      %vm3375 = vcmask 195768
      %3376 = vst.msk [vmem:[#allocation3] sm:$0xff] %vm3375, %v3328
      %3377 = vst.msk [vmem:[#allocation3 + $0x8] sm:$0xff] %vm3375, %v3330
      %3378 = vst.msk [vmem:[#allocation3 + $0x10] sm:$0xff] %vm3375, %v3332
      %3379 = vst.msk [vmem:[#allocation3 + $0x18] sm:$0xff] %vm3375, %v3334
      %3380 = vst.msk [vmem:[#allocation3 + $0x20] sm:$0xff] %vm3375, %v3336
      %3381 = vst.msk [vmem:[#allocation3 + $0x28] sm:$0xff] %vm3375, %v3338
      %3382 = vst.msk [vmem:[#allocation3 + $0x30] sm:$0xff] %vm3375, %v3340
      %3383 = vst.msk [vmem:[#allocation3 + $0x38] sm:$0xff] %vm3375, %v3342
      %3384 = vst.msk [vmem:[#allocation3 + $0x40] sm:$0xff] %vm3375, %v3344
      %3385 = vst.msk [vmem:[#allocation3 + $0x48] sm:$0xff] %vm3375, %v3346
      %3386 = vst.msk [vmem:[#allocation3 + $0x50] sm:$0xff] %vm3375, %v3348
      %3387 = vst.msk [vmem:[#allocation3 + $0x58] sm:$0xff] %vm3375, %v3350
      %3388 = vst.msk [vmem:[#allocation3 + $0x60] sm:$0xff] %vm3375, %v3352
      %3389 = vst.msk [vmem:[#allocation3 + $0x68] sm:$0xff] %vm3375, %v3354
      %3390 = vst.msk [vmem:[#allocation3 + $0x70] sm:$0xff] %vm3375, %v3356
      %3391 = vst.msk [vmem:[#allocation3 + $0x78] sm:$0xff] %vm3375, %v3358
      %v3392 = vld [vmem:[%s2875 + $0x4] sm:$0xff]
      %v3393 = vld [vmem:[%s2875 + $0xc] sm:$0xff]
      %v3394 = vld [vmem:[%s2875 + $0x1c] sm:$0xff]
      %v3395 = vld [vmem:[%s2875 + $0x24] sm:$0xff]
      %v3396 = vld [vmem:[%s2875 + $0x34] sm:$0xff]
      %v3397 = vld [vmem:[%s2875 + $0x3c] sm:$0xff]
      %v3398 = vld [vmem:[%s2875 + $0x4c] sm:$0xff]
      %v3399 = vld [vmem:[%s2875 + $0x54] sm:$0xff]
      %v3400 = vld [vmem:[%s2875 + $0x64] sm:$0xff]
      %v3401 = vld [vmem:[%s2875 + $0x6c] sm:$0xff]
      %v3402 = vld [vmem:[%s2875 + $0x7c] sm:$0xff]
      %v3403 = vld [vmem:[%s2875 + $0x84] sm:$0xff]
      %v3404 = vld [vmem:[%s2875 + $0x94] sm:$0xff]
      %v3405 = vld [vmem:[%s2875 + $0x9c] sm:$0xff]
      %v3406 = vld [vmem:[%s2875 + $0xac] sm:$0xff]
      %v3407 = vld [vmem:[%s2875 + $0xb4] sm:$0xff]
      %v3408 = vld [vmem:[%s2875 + $0xc4] sm:$0xff]
      %v3409 = vld [vmem:[%s2875 + $0xcc] sm:$0xff]
      %v3410 = vld [vmem:[%s2875 + $0xdc] sm:$0xff]
      %v3411 = vld [vmem:[%s2875 + $0xe4] sm:$0xff]
      %v3412 = vld [vmem:[%s2875 + $0xf4] sm:$0xff]
      %v3413 = vld [vmem:[%s2875 + $0xfc] sm:$0xff]
      %v3414 = vld [vmem:[%s2875 + $0x10c] sm:$0xff]
      %v3415 = vld [vmem:[%s2875 + $0x114] sm:$0xff]
      %v3416 = vld [vmem:[%s2875 + $0x124] sm:$0xff]
      %v3417 = vld [vmem:[%s2875 + $0x12c] sm:$0xff]
      %v3418 = vld [vmem:[%s2875 + $0x13c] sm:$0xff]
      %v3419 = vld [vmem:[%s2875 + $0x144] sm:$0xff]
      %v3420 = vld [vmem:[%s2875 + $0x154] sm:$0xff]
      %v3421 = vld [vmem:[%s2875 + $0x15c] sm:$0xff]
      %v3422 = vld [vmem:[%s2875 + $0x16c] sm:$0xff]
      %v3423 = vld [vmem:[%s2875 + $0x174] sm:$0xff]
      %v3424 = vpack.c.bf16 %v3393, %v3392
      %v3425 = vpack.c.bf16 %v3395, %v3394
      %v3426 = vpack.c.bf16 %v3397, %v3396
      %v3427 = vpack.c.bf16 %v3399, %v3398
      %v3428 = vpack.c.bf16 %v3401, %v3400
      %v3429 = vpack.c.bf16 %v3403, %v3402
      %v3430 = vpack.c.bf16 %v3405, %v3404
      %v3431 = vpack.c.bf16 %v3407, %v3406
      %v3432 = vpack.c.bf16 %v3409, %v3408
      %v3433 = vpack.c.bf16 %v3411, %v3410
      %v3434 = vpack.c.bf16 %v3413, %v3412
      %v3435 = vpack.c.bf16 %v3415, %v3414
      %v3436 = vpack.c.bf16 %v3417, %v3416
      %v3437 = vpack.c.bf16 %v3419, %v3418
      %v3438 = vpack.c.bf16 %v3421, %v3420
      %v3439 = vpack.c.bf16 %v3423, %v3422
      %3456 = vrot.lane.b32.xlu0 %v3424, 24
      %v3457 = vpop.permute.xlu0 %3456
      %3458 = vrot.lane.b32.xlu0 %v3425, 24
      %v3459 = vpop.permute.xlu0 %3458
      %3460 = vrot.lane.b32.xlu0 %v3426, 24
      %v3461 = vpop.permute.xlu0 %3460
      %3462 = vrot.lane.b32.xlu0 %v3427, 24
      %v3463 = vpop.permute.xlu0 %3462
      %3464 = vrot.lane.b32.xlu0 %v3428, 24
      %v3465 = vpop.permute.xlu0 %3464
      %3466 = vrot.lane.b32.xlu0 %v3429, 24
      %v3467 = vpop.permute.xlu0 %3466
      %3468 = vrot.lane.b32.xlu0 %v3430, 24
      %v3469 = vpop.permute.xlu0 %3468
      %3470 = vrot.lane.b32.xlu0 %v3431, 24
      %v3471 = vpop.permute.xlu0 %3470
      %3472 = vrot.lane.b32.xlu0 %v3432, 24
      %v3473 = vpop.permute.xlu0 %3472
      %3474 = vrot.lane.b32.xlu0 %v3433, 24
      %v3475 = vpop.permute.xlu0 %3474
      %3476 = vrot.lane.b32.xlu0 %v3434, 24
      %v3477 = vpop.permute.xlu0 %3476
      %3478 = vrot.lane.b32.xlu0 %v3435, 24
      %v3479 = vpop.permute.xlu0 %3478
      %3480 = vrot.lane.b32.xlu0 %v3436, 24
      %v3481 = vpop.permute.xlu0 %3480
      %3482 = vrot.lane.b32.xlu0 %v3437, 24
      %v3483 = vpop.permute.xlu0 %3482
      %3484 = vrot.lane.b32.xlu0 %v3438, 24
      %v3485 = vpop.permute.xlu0 %3484
      %3486 = vrot.lane.b32.xlu0 %v3439, 24
      %v3487 = vpop.permute.xlu0 %3486
      %vm3504 = vcmask 203968
      %3505 = vst.msk [vmem:[#allocation3] sm:$0xff] %vm3504, %v3457
      %3506 = vst.msk [vmem:[#allocation3 + $0x8] sm:$0xff] %vm3504, %v3459
      %3507 = vst.msk [vmem:[#allocation3 + $0x10] sm:$0xff] %vm3504, %v3461
      %3508 = vst.msk [vmem:[#allocation3 + $0x18] sm:$0xff] %vm3504, %v3463
      %3509 = vst.msk [vmem:[#allocation3 + $0x20] sm:$0xff] %vm3504, %v3465
      %3510 = vst.msk [vmem:[#allocation3 + $0x28] sm:$0xff] %vm3504, %v3467
      %3511 = vst.msk [vmem:[#allocation3 + $0x30] sm:$0xff] %vm3504, %v3469
      %3512 = vst.msk [vmem:[#allocation3 + $0x38] sm:$0xff] %vm3504, %v3471
      %3513 = vst.msk [vmem:[#allocation3 + $0x40] sm:$0xff] %vm3504, %v3473
      %3514 = vst.msk [vmem:[#allocation3 + $0x48] sm:$0xff] %vm3504, %v3475
      %3515 = vst.msk [vmem:[#allocation3 + $0x50] sm:$0xff] %vm3504, %v3477
      %3516 = vst.msk [vmem:[#allocation3 + $0x58] sm:$0xff] %vm3504, %v3479
      %3517 = vst.msk [vmem:[#allocation3 + $0x60] sm:$0xff] %vm3504, %v3481
      %3518 = vst.msk [vmem:[#allocation3 + $0x68] sm:$0xff] %vm3504, %v3483
      %3519 = vst.msk [vmem:[#allocation3 + $0x70] sm:$0xff] %vm3504, %v3485
      %3520 = vst.msk [vmem:[#allocation3 + $0x78] sm:$0xff] %vm3504, %v3487
      %v3521 = vld [vmem:[#allocation3] sm:$0xff]
      %v3522 = vld [vmem:[#allocation3 + $0x8] sm:$0xff]
      %v3523 = vld [vmem:[#allocation3 + $0x10] sm:$0xff]
      %v3524 = vld [vmem:[#allocation3 + $0x18] sm:$0xff]
      %v3525 = vld [vmem:[#allocation3 + $0x20] sm:$0xff]
      %v3526 = vld [vmem:[#allocation3 + $0x28] sm:$0xff]
      %v3527 = vld [vmem:[#allocation3 + $0x30] sm:$0xff]
      %v3528 = vld [vmem:[#allocation3 + $0x38] sm:$0xff]
      %v3529 = vld [vmem:[#allocation3 + $0x40] sm:$0xff]
      %v3530 = vld [vmem:[#allocation3 + $0x48] sm:$0xff]
      %v3531 = vld [vmem:[#allocation3 + $0x50] sm:$0xff]
      %v3532 = vld [vmem:[#allocation3 + $0x58] sm:$0xff]
      %v3533 = vld [vmem:[#allocation3 + $0x60] sm:$0xff]
      %v3534 = vld [vmem:[#allocation3 + $0x68] sm:$0xff]
      %v3535 = vld [vmem:[#allocation3 + $0x70] sm:$0xff]
      %v3536 = vld [vmem:[#allocation3 + $0x78] sm:$0xff]
      %v3537 = vld [vmem:[%s1] sm:$0xf]
      %v3538 = vld [vmem:[%s1 + $0x4] sm:$0xf]
      %v3539 = vld [vmem:[%s1 + $0x8] sm:$0xf]
      %v3540 = vld [vmem:[%s1 + $0xc] sm:$0x1]
      %v3545 = vunpack.c.l.b16 %v3537
      %v3546 = vunpack.c.l.b16 %v3538
      %v3547 = vunpack.c.l.b16 %v3539
      %v3548 = vunpack.c.l.b16 %v3540
      %v3549 = vpack.c.b16 %v3546, %v3545
      %v3550 = vpack.c.b16 %v3548, %v3547
      %vm3552 = vcmask 203776
      %v3554 = vsel %vm3552, %v3521, 0
      %v3557 = vsel %vm3552, %v3522, 0
      %v3560 = vsel %vm3552, %v3523, 0
      %v3563 = vsel %vm3552, %v3524, 0
      %v3566 = vsel %vm3552, %v3525, 0
      %v3569 = vsel %vm3552, %v3526, 0
      %v3572 = vsel %vm3552, %v3527, 0
      %v3575 = vsel %vm3552, %v3528, 0
      %v3578 = vsel %vm3552, %v3529, 0
      %v3581 = vsel %vm3552, %v3530, 0
      %v3584 = vsel %vm3552, %v3531, 0
      %v3587 = vsel %vm3552, %v3532, 0
      %v3590 = vsel %vm3552, %v3533, 0
      %v3593 = vsel %vm3552, %v3534, 0
      %v3596 = vsel %vm3552, %v3535, 0
      %v3599 = vsel %vm3552, %v3536, 0
      %vm3601 = vcmask 1043456
      %vm3602 = vcmask 1044480
      %v3603 = vsel %vm3601, 4294967295, 65535
      %v3604 = vsel %vm3602, %v3603, 0
      %v3606 = vand.u32 %v3550, %v3604
      %3608 = vmatprep.subr.bf16.mxu0 0
      %3609 = vmatpush1.bf16.msra.mxu0 %v3549
      %3610 = vmatprep.subr.bf16.mxu0 0
      %3611 = vmatpush1.bf16.msra.mxu0 %v3606
      %3612 = vmatprep.subr.bf16.mxu0 0
      %3613 = vmatpush1.bf16.msra.mxu0 0
      %3614 = vmatprep.subr.bf16.mxu0 0
      %3615 = vmatpush1.bf16.msra.mxu0 0
      %3616 = vmatprep.subr.bf16.mxu0 0
      %3617 = vmatpush1.bf16.msra.mxu0 0
      %3618 = vmatprep.subr.bf16.mxu0 0
      %3619 = vmatpush1.bf16.msra.mxu0 0
      %3620 = vmatprep.subr.bf16.mxu0 0
      %3621 = vmatpush1.bf16.msra.mxu0 0
      %3622 = vmatprep.subr.bf16.mxu0 0
      %3623 = vmatpush1.bf16.msra.mxu0 0
      %3624 = vmatprep.subr.bf16.mxu0 0
      %3625 = vmatpush1.bf16.msra.mxu0 0
      %3626 = vmatprep.subr.bf16.mxu0 0
      %3627 = vmatpush1.bf16.msra.mxu0 0
      %3628 = vmatprep.subr.bf16.mxu0 0
      %3629 = vmatpush1.bf16.msra.mxu0 0
      %3630 = vmatprep.subr.bf16.mxu0 0
      %3631 = vmatpush1.bf16.msra.mxu0 0
      %3632 = vmatprep.subr.bf16.mxu0 0
      %3633 = vmatpush1.bf16.msra.mxu0 0
      %3634 = vmatprep.subr.bf16.mxu0 0
      %3635 = vmatpush1.bf16.msra.mxu0 0
      %3636 = vmatprep.subr.bf16.mxu0 0
      %3637 = vmatpush1.bf16.msra.mxu0 0
      %3638 = vmatprep.subr.bf16.mxu0 0
      %3639 = vmatpush1.bf16.msra.mxu0 0
      %3640 = vmatprep.mubr.bf16.mxu0 0
      %3641 = vmatmul.mubr.bf16.gmra.mrb[0].mxu0 %v3554
      %v3642 = vpop.f32.mrb[0].mxu0
      %v3643 = vadd.f32 0.0, %v3642
      %v3644 = vpop.f32.mrb[0].mxu0
      %v3645 = vpop.f32.mrb[0].mxu0
      %v3646 = vadd.f32 0.0, %v3645
      %v3647 = vpop.f32.mrb[0].mxu0
      %3648 = vmatprep.mubr.bf16.mxu0 0
      %3649 = vmatmul.mubr.bf16.gmra.mrb[0].mxu0 %v3557
      %v3650 = vpop.f32.mrb[0].mxu0
      %v3651 = vadd.f32 0.0, %v3650
      %v3652 = vpop.f32.mrb[0].mxu0
      %v3653 = vpop.f32.mrb[0].mxu0
      %v3654 = vadd.f32 0.0, %v3653
      %v3655 = vpop.f32.mrb[0].mxu0
      %3656 = vmatprep.mubr.bf16.mxu0 0
      %3657 = vmatmul.mubr.bf16.gmra.mrb[0].mxu0 %v3560
      %v3658 = vpop.f32.mrb[0].mxu0
      %v3659 = vadd.f32 0.0, %v3658
      %v3660 = vpop.f32.mrb[0].mxu0
      %v3661 = vpop.f32.mrb[0].mxu0
      %v3662 = vadd.f32 0.0, %v3661
      %v3663 = vpop.f32.mrb[0].mxu0
      %3664 = vmatprep.mubr.bf16.mxu0 0
      %3665 = vmatmul.mubr.bf16.gmra.mrb[0].mxu0 %v3563
      %v3666 = vpop.f32.mrb[0].mxu0
      %v3667 = vadd.f32 0.0, %v3666
      %v3668 = vpop.f32.mrb[0].mxu0
      %v3669 = vpop.f32.mrb[0].mxu0
      %v3670 = vadd.f32 0.0, %v3669
      %v3671 = vpop.f32.mrb[0].mxu0
      %3672 = vmatprep.mubr.bf16.mxu0 0
      %3673 = vmatmul.mubr.bf16.gmra.mrb[0].mxu0 %v3566
      %v3674 = vpop.f32.mrb[0].mxu0
      %v3675 = vadd.f32 0.0, %v3674
      %v3676 = vpop.f32.mrb[0].mxu0
      %v3677 = vpop.f32.mrb[0].mxu0
      %v3678 = vadd.f32 0.0, %v3677
      %v3679 = vpop.f32.mrb[0].mxu0
      %3680 = vmatprep.mubr.bf16.mxu0 0
      %3681 = vmatmul.mubr.bf16.gmra.mrb[0].mxu0 %v3569
      %v3682 = vpop.f32.mrb[0].mxu0
      %v3683 = vadd.f32 0.0, %v3682
      %v3684 = vpop.f32.mrb[0].mxu0
      %v3685 = vpop.f32.mrb[0].mxu0
      %v3686 = vadd.f32 0.0, %v3685
      %v3687 = vpop.f32.mrb[0].mxu0
      %3688 = vmatprep.mubr.bf16.mxu0 0
      %3689 = vmatmul.mubr.bf16.gmra.mrb[0].mxu0 %v3572
      %v3690 = vpop.f32.mrb[0].mxu0
      %v3691 = vadd.f32 0.0, %v3690
      %v3692 = vpop.f32.mrb[0].mxu0
      %v3693 = vpop.f32.mrb[0].mxu0
      %v3694 = vadd.f32 0.0, %v3693
      %v3695 = vpop.f32.mrb[0].mxu0
      %3696 = vmatprep.mubr.bf16.mxu0 0
      %3697 = vmatmul.mubr.bf16.gmra.mrb[0].mxu0 %v3575
      %v3698 = vpop.f32.mrb[0].mxu0
      %v3699 = vadd.f32 0.0, %v3698
      %v3700 = vpop.f32.mrb[0].mxu0
      %v3701 = vpop.f32.mrb[0].mxu0
      %v3702 = vadd.f32 0.0, %v3701
      %v3703 = vpop.f32.mrb[0].mxu0
      %3704 = vmatprep.mubr.bf16.mxu0 0
      %3705 = vmatmul.mubr.bf16.gmra.mrb[0].mxu0 %v3578
      %v3706 = vpop.f32.mrb[0].mxu0
      %v3707 = vadd.f32 0.0, %v3706
      %v3708 = vpop.f32.mrb[0].mxu0
      %v3709 = vpop.f32.mrb[0].mxu0
      %v3710 = vadd.f32 0.0, %v3709
      %v3711 = vpop.f32.mrb[0].mxu0
      %3712 = vmatprep.mubr.bf16.mxu0 0
      %3713 = vmatmul.mubr.bf16.gmra.mrb[0].mxu0 %v3581
      %v3714 = vpop.f32.mrb[0].mxu0
      %v3715 = vadd.f32 0.0, %v3714
      %v3716 = vpop.f32.mrb[0].mxu0
      %v3717 = vpop.f32.mrb[0].mxu0
      %v3718 = vadd.f32 0.0, %v3717
      %v3719 = vpop.f32.mrb[0].mxu0
      %3720 = vmatprep.mubr.bf16.mxu0 0
      %3721 = vmatmul.mubr.bf16.gmra.mrb[0].mxu0 %v3584
      %v3722 = vpop.f32.mrb[0].mxu0
      %v3723 = vadd.f32 0.0, %v3722
      %v3724 = vpop.f32.mrb[0].mxu0
      %v3725 = vpop.f32.mrb[0].mxu0
      %v3726 = vadd.f32 0.0, %v3725
      %v3727 = vpop.f32.mrb[0].mxu0
      %3728 = vmatprep.mubr.bf16.mxu0 0
      %3729 = vmatmul.mubr.bf16.gmra.mrb[0].mxu0 %v3587
      %v3730 = vpop.f32.mrb[0].mxu0
      %v3731 = vadd.f32 0.0, %v3730
      %v3732 = vpop.f32.mrb[0].mxu0
      %v3733 = vpop.f32.mrb[0].mxu0
      %v3734 = vadd.f32 0.0, %v3733
      %v3735 = vpop.f32.mrb[0].mxu0
      %3736 = vmatprep.mubr.bf16.mxu0 0
      %3737 = vmatmul.mubr.bf16.gmra.mrb[0].mxu0 %v3590
      %v3738 = vpop.f32.mrb[0].mxu0
      %v3739 = vadd.f32 0.0, %v3738
      %v3740 = vpop.f32.mrb[0].mxu0
      %v3741 = vpop.f32.mrb[0].mxu0
      %v3742 = vadd.f32 0.0, %v3741
      %v3743 = vpop.f32.mrb[0].mxu0
      %3744 = vmatprep.mubr.bf16.mxu0 0
      %3745 = vmatmul.mubr.bf16.gmra.mrb[0].mxu0 %v3593
      %v3746 = vpop.f32.mrb[0].mxu0
      %v3747 = vadd.f32 0.0, %v3746
      %v3748 = vpop.f32.mrb[0].mxu0
      %v3749 = vpop.f32.mrb[0].mxu0
      %v3750 = vadd.f32 0.0, %v3749
      %v3751 = vpop.f32.mrb[0].mxu0
      %3752 = vmatprep.mubr.bf16.mxu0 0
      %3753 = vmatmul.mubr.bf16.gmra.mrb[0].mxu0 %v3596
      %v3754 = vpop.f32.mrb[0].mxu0
      %v3755 = vadd.f32 0.0, %v3754
      %v3756 = vpop.f32.mrb[0].mxu0
      %v3757 = vpop.f32.mrb[0].mxu0
      %v3758 = vadd.f32 0.0, %v3757
      %v3759 = vpop.f32.mrb[0].mxu0
      %3760 = vmatprep.mubr.bf16.mxu0 0
      %3761 = vmatmul.mubr.bf16.gmra.mrb[0].mxu0 %v3599
      %v3762 = vpop.f32.mrb[0].mxu0
      %v3763 = vadd.f32 0.0, %v3762
      %v3764 = vpop.f32.mrb[0].mxu0
      %v3765 = vpop.f32.mrb[0].mxu0
      %v3766 = vadd.f32 0.0, %v3765
      %v3767 = vpop.f32.mrb[0].mxu0
      %3768 = vdwg.mxu0
      %v3769 = vld [vmem:[%s2] sm:$0x1]
      %v3771 = vlaneseq
      %v3772 = vshrl.u32 %v3771, 7
      %v3773 = vsub.s32 0, %v3772
      %v3774 = vrot.slane %v3769, %v3773
      %v3776 = vmul.f32 %v3643, %v3774
      %v3777 = vmul.f32 %v3646, %v3774
      %v3778 = vmul.f32 %v3651, %v3774
      %v3779 = vmul.f32 %v3654, %v3774
      %v3780 = vmul.f32 %v3659, %v3774
      %v3781 = vmul.f32 %v3662, %v3774
      %v3782 = vmul.f32 %v3667, %v3774
      %v3783 = vmul.f32 %v3670, %v3774
      %v3784 = vmul.f32 %v3675, %v3774
      %v3785 = vmul.f32 %v3678, %v3774
      %v3786 = vmul.f32 %v3683, %v3774
      %v3787 = vmul.f32 %v3686, %v3774
      %v3788 = vmul.f32 %v3691, %v3774
      %v3789 = vmul.f32 %v3694, %v3774
      %v3790 = vmul.f32 %v3699, %v3774
      %v3791 = vmul.f32 %v3702, %v3774
      %v3792 = vmul.f32 %v3707, %v3774
      %v3793 = vmul.f32 %v3710, %v3774
      %v3794 = vmul.f32 %v3715, %v3774
      %v3795 = vmul.f32 %v3718, %v3774
      %v3796 = vmul.f32 %v3723, %v3774
      %v3797 = vmul.f32 %v3726, %v3774
      %v3798 = vmul.f32 %v3731, %v3774
      %v3799 = vmul.f32 %v3734, %v3774
      %v3800 = vmul.f32 %v3739, %v3774
      %v3801 = vmul.f32 %v3742, %v3774
      %v3802 = vmul.f32 %v3747, %v3774
      %v3803 = vmul.f32 %v3750, %v3774
      %v3804 = vmul.f32 %v3755, %v3774
      %v3805 = vmul.f32 %v3758, %v3774
      %v3806 = vmul.f32 %v3763, %v3774
      %v3807 = vmul.f32 %v3766, %v3774
      %v3808 = vld [vmem:[%s3] sm:$0x1]
      %v3810 = vlaneseq
      %v3811 = vshrl.u32 %v3810, 7
      %v3812 = vsub.s32 0, %v3811
      %v3813 = vrot.slane %v3808, %v3812
      %v3815 = vadd.f32 %v3776, %v3813
      %v3816 = vadd.f32 %v3777, %v3813
      %v3817 = vadd.f32 %v3778, %v3813
      %v3818 = vadd.f32 %v3779, %v3813
      %v3819 = vadd.f32 %v3780, %v3813
      %v3820 = vadd.f32 %v3781, %v3813
      %v3821 = vadd.f32 %v3782, %v3813
      %v3822 = vadd.f32 %v3783, %v3813
      %v3823 = vadd.f32 %v3784, %v3813
      %v3824 = vadd.f32 %v3785, %v3813
      %v3825 = vadd.f32 %v3786, %v3813
      %v3826 = vadd.f32 %v3787, %v3813
      %v3827 = vadd.f32 %v3788, %v3813
      %v3828 = vadd.f32 %v3789, %v3813
      %v3829 = vadd.f32 %v3790, %v3813
      %v3830 = vadd.f32 %v3791, %v3813
      %v3831 = vadd.f32 %v3792, %v3813
      %v3832 = vadd.f32 %v3793, %v3813
      %v3833 = vadd.f32 %v3794, %v3813
      %v3834 = vadd.f32 %v3795, %v3813
      %v3835 = vadd.f32 %v3796, %v3813
      %v3836 = vadd.f32 %v3797, %v3813
      %v3837 = vadd.f32 %v3798, %v3813
      %v3838 = vadd.f32 %v3799, %v3813
      %v3839 = vadd.f32 %v3800, %v3813
      %v3840 = vadd.f32 %v3801, %v3813
      %v3841 = vadd.f32 %v3802, %v3813
      %v3842 = vadd.f32 %v3803, %v3813
      %v3843 = vadd.f32 %v3804, %v3813
      %v3844 = vadd.f32 %v3805, %v3813
      %v3845 = vadd.f32 %v3806, %v3813
      %v3846 = vadd.f32 %v3807, %v3813
      %v3847 = vmax.f32 %v3815, 0.0
      %v3848 = vmax.f32 %v3816, 0.0
      %v3849 = vmax.f32 %v3817, 0.0
      %v3850 = vmax.f32 %v3818, 0.0
      %v3851 = vmax.f32 %v3819, 0.0
      %v3852 = vmax.f32 %v3820, 0.0
      %v3853 = vmax.f32 %v3821, 0.0
      %v3854 = vmax.f32 %v3822, 0.0
      %v3855 = vmax.f32 %v3823, 0.0
      %v3856 = vmax.f32 %v3824, 0.0
      %v3857 = vmax.f32 %v3825, 0.0
      %v3858 = vmax.f32 %v3826, 0.0
      %v3859 = vmax.f32 %v3827, 0.0
      %v3860 = vmax.f32 %v3828, 0.0
      %v3861 = vmax.f32 %v3829, 0.0
      %v3862 = vmax.f32 %v3830, 0.0
      %v3863 = vmax.f32 %v3831, 0.0
      %v3864 = vmax.f32 %v3832, 0.0
      %v3865 = vmax.f32 %v3833, 0.0
      %v3866 = vmax.f32 %v3834, 0.0
      %v3867 = vmax.f32 %v3835, 0.0
      %v3868 = vmax.f32 %v3836, 0.0
      %v3869 = vmax.f32 %v3837, 0.0
      %v3870 = vmax.f32 %v3838, 0.0
      %v3871 = vmax.f32 %v3839, 0.0
      %v3872 = vmax.f32 %v3840, 0.0
      %v3873 = vmax.f32 %v3841, 0.0
      %v3874 = vmax.f32 %v3842, 0.0
      %v3875 = vmax.f32 %v3843, 0.0
      %v3876 = vmax.f32 %v3844, 0.0
      %v3877 = vmax.f32 %v3845, 0.0
      %v3878 = vmax.f32 %v3846, 0.0
      %vm3879 = vcmask 130048
      %3880 = vst.msk [vmem:[#allocation4] sm:$0xff] %vm3879, %v3847
      %3881 = vst.msk [vmem:[#allocation4 + $0x8] sm:$0xff] %vm3879, %v3848
      %3882 = vst.msk [vmem:[#allocation4 + $0x10] sm:$0xff] %vm3879, %v3849
      %3883 = vst.msk [vmem:[#allocation4 + $0x18] sm:$0xff] %vm3879, %v3850
      %3884 = vst.msk [vmem:[#allocation4 + $0x20] sm:$0xff] %vm3879, %v3851
      %3885 = vst.msk [vmem:[#allocation4 + $0x28] sm:$0xff] %vm3879, %v3852
      %3886 = vst.msk [vmem:[#allocation4 + $0x30] sm:$0xff] %vm3879, %v3853
      %3887 = vst.msk [vmem:[#allocation4 + $0x38] sm:$0xff] %vm3879, %v3854
      %3888 = vst.msk [vmem:[#allocation4 + $0x40] sm:$0xff] %vm3879, %v3855
      %3889 = vst.msk [vmem:[#allocation4 + $0x48] sm:$0xff] %vm3879, %v3856
      %3890 = vst.msk [vmem:[#allocation4 + $0x50] sm:$0xff] %vm3879, %v3857
      %3891 = vst.msk [vmem:[#allocation4 + $0x58] sm:$0xff] %vm3879, %v3858
      %3892 = vst.msk [vmem:[#allocation4 + $0x60] sm:$0xff] %vm3879, %v3859
      %3893 = vst.msk [vmem:[#allocation4 + $0x68] sm:$0xff] %vm3879, %v3860
      %3894 = vst.msk [vmem:[#allocation4 + $0x70] sm:$0xff] %vm3879, %v3861
      %3895 = vst.msk [vmem:[#allocation4 + $0x78] sm:$0xff] %vm3879, %v3862
      %3896 = vst.msk [vmem:[#allocation4 + $0x80] sm:$0xff] %vm3879, %v3863
      %3897 = vst.msk [vmem:[#allocation4 + $0x88] sm:$0xff] %vm3879, %v3864
      %3898 = vst.msk [vmem:[#allocation4 + $0x90] sm:$0xff] %vm3879, %v3865
      %3899 = vst.msk [vmem:[#allocation4 + $0x98] sm:$0xff] %vm3879, %v3866
      %3900 = vst.msk [vmem:[#allocation4 + $0xa0] sm:$0xff] %vm3879, %v3867
      %3901 = vst.msk [vmem:[#allocation4 + $0xa8] sm:$0xff] %vm3879, %v3868
      %3902 = vst.msk [vmem:[#allocation4 + $0xb0] sm:$0xff] %vm3879, %v3869
      %3903 = vst.msk [vmem:[#allocation4 + $0xb8] sm:$0xff] %vm3879, %v3870
      %3904 = vst.msk [vmem:[#allocation4 + $0xc0] sm:$0xff] %vm3879, %v3871
      %3905 = vst.msk [vmem:[#allocation4 + $0xc8] sm:$0xff] %vm3879, %v3872
      %3906 = vst.msk [vmem:[#allocation4 + $0xd0] sm:$0xff] %vm3879, %v3873
      %3907 = vst.msk [vmem:[#allocation4 + $0xd8] sm:$0xff] %vm3879, %v3874
      %3908 = vst.msk [vmem:[#allocation4 + $0xe0] sm:$0xff] %vm3879, %v3875
      %3909 = vst.msk [vmem:[#allocation4 + $0xe8] sm:$0xff] %vm3879, %v3876
      %3910 = vst.msk [vmem:[#allocation4 + $0xf0] sm:$0xff] %vm3879, %v3877
      %3911 = vst.msk [vmem:[#allocation4 + $0xf8] sm:$0xff] %vm3879, %v3878
      %v3912 = vld [vmem:[#allocation4] ss:$2 sm:$0xff]
      %s3913 = scalar_lea.vmem [#allocation4], 32
      %v3914 = vld [vmem:[%s3913] ss:$2 sm:$0xff]
      %s3915 = scalar_lea.vmem [#allocation4], 64
      %v3916 = vld [vmem:[%s3915] ss:$2 sm:$0xff]
      %s3917 = scalar_lea.vmem [#allocation4], 96
      %v3918 = vld [vmem:[%s3917] ss:$2 sm:$0xff]
      %s3919 = scalar_lea.vmem [#allocation4], 128
      %v3920 = vld [vmem:[%s3919] ss:$2 sm:$0xff]
      %s3921 = scalar_lea.vmem [#allocation4], 160
      %v3922 = vld [vmem:[%s3921] ss:$2 sm:$0xff]
      %s3923 = scalar_lea.vmem [#allocation4], 192
      %v3924 = vld [vmem:[%s3923] ss:$2 sm:$0xff]
      %s3925 = scalar_lea.vmem [#allocation4], 224
      %v3926 = vld [vmem:[%s3925] ss:$2 sm:$0xff]
      %s3927 = scalar_lea.vmem [#allocation4], 1
      %v3928 = vld [vmem:[%s3927] ss:$2 sm:$0xff]
      %s3929 = scalar_lea.vmem [#allocation4], 33
      %v3930 = vld [vmem:[%s3929] ss:$2 sm:$0xff]
      %s3931 = scalar_lea.vmem [#allocation4], 65
      %v3932 = vld [vmem:[%s3931] ss:$2 sm:$0xff]
      %s3933 = scalar_lea.vmem [#allocation4], 97
      %v3934 = vld [vmem:[%s3933] ss:$2 sm:$0xff]
      %s3935 = scalar_lea.vmem [#allocation4], 129
      %v3936 = vld [vmem:[%s3935] ss:$2 sm:$0xff]
      %s3937 = scalar_lea.vmem [#allocation4], 161
      %v3938 = vld [vmem:[%s3937] ss:$2 sm:$0xff]
      %s3939 = scalar_lea.vmem [#allocation4], 193
      %v3940 = vld [vmem:[%s3939] ss:$2 sm:$0xff]
      %s3941 = scalar_lea.vmem [#allocation4], 225
      %v3942 = vld [vmem:[%s3941] ss:$2 sm:$0xff]
      %s3943 = scalar_lea.vmem [#allocation4], 16
      %v3944 = vld [vmem:[%s3943] ss:$2 sm:$0xff]
      %s3945 = scalar_lea.vmem %s3943, 32 [#allocation4]
      %v3946 = vld [vmem:[%s3945] ss:$2 sm:$0xff]
      %s3947 = scalar_lea.vmem %s3943, 64 [#allocation4]
      %v3948 = vld [vmem:[%s3947] ss:$2 sm:$0xff]
      %s3949 = scalar_lea.vmem %s3943, 96 [#allocation4]
      %v3950 = vld [vmem:[%s3949] ss:$2 sm:$0xff]
      %s3951 = scalar_lea.vmem %s3943, 128 [#allocation4]
      %v3952 = vld [vmem:[%s3951] ss:$2 sm:$0xff]
      %s3953 = scalar_lea.vmem %s3943, 160 [#allocation4]
      %v3954 = vld [vmem:[%s3953] ss:$2 sm:$0xff]
      %s3955 = scalar_lea.vmem %s3943, 192 [#allocation4]
      %v3956 = vld [vmem:[%s3955] ss:$2 sm:$0xff]
      %s3957 = scalar_lea.vmem %s3943, 224 [#allocation4]
      %v3958 = vld [vmem:[%s3957] ss:$2 sm:$0xff]
      %s3959 = scalar_lea.vmem %s3943, 1 [#allocation4]
      %v3960 = vld [vmem:[%s3959] ss:$2 sm:$0xff]
      %s3961 = scalar_lea.vmem %s3943, 33 [#allocation4]
      %v3962 = vld [vmem:[%s3961] ss:$2 sm:$0xff]
      %s3963 = scalar_lea.vmem %s3943, 65 [#allocation4]
      %v3964 = vld [vmem:[%s3963] ss:$2 sm:$0xff]
      %s3965 = scalar_lea.vmem %s3943, 97 [#allocation4]
      %v3966 = vld [vmem:[%s3965] ss:$2 sm:$0xff]
      %s3967 = scalar_lea.vmem %s3943, 129 [#allocation4]
      %v3968 = vld [vmem:[%s3967] ss:$2 sm:$0xff]
      %s3969 = scalar_lea.vmem %s3943, 161 [#allocation4]
      %v3970 = vld [vmem:[%s3969] ss:$2 sm:$0xff]
      %s3971 = scalar_lea.vmem %s3943, 193 [#allocation4]
      %v3972 = vld [vmem:[%s3971] ss:$2 sm:$0xff]
      %s3973 = scalar_lea.vmem %s3943, 225 [#allocation4]
      %v3974 = vld [vmem:[%s3973] ss:$2 sm:$0xff]
      %v3975 = vmax.f32 %v3912, %v3928
      %v3976 = vmax.f32 %v3914, %v3930
      %v3977 = vmax.f32 %v3916, %v3932
      %v3978 = vmax.f32 %v3918, %v3934
      %v3979 = vmax.f32 %v3920, %v3936
      %v3980 = vmax.f32 %v3922, %v3938
      %v3981 = vmax.f32 %v3924, %v3940
      %v3982 = vmax.f32 %v3926, %v3942
      %v3983 = vmax.f32 %v3944, %v3960
      %v3984 = vmax.f32 %v3946, %v3962
      %v3985 = vmax.f32 %v3948, %v3964
      %v3986 = vmax.f32 %v3950, %v3966
      %v3987 = vmax.f32 %v3952, %v3968
      %v3988 = vmax.f32 %v3954, %v3970
      %v3989 = vmax.f32 %v3956, %v3972
      %v3990 = vmax.f32 %v3958, %v3974
      %v3991 = vmax.f32 %v3975, %v3983
      %v3992 = vmax.f32 %v3976, %v3984
      %v3993 = vmax.f32 %v3977, %v3985
      %v3994 = vmax.f32 %v3978, %v3986
      %v3995 = vmax.f32 %v3979, %v3987
      %v3996 = vmax.f32 %v3980, %v3988
      %v3997 = vmax.f32 %v3981, %v3989
      %v3998 = vmax.f32 %v3982, %v3990
      %v3999 = vpack.c.bf16 %v3991, %v3991
      %v4000 = vpack.c.bf16 %v3992, %v3992
      %v4001 = vpack.c.bf16 %v3993, %v3993
      %v4002 = vpack.c.bf16 %v3994, %v3994
      %v4003 = vpack.c.bf16 %v3995, %v3995
      %v4004 = vpack.c.bf16 %v3996, %v3996
      %v4005 = vpack.c.bf16 %v3997, %v3997
      %v4006 = vpack.c.bf16 %v3998, %v3998
      %vm4007 = vcmask 125952
      %4008 = vst.msk [vmem:[%s197] sm:$0xf] %vm4007, %v3999
      %4009 = vst.msk [vmem:[%s197 + $0x4] sm:$0xf] %vm4007, %v4000
      %4010 = vst.msk [vmem:[%s197 + $0x8] sm:$0xf] %vm4007, %v4001
      %4011 = vst.msk [vmem:[%s197 + $0xc] sm:$0xf] %vm4007, %v4002
      %4012 = vst.msk [vmem:[%s197 + $0x10] sm:$0xf] %vm4007, %v4003
      %4013 = vst.msk [vmem:[%s197 + $0x14] sm:$0xf] %vm4007, %v4004
      %4014 = vst.msk [vmem:[%s197 + $0x18] sm:$0xf] %vm4007, %v4005
      %4015 = vst.msk [vmem:[%s197 + $0x1c] sm:$0xf] %vm4007, %v4006
      %p4016 = scmp.lt.s32.totalorder %s15, 1
      %s4017 = scalar_select %p4016, %s15, 1
      %s4018 = smul.addr %s4017, 8
      %s4019 = smul.addr %s4018, 4
      %s4020 = scalar_lea.vmem %s4, %s4019
      // Predicated region
      $region37: #{net_forward.3} parent=35 // pred_check
        %p4021 = pneg %p122
      $region38: #{net_forward.3} parent=35 // pred_check_branch
        %4023 = sbr.rel (%p4021) target = $region40
      $region39: #{net_forward.3} parent=35 // pred_region
        _
      $region40: #{net_forward.3} parent=35 // pred_fallthru
        _
    $region36: #{net_forward.3} parent=5 // pred_fallthru
      _
    %p4024 = scmp.le.s32.totalorder 2, %s10
    // Predicated region
    $region41: #{net_forward.3} parent=5 // pred_check
      %p4025 = pneg %p4024
    $region42: #{net_forward.3} parent=5 // pred_check_branch
      %4027 = sbr.rel (%p4025) target = $region44
    $region43: #{net_forward.3} parent=5 // pred_region
      %s4028 = ssub.s32 %s10, 2
      // Predicated region
      $region45: #{net_forward.3} parent=43 // pred_check
        %p4029 = pneg %p128
      $region46: #{net_forward.3} parent=43 // pred_check_branch
        %4031 = sbr.rel (%p4029) target = $region48
      $region47: #{net_forward.3} parent=43 // pred_region
        %p4032 = scmp.lt.s32.totalorder %s16, 1
        %s4033 = scalar_select %p4032, %s16, 1
        %s4034 = smul.addr %s4033, 8
        %s4035 = smul.addr %s4034, 4
        %s4036 = scalar_lea.vmem %s4, %s4035
      $region48: #{net_forward.3} parent=43 // pred_fallthru
        _
    $region44: #{net_forward.3} parent=5 // pred_fallthru
      _
  $region6: #{net_forward.3} parent=0 // loop_footer
    %s14 = sadd.s32 1, %s10
  $region7: #{net_forward.3} parent=0 // loop_footer_branch
    %9 = sbr.rel target = $region3
  $region8: #{net_forward.3} parent=0 // loop_exit
    _

</llo_original>
